<compile_context>
chip_gen: v7x
topology: tpu7x:2x2x1
jax: 0.10.0
libtpu: 0.0.40
codegen_flags: <defaults>
</compile_context>

<pallas_src>
import functools

import jax
import jax.numpy as jnp
import numpy as np
from jax import lax
from jax.experimental import pallas as pl
from jax.experimental.pallas import tpu as pltpu

EPS = 1e-5
LANE = 128                      # pad channel dims to multiples of this
MXU_DTYPE = jnp.bfloat16        # matmul operand dtype (accumulation stays f32)
ACT_DTYPE = jnp.bfloat16        # stored intermediate activations
_BN_TILE = 1024                 # row tile for the BatchNorm normalize pass
_VMEM_LIMIT = 32 * 1024 * 1024


def _round_up(x, m):
    return (x + m - 1) // m * m


def _cdiv(a, b):
    return (a + b - 1) // b


# ----------------------------- conv kernel -----------------------------

def _conv_kernel(*refs, tm, tin, taps, cin_p, has_res):
    """One (Cout-tile, row-tile) step of a stride-1 KxK conv, with optional
    residual add and BatchNorm partial statistics fused into the epilogue.

    The flattened, spatially padded activation stays in HBM; every step DMAs a
    halo'd row window (double-buffered across steps so the fetch hides behind
    the matmul) and lays the KH*KW taps side by side in VMEM so the whole conv
    is a single deep-K MXU contraction (one output store per block).
    """
    if has_res:
        x_hbm, w_ref, mask_ref, r_ref, y_ref, st_ref, buf0, buf1, xk, sem = refs
    else:
        x_hbm, w_ref, mask_ref, y_ref, st_ref, buf0, buf1, xk, sem = refs
        r_ref = None
    bufs = (buf0, buf1)

    n = pl.program_id(0)            # Cout tile (outer: weight tile stays resident)
    m = pl.program_id(1)            # row tile (inner)
    num_n = pl.num_programs(0)
    num_m = pl.num_programs(1)
    step = n * num_m + m

    def start_fetch(mi, slot):
        row0 = pl.multiple_of(mi * tm, 8)
        pltpu.make_async_copy(x_hbm.at[pl.ds(row0, tin)], bufs[slot],
                              sem.at[slot]).start()

    # Prime the double buffer on the very first grid step.
    @pl.when(step == 0)
    def _():
        start_fetch(0, 0)

    def process(slot):
        # Prefetch the next step's activation window into the other slot.
        @pl.when(jnp.logical_or(m + 1 < num_m, n + 1 < num_n))
        def _():
            start_fetch(jnp.where(m + 1 < num_m, m + 1, 0), 1 - slot)
        # Wait for this step's window, then build the deep-K LHS:
        # xk[:, t*Cin:(t+1)*Cin] = window rows shifted by tap offset t.
        row0 = pl.multiple_of(m * tm, 8)
        pltpu.make_async_copy(x_hbm.at[pl.ds(row0, tin)], bufs[slot],
                              sem.at[slot]).wait()
        for t, off in enumerate(taps):
            xk[:, t * cin_p:(t + 1) * cin_p] = bufs[slot][pl.ds(off, tm), :]

    @pl.when(step % 2 == 0)
    def _():
        process(0)

    @pl.when(step % 2 == 1)
    def _():
        process(1)

    # Single deep-K contraction over (taps x Cin); f32 accumulation on the MXU.
    acc = jnp.dot(xk[...], w_ref[...], preferred_element_type=jnp.float32)
    if r_ref is not None:
        acc = acc + r_ref[...].astype(jnp.float32)

    # Fused BatchNorm partial statistics over the valid output rows only.
    xm = acc * mask_ref[...]
    s = jnp.sum(xm, axis=0, keepdims=True)
    sq = jnp.sum(xm * xm, axis=0, keepdims=True)
    st_ref[...] = jnp.concatenate([s, sq], axis=0)[None]

    y_ref[...] = acc.astype(y_ref.dtype)


def conv2d_stats(x_pad, w_taps, ksize, hout, wout, residual=None):
    """Stride-1 `ksize` x `ksize` conv over a spatially pre-padded NHWC input,
    with an optional residual add and BN partial statistics fused in.

    x_pad   : (N, Hd, Wd, cin_p) activation, channels padded to LANE.
    w_taps  : (ksize*ksize, cin_p, cout_p) tap-major (i-major, j-minor) weights.
    residual: optional (N, hout, wout, cout_p) added before stats / store.
    Returns (y_dense (num_m*tm, cout_p) ACT_DTYPE  - flattened dense grid,
             stats   (num_m, 2, cout_p) f32        - per-tile [sum, sum_sq]
             over the valid hout x wout output region).
    """
    N, Hd, Wd, cin_p = x_pad.shape
    T, wc, cout_p = w_taps.shape
    assert T == ksize * ksize and wc == cin_p
    M = N * Hd * Wd
    taps = tuple(i * Wd + j for i in range(ksize) for j in range(ksize))
    halo = taps[-1]

    tm = 256 if M > 256 else _round_up(M, 8)            # row tile
    num_m = _cdiv(M, tm)
    tn = 256 if cout_p % 256 == 0 else 128              # lane-dense Cout tile
    num_n = cout_p // tn
    tin = _round_up(tm + halo, 8)                       # rows per DMA window
    rows = (num_m - 1) * tm + tin                       # flat rows incl. halo

    x_flat = jnp.pad(x_pad.reshape(M, cin_p).astype(MXU_DTYPE),
                     ((0, rows - M), (0, 0)))
    w_k = w_taps.astype(MXU_DTYPE).reshape(T * cin_p, cout_p)

    # Valid-output-row mask (rows outside hout x wout, and the row padding,
    # contribute nothing to the BN statistics).
    hw_valid = (jnp.arange(Hd)[:, None] < hout) & (jnp.arange(Wd)[None, :] < wout)
    mask = jnp.broadcast_to(hw_valid[None], (N, Hd, Wd))
    mask = jnp.pad(mask.reshape(M, 1).astype(jnp.float32),
                   ((0, num_m * tm - M), (0, 0)))

    inputs = [x_flat, w_k, mask]
    in_specs = [
        pl.BlockSpec(memory_space=pl.ANY),                    # activation in HBM
        pl.BlockSpec((T * cin_p, tn), lambda n, m: (0, n)),   # resident per Cout tile
        pl.BlockSpec((tm, 1), lambda n, m: (m, 0)),
    ]
    if residual is not None:
        res = jnp.pad(residual.astype(ACT_DTYPE),
                      ((0, 0), (0, Hd - hout), (0, Wd - wout), (0, 0)))
        res = jnp.pad(res.reshape(M, cout_p), ((0, num_m * tm - M), (0, 0)))
        inputs.append(res)
        in_specs.append(pl.BlockSpec((tm, tn), lambda n, m: (m, n)))

    kernel = functools.partial(_conv_kernel, tm=tm, tin=tin, taps=taps,
                               cin_p=cin_p, has_res=residual is not None)
    y, stats = pl.pallas_call(
        kernel,
        out_shape=(jax.ShapeDtypeStruct((num_m * tm, cout_p), ACT_DTYPE),
                   jax.ShapeDtypeStruct((num_m, 2, cout_p), jnp.float32)),
        grid_spec=pltpu.PrefetchScalarGridSpec(
            num_scalar_prefetch=0,
            grid=(num_n, num_m),
            in_specs=in_specs,
            out_specs=(pl.BlockSpec((tm, tn), lambda n, m: (m, n)),
                       pl.BlockSpec((1, 2, tn), lambda n, m: (m, 0, n))),
            scratch_shapes=[
                pltpu.VMEM((tin, cin_p), MXU_DTYPE),          # window buffer A
                pltpu.VMEM((tin, cin_p), MXU_DTYPE),          # window buffer B
                pltpu.VMEM((tm, T * cin_p), MXU_DTYPE),       # deep-K LHS
                pltpu.SemaphoreType.DMA((2,)),
            ]),
        # The manual double-buffered DMA chains grid steps sequentially, so
        # both axes must stay "arbitrary".
        compiler_params=pltpu.CompilerParams(
            dimension_semantics=("arbitrary", "arbitrary"),
            vmem_limit_bytes=_VMEM_LIMIT),
    )(*inputs)
    return y, stats


# ----------------------------- BatchNorm + ReLU -----------------------------

def bn_finalize(stats, count):
    """Training-mode batch stats (biased variance) from per-tile partials."""
    tot = jnp.sum(stats, axis=0)                        # (2, C) f32
    mean = tot[0] / count
    var = jnp.maximum(tot[1] / count - mean * mean, 0.0)
    rstd = lax.rsqrt(var + EPS)
    return mean[None, :], rstd[None, :]


def _bn_norm_kernel(mean_ref, rstd_ref, x_ref, o_ref):
    x = x_ref[...].astype(jnp.float32)
    o_ref[...] = jnp.maximum((x - mean_ref[...]) * rstd_ref[...],
                             0.0).astype(o_ref.dtype)


def bn_relu_apply(y_flat, mean, rstd, out_dtype):
    """relu((y - mean) * rstd), tiled over rows (math in f32)."""
    Mp, C = y_flat.shape
    tbn = min(Mp, _BN_TILE)
    while Mp % tbn:                                     # Mp is a multiple of 8
        tbn -= 8
    tile = pl.BlockSpec((tbn, C), lambda i: (i, 0))
    vec = pl.BlockSpec((1, C), lambda i: (0, 0))
    return pl.pallas_call(
        _bn_norm_kernel,
        out_shape=jax.ShapeDtypeStruct((Mp, C), out_dtype),
        grid_spec=pltpu.PrefetchScalarGridSpec(
            num_scalar_prefetch=0,
            grid=(Mp // tbn,),
            in_specs=[vec, vec, tile],
            out_specs=tile),
        compiler_params=pltpu.CompilerParams(
            dimension_semantics=("parallel",),
            vmem_limit_bytes=_VMEM_LIMIT),
    )(mean, rstd, y_flat)


# ----------------------------- parameter plumbing -----------------------------

def _pad_channels(x, mult=LANE):
    c = x.shape[-1]
    cp = _round_up(c, mult)
    if cp == c:
        return x
    return jnp.pad(x, [(0, 0)] * (x.ndim - 1) + [(0, cp - c)])


def _prep_weight_taps(w_hwio, mult=LANE):
    KH, KW, cin, cout = w_hwio.shape
    cin_p, cout_p = _round_up(cin, mult), _round_up(cout, mult)
    w = jnp.pad(w_hwio, ((0, 0), (0, 0), (0, cin_p - cin), (0, cout_p - cout)))
    return w.reshape(KH * KW, cin_p, cout_p)            # tap-major (i-major, j-minor)


def _phase_decompose(x, w, pad):
    """Rewrite a stride-2 KxK conv as a stride-1 ceil(K/2)-tap conv over a
    phase-stacked (4*cin channel) image, so only the strided output positions
    are ever computed (no dense-compute-then-subsample waste)."""
    N, H, W, cin = x.shape
    KH, KW, _, cout = w.shape
    kd = (KH + 1) // 2
    Hp, Wp = H + 2 * pad, W + 2 * pad
    He, We = _round_up(Hp, 2), _round_up(Wp, 2)
    xs = jnp.pad(x, ((0, 0), (pad, pad + He - Hp), (pad, pad + We - Wp), (0, 0)))
    xs = xs.reshape(N, He // 2, 2, We // 2, 2, cin)
    x_ph = jnp.transpose(xs, (0, 1, 3, 2, 4, 5)).reshape(N, He // 2, We // 2, 4 * cin)

    w_ph = jnp.zeros((kd, kd, 4 * cin, cout), w.dtype)
    for di in range(kd):
        for dj in range(kd):
            for pi in range(2):
                for pj in range(2):
                    i, j = 2 * di + pi, 2 * dj + pj
                    if i < KH and j < KW:
                        q = 2 * pi + pj
                        w_ph = w_ph.at[di, dj, q * cin:(q + 1) * cin, :].set(w[i, j])
    return _pad_channels(x_ph), _prep_weight_taps(w_ph), kd


def init_params(key, downsample, in_channels, out_channels, kernel_size=3):
    k1, k2, k3 = jax.random.split(key, 3)
    s1 = 1.0 / np.sqrt(in_channels * kernel_size * kernel_size)
    s2 = 1.0 / np.sqrt(out_channels * kernel_size * kernel_size)
    params = {
        "w1": jax.random.uniform(
            k1, (kernel_size, kernel_size, in_channels, out_channels),
            jnp.float32, -s1, s1),
        "w2": jax.random.uniform(
            k2, (kernel_size, kernel_size, out_channels, out_channels),
            jnp.float32, -s2, s2),
    }
    if downsample:
        sd = 1.0 / np.sqrt(in_channels)
        params["w_ds"] = jax.random.uniform(
            k3, (1, 1, in_channels, out_channels), jnp.float32, -sd, sd)
    return params


# ----------------------------- ResidualBlock forward -----------------------------

def residual_block_forward(x_nchw, params, downsample, kernel_size=3):
    k = kernel_size
    pad = k // 2
    x = jnp.transpose(x_nchw, (0, 2, 3, 1)).astype(jnp.float32)   # NCHW -> NHWC
    N, H, W, cin = x.shape
    cout = params["w1"].shape[-1]
    cout_p = _round_up(cout, LANE)

    stride1 = 2 if downsample else 1
    Hout = (H + 2 * pad - k) // stride1 + 1
    Wout = (W + 2 * pad - k) // stride1 + 1

    # ---- conv1 (+ fused BN1 partial stats) ----
    if downsample:
        x1, w1_taps, k1 = _phase_decompose(x, params["w1"], pad)
    else:
        x1 = jnp.pad(_pad_channels(x), ((0, 0), (pad, pad), (pad, pad), (0, 0)))
        w1_taps = _prep_weight_taps(params["w1"])
        k1 = k
    x1 = x1.astype(ACT_DTYPE)
    Hd1, Wd1 = x1.shape[1], x1.shape[2]
    y1_flat, st1 = conv2d_stats(x1, w1_taps, k1, Hout, Wout)
    mean1, rstd1 = bn_finalize(st1, N * Hout * Wout)
    y1n_flat = bn_relu_apply(y1_flat, mean1, rstd1, ACT_DTYPE)
    y1n = y1n_flat[:N * Hd1 * Wd1].reshape(N, Hd1, Wd1, cout_p)[:, :Hout, :Wout, :]

    # ---- residual path ----
    if downsample:
        xr_in = _pad_channels(x[:, ::2, ::2, :]).astype(ACT_DTYPE)  # 1x1 stride-2
        xr_flat, _ = conv2d_stats(xr_in, _prep_weight_taps(params["w_ds"]), 1,
                                  Hout, Wout)
        Hr, Wr = xr_in.shape[1], xr_in.shape[2]
        xr = xr_flat[:N * Hr * Wr].reshape(N, Hr, Wr, cout_p)[:, :Hout, :Wout, :]
    else:
        assert cin == cout, "identity residual path needs in_channels == out_channels"
        xr = _pad_channels(x).astype(ACT_DTYPE)

    # ---- conv2 (+ fused residual add + BN2 partial stats) ----
    y1p = jnp.pad(y1n, ((0, 0), (pad, pad), (pad, pad), (0, 0)))
    Hd2, Wd2 = y1p.shape[1], y1p.shape[2]
    y2_flat, st2 = conv2d_stats(y1p, _prep_weight_taps(params["w2"]), k,
                                Hout, Wout, residual=xr)
    mean2, rstd2 = bn_finalize(st2, N * Hout * Wout)
    out_flat = bn_relu_apply(y2_flat, mean2, rstd2, jnp.float32)
    out = out_flat[:N * Hd2 * Wd2].reshape(N, Hd2, Wd2, cout_p)
    out = out[:, :Hout, :Wout, :cout]                             # strip padding
    return jnp.transpose(out, (0, 3, 1, 2))                       # NHWC -> NCHW


# ----------------------------- pure-JAX reference -----------------------------

def _ref_conv(x, w, stride, pad):
    return jax.lax.conv_general_dilated(
        x, w, (stride, stride), [(pad, pad), (pad, pad)],
        dimension_numbers=("NHWC", "HWIO", "NHWC"),
        precision=jax.lax.Precision.HIGHEST)


def _ref_bn_relu(x):
    mean = jnp.mean(x, axis=(0, 1, 2), keepdims=True)
    var = jnp.mean(jnp.square(x - mean), axis=(0, 1, 2), keepdims=True)
    return jnp.maximum((x - mean) * jax.lax.rsqrt(var + EPS), 0.0)


def reference_forward(x_nchw, params, downsample, kernel_size=3):
    pad = kernel_size // 2
    stride1 = 2 if downsample else 1
    x = jnp.transpose(x_nchw, (0, 2, 3, 1))
    y = _ref_bn_relu(_ref_conv(x, params["w1"], stride1, pad))
    y = _ref_conv(y, params["w2"], 1, pad)
    xr = _ref_conv(x, params["w_ds"], 2, 0) if downsample else x
    return jnp.transpose(_ref_bn_relu(xr + y), (0, 3, 1, 2))


if __name__ == "__main__":
    key = jax.random.PRNGKey(0)
    kx, kp, kp2 = jax.random.split(key, 3)

    # Downsample block: (2, 4, 16, 16) -> (2, 8, 8, 8)
    N, Cin, H, W = 2, 4, 16, 16
    Cout = 8
    x = jax.random.normal(kx, (N, Cin, H, W), jnp.float32)
    params = init_params(kp, True, Cin, Cout, kernel_size=3)
    fwd_ds = jax.jit(functools.partial(residual_block_forward, downsample=True))
    out = jax.block_until_ready(fwd_ds(x, params))
    ref = reference_forward(x, params, True)
    np.testing.assert_allclose(np.asarray(out), np.asarray(ref),
                               atol=3e-2, rtol=3e-2)

    # Identity block: (2, 8, 16, 16) -> (2, 8, 16, 16)
    params2 = init_params(kp2, False, Cout, Cout, kernel_size=3)
    x2 = jax.random.normal(kx, (N, Cout, H, W), jnp.float32)
    fwd_id = jax.jit(functools.partial(residual_block_forward, downsample=False))
    out2 = jax.block_until_ready(fwd_id(x2, params2))
    ref2 = reference_forward(x2, params2, False)
    np.testing.assert_allclose(np.asarray(out2), np.asarray(ref2),
                               atol=3e-2, rtol=3e-2)

    print("KERNEL_OK")
</pallas_src>

<mosaic_0001>
module attributes {stable_mosaic.version = 11 : i64} {
  func.func @_conv_kernel(%arg0: i32, %arg1: i32, %arg2: memref<184x128xbf16, #tpu.memory_space<any>>, %arg3: memref<512x128xbf16, #tpu.memory_space<vmem>>, %arg4: memref<168x1xf32, #tpu.memory_space<vmem>>, %arg5: memref<168x128xbf16, #tpu.memory_space<vmem>>, %arg6: memref<1x2x128xf32, #tpu.memory_space<vmem>>, %arg7: memref<184x128xbf16, #tpu.memory_space<vmem>>, %arg8: memref<184x128xbf16, #tpu.memory_space<vmem>>, %arg9: memref<168x512xbf16, #tpu.memory_space<vmem>>, %arg10: memref<2x!tpu.dma_semaphore, #tpu.memory_space<semaphore_mem>>) attributes {dimension_semantics = [#tpu.dimension_semantics<arbitrary>, #tpu.dimension_semantics<arbitrary>], iteration_bounds = array<i64: 1, 1>, scalar_prefetch = 0 : i64, scratch_operands = 4 : i64, tpu.core_type = #tpu.core_type<tc>, window_params = [{}, {transform_indices = @transform_1, window_bounds = array<i64: 512, 128>}, {transform_indices = @transform_2, window_bounds = array<i64: 168, 1>}, {transform_indices = @transform_3, window_bounds = array<i64: 168, 128>}, {transform_indices = @transform_4, window_bounds = array<i64: 1, 2, 128>}]} {
    %c1_i32 = arith.constant 1 : i32
    %0 = arith.muli %arg0, %c1_i32 : i32
    %1 = arith.addi %0, %arg1 : i32
    %c0_i32 = arith.constant 0 : i32
    %2 = arith.cmpi eq, %1, %c0_i32 : i32
    %3 = arith.extui %2 : i1 to i32
    %c0_i32_0 = arith.constant 0 : i32
    %4 = arith.cmpi ne, %3, %c0_i32_0 : i32
    scf.if %4 {
      %c0_i32_28 = arith.constant 0 : i32
      %47 = tpu.assume_multiple %c0_i32_28, 8 : i32
      %c0_i32_29 = arith.constant 0 : i32
      %c0_i32_30 = arith.constant 0 : i32
      %48 = tpu.memref_slice %arg2[%47, %c0_i32_30] : memref<184x128xbf16, #tpu.memory_space<any>> -> memref<184x128xbf16, #tpu.memory_space<any>>
      %49 = tpu.memref_slice %arg10[%c0_i32_29] : memref<2x!tpu.dma_semaphore, #tpu.memory_space<semaphore_mem>> -> memref<1x!tpu.dma_semaphore, #tpu.memory_space<semaphore_mem>>
      %50 = tpu.memref_squeeze %49 : memref<1x!tpu.dma_semaphore, #tpu.memory_space<semaphore_mem>> -> memref<!tpu.dma_semaphore, #tpu.memory_space<semaphore_mem>>
      tpu.enqueue_dma source(%48 : memref<184x128xbf16, #tpu.memory_space<any>>) target(%arg7 : memref<184x128xbf16, #tpu.memory_space<vmem>>) target_semaphore(%50 : memref<!tpu.dma_semaphore, #tpu.memory_space<semaphore_mem>>)
    } else {
    }
    %c2_i32 = arith.constant 2 : i32
    %c0_i32_1 = arith.constant 0 : i32
    %5 = arith.cmpi eq, %c2_i32, %c0_i32_1 : i32
    %c1_i32_2 = arith.constant 1 : i32
    %6 = arith.select %5, %c1_i32_2, %c2_i32 : i32
    %7 = arith.remsi %1, %6 : i32
    %c0_i32_3 = arith.constant 0 : i32
    %8 = arith.cmpi ne, %7, %c0_i32_3 : i32
    %c0_i32_4 = arith.constant 0 : i32
    %9 = arith.cmpi slt, %7, %c0_i32_4 : i32
    %c0_i32_5 = arith.constant 0 : i32
    %10 = arith.cmpi slt, %6, %c0_i32_5 : i32
    %11 = arith.xori %9, %10 : i1
    %12 = arith.andi %11, %8 : i1
    %13 = arith.addi %7, %6 : i32
    %14 = arith.select %12, %13, %7 : i32
    %c0_i32_6 = arith.constant 0 : i32
    %15 = arith.cmpi eq, %14, %c0_i32_6 : i32
    %16 = arith.extui %15 : i1 to i32
    %c0_i32_7 = arith.constant 0 : i32
    %17 = arith.cmpi ne, %16, %c0_i32_7 : i32
    scf.if %17 {
      %c1_i32_28 = arith.constant 1 : i32
      %47 = arith.addi %arg1, %c1_i32_28 : i32
      %c1_i32_29 = arith.constant 1 : i32
      %48 = arith.cmpi slt, %47, %c1_i32_29 : i32
      %c1_i32_30 = arith.constant 1 : i32
      %49 = arith.addi %arg0, %c1_i32_30 : i32
      %c1_i32_31 = arith.constant 1 : i32
      %50 = arith.cmpi slt, %49, %c1_i32_31 : i32
      %51 = arith.ori %48, %50 : i1
      %52 = arith.extui %51 : i1 to i32
      %c0_i32_32 = arith.constant 0 : i32
      %53 = arith.cmpi ne, %52, %c0_i32_32 : i32
      scf.if %53 {
        %c1_i32_45 = arith.constant 1 : i32
        %67 = arith.addi %arg1, %c1_i32_45 : i32
        %c1_i32_46 = arith.constant 1 : i32
        %68 = arith.cmpi slt, %67, %c1_i32_46 : i32
        %c1_i32_47 = arith.constant 1 : i32
        %69 = arith.addi %arg1, %c1_i32_47 : i32
        %c0_i32_48 = arith.constant 0 : i32
        %70 = arith.select %68, %69, %c0_i32_48 : i32
        %c168_i32_49 = arith.constant 168 : i32
        %71 = arith.muli %70, %c168_i32_49 : i32
        %72 = tpu.assume_multiple %71, 8 : i32
        %c1_i32_50 = arith.constant 1 : i32
        %c0_i32_51 = arith.constant 0 : i32
        %73 = tpu.memref_slice %arg2[%72, %c0_i32_51] : memref<184x128xbf16, #tpu.memory_space<any>> -> memref<184x128xbf16, #tpu.memory_space<any>>
        %74 = tpu.memref_slice %arg10[%c1_i32_50] : memref<2x!tpu.dma_semaphore, #tpu.memory_space<semaphore_mem>> -> memref<1x!tpu.dma_semaphore, #tpu.memory_space<semaphore_mem>>
        %75 = tpu.memref_squeeze %74 : memref<1x!tpu.dma_semaphore, #tpu.memory_space<semaphore_mem>> -> memref<!tpu.dma_semaphore, #tpu.memory_space<semaphore_mem>>
        tpu.enqueue_dma source(%73 : memref<184x128xbf16, #tpu.memory_space<any>>) target(%arg8 : memref<184x128xbf16, #tpu.memory_space<vmem>>) target_semaphore(%75 : memref<!tpu.dma_semaphore, #tpu.memory_space<semaphore_mem>>)
      } else {
      }
      %c168_i32 = arith.constant 168 : i32
      %54 = arith.muli %arg1, %c168_i32 : i32
      %55 = tpu.assume_multiple %54, 8 : i32
      %c0_i32_33 = arith.constant 0 : i32
      %c0_i32_34 = arith.constant 0 : i32
      %56 = tpu.memref_slice %arg2[%55, %c0_i32_34] : memref<184x128xbf16, #tpu.memory_space<any>> -> memref<184x128xbf16, #tpu.memory_space<any>>
      %57 = tpu.memref_slice %arg10[%c0_i32_33] : memref<2x!tpu.dma_semaphore, #tpu.memory_space<semaphore_mem>> -> memref<1x!tpu.dma_semaphore, #tpu.memory_space<semaphore_mem>>
      %58 = tpu.memref_squeeze %57 : memref<1x!tpu.dma_semaphore, #tpu.memory_space<semaphore_mem>> -> memref<!tpu.dma_semaphore, #tpu.memory_space<semaphore_mem>>
      tpu.wait_dma2 semaphore(%58 : memref<!tpu.dma_semaphore, #tpu.memory_space<semaphore_mem>>) src(%56 : memref<184x128xbf16, #tpu.memory_space<any>>) dst(%arg7 : memref<184x128xbf16, #tpu.memory_space<vmem>>)
      %c0_35 = arith.constant 0 : index
      %c0_36 = arith.constant 0 : index
      %59 = vector.load %arg7[%c0_35, %c0_36] : memref<184x128xbf16, #tpu.memory_space<vmem>>, vector<168x128xbf16>
      %c0_37 = arith.constant 0 : index
      %c0_38 = arith.constant 0 : index
      %60 = vector.load %arg9[%c0_37, %c0_38] : memref<168x512xbf16, #tpu.memory_space<vmem>>, vector<168x128xbf16>
      tpu.vector_store %arg9[%c0_37, %c0_38], %59 {strides = array<i32>} : memref<168x512xbf16, #tpu.memory_space<vmem>>, vector<168x128xbf16>,
      %c1 = arith.constant 1 : index
      %c0_39 = arith.constant 0 : index
      %61 = vector.load %arg7[%c1, %c0_39] : memref<184x128xbf16, #tpu.memory_space<vmem>>, vector<168x128xbf16>
      %c0_40 = arith.constant 0 : index
      %c128 = arith.constant 128 : index
      %62 = vector.load %arg9[%c0_40, %c128] : memref<168x512xbf16, #tpu.memory_space<vmem>>, vector<168x128xbf16>
      tpu.vector_store %arg9[%c0_40, %c128], %61 {strides = array<i32>} : memref<168x512xbf16, #tpu.memory_space<vmem>>, vector<168x128xbf16>,
      %c9 = arith.constant 9 : index
      %c0_41 = arith.constant 0 : index
      %63 = vector.load %arg7[%c9, %c0_41] : memref<184x128xbf16, #tpu.memory_space<vmem>>, vector<168x128xbf16>
      %c0_42 = arith.constant 0 : index
      %c256 = arith.constant 256 : index
      %64 = vector.load %arg9[%c0_42, %c256] : memref<168x512xbf16, #tpu.memory_space<vmem>>, vector<168x128xbf16>
      tpu.vector_store %arg9[%c0_42, %c256], %63 {strides = array<i32>} : memref<168x512xbf16, #tpu.memory_space<vmem>>, vector<168x128xbf16>,
      %c10 = arith.constant 10 : index
      %c0_43 = arith.constant 0 : index
      %65 = vector.load %arg7[%c10, %c0_43] : memref<184x128xbf16, #tpu.memory_space<vmem>>, vector<168x128xbf16>
      %c0_44 = arith.constant 0 : index
      %c384 = arith.constant 384 : index
      %66 = vector.load %arg9[%c0_44, %c384] : memref<168x512xbf16, #tpu.memory_space<vmem>>, vector<168x128xbf16>
      tpu.vector_store %arg9[%c0_44, %c384], %65 {strides = array<i32>} : memref<168x512xbf16, #tpu.memory_space<vmem>>, vector<168x128xbf16>,
    } else {
    }
    %c2_i32_8 = arith.constant 2 : i32
    %c0_i32_9 = arith.constant 0 : i32
    %18 = arith.cmpi eq, %c2_i32_8, %c0_i32_9 : i32
    %c1_i32_10 = arith.constant 1 : i32
    %19 = arith.select %18, %c1_i32_10, %c2_i32_8 : i32
    %20 = arith.remsi %1, %19 : i32
    %c0_i32_11 = arith.constant 0 : i32
    %21 = arith.cmpi ne, %20, %c0_i32_11 : i32
    %c0_i32_12 = arith.constant 0 : i32
    %22 = arith.cmpi slt, %20, %c0_i32_12 : i32
    %c0_i32_13 = arith.constant 0 : i32
    %23 = arith.cmpi slt, %19, %c0_i32_13 : i32
    %24 = arith.xori %22, %23 : i1
    %25 = arith.andi %24, %21 : i1
    %26 = arith.addi %20, %19 : i32
    %27 = arith.select %25, %26, %20 : i32
    %c1_i32_14 = arith.constant 1 : i32
    %28 = arith.cmpi eq, %27, %c1_i32_14 : i32
    %29 = arith.extui %28 : i1 to i32
    %c0_i32_15 = arith.constant 0 : i32
    %30 = arith.cmpi ne, %29, %c0_i32_15 : i32
    scf.if %30 {
      %c1_i32_28 = arith.constant 1 : i32
      %47 = arith.addi %arg1, %c1_i32_28 : i32
      %c1_i32_29 = arith.constant 1 : i32
      %48 = arith.cmpi slt, %47, %c1_i32_29 : i32
      %c1_i32_30 = arith.constant 1 : i32
      %49 = arith.addi %arg0, %c1_i32_30 : i32
      %c1_i32_31 = arith.constant 1 : i32
      %50 = arith.cmpi slt, %49, %c1_i32_31 : i32
      %51 = arith.ori %48, %50 : i1
      %52 = arith.extui %51 : i1 to i32
      %c0_i32_32 = arith.constant 0 : i32
      %53 = arith.cmpi ne, %52, %c0_i32_32 : i32
      scf.if %53 {
        %c1_i32_45 = arith.constant 1 : i32
        %67 = arith.addi %arg1, %c1_i32_45 : i32
        %c1_i32_46 = arith.constant 1 : i32
        %68 = arith.cmpi slt, %67, %c1_i32_46 : i32
        %c1_i32_47 = arith.constant 1 : i32
        %69 = arith.addi %arg1, %c1_i32_47 : i32
        %c0_i32_48 = arith.constant 0 : i32
        %70 = arith.select %68, %69, %c0_i32_48 : i32
        %c168_i32_49 = arith.constant 168 : i32
        %71 = arith.muli %70, %c168_i32_49 : i32
        %72 = tpu.assume_multiple %71, 8 : i32
        %c0_i32_50 = arith.constant 0 : i32
        %c0_i32_51 = arith.constant 0 : i32
        %73 = tpu.memref_slice %arg2[%72, %c0_i32_51] : memref<184x128xbf16, #tpu.memory_space<any>> -> memref<184x128xbf16, #tpu.memory_space<any>>
        %74 = tpu.memref_slice %arg10[%c0_i32_50] : memref<2x!tpu.dma_semaphore, #tpu.memory_space<semaphore_mem>> -> memref<1x!tpu.dma_semaphore, #tpu.memory_space<semaphore_mem>>
        %75 = tpu.memref_squeeze %74 : memref<1x!tpu.dma_semaphore, #tpu.memory_space<semaphore_mem>> -> memref<!tpu.dma_semaphore, #tpu.memory_space<semaphore_mem>>
        tpu.enqueue_dma source(%73 : memref<184x128xbf16, #tpu.memory_space<any>>) target(%arg7 : memref<184x128xbf16, #tpu.memory_space<vmem>>) target_semaphore(%75 : memref<!tpu.dma_semaphore, #tpu.memory_space<semaphore_mem>>)
      } else {
      }
      %c168_i32 = arith.constant 168 : i32
      %54 = arith.muli %arg1, %c168_i32 : i32
      %55 = tpu.assume_multiple %54, 8 : i32
      %c1_i32_33 = arith.constant 1 : i32
      %c0_i32_34 = arith.constant 0 : i32
      %56 = tpu.memref_slice %arg2[%55, %c0_i32_34] : memref<184x128xbf16, #tpu.memory_space<any>> -> memref<184x128xbf16, #tpu.memory_space<any>>
      %57 = tpu.memref_slice %arg10[%c1_i32_33] : memref<2x!tpu.dma_semaphore, #tpu.memory_space<semaphore_mem>> -> memref<1x!tpu.dma_semaphore, #tpu.memory_space<semaphore_mem>>
      %58 = tpu.memref_squeeze %57 : memref<1x!tpu.dma_semaphore, #tpu.memory_space<semaphore_mem>> -> memref<!tpu.dma_semaphore, #tpu.memory_space<semaphore_mem>>
      tpu.wait_dma2 semaphore(%58 : memref<!tpu.dma_semaphore, #tpu.memory_space<semaphore_mem>>) src(%56 : memref<184x128xbf16, #tpu.memory_space<any>>) dst(%arg8 : memref<184x128xbf16, #tpu.memory_space<vmem>>)
      %c0_35 = arith.constant 0 : index
      %c0_36 = arith.constant 0 : index
      %59 = vector.load %arg8[%c0_35, %c0_36] : memref<184x128xbf16, #tpu.memory_space<vmem>>, vector<168x128xbf16>
      %c0_37 = arith.constant 0 : index
      %c0_38 = arith.constant 0 : index
      %60 = vector.load %arg9[%c0_37, %c0_38] : memref<168x512xbf16, #tpu.memory_space<vmem>>, vector<168x128xbf16>
      tpu.vector_store %arg9[%c0_37, %c0_38], %59 {strides = array<i32>} : memref<168x512xbf16, #tpu.memory_space<vmem>>, vector<168x128xbf16>,
      %c1 = arith.constant 1 : index
      %c0_39 = arith.constant 0 : index
      %61 = vector.load %arg8[%c1, %c0_39] : memref<184x128xbf16, #tpu.memory_space<vmem>>, vector<168x128xbf16>
      %c0_40 = arith.constant 0 : index
      %c128 = arith.constant 128 : index
      %62 = vector.load %arg9[%c0_40, %c128] : memref<168x512xbf16, #tpu.memory_space<vmem>>, vector<168x128xbf16>
      tpu.vector_store %arg9[%c0_40, %c128], %61 {strides = array<i32>} : memref<168x512xbf16, #tpu.memory_space<vmem>>, vector<168x128xbf16>,
      %c9 = arith.constant 9 : index
      %c0_41 = arith.constant 0 : index
      %63 = vector.load %arg8[%c9, %c0_41] : memref<184x128xbf16, #tpu.memory_space<vmem>>, vector<168x128xbf16>
      %c0_42 = arith.constant 0 : index
      %c256 = arith.constant 256 : index
      %64 = vector.load %arg9[%c0_42, %c256] : memref<168x512xbf16, #tpu.memory_space<vmem>>, vector<168x128xbf16>
      tpu.vector_store %arg9[%c0_42, %c256], %63 {strides = array<i32>} : memref<168x512xbf16, #tpu.memory_space<vmem>>, vector<168x128xbf16>,
      %c10 = arith.constant 10 : index
      %c0_43 = arith.constant 0 : index
      %65 = vector.load %arg8[%c10, %c0_43] : memref<184x128xbf16, #tpu.memory_space<vmem>>, vector<168x128xbf16>
      %c0_44 = arith.constant 0 : index
      %c384 = arith.constant 384 : index
      %66 = vector.load %arg9[%c0_44, %c384] : memref<168x512xbf16, #tpu.memory_space<vmem>>, vector<168x128xbf16>
      tpu.vector_store %arg9[%c0_44, %c384], %65 {strides = array<i32>} : memref<168x512xbf16, #tpu.memory_space<vmem>>, vector<168x128xbf16>,
    } else {
    }
    %c0 = arith.constant 0 : index
    %c0_16 = arith.constant 0 : index
    %31 = vector.load %arg9[%c0, %c0_16] : memref<168x512xbf16, #tpu.memory_space<vmem>>, vector<168x512xbf16>
    %c0_17 = arith.constant 0 : index
    %c0_18 = arith.constant 0 : index
    %32 = vector.load %arg3[%c0_17, %c0_18] : memref<512x128xbf16, #tpu.memory_space<vmem>>, vector<512x128xbf16>
    %cst = arith.constant dense<0.000000e+00> : vector<168x128xf32>
    %33 = tpu.matmul %31, %32, %cst {dimension_numbers = #tpu.dot_dimension_numbers<[1], [0], [0], [1], [0, 0, 1, 1], [], []>} : vector<168x512xbf16>, vector<512x128xbf16>, vector<168x128xf32> -> vector<168x128xf32>
    %c0_19 = arith.constant 0 : index
    %c0_20 = arith.constant 0 : index
    %34 = vector.load %arg4[%c0_19, %c0_20] : memref<168x1xf32, #tpu.memory_space<vmem>>, vector<168x1xf32>
    %35 = vector.broadcast %34 : vector<168x1xf32> to vector<168x128xf32>
    %36 = arith.mulf %33, %35 : vector<168x128xf32>
    %cst_21 = arith.constant dense<0.000000e+00> : vector<128xf32>
    %37 = vector.multi_reduction <add>, %36, %cst_21 [0] : vector<168x128xf32> to vector<128xf32>
    %38 = vector.shape_cast %37 : vector<128xf32> to vector<1x128xf32>
    %39 = arith.mulf %36, %36 : vector<168x128xf32>
    %cst_22 = arith.constant dense<0.000000e+00> : vector<128xf32>
    %40 = vector.multi_reduction <add>, %39, %cst_22 [0] : vector<168x128xf32> to vector<128xf32>
    %41 = vector.shape_cast %40 : vector<128xf32> to vector<1x128xf32>
    %42 = tpu.concatenate %38, %41 in 0 : vector<1x128xf32>, vector<1x128xf32> -> vector<2x128xf32>
    %43 = vector.shape_cast %42 : vector<2x128xf32> to vector<1x2x128xf32>
    %c0_23 = arith.constant 0 : index
    %c0_24 = arith.constant 0 : index
    %c0_25 = arith.constant 0 : index
    %44 = vector.load %arg6[%c0_23, %c0_24, %c0_25] : memref<1x2x128xf32, #tpu.memory_space<vmem>>, vector<1x2x128xf32>
    tpu.vector_store %arg6[%c0_23, %c0_24, %c0_25], %43 {strides = array<i32>} : memref<1x2x128xf32, #tpu.memory_space<vmem>>, vector<1x2x128xf32>,
    %45 = arith.truncf %33 : vector<168x128xf32> to vector<168x128xbf16>
    %c0_26 = arith.constant 0 : index
    %c0_27 = arith.constant 0 : index
    %46 = vector.load %arg5[%c0_26, %c0_27] : memref<168x128xbf16, #tpu.memory_space<vmem>>, vector<168x128xbf16>
    tpu.vector_store %arg5[%c0_26, %c0_27], %45 {strides = array<i32>} : memref<168x128xbf16, #tpu.memory_space<vmem>>, vector<168x128xbf16>,
    return
  }
  func.func @transform_1(%arg0: i32, %arg1: i32) -> (i32, i32) {
    %c0_i32 = arith.constant 0 : i32
    %c0_i32_0 = arith.constant 0 : i32
    return %c0_i32, %arg0 : i32, i32
  }
  func.func @transform_2(%arg0: i32, %arg1: i32) -> (i32, i32) {
    %c0_i32 = arith.constant 0 : i32
    %c0_i32_0 = arith.constant 0 : i32
    return %arg1, %c0_i32 : i32, i32
  }
  func.func @transform_3(%arg0: i32, %arg1: i32) -> (i32, i32) {
    %c0_i32 = arith.constant 0 : i32
    return %arg1, %arg0 : i32, i32
  }
  func.func @transform_4(%arg0: i32, %arg1: i32) -> (i32, i32, i32) {
    %c0_i32 = arith.constant 0 : i32
    %c0_i32_0 = arith.constant 0 : i32
    return %arg1, %c0_i32, %arg0 : i32, i32, i32
  }
}

module attributes {stable_mosaic.version = 11 : i64} {
  func.func @_bn_norm_kernel(%arg0: i32, %arg1: memref<1x128xf32, #tpu.memory_space<vmem>>, %arg2: memref<1x128xf32, #tpu.memory_space<vmem>>, %arg3: memref<168x128xbf16, #tpu.memory_space<vmem>>, %arg4: memref<168x128xbf16, #tpu.memory_space<vmem>>) attributes {dimension_semantics = [#tpu.dimension_semantics<parallel>], iteration_bounds = array<i64: 1>, scalar_prefetch = 0 : i64, scratch_operands = 0 : i64, tpu.core_type = #tpu.core_type<tc>, window_params = [{pipeline_mode = #tpu.pipeline_mode<synchronous>, transform_indices = @transform_0, window_bounds = array<i64: 1, 128>}, {pipeline_mode = #tpu.pipeline_mode<synchronous>, transform_indices = @transform_1, window_bounds = array<i64: 1, 128>}, {transform_indices = @transform_2, window_bounds = array<i64: 168, 128>}, {transform_indices = @transform_3, window_bounds = array<i64: 168, 128>}]} {
    %c0 = arith.constant 0 : index
    %c0_0 = arith.constant 0 : index
    %0 = vector.load %arg3[%c0, %c0_0] : memref<168x128xbf16, #tpu.memory_space<vmem>>, vector<168x128xbf16>
    %1 = arith.extf %0 : vector<168x128xbf16> to vector<168x128xf32>
    %c0_1 = arith.constant 0 : index
    %c0_2 = arith.constant 0 : index
    %2 = vector.load %arg1[%c0_1, %c0_2] : memref<1x128xf32, #tpu.memory_space<vmem>>, vector<1x128xf32>
    %3 = vector.broadcast %2 : vector<1x128xf32> to vector<168x128xf32>
    %4 = arith.subf %1, %3 : vector<168x128xf32>
    %c0_3 = arith.constant 0 : index
    %c0_4 = arith.constant 0 : index
    %5 = vector.load %arg2[%c0_3, %c0_4] : memref<1x128xf32, #tpu.memory_space<vmem>>, vector<1x128xf32>
    %6 = vector.broadcast %5 : vector<1x128xf32> to vector<168x128xf32>
    %7 = arith.mulf %4, %6 : vector<168x128xf32>
    %cst = arith.constant 0.000000e+00 : f32
    %8 = vector.broadcast %cst : f32 to vector<168x128xf32>
    %9 = arith.maximumf %7, %8 : vector<168x128xf32>
    %10 = arith.truncf %9 : vector<168x128xf32> to vector<168x128xbf16>
    %c0_5 = arith.constant 0 : index
    %c0_6 = arith.constant 0 : index
    %11 = vector.load %arg4[%c0_5, %c0_6] : memref<168x128xbf16, #tpu.memory_space<vmem>>, vector<168x128xbf16>
    tpu.vector_store %arg4[%c0_5, %c0_6], %10 {strides = array<i32>} : memref<168x128xbf16, #tpu.memory_space<vmem>>, vector<168x128xbf16>,
    return
  }
  func.func @transform_0(%arg0: i32) -> (i32, i32) {
    %c0_i32 = arith.constant 0 : i32
    %c0_i32_0 = arith.constant 0 : i32
    %c0_i32_1 = arith.constant 0 : i32
    return %c0_i32, %c0_i32_0 : i32, i32
  }
  func.func @transform_1(%arg0: i32) -> (i32, i32) {
    %c0_i32 = arith.constant 0 : i32
    %c0_i32_0 = arith.constant 0 : i32
    %c0_i32_1 = arith.constant 0 : i32
    return %c0_i32, %c0_i32_0 : i32, i32
  }
  func.func @transform_2(%arg0: i32) -> (i32, i32) {
    %c0_i32 = arith.constant 0 : i32
    %c0_i32_0 = arith.constant 0 : i32
    return %arg0, %c0_i32 : i32, i32
  }
  func.func @transform_3(%arg0: i32) -> (i32, i32) {
    %c0_i32 = arith.constant 0 : i32
    %c0_i32_0 = arith.constant 0 : i32
    return %arg0, %c0_i32 : i32, i32
  }
}

module attributes {stable_mosaic.version = 11 : i64} {
  func.func @_conv_kernel(%arg0: i32, %arg1: i32, %arg2: memref<128x128xbf16, #tpu.memory_space<any>>, %arg3: memref<128x128xbf16, #tpu.memory_space<vmem>>, %arg4: memref<128x1xf32, #tpu.memory_space<vmem>>, %arg5: memref<128x128xbf16, #tpu.memory_space<vmem>>, %arg6: memref<1x2x128xf32, #tpu.memory_space<vmem>>, %arg7: memref<128x128xbf16, #tpu.memory_space<vmem>>, %arg8: memref<128x128xbf16, #tpu.memory_space<vmem>>, %arg9: memref<128x128xbf16, #tpu.memory_space<vmem>>, %arg10: memref<2x!tpu.dma_semaphore, #tpu.memory_space<semaphore_mem>>) attributes {dimension_semantics = [#tpu.dimension_semantics<arbitrary>, #tpu.dimension_semantics<arbitrary>], iteration_bounds = array<i64: 1, 1>, scalar_prefetch = 0 : i64, scratch_operands = 4 : i64, tpu.core_type = #tpu.core_type<tc>, window_params = [{}, {transform_indices = @transform_1, window_bounds = array<i64: 128, 128>}, {transform_indices = @transform_2, window_bounds = array<i64: 128, 1>}, {transform_indices = @transform_3, window_bounds = array<i64: 128, 128>}, {transform_indices = @transform_4, window_bounds = array<i64: 1, 2, 128>}]} {
    %c1_i32 = arith.constant 1 : i32
    %0 = arith.muli %arg0, %c1_i32 : i32
    %1 = arith.addi %0, %arg1 : i32
    %c0_i32 = arith.constant 0 : i32
    %2 = arith.cmpi eq, %1, %c0_i32 : i32
    %3 = arith.extui %2 : i1 to i32
    %c0_i32_0 = arith.constant 0 : i32
    %4 = arith.cmpi ne, %3, %c0_i32_0 : i32
    scf.if %4 {
      %c0_i32_28 = arith.constant 0 : i32
      %47 = tpu.assume_multiple %c0_i32_28, 8 : i32
      %c0_i32_29 = arith.constant 0 : i32
      %c0_i32_30 = arith.constant 0 : i32
      %48 = tpu.memref_slice %arg2[%47, %c0_i32_30] : memref<128x128xbf16, #tpu.memory_space<any>> -> memref<128x128xbf16, #tpu.memory_space<any>>
      %49 = tpu.memref_slice %arg10[%c0_i32_29] : memref<2x!tpu.dma_semaphore, #tpu.memory_space<semaphore_mem>> -> memref<1x!tpu.dma_semaphore, #tpu.memory_space<semaphore_mem>>
      %50 = tpu.memref_squeeze %49 : memref<1x!tpu.dma_semaphore, #tpu.memory_space<semaphore_mem>> -> memref<!tpu.dma_semaphore, #tpu.memory_space<semaphore_mem>>
      tpu.enqueue_dma source(%48 : memref<128x128xbf16, #tpu.memory_space<any>>) target(%arg7 : memref<128x128xbf16, #tpu.memory_space<vmem>>) target_semaphore(%50 : memref<!tpu.dma_semaphore, #tpu.memory_space<semaphore_mem>>)
    } else {
    }
    %c2_i32 = arith.constant 2 : i32
    %c0_i32_1 = arith.constant 0 : i32
    %5 = arith.cmpi eq, %c2_i32, %c0_i32_1 : i32
    %c1_i32_2 = arith.constant 1 : i32
    %6 = arith.select %5, %c1_i32_2, %c2_i32 : i32
    %7 = arith.remsi %1, %6 : i32
    %c0_i32_3 = arith.constant 0 : i32
    %8 = arith.cmpi ne, %7, %c0_i32_3 : i32
    %c0_i32_4 = arith.constant 0 : i32
    %9 = arith.cmpi slt, %7, %c0_i32_4 : i32
    %c0_i32_5 = arith.constant 0 : i32
    %10 = arith.cmpi slt, %6, %c0_i32_5 : i32
    %11 = arith.xori %9, %10 : i1
    %12 = arith.andi %11, %8 : i1
    %13 = arith.addi %7, %6 : i32
    %14 = arith.select %12, %13, %7 : i32
    %c0_i32_6 = arith.constant 0 : i32
    %15 = arith.cmpi eq, %14, %c0_i32_6 : i32
    %16 = arith.extui %15 : i1 to i32
    %c0_i32_7 = arith.constant 0 : i32
    %17 = arith.cmpi ne, %16, %c0_i32_7 : i32
    scf.if %17 {
      %c1_i32_28 = arith.constant 1 : i32
      %47 = arith.addi %arg1, %c1_i32_28 : i32
      %c1_i32_29 = arith.constant 1 : i32
      %48 = arith.cmpi slt, %47, %c1_i32_29 : i32
      %c1_i32_30 = arith.constant 1 : i32
      %49 = arith.addi %arg0, %c1_i32_30 : i32
      %c1_i32_31 = arith.constant 1 : i32
      %50 = arith.cmpi slt, %49, %c1_i32_31 : i32
      %51 = arith.ori %48, %50 : i1
      %52 = arith.extui %51 : i1 to i32
      %c0_i32_32 = arith.constant 0 : i32
      %53 = arith.cmpi ne, %52, %c0_i32_32 : i32
      scf.if %53 {
        %c1_i32_39 = arith.constant 1 : i32
        %61 = arith.addi %arg1, %c1_i32_39 : i32
        %c1_i32_40 = arith.constant 1 : i32
        %62 = arith.cmpi slt, %61, %c1_i32_40 : i32
        %c1_i32_41 = arith.constant 1 : i32
        %63 = arith.addi %arg1, %c1_i32_41 : i32
        %c0_i32_42 = arith.constant 0 : i32
        %64 = arith.select %62, %63, %c0_i32_42 : i32
        %c128_i32_43 = arith.constant 128 : i32
        %65 = arith.muli %64, %c128_i32_43 : i32
        %66 = tpu.assume_multiple %65, 8 : i32
        %c1_i32_44 = arith.constant 1 : i32
        %c0_i32_45 = arith.constant 0 : i32
        %67 = tpu.memref_slice %arg2[%66, %c0_i32_45] : memref<128x128xbf16, #tpu.memory_space<any>> -> memref<128x128xbf16, #tpu.memory_space<any>>
        %68 = tpu.memref_slice %arg10[%c1_i32_44] : memref<2x!tpu.dma_semaphore, #tpu.memory_space<semaphore_mem>> -> memref<1x!tpu.dma_semaphore, #tpu.memory_space<semaphore_mem>>
        %69 = tpu.memref_squeeze %68 : memref<1x!tpu.dma_semaphore, #tpu.memory_space<semaphore_mem>> -> memref<!tpu.dma_semaphore, #tpu.memory_space<semaphore_mem>>
        tpu.enqueue_dma source(%67 : memref<128x128xbf16, #tpu.memory_space<any>>) target(%arg8 : memref<128x128xbf16, #tpu.memory_space<vmem>>) target_semaphore(%69 : memref<!tpu.dma_semaphore, #tpu.memory_space<semaphore_mem>>)
      } else {
      }
      %c128_i32 = arith.constant 128 : i32
      %54 = arith.muli %arg1, %c128_i32 : i32
      %55 = tpu.assume_multiple %54, 8 : i32
      %c0_i32_33 = arith.constant 0 : i32
      %c0_i32_34 = arith.constant 0 : i32
      %56 = tpu.memref_slice %arg2[%55, %c0_i32_34] : memref<128x128xbf16, #tpu.memory_space<any>> -> memref<128x128xbf16, #tpu.memory_space<any>>
      %57 = tpu.memref_slice %arg10[%c0_i32_33] : memref<2x!tpu.dma_semaphore, #tpu.memory_space<semaphore_mem>> -> memref<1x!tpu.dma_semaphore, #tpu.memory_space<semaphore_mem>>
      %58 = tpu.memref_squeeze %57 : memref<1x!tpu.dma_semaphore, #tpu.memory_space<semaphore_mem>> -> memref<!tpu.dma_semaphore, #tpu.memory_space<semaphore_mem>>
      tpu.wait_dma2 semaphore(%58 : memref<!tpu.dma_semaphore, #tpu.memory_space<semaphore_mem>>) src(%56 : memref<128x128xbf16, #tpu.memory_space<any>>) dst(%arg7 : memref<128x128xbf16, #tpu.memory_space<vmem>>)
      %c0_35 = arith.constant 0 : index
      %c0_36 = arith.constant 0 : index
      %59 = vector.load %arg7[%c0_35, %c0_36] : memref<128x128xbf16, #tpu.memory_space<vmem>>, vector<128x128xbf16>
      %c0_37 = arith.constant 0 : index
      %c0_38 = arith.constant 0 : index
      %60 = vector.load %arg9[%c0_37, %c0_38] : memref<128x128xbf16, #tpu.memory_space<vmem>>, vector<128x128xbf16>
      tpu.vector_store %arg9[%c0_37, %c0_38], %59 {strides = array<i32>} : memref<128x128xbf16, #tpu.memory_space<vmem>>, vector<128x128xbf16>,
    } else {
    }
    %c2_i32_8 = arith.constant 2 : i32
    %c0_i32_9 = arith.constant 0 : i32
    %18 = arith.cmpi eq, %c2_i32_8, %c0_i32_9 : i32
    %c1_i32_10 = arith.constant 1 : i32
    %19 = arith.select %18, %c1_i32_10, %c2_i32_8 : i32
    %20 = arith.remsi %1, %19 : i32
    %c0_i32_11 = arith.constant 0 : i32
    %21 = arith.cmpi ne, %20, %c0_i32_11 : i32
    %c0_i32_12 = arith.constant 0 : i32
    %22 = arith.cmpi slt, %20, %c0_i32_12 : i32
    %c0_i32_13 = arith.constant 0 : i32
    %23 = arith.cmpi slt, %19, %c0_i32_13 : i32
    %24 = arith.xori %22, %23 : i1
    %25 = arith.andi %24, %21 : i1
    %26 = arith.addi %20, %19 : i32
    %27 = arith.select %25, %26, %20 : i32
    %c1_i32_14 = arith.constant 1 : i32
    %28 = arith.cmpi eq, %27, %c1_i32_14 : i32
    %29 = arith.extui %28 : i1 to i32
    %c0_i32_15 = arith.constant 0 : i32
    %30 = arith.cmpi ne, %29, %c0_i32_15 : i32
    scf.if %30 {
      %c1_i32_28 = arith.constant 1 : i32
      %47 = arith.addi %arg1, %c1_i32_28 : i32
      %c1_i32_29 = arith.constant 1 : i32
      %48 = arith.cmpi slt, %47, %c1_i32_29 : i32
      %c1_i32_30 = arith.constant 1 : i32
      %49 = arith.addi %arg0, %c1_i32_30 : i32
      %c1_i32_31 = arith.constant 1 : i32
      %50 = arith.cmpi slt, %49, %c1_i32_31 : i32
      %51 = arith.ori %48, %50 : i1
      %52 = arith.extui %51 : i1 to i32
      %c0_i32_32 = arith.constant 0 : i32
      %53 = arith.cmpi ne, %52, %c0_i32_32 : i32
      scf.if %53 {
        %c1_i32_39 = arith.constant 1 : i32
        %61 = arith.addi %arg1, %c1_i32_39 : i32
        %c1_i32_40 = arith.constant 1 : i32
        %62 = arith.cmpi slt, %61, %c1_i32_40 : i32
        %c1_i32_41 = arith.constant 1 : i32
        %63 = arith.addi %arg1, %c1_i32_41 : i32
        %c0_i32_42 = arith.constant 0 : i32
        %64 = arith.select %62, %63, %c0_i32_42 : i32
        %c128_i32_43 = arith.constant 128 : i32
        %65 = arith.muli %64, %c128_i32_43 : i32
        %66 = tpu.assume_multiple %65, 8 : i32
        %c0_i32_44 = arith.constant 0 : i32
        %c0_i32_45 = arith.constant 0 : i32
        %67 = tpu.memref_slice %arg2[%66, %c0_i32_45] : memref<128x128xbf16, #tpu.memory_space<any>> -> memref<128x128xbf16, #tpu.memory_space<any>>
        %68 = tpu.memref_slice %arg10[%c0_i32_44] : memref<2x!tpu.dma_semaphore, #tpu.memory_space<semaphore_mem>> -> memref<1x!tpu.dma_semaphore, #tpu.memory_space<semaphore_mem>>
        %69 = tpu.memref_squeeze %68 : memref<1x!tpu.dma_semaphore, #tpu.memory_space<semaphore_mem>> -> memref<!tpu.dma_semaphore, #tpu.memory_space<semaphore_mem>>
        tpu.enqueue_dma source(%67 : memref<128x128xbf16, #tpu.memory_space<any>>) target(%arg7 : memref<128x128xbf16, #tpu.memory_space<vmem>>) target_semaphore(%69 : memref<!tpu.dma_semaphore, #tpu.memory_space<semaphore_mem>>)
      } else {
      }
      %c128_i32 = arith.constant 128 : i32
      %54 = arith.muli %arg1, %c128_i32 : i32
      %55 = tpu.assume_multiple %54, 8 : i32
      %c1_i32_33 = arith.constant 1 : i32
      %c0_i32_34 = arith.constant 0 : i32
      %56 = tpu.memref_slice %arg2[%55, %c0_i32_34] : memref<128x128xbf16, #tpu.memory_space<any>> -> memref<128x128xbf16, #tpu.memory_space<any>>
      %57 = tpu.memref_slice %arg10[%c1_i32_33] : memref<2x!tpu.dma_semaphore, #tpu.memory_space<semaphore_mem>> -> memref<1x!tpu.dma_semaphore, #tpu.memory_space<semaphore_mem>>
      %58 = tpu.memref_squeeze %57 : memref<1x!tpu.dma_semaphore, #tpu.memory_space<semaphore_mem>> -> memref<!tpu.dma_semaphore, #tpu.memory_space<semaphore_mem>>
      tpu.wait_dma2 semaphore(%58 : memref<!tpu.dma_semaphore, #tpu.memory_space<semaphore_mem>>) src(%56 : memref<128x128xbf16, #tpu.memory_space<any>>) dst(%arg8 : memref<128x128xbf16, #tpu.memory_space<vmem>>)
      %c0_35 = arith.constant 0 : index
      %c0_36 = arith.constant 0 : index
      %59 = vector.load %arg8[%c0_35, %c0_36] : memref<128x128xbf16, #tpu.memory_space<vmem>>, vector<128x128xbf16>
      %c0_37 = arith.constant 0 : index
      %c0_38 = arith.constant 0 : index
      %60 = vector.load %arg9[%c0_37, %c0_38] : memref<128x128xbf16, #tpu.memory_space<vmem>>, vector<128x128xbf16>
      tpu.vector_store %arg9[%c0_37, %c0_38], %59 {strides = array<i32>} : memref<128x128xbf16, #tpu.memory_space<vmem>>, vector<128x128xbf16>,
    } else {
    }
    %c0 = arith.constant 0 : index
    %c0_16 = arith.constant 0 : index
    %31 = vector.load %arg9[%c0, %c0_16] : memref<128x128xbf16, #tpu.memory_space<vmem>>, vector<128x128xbf16>
    %c0_17 = arith.constant 0 : index
    %c0_18 = arith.constant 0 : index
    %32 = vector.load %arg3[%c0_17, %c0_18] : memref<128x128xbf16, #tpu.memory_space<vmem>>, vector<128x128xbf16>
    %cst = arith.constant dense<0.000000e+00> : vector<128x128xf32>
    %33 = tpu.matmul %31, %32, %cst {dimension_numbers = #tpu.dot_dimension_numbers<[1], [0], [0], [1], [0, 0, 1, 1], [], []>} : vector<128x128xbf16>, vector<128x128xbf16>, vector<128x128xf32> -> vector<128x128xf32>
    %c0_19 = arith.constant 0 : index
    %c0_20 = arith.constant 0 : index
    %34 = vector.load %arg4[%c0_19, %c0_20] : memref<128x1xf32, #tpu.memory_space<vmem>>, vector<128x1xf32>
    %35 = vector.broadcast %34 : vector<128x1xf32> to vector<128x128xf32>
    %36 = arith.mulf %33, %35 : vector<128x128xf32>
    %cst_21 = arith.constant dense<0.000000e+00> : vector<128xf32>
    %37 = vector.multi_reduction <add>, %36, %cst_21 [0] : vector<128x128xf32> to vector<128xf32>
    %38 = vector.shape_cast %37 : vector<128xf32> to vector<1x128xf32>
    %39 = arith.mulf %36, %36 : vector<128x128xf32>
    %cst_22 = arith.constant dense<0.000000e+00> : vector<128xf32>
    %40 = vector.multi_reduction <add>, %39, %cst_22 [0] : vector<128x128xf32> to vector<128xf32>
    %41 = vector.shape_cast %40 : vector<128xf32> to vector<1x128xf32>
    %42 = tpu.concatenate %38, %41 in 0 : vector<1x128xf32>, vector<1x128xf32> -> vector<2x128xf32>
    %43 = vector.shape_cast %42 : vector<2x128xf32> to vector<1x2x128xf32>
    %c0_23 = arith.constant 0 : index
    %c0_24 = arith.constant 0 : index
    %c0_25 = arith.constant 0 : index
    %44 = vector.load %arg6[%c0_23, %c0_24, %c0_25] : memref<1x2x128xf32, #tpu.memory_space<vmem>>, vector<1x2x128xf32>
    tpu.vector_store %arg6[%c0_23, %c0_24, %c0_25], %43 {strides = array<i32>} : memref<1x2x128xf32, #tpu.memory_space<vmem>>, vector<1x2x128xf32>,
    %45 = arith.truncf %33 : vector<128x128xf32> to vector<128x128xbf16>
    %c0_26 = arith.constant 0 : index
    %c0_27 = arith.constant 0 : index
    %46 = vector.load %arg5[%c0_26, %c0_27] : memref<128x128xbf16, #tpu.memory_space<vmem>>, vector<128x128xbf16>
    tpu.vector_store %arg5[%c0_26, %c0_27], %45 {strides = array<i32>} : memref<128x128xbf16, #tpu.memory_space<vmem>>, vector<128x128xbf16>,
    return
  }
  func.func @transform_1(%arg0: i32, %arg1: i32) -> (i32, i32) {
    %c0_i32 = arith.constant 0 : i32
    %c0_i32_0 = arith.constant 0 : i32
    return %c0_i32, %arg0 : i32, i32
  }
  func.func @transform_2(%arg0: i32, %arg1: i32) -> (i32, i32) {
    %c0_i32 = arith.constant 0 : i32
    %c0_i32_0 = arith.constant 0 : i32
    return %arg1, %c0_i32 : i32, i32
  }
  func.func @transform_3(%arg0: i32, %arg1: i32) -> (i32, i32) {
    %c0_i32 = arith.constant 0 : i32
    return %arg1, %arg0 : i32, i32
  }
  func.func @transform_4(%arg0: i32, %arg1: i32) -> (i32, i32, i32) {
    %c0_i32 = arith.constant 0 : i32
    %c0_i32_0 = arith.constant 0 : i32
    return %arg1, %c0_i32, %arg0 : i32, i32, i32
  }
}

module attributes {stable_mosaic.version = 11 : i64} {
  func.func @_conv_kernel(%arg0: i32, %arg1: i32, %arg2: memref<224x128xbf16, #tpu.memory_space<any>>, %arg3: memref<1152x128xbf16, #tpu.memory_space<vmem>>, %arg4: memref<200x1xf32, #tpu.memory_space<vmem>>, %arg5: memref<200x128xbf16, #tpu.memory_space<vmem>>, %arg6: memref<200x128xbf16, #tpu.memory_space<vmem>>, %arg7: memref<1x2x128xf32, #tpu.memory_space<vmem>>, %arg8: memref<224x128xbf16, #tpu.memory_space<vmem>>, %arg9: memref<224x128xbf16, #tpu.memory_space<vmem>>, %arg10: memref<200x1152xbf16, #tpu.memory_space<vmem>>, %arg11: memref<2x!tpu.dma_semaphore, #tpu.memory_space<semaphore_mem>>) attributes {dimension_semantics = [#tpu.dimension_semantics<arbitrary>, #tpu.dimension_semantics<arbitrary>], iteration_bounds = array<i64: 1, 1>, scalar_prefetch = 0 : i64, scratch_operands = 4 : i64, tpu.core_type = #tpu.core_type<tc>, window_params = [{}, {transform_indices = @transform_1, window_bounds = array<i64: 1152, 128>}, {transform_indices = @transform_2, window_bounds = array<i64: 200, 1>}, {transform_indices = @transform_3, window_bounds = array<i64: 200, 128>}, {transform_indices = @transform_4, window_bounds = array<i64: 200, 128>}, {transform_indices = @transform_5, window_bounds = array<i64: 1, 2, 128>}]} {
    %c1_i32 = arith.constant 1 : i32
    %0 = arith.muli %arg0, %c1_i32 : i32
    %1 = arith.addi %0, %arg1 : i32
    %c0_i32 = arith.constant 0 : i32
    %2 = arith.cmpi eq, %1, %c0_i32 : i32
    %3 = arith.extui %2 : i1 to i32
    %c0_i32_0 = arith.constant 0 : i32
    %4 = arith.cmpi ne, %3, %c0_i32_0 : i32
    scf.if %4 {
      %c0_i32_30 = arith.constant 0 : i32
      %50 = tpu.assume_multiple %c0_i32_30, 8 : i32
      %c0_i32_31 = arith.constant 0 : i32
      %c0_i32_32 = arith.constant 0 : i32
      %51 = tpu.memref_slice %arg2[%50, %c0_i32_32] : memref<224x128xbf16, #tpu.memory_space<any>> -> memref<224x128xbf16, #tpu.memory_space<any>>
      %52 = tpu.memref_slice %arg11[%c0_i32_31] : memref<2x!tpu.dma_semaphore, #tpu.memory_space<semaphore_mem>> -> memref<1x!tpu.dma_semaphore, #tpu.memory_space<semaphore_mem>>
      %53 = tpu.memref_squeeze %52 : memref<1x!tpu.dma_semaphore, #tpu.memory_space<semaphore_mem>> -> memref<!tpu.dma_semaphore, #tpu.memory_space<semaphore_mem>>
      tpu.enqueue_dma source(%51 : memref<224x128xbf16, #tpu.memory_space<any>>) target(%arg8 : memref<224x128xbf16, #tpu.memory_space<vmem>>) target_semaphore(%53 : memref<!tpu.dma_semaphore, #tpu.memory_space<semaphore_mem>>)
    } else {
    }
    %c2_i32 = arith.constant 2 : i32
    %c0_i32_1 = arith.constant 0 : i32
    %5 = arith.cmpi eq, %c2_i32, %c0_i32_1 : i32
    %c1_i32_2 = arith.constant 1 : i32
    %6 = arith.select %5, %c1_i32_2, %c2_i32 : i32
    %7 = arith.remsi %1, %6 : i32
    %c0_i32_3 = arith.constant 0 : i32
    %8 = arith.cmpi ne, %7, %c0_i32_3 : i32
    %c0_i32_4 = arith.constant 0 : i32
    %9 = arith.cmpi slt, %7, %c0_i32_4 : i32
    %c0_i32_5 = arith.constant 0 : i32
    %10 = arith.cmpi slt, %6, %c0_i32_5 : i32
    %11 = arith.xori %9, %10 : i1
    %12 = arith.andi %11, %8 : i1
    %13 = arith.addi %7, %6 : i32
    %14 = arith.select %12, %13, %7 : i32
    %c0_i32_6 = arith.constant 0 : i32
    %15 = arith.cmpi eq, %14, %c0_i32_6 : i32
    %16 = arith.extui %15 : i1 to i32
    %c0_i32_7 = arith.constant 0 : i32
    %17 = arith.cmpi ne, %16, %c0_i32_7 : i32
    scf.if %17 {
      %c1_i32_30 = arith.constant 1 : i32
      %50 = arith.addi %arg1, %c1_i32_30 : i32
      %c1_i32_31 = arith.constant 1 : i32
      %51 = arith.cmpi slt, %50, %c1_i32_31 : i32
      %c1_i32_32 = arith.constant 1 : i32
      %52 = arith.addi %arg0, %c1_i32_32 : i32
      %c1_i32_33 = arith.constant 1 : i32
      %53 = arith.cmpi slt, %52, %c1_i32_33 : i32
      %54 = arith.ori %51, %53 : i1
      %55 = arith.extui %54 : i1 to i32
      %c0_i32_34 = arith.constant 0 : i32
      %56 = arith.cmpi ne, %55, %c0_i32_34 : i32
      scf.if %56 {
        %c1_i32_57 = arith.constant 1 : i32
        %80 = arith.addi %arg1, %c1_i32_57 : i32
        %c1_i32_58 = arith.constant 1 : i32
        %81 = arith.cmpi slt, %80, %c1_i32_58 : i32
        %c1_i32_59 = arith.constant 1 : i32
        %82 = arith.addi %arg1, %c1_i32_59 : i32
        %c0_i32_60 = arith.constant 0 : i32
        %83 = arith.select %81, %82, %c0_i32_60 : i32
        %c200_i32_61 = arith.constant 200 : i32
        %84 = arith.muli %83, %c200_i32_61 : i32
        %85 = tpu.assume_multiple %84, 8 : i32
        %c1_i32_62 = arith.constant 1 : i32
        %c0_i32_63 = arith.constant 0 : i32
        %86 = tpu.memref_slice %arg2[%85, %c0_i32_63] : memref<224x128xbf16, #tpu.memory_space<any>> -> memref<224x128xbf16, #tpu.memory_space<any>>
        %87 = tpu.memref_slice %arg11[%c1_i32_62] : memref<2x!tpu.dma_semaphore, #tpu.memory_space<semaphore_mem>> -> memref<1x!tpu.dma_semaphore, #tpu.memory_space<semaphore_mem>>
        %88 = tpu.memref_squeeze %87 : memref<1x!tpu.dma_semaphore, #tpu.memory_space<semaphore_mem>> -> memref<!tpu.dma_semaphore, #tpu.memory_space<semaphore_mem>>
        tpu.enqueue_dma source(%86 : memref<224x128xbf16, #tpu.memory_space<any>>) target(%arg9 : memref<224x128xbf16, #tpu.memory_space<vmem>>) target_semaphore(%88 : memref<!tpu.dma_semaphore, #tpu.memory_space<semaphore_mem>>)
      } else {
      }
      %c200_i32 = arith.constant 200 : i32
      %57 = arith.muli %arg1, %c200_i32 : i32
      %58 = tpu.assume_multiple %57, 8 : i32
      %c0_i32_35 = arith.constant 0 : i32
      %c0_i32_36 = arith.constant 0 : i32
      %59 = tpu.memref_slice %arg2[%58, %c0_i32_36] : memref<224x128xbf16, #tpu.memory_space<any>> -> memref<224x128xbf16, #tpu.memory_space<any>>
      %60 = tpu.memref_slice %arg11[%c0_i32_35] : memref<2x!tpu.dma_semaphore, #tpu.memory_space<semaphore_mem>> -> memref<1x!tpu.dma_semaphore, #tpu.memory_space<semaphore_mem>>
      %61 = tpu.memref_squeeze %60 : memref<1x!tpu.dma_semaphore, #tpu.memory_space<semaphore_mem>> -> memref<!tpu.dma_semaphore, #tpu.memory_space<semaphore_mem>>
      tpu.wait_dma2 semaphore(%61 : memref<!tpu.dma_semaphore, #tpu.memory_space<semaphore_mem>>) src(%59 : memref<224x128xbf16, #tpu.memory_space<any>>) dst(%arg8 : memref<224x128xbf16, #tpu.memory_space<vmem>>)
      %c0_37 = arith.constant 0 : index
      %c0_38 = arith.constant 0 : index
      %62 = vector.load %arg8[%c0_37, %c0_38] : memref<224x128xbf16, #tpu.memory_space<vmem>>, vector<200x128xbf16>
      %c0_39 = arith.constant 0 : index
      %c0_40 = arith.constant 0 : index
      %63 = vector.load %arg10[%c0_39, %c0_40] : memref<200x1152xbf16, #tpu.memory_space<vmem>>, vector<200x128xbf16>
      tpu.vector_store %arg10[%c0_39, %c0_40], %62 {strides = array<i32>} : memref<200x1152xbf16, #tpu.memory_space<vmem>>, vector<200x128xbf16>,
      %c1 = arith.constant 1 : index
      %c0_41 = arith.constant 0 : index
      %64 = vector.load %arg8[%c1, %c0_41] : memref<224x128xbf16, #tpu.memory_space<vmem>>, vector<200x128xbf16>
      %c0_42 = arith.constant 0 : index
      %c128 = arith.constant 128 : index
      %65 = vector.load %arg10[%c0_42, %c128] : memref<200x1152xbf16, #tpu.memory_space<vmem>>, vector<200x128xbf16>
      tpu.vector_store %arg10[%c0_42, %c128], %64 {strides = array<i32>} : memref<200x1152xbf16, #tpu.memory_space<vmem>>, vector<200x128xbf16>,
      %c2 = arith.constant 2 : index
      %c0_43 = arith.constant 0 : index
      %66 = vector.load %arg8[%c2, %c0_43] : memref<224x128xbf16, #tpu.memory_space<vmem>>, vector<200x128xbf16>
      %c0_44 = arith.constant 0 : index
      %c256 = arith.constant 256 : index
      %67 = vector.load %arg10[%c0_44, %c256] : memref<200x1152xbf16, #tpu.memory_space<vmem>>, vector<200x128xbf16>
      tpu.vector_store %arg10[%c0_44, %c256], %66 {strides = array<i32>} : memref<200x1152xbf16, #tpu.memory_space<vmem>>, vector<200x128xbf16>,
      %c10 = arith.constant 10 : index
      %c0_45 = arith.constant 0 : index
      %68 = vector.load %arg8[%c10, %c0_45] : memref<224x128xbf16, #tpu.memory_space<vmem>>, vector<200x128xbf16>
      %c0_46 = arith.constant 0 : index
      %c384 = arith.constant 384 : index
      %69 = vector.load %arg10[%c0_46, %c384] : memref<200x1152xbf16, #tpu.memory_space<vmem>>, vector<200x128xbf16>
      tpu.vector_store %arg10[%c0_46, %c384], %68 {strides = array<i32>} : memref<200x1152xbf16, #tpu.memory_space<vmem>>, vector<200x128xbf16>,
      %c11 = arith.constant 11 : index
      %c0_47 = arith.constant 0 : index
      %70 = vector.load %arg8[%c11, %c0_47] : memref<224x128xbf16, #tpu.memory_space<vmem>>, vector<200x128xbf16>
      %c0_48 = arith.constant 0 : index
      %c512 = arith.constant 512 : index
      %71 = vector.load %arg10[%c0_48, %c512] : memref<200x1152xbf16, #tpu.memory_space<vmem>>, vector<200x128xbf16>
      tpu.vector_store %arg10[%c0_48, %c512], %70 {strides = array<i32>} : memref<200x1152xbf16, #tpu.memory_space<vmem>>, vector<200x128xbf16>,
      %c12 = arith.constant 12 : index
      %c0_49 = arith.constant 0 : index
      %72 = vector.load %arg8[%c12, %c0_49] : memref<224x128xbf16, #tpu.memory_space<vmem>>, vector<200x128xbf16>
      %c0_50 = arith.constant 0 : index
      %c640 = arith.constant 640 : index
      %73 = vector.load %arg10[%c0_50, %c640] : memref<200x1152xbf16, #tpu.memory_space<vmem>>, vector<200x128xbf16>
      tpu.vector_store %arg10[%c0_50, %c640], %72 {strides = array<i32>} : memref<200x1152xbf16, #tpu.memory_space<vmem>>, vector<200x128xbf16>,
      %c20 = arith.constant 20 : index
      %c0_51 = arith.constant 0 : index
      %74 = vector.load %arg8[%c20, %c0_51] : memref<224x128xbf16, #tpu.memory_space<vmem>>, vector<200x128xbf16>
      %c0_52 = arith.constant 0 : index
      %c768 = arith.constant 768 : index
      %75 = vector.load %arg10[%c0_52, %c768] : memref<200x1152xbf16, #tpu.memory_space<vmem>>, vector<200x128xbf16>
      tpu.vector_store %arg10[%c0_52, %c768], %74 {strides = array<i32>} : memref<200x1152xbf16, #tpu.memory_space<vmem>>, vector<200x128xbf16>,
      %c21 = arith.constant 21 : index
      %c0_53 = arith.constant 0 : index
      %76 = vector.load %arg8[%c21, %c0_53] : memref<224x128xbf16, #tpu.memory_space<vmem>>, vector<200x128xbf16>
      %c0_54 = arith.constant 0 : index
      %c896 = arith.constant 896 : index
      %77 = vector.load %arg10[%c0_54, %c896] : memref<200x1152xbf16, #tpu.memory_space<vmem>>, vector<200x128xbf16>
      tpu.vector_store %arg10[%c0_54, %c896], %76 {strides = array<i32>} : memref<200x1152xbf16, #tpu.memory_space<vmem>>, vector<200x128xbf16>,
      %c22 = arith.constant 22 : index
      %c0_55 = arith.constant 0 : index
      %78 = vector.load %arg8[%c22, %c0_55] : memref<224x128xbf16, #tpu.memory_space<vmem>>, vector<200x128xbf16>
      %c0_56 = arith.constant 0 : index
      %c1024 = arith.constant 1024 : index
      %79 = vector.load %arg10[%c0_56, %c1024] : memref<200x1152xbf16, #tpu.memory_space<vmem>>, vector<200x128xbf16>
      tpu.vector_store %arg10[%c0_56, %c1024], %78 {strides = array<i32>} : memref<200x1152xbf16, #tpu.memory_space<vmem>>, vector<200x128xbf16>,
    } else {
    }
    %c2_i32_8 = arith.constant 2 : i32
    %c0_i32_9 = arith.constant 0 : i32
    %18 = arith.cmpi eq, %c2_i32_8, %c0_i32_9 : i32
    %c1_i32_10 = arith.constant 1 : i32
    %19 = arith.select %18, %c1_i32_10, %c2_i32_8 : i32
    %20 = arith.remsi %1, %19 : i32
    %c0_i32_11 = arith.constant 0 : i32
    %21 = arith.cmpi ne, %20, %c0_i32_11 : i32
    %c0_i32_12 = arith.constant 0 : i32
    %22 = arith.cmpi slt, %20, %c0_i32_12 : i32
    %c0_i32_13 = arith.constant 0 : i32
    %23 = arith.cmpi slt, %19, %c0_i32_13 : i32
    %24 = arith.xori %22, %23 : i1
    %25 = arith.andi %24, %21 : i1
    %26 = arith.addi %20, %19 : i32
    %27 = arith.select %25, %26, %20 : i32
    %c1_i32_14 = arith.constant 1 : i32
    %28 = arith.cmpi eq, %27, %c1_i32_14 : i32
    %29 = arith.extui %28 : i1 to i32
    %c0_i32_15 = arith.constant 0 : i32
    %30 = arith.cmpi ne, %29, %c0_i32_15 : i32
    scf.if %30 {
      %c1_i32_30 = arith.constant 1 : i32
      %50 = arith.addi %arg1, %c1_i32_30 : i32
      %c1_i32_31 = arith.constant 1 : i32
      %51 = arith.cmpi slt, %50, %c1_i32_31 : i32
      %c1_i32_32 = arith.constant 1 : i32
      %52 = arith.addi %arg0, %c1_i32_32 : i32
      %c1_i32_33 = arith.constant 1 : i32
      %53 = arith.cmpi slt, %52, %c1_i32_33 : i32
      %54 = arith.ori %51, %53 : i1
      %55 = arith.extui %54 : i1 to i32
      %c0_i32_34 = arith.constant 0 : i32
      %56 = arith.cmpi ne, %55, %c0_i32_34 : i32
      scf.if %56 {
        %c1_i32_57 = arith.constant 1 : i32
        %80 = arith.addi %arg1, %c1_i32_57 : i32
        %c1_i32_58 = arith.constant 1 : i32
        %81 = arith.cmpi slt, %80, %c1_i32_58 : i32
        %c1_i32_59 = arith.constant 1 : i32
        %82 = arith.addi %arg1, %c1_i32_59 : i32
        %c0_i32_60 = arith.constant 0 : i32
        %83 = arith.select %81, %82, %c0_i32_60 : i32
        %c200_i32_61 = arith.constant 200 : i32
        %84 = arith.muli %83, %c200_i32_61 : i32
        %85 = tpu.assume_multiple %84, 8 : i32
        %c0_i32_62 = arith.constant 0 : i32
        %c0_i32_63 = arith.constant 0 : i32
        %86 = tpu.memref_slice %arg2[%85, %c0_i32_63] : memref<224x128xbf16, #tpu.memory_space<any>> -> memref<224x128xbf16, #tpu.memory_space<any>>
        %87 = tpu.memref_slice %arg11[%c0_i32_62] : memref<2x!tpu.dma_semaphore, #tpu.memory_space<semaphore_mem>> -> memref<1x!tpu.dma_semaphore, #tpu.memory_space<semaphore_mem>>
        %88 = tpu.memref_squeeze %87 : memref<1x!tpu.dma_semaphore, #tpu.memory_space<semaphore_mem>> -> memref<!tpu.dma_semaphore, #tpu.memory_space<semaphore_mem>>
        tpu.enqueue_dma source(%86 : memref<224x128xbf16, #tpu.memory_space<any>>) target(%arg8 : memref<224x128xbf16, #tpu.memory_space<vmem>>) target_semaphore(%88 : memref<!tpu.dma_semaphore, #tpu.memory_space<semaphore_mem>>)
      } else {
      }
      %c200_i32 = arith.constant 200 : i32
      %57 = arith.muli %arg1, %c200_i32 : i32
      %58 = tpu.assume_multiple %57, 8 : i32
      %c1_i32_35 = arith.constant 1 : i32
      %c0_i32_36 = arith.constant 0 : i32
      %59 = tpu.memref_slice %arg2[%58, %c0_i32_36] : memref<224x128xbf16, #tpu.memory_space<any>> -> memref<224x128xbf16, #tpu.memory_space<any>>
      %60 = tpu.memref_slice %arg11[%c1_i32_35] : memref<2x!tpu.dma_semaphore, #tpu.memory_space<semaphore_mem>> -> memref<1x!tpu.dma_semaphore, #tpu.memory_space<semaphore_mem>>
      %61 = tpu.memref_squeeze %60 : memref<1x!tpu.dma_semaphore, #tpu.memory_space<semaphore_mem>> -> memref<!tpu.dma_semaphore, #tpu.memory_space<semaphore_mem>>
      tpu.wait_dma2 semaphore(%61 : memref<!tpu.dma_semaphore, #tpu.memory_space<semaphore_mem>>) src(%59 : memref<224x128xbf16, #tpu.memory_space<any>>) dst(%arg9 : memref<224x128xbf16, #tpu.memory_space<vmem>>)
      %c0_37 = arith.constant 0 : index
      %c0_38 = arith.constant 0 : index
      %62 = vector.load %arg9[%c0_37, %c0_38] : memref<224x128xbf16, #tpu.memory_space<vmem>>, vector<200x128xbf16>
      %c0_39 = arith.constant 0 : index
      %c0_40 = arith.constant 0 : index
      %63 = vector.load %arg10[%c0_39, %c0_40] : memref<200x1152xbf16, #tpu.memory_space<vmem>>, vector<200x128xbf16>
      tpu.vector_store %arg10[%c0_39, %c0_40], %62 {strides = array<i32>} : memref<200x1152xbf16, #tpu.memory_space<vmem>>, vector<200x128xbf16>,
      %c1 = arith.constant 1 : index
      %c0_41 = arith.constant 0 : index
      %64 = vector.load %arg9[%c1, %c0_41] : memref<224x128xbf16, #tpu.memory_space<vmem>>, vector<200x128xbf16>
      %c0_42 = arith.constant 0 : index
      %c128 = arith.constant 128 : index
      %65 = vector.load %arg10[%c0_42, %c128] : memref<200x1152xbf16, #tpu.memory_space<vmem>>, vector<200x128xbf16>
      tpu.vector_store %arg10[%c0_42, %c128], %64 {strides = array<i32>} : memref<200x1152xbf16, #tpu.memory_space<vmem>>, vector<200x128xbf16>,
      %c2 = arith.constant 2 : index
      %c0_43 = arith.constant 0 : index
      %66 = vector.load %arg9[%c2, %c0_43] : memref<224x128xbf16, #tpu.memory_space<vmem>>, vector<200x128xbf16>
      %c0_44 = arith.constant 0 : index
      %c256 = arith.constant 256 : index
      %67 = vector.load %arg10[%c0_44, %c256] : memref<200x1152xbf16, #tpu.memory_space<vmem>>, vector<200x128xbf16>
      tpu.vector_store %arg10[%c0_44, %c256], %66 {strides = array<i32>} : memref<200x1152xbf16, #tpu.memory_space<vmem>>, vector<200x128xbf16>,
      %c10 = arith.constant 10 : index
      %c0_45 = arith.constant 0 : index
      %68 = vector.load %arg9[%c10, %c0_45] : memref<224x128xbf16, #tpu.memory_space<vmem>>, vector<200x128xbf16>
      %c0_46 = arith.constant 0 : index
      %c384 = arith.constant 384 : index
      %69 = vector.load %arg10[%c0_46, %c384] : memref<200x1152xbf16, #tpu.memory_space<vmem>>, vector<200x128xbf16>
      tpu.vector_store %arg10[%c0_46, %c384], %68 {strides = array<i32>} : memref<200x1152xbf16, #tpu.memory_space<vmem>>, vector<200x128xbf16>,
      %c11 = arith.constant 11 : index
      %c0_47 = arith.constant 0 : index
      %70 = vector.load %arg9[%c11, %c0_47] : memref<224x128xbf16, #tpu.memory_space<vmem>>, vector<200x128xbf16>
      %c0_48 = arith.constant 0 : index
      %c512 = arith.constant 512 : index
      %71 = vector.load %arg10[%c0_48, %c512] : memref<200x1152xbf16, #tpu.memory_space<vmem>>, vector<200x128xbf16>
      tpu.vector_store %arg10[%c0_48, %c512], %70 {strides = array<i32>} : memref<200x1152xbf16, #tpu.memory_space<vmem>>, vector<200x128xbf16>,
      %c12 = arith.constant 12 : index
      %c0_49 = arith.constant 0 : index
      %72 = vector.load %arg9[%c12, %c0_49] : memref<224x128xbf16, #tpu.memory_space<vmem>>, vector<200x128xbf16>
      %c0_50 = arith.constant 0 : index
      %c640 = arith.constant 640 : index
      %73 = vector.load %arg10[%c0_50, %c640] : memref<200x1152xbf16, #tpu.memory_space<vmem>>, vector<200x128xbf16>
      tpu.vector_store %arg10[%c0_50, %c640], %72 {strides = array<i32>} : memref<200x1152xbf16, #tpu.memory_space<vmem>>, vector<200x128xbf16>,
      %c20 = arith.constant 20 : index
      %c0_51 = arith.constant 0 : index
      %74 = vector.load %arg9[%c20, %c0_51] : memref<224x128xbf16, #tpu.memory_space<vmem>>, vector<200x128xbf16>
      %c0_52 = arith.constant 0 : index
      %c768 = arith.constant 768 : index
      %75 = vector.load %arg10[%c0_52, %c768] : memref<200x1152xbf16, #tpu.memory_space<vmem>>, vector<200x128xbf16>
      tpu.vector_store %arg10[%c0_52, %c768], %74 {strides = array<i32>} : memref<200x1152xbf16, #tpu.memory_space<vmem>>, vector<200x128xbf16>,
      %c21 = arith.constant 21 : index
      %c0_53 = arith.constant 0 : index
      %76 = vector.load %arg9[%c21, %c0_53] : memref<224x128xbf16, #tpu.memory_space<vmem>>, vector<200x128xbf16>
      %c0_54 = arith.constant 0 : index
      %c896 = arith.constant 896 : index
      %77 = vector.load %arg10[%c0_54, %c896] : memref<200x1152xbf16, #tpu.memory_space<vmem>>, vector<200x128xbf16>
      tpu.vector_store %arg10[%c0_54, %c896], %76 {strides = array<i32>} : memref<200x1152xbf16, #tpu.memory_space<vmem>>, vector<200x128xbf16>,
      %c22 = arith.constant 22 : index
      %c0_55 = arith.constant 0 : index
      %78 = vector.load %arg9[%c22, %c0_55] : memref<224x128xbf16, #tpu.memory_space<vmem>>, vector<200x128xbf16>
      %c0_56 = arith.constant 0 : index
      %c1024 = arith.constant 1024 : index
      %79 = vector.load %arg10[%c0_56, %c1024] : memref<200x1152xbf16, #tpu.memory_space<vmem>>, vector<200x128xbf16>
      tpu.vector_store %arg10[%c0_56, %c1024], %78 {strides = array<i32>} : memref<200x1152xbf16, #tpu.memory_space<vmem>>, vector<200x128xbf16>,
    } else {
    }
    %c0 = arith.constant 0 : index
    %c0_16 = arith.constant 0 : index
    %31 = vector.load %arg10[%c0, %c0_16] : memref<200x1152xbf16, #tpu.memory_space<vmem>>, vector<200x1152xbf16>
    %c0_17 = arith.constant 0 : index
    %c0_18 = arith.constant 0 : index
    %32 = vector.load %arg3[%c0_17, %c0_18] : memref<1152x128xbf16, #tpu.memory_space<vmem>>, vector<1152x128xbf16>
    %cst = arith.constant dense<0.000000e+00> : vector<200x128xf32>
    %33 = tpu.matmul %31, %32, %cst {dimension_numbers = #tpu.dot_dimension_numbers<[1], [0], [0], [1], [0, 0, 1, 1], [], []>} : vector<200x1152xbf16>, vector<1152x128xbf16>, vector<200x128xf32> -> vector<200x128xf32>
    %c0_19 = arith.constant 0 : index
    %c0_20 = arith.constant 0 : index
    %34 = vector.load %arg5[%c0_19, %c0_20] : memref<200x128xbf16, #tpu.memory_space<vmem>>, vector<200x128xbf16>
    %35 = arith.extf %34 : vector<200x128xbf16> to vector<200x128xf32>
    %36 = arith.addf %33, %35 : vector<200x128xf32>
    %c0_21 = arith.constant 0 : index
    %c0_22 = arith.constant 0 : index
    %37 = vector.load %arg4[%c0_21, %c0_22] : memref<200x1xf32, #tpu.memory_space<vmem>>, vector<200x1xf32>
    %38 = vector.broadcast %37 : vector<200x1xf32> to vector<200x128xf32>
    %39 = arith.mulf %36, %38 : vector<200x128xf32>
    %cst_23 = arith.constant dense<0.000000e+00> : vector<128xf32>
    %40 = vector.multi_reduction <add>, %39, %cst_23 [0] : vector<200x128xf32> to vector<128xf32>
    %41 = vector.shape_cast %40 : vector<128xf32> to vector<1x128xf32>
    %42 = arith.mulf %39, %39 : vector<200x128xf32>
    %cst_24 = arith.constant dense<0.000000e+00> : vector<128xf32>
    %43 = vector.multi_reduction <add>, %42, %cst_24 [0] : vector<200x128xf32> to vector<128xf32>
    %44 = vector.shape_cast %43 : vector<128xf32> to vector<1x128xf32>
    %45 = tpu.concatenate %41, %44 in 0 : vector<1x128xf32>, vector<1x128xf32> -> vector<2x128xf32>
    %46 = vector.shape_cast %45 : vector<2x128xf32> to vector<1x2x128xf32>
    %c0_25 = arith.constant 0 : index
    %c0_26 = arith.constant 0 : index
    %c0_27 = arith.constant 0 : index
    %47 = vector.load %arg7[%c0_25, %c0_26, %c0_27] : memref<1x2x128xf32, #tpu.memory_space<vmem>>, vector<1x2x128xf32>
    tpu.vector_store %arg7[%c0_25, %c0_26, %c0_27], %46 {strides = array<i32>} : memref<1x2x128xf32, #tpu.memory_space<vmem>>, vector<1x2x128xf32>,
    %48 = arith.truncf %36 : vector<200x128xf32> to vector<200x128xbf16>
    %c0_28 = arith.constant 0 : index
    %c0_29 = arith.constant 0 : index
    %49 = vector.load %arg6[%c0_28, %c0_29] : memref<200x128xbf16, #tpu.memory_space<vmem>>, vector<200x128xbf16>
    tpu.vector_store %arg6[%c0_28, %c0_29], %48 {strides = array<i32>} : memref<200x128xbf16, #tpu.memory_space<vmem>>, vector<200x128xbf16>,
    return
  }
  func.func @transform_1(%arg0: i32, %arg1: i32) -> (i32, i32) {
    %c0_i32 = arith.constant 0 : i32
    %c0_i32_0 = arith.constant 0 : i32
    return %c0_i32, %arg0 : i32, i32
  }
  func.func @transform_2(%arg0: i32, %arg1: i32) -> (i32, i32) {
    %c0_i32 = arith.constant 0 : i32
    %c0_i32_0 = arith.constant 0 : i32
    return %arg1, %c0_i32 : i32, i32
  }
  func.func @transform_3(%arg0: i32, %arg1: i32) -> (i32, i32) {
    %c0_i32 = arith.constant 0 : i32
    return %arg1, %arg0 : i32, i32
  }
  func.func @transform_4(%arg0: i32, %arg1: i32) -> (i32, i32) {
    %c0_i32 = arith.constant 0 : i32
    return %arg1, %arg0 : i32, i32
  }
  func.func @transform_5(%arg0: i32, %arg1: i32) -> (i32, i32, i32) {
    %c0_i32 = arith.constant 0 : i32
    %c0_i32_0 = arith.constant 0 : i32
    return %arg1, %c0_i32, %arg0 : i32, i32, i32
  }
}

module attributes {stable_mosaic.version = 11 : i64} {
  func.func @_bn_norm_kernel(%arg0: i32, %arg1: memref<1x128xf32, #tpu.memory_space<vmem>>, %arg2: memref<1x128xf32, #tpu.memory_space<vmem>>, %arg3: memref<200x128xbf16, #tpu.memory_space<vmem>>, %arg4: memref<200x128xf32, #tpu.memory_space<vmem>>) attributes {dimension_semantics = [#tpu.dimension_semantics<parallel>], iteration_bounds = array<i64: 1>, scalar_prefetch = 0 : i64, scratch_operands = 0 : i64, tpu.core_type = #tpu.core_type<tc>, window_params = [{pipeline_mode = #tpu.pipeline_mode<synchronous>, transform_indices = @transform_0, window_bounds = array<i64: 1, 128>}, {pipeline_mode = #tpu.pipeline_mode<synchronous>, transform_indices = @transform_1, window_bounds = array<i64: 1, 128>}, {transform_indices = @transform_2, window_bounds = array<i64: 200, 128>}, {transform_indices = @transform_3, window_bounds = array<i64: 200, 128>}]} {
    %c0 = arith.constant 0 : index
    %c0_0 = arith.constant 0 : index
    %0 = vector.load %arg3[%c0, %c0_0] : memref<200x128xbf16, #tpu.memory_space<vmem>>, vector<200x128xbf16>
    %1 = arith.extf %0 : vector<200x128xbf16> to vector<200x128xf32>
    %c0_1 = arith.constant 0 : index
    %c0_2 = arith.constant 0 : index
    %2 = vector.load %arg1[%c0_1, %c0_2] : memref<1x128xf32, #tpu.memory_space<vmem>>, vector<1x128xf32>
    %3 = vector.broadcast %2 : vector<1x128xf32> to vector<200x128xf32>
    %4 = arith.subf %1, %3 : vector<200x128xf32>
    %c0_3 = arith.constant 0 : index
    %c0_4 = arith.constant 0 : index
    %5 = vector.load %arg2[%c0_3, %c0_4] : memref<1x128xf32, #tpu.memory_space<vmem>>, vector<1x128xf32>
    %6 = vector.broadcast %5 : vector<1x128xf32> to vector<200x128xf32>
    %7 = arith.mulf %4, %6 : vector<200x128xf32>
    %cst = arith.constant 0.000000e+00 : f32
    %8 = vector.broadcast %cst : f32 to vector<200x128xf32>
    %9 = arith.maximumf %7, %8 : vector<200x128xf32>
    %c0_5 = arith.constant 0 : index
    %c0_6 = arith.constant 0 : index
    %10 = vector.load %arg4[%c0_5, %c0_6] : memref<200x128xf32, #tpu.memory_space<vmem>>, vector<200x128xf32>
    tpu.vector_store %arg4[%c0_5, %c0_6], %9 {strides = array<i32>} : memref<200x128xf32, #tpu.memory_space<vmem>>, vector<200x128xf32>,
    return
  }
  func.func @transform_0(%arg0: i32) -> (i32, i32) {
    %c0_i32 = arith.constant 0 : i32
    %c0_i32_0 = arith.constant 0 : i32
    %c0_i32_1 = arith.constant 0 : i32
    return %c0_i32, %c0_i32_0 : i32, i32
  }
  func.func @transform_1(%arg0: i32) -> (i32, i32) {
    %c0_i32 = arith.constant 0 : i32
    %c0_i32_0 = arith.constant 0 : i32
    %c0_i32_1 = arith.constant 0 : i32
    return %c0_i32, %c0_i32_0 : i32, i32
  }
  func.func @transform_2(%arg0: i32) -> (i32, i32) {
    %c0_i32 = arith.constant 0 : i32
    %c0_i32_0 = arith.constant 0 : i32
    return %arg0, %c0_i32 : i32, i32
  }
  func.func @transform_3(%arg0: i32) -> (i32, i32) {
    %c0_i32 = arith.constant 0 : i32
    %c0_i32_0 = arith.constant 0 : i32
    return %arg0, %c0_i32 : i32, i32
  }
}

</mosaic_0001>

<llo_original>
// kernel: residual_block_forward.6
$region0: #{residual_block_forward.6}
  #allocation0 [shape = 'u32[]', space=smem, size = 0x4, offset = 0x4, fixed_abs, tag = 'smem constant byte address 0x4 - core index']
  #allocation1 [shape = 'u32[144,128]{1,0:T(1,128)}', space=vmem, size = 0x12000, scoped, tag = 'internal scratch']
  %s0 = inlined_call_operand.vmem [shape: f32[1,128], index: 0, kind: input, shape index: {}]
  %s1 = inlined_call_operand.vmem [shape: f32[1,128], index: 1, kind: input, shape index: {}]
  %s2 = inlined_call_operand.vmem [shape: bf16[168,128], index: 2, kind: input, shape index: {}]
  %s3 = inlined_call_operand.vmem [shape: bf16[168,128], index: 3, kind: output, shape index: {}]
  %s4 = sld [smem:[#allocation0]]
  $region22: #{residual_block_forward.6} parent=0
    _
  %s6 = ssub.s32 1, %s4
  %s7 = scalar_select 0, %s6, %s4
  // Predicated region
  $region2: #{residual_block_forward.6} parent=0 // pred_check
    _
  $region3: #{residual_block_forward.6} parent=0 // pred_check_branch
    %9 = sbr.rel (0) target = $region5
  $region4: #{residual_block_forward.6} parent=0 // pred_region
    _
  $region5: #{residual_block_forward.6} parent=0 // pred_fallthru
    _
  // Predicated region
  $region6: #{residual_block_forward.6} parent=0 // pred_check
    _
  $region7: #{residual_block_forward.6} parent=0 // pred_check_branch
    %11 = sbr.rel (0) target = $region9
  $region8: #{residual_block_forward.6} parent=0 // pred_region
    _
  $region9: #{residual_block_forward.6} parent=0 // pred_fallthru
    _
  // Predicated region
  $region10: #{residual_block_forward.6} parent=0 // pred_check
    _
  $region11: #{residual_block_forward.6} parent=0 // pred_check_branch
    %13 = sbr.rel (0) target = $region13
  $region12: #{residual_block_forward.6} parent=0 // pred_region
    _
  $region13: #{residual_block_forward.6} parent=0 // pred_fallthru
    _
  %v14 = vld [vmem:[%s2] sm:$0xf]
  %v15 = vld [vmem:[%s2 + $0x4] sm:$0xf]
  %v16 = vld [vmem:[%s2 + $0x8] sm:$0xf]
  %v17 = vld [vmem:[%s2 + $0xc] sm:$0xf]
  %v18 = vld [vmem:[%s2 + $0x10] sm:$0xf]
  %v19 = vld [vmem:[%s2 + $0x14] sm:$0xf]
  %v20 = vld [vmem:[%s2 + $0x18] sm:$0xf]
  %v21 = vld [vmem:[%s2 + $0x1c] sm:$0xf]
  %v22 = vld [vmem:[%s2 + $0x20] sm:$0xf]
  %v23 = vld [vmem:[%s2 + $0x24] sm:$0xf]
  %v24 = vld [vmem:[%s2 + $0x28] sm:$0xf]
  %v25 = vld [vmem:[%s2 + $0x2c] sm:$0xf]
  %v26 = vld [vmem:[%s2 + $0x30] sm:$0xf]
  %v27 = vld [vmem:[%s2 + $0x34] sm:$0xf]
  %v28 = vld [vmem:[%s2 + $0x38] sm:$0xf]
  %v29 = vld [vmem:[%s2 + $0x3c] sm:$0xf]
  %v30 = vld [vmem:[%s2 + $0x40] sm:$0xf]
  %v31 = vld [vmem:[%s2 + $0x44] sm:$0xf]
  %v32 = vld [vmem:[%s2 + $0x48] sm:$0xf]
  %v33 = vld [vmem:[%s2 + $0x4c] sm:$0xf]
  %v34 = vld [vmem:[%s2 + $0x50] sm:$0xf]
  %v35 = vunpack.c.l.bf16 %v14
  %v36 = vunpack.c.l.bf16 %v15
  %v37 = vunpack.c.l.bf16 %v16
  %v38 = vunpack.c.l.bf16 %v17
  %v39 = vunpack.c.l.bf16 %v18
  %v40 = vunpack.c.l.bf16 %v19
  %v41 = vunpack.c.l.bf16 %v20
  %v42 = vunpack.c.l.bf16 %v21
  %v43 = vunpack.c.l.bf16 %v22
  %v44 = vunpack.c.l.bf16 %v23
  %v45 = vunpack.c.l.bf16 %v24
  %v46 = vunpack.c.l.bf16 %v25
  %v47 = vunpack.c.l.bf16 %v26
  %v48 = vunpack.c.l.bf16 %v27
  %v49 = vunpack.c.l.bf16 %v28
  %v50 = vunpack.c.l.bf16 %v29
  %v51 = vunpack.c.l.bf16 %v30
  %v52 = vunpack.c.l.bf16 %v31
  %v53 = vunpack.c.l.bf16 %v32
  %v54 = vunpack.c.l.bf16 %v33
  %v55 = vunpack.c.l.bf16 %v34
  %v56 = vld [vmem:[%s0] sm:$0x1]
  %v58 = vlaneseq
  %v59 = vshrl.u32 %v58, 7
  %v60 = vsub.s32 0, %v59
  %v61 = vrot.slane %v56, %v60
  %v63 = vsub.f32 %v35, %v61
  %v64 = vsub.f32 %v36, %v61
  %v65 = vsub.f32 %v37, %v61
  %v66 = vsub.f32 %v38, %v61
  %v67 = vsub.f32 %v39, %v61
  %v68 = vsub.f32 %v40, %v61
  %v69 = vsub.f32 %v41, %v61
  %v70 = vsub.f32 %v42, %v61
  %v71 = vsub.f32 %v43, %v61
  %v72 = vsub.f32 %v44, %v61
  %v73 = vsub.f32 %v45, %v61
  %v74 = vsub.f32 %v46, %v61
  %v75 = vsub.f32 %v47, %v61
  %v76 = vsub.f32 %v48, %v61
  %v77 = vsub.f32 %v49, %v61
  %v78 = vsub.f32 %v50, %v61
  %v79 = vsub.f32 %v51, %v61
  %v80 = vsub.f32 %v52, %v61
  %v81 = vsub.f32 %v53, %v61
  %v82 = vsub.f32 %v54, %v61
  %v83 = vsub.f32 %v55, %v61
  %v84 = vld [vmem:[%s1] sm:$0x1]
  %v86 = vlaneseq
  %v87 = vshrl.u32 %v86, 7
  %v88 = vsub.s32 0, %v87
  %v89 = vrot.slane %v84, %v88
  %v91 = vmul.f32 %v63, %v89
  %v92 = vmul.f32 %v64, %v89
  %v93 = vmul.f32 %v65, %v89
  %v94 = vmul.f32 %v66, %v89
  %v95 = vmul.f32 %v67, %v89
  %v96 = vmul.f32 %v68, %v89
  %v97 = vmul.f32 %v69, %v89
  %v98 = vmul.f32 %v70, %v89
  %v99 = vmul.f32 %v71, %v89
  %v100 = vmul.f32 %v72, %v89
  %v101 = vmul.f32 %v73, %v89
  %v102 = vmul.f32 %v74, %v89
  %v103 = vmul.f32 %v75, %v89
  %v104 = vmul.f32 %v76, %v89
  %v105 = vmul.f32 %v77, %v89
  %v106 = vmul.f32 %v78, %v89
  %v107 = vmul.f32 %v79, %v89
  %v108 = vmul.f32 %v80, %v89
  %v109 = vmul.f32 %v81, %v89
  %v110 = vmul.f32 %v82, %v89
  %v111 = vmul.f32 %v83, %v89
  %v112 = vmax.f32 %v91, 0.0
  %v113 = vmax.f32 %v92, 0.0
  %v114 = vmax.f32 %v93, 0.0
  %v115 = vmax.f32 %v94, 0.0
  %v116 = vmax.f32 %v95, 0.0
  %v117 = vmax.f32 %v96, 0.0
  %v118 = vmax.f32 %v97, 0.0
  %v119 = vmax.f32 %v98, 0.0
  %v120 = vmax.f32 %v99, 0.0
  %v121 = vmax.f32 %v100, 0.0
  %v122 = vmax.f32 %v101, 0.0
  %v123 = vmax.f32 %v102, 0.0
  %v124 = vmax.f32 %v103, 0.0
  %v125 = vmax.f32 %v104, 0.0
  %v126 = vmax.f32 %v105, 0.0
  %v127 = vmax.f32 %v106, 0.0
  %v128 = vmax.f32 %v107, 0.0
  %v129 = vmax.f32 %v108, 0.0
  %v130 = vmax.f32 %v109, 0.0
  %v131 = vmax.f32 %v110, 0.0
  %v132 = vmax.f32 %v111, 0.0
  %v133 = vpack.c.bf16 %v113, %v112
  %v134 = vpack.c.bf16 %v115, %v114
  %v135 = vpack.c.bf16 %v117, %v116
  %v136 = vpack.c.bf16 %v119, %v118
  %v137 = vpack.c.bf16 %v121, %v120
  %v138 = vpack.c.bf16 %v123, %v122
  %v139 = vpack.c.bf16 %v125, %v124
  %v140 = vpack.c.bf16 %v127, %v126
  %v141 = vpack.c.bf16 %v129, %v128
  %v142 = vpack.c.bf16 %v131, %v130
  %v143 = vpack.c.bf16 %v132, %v132
  %v155 = vunpack.c.l.b16 %v133
  %v156 = vunpack.c.h.b16 %v133
  %v157 = vunpack.c.l.b16 %v134
  %v158 = vunpack.c.h.b16 %v134
  %v159 = vunpack.c.l.b16 %v135
  %v160 = vunpack.c.h.b16 %v135
  %v161 = vunpack.c.l.b16 %v136
  %v162 = vunpack.c.h.b16 %v136
  %v163 = vunpack.c.l.b16 %v137
  %v164 = vunpack.c.h.b16 %v137
  %v165 = vunpack.c.l.b16 %v138
  %v166 = vunpack.c.h.b16 %v138
  %v167 = vunpack.c.l.b16 %v139
  %v168 = vunpack.c.h.b16 %v139
  %v169 = vunpack.c.l.b16 %v140
  %v170 = vunpack.c.h.b16 %v140
  %v171 = vunpack.c.l.b16 %v141
  %v172 = vunpack.c.h.b16 %v141
  %v173 = vunpack.c.l.b16 %v142
  %v174 = vunpack.c.h.b16 %v142
  %v175 = vunpack.c.l.b16 %v143
  %v176 = vpack.c.b16 %v155, %v155
  %v177 = vpack.c.b16 %v156, %v156
  %v178 = vpack.c.b16 %v157, %v157
  %v179 = vpack.c.b16 %v158, %v158
  %v180 = vpack.c.b16 %v159, %v159
  %v181 = vpack.c.b16 %v160, %v160
  %v182 = vpack.c.b16 %v161, %v161
  %v183 = vpack.c.b16 %v162, %v162
  %v184 = vpack.c.b16 %v163, %v163
  %v185 = vpack.c.b16 %v164, %v164
  %v186 = vpack.c.b16 %v165, %v165
  %v187 = vpack.c.b16 %v166, %v166
  %v188 = vpack.c.b16 %v167, %v167
  %v189 = vpack.c.b16 %v168, %v168
  %v190 = vpack.c.b16 %v169, %v169
  %v191 = vpack.c.b16 %v170, %v170
  %v192 = vpack.c.b16 %v171, %v171
  %v193 = vpack.c.b16 %v172, %v172
  %v194 = vpack.c.b16 %v173, %v173
  %v195 = vpack.c.b16 %v174, %v174
  %v196 = vpack.c.b16 %v175, %v175
  %218 = vst [vmem:[%s3] sm:$0xf] %v176
  %219 = vst [vmem:[%s3 + $0x4] sm:$0xf] %v177
  %220 = vst [vmem:[%s3 + $0x8] sm:$0xf] %v178
  %221 = vst [vmem:[%s3 + $0xc] sm:$0xf] %v179
  %222 = vst [vmem:[%s3 + $0x10] sm:$0xf] %v180
  %223 = vst [vmem:[%s3 + $0x14] sm:$0xf] %v181
  %224 = vst [vmem:[%s3 + $0x18] sm:$0xf] %v182
  %225 = vst [vmem:[%s3 + $0x1c] sm:$0xf] %v183
  %226 = vst [vmem:[%s3 + $0x20] sm:$0xf] %v184
  %227 = vst [vmem:[%s3 + $0x24] sm:$0xf] %v185
  %228 = vst [vmem:[%s3 + $0x28] sm:$0xf] %v186
  %229 = vst [vmem:[%s3 + $0x2c] sm:$0xf] %v187
  %230 = vst [vmem:[%s3 + $0x30] sm:$0xf] %v188
  %231 = vst [vmem:[%s3 + $0x34] sm:$0xf] %v189
  %232 = vst [vmem:[%s3 + $0x38] sm:$0xf] %v190
  %233 = vst [vmem:[%s3 + $0x3c] sm:$0xf] %v191
  %234 = vst [vmem:[%s3 + $0x40] sm:$0xf] %v192
  %235 = vst [vmem:[%s3 + $0x44] sm:$0xf] %v193
  %236 = vst [vmem:[%s3 + $0x48] sm:$0xf] %v194
  %237 = vst [vmem:[%s3 + $0x4c] sm:$0xf] %v195
  %238 = vst [vmem:[%s3 + $0x50] sm:$0xf] %v196
  // Predicated region
  $region14: #{residual_block_forward.6} parent=0 // pred_check
    _
  $region15: #{residual_block_forward.6} parent=0 // pred_check_branch
    %240 = sbr.rel (0) target = $region17
  $region16: #{residual_block_forward.6} parent=0 // pred_region
    _
  $region17: #{residual_block_forward.6} parent=0 // pred_fallthru
    _
  // Predicated region
  $region18: #{residual_block_forward.6} parent=0 // pred_check
    _
  $region19: #{residual_block_forward.6} parent=0 // pred_check_branch
    %242 = sbr.rel (0) target = $region21
  $region20: #{residual_block_forward.6} parent=0 // pred_region
    _
  $region21: #{residual_block_forward.6} parent=0 // pred_fallthru
    _

// kernel: residual_block_forward.7
$region0: #{residual_block_forward.7}
  #allocation0 [shape = 'u32[]', space=smem, size = 0x4, offset = 0x4, fixed_abs, tag = 'smem constant byte address 0x4 - core index']
  #allocation1 [shape = 'u32[144,128]{1,0:T(1,128)}', space=vmem, size = 0x12000, scoped, tag = 'internal scratch']
  #allocation2 [shape = 'bf16[128,128]{1,0:T(16,128)(2,1)}', space=vmem, size = 0x8000, scoped, tag = 'scratch operand']
  #allocation3 [shape = 'bf16[128,128]{1,0:T(16,128)(2,1)}', space=vmem, size = 0x8000, scoped, tag = 'scratch operand']
  #allocation4 [shape = 'bf16[128,128]{1,0:T(16,128)(2,1)}', space=vmem, size = 0x8000, scoped, tag = 'scratch operand']
  #allocation5 [shape = 's32[2]{0}', space=sflag, size = 0x8, scoped, tag = 'scratch operand']
  #allocation8 [shape = 's32[]', space=sflag, size = 0x4, offset = 0, fixed_abs, tag = 'sflag constant byte address 0x0 - dummy sync flag']
  #allocation9 [shape = 's32[]', space=sflag, size = 0x4, offset = 0, fixed_abs, tag = 'sflag constant byte address 0x0 - dummy sync flag']
  #allocation10 [shape = 's32[]', space=sflag, size = 0x4, offset = 0, fixed_abs, tag = 'sflag constant byte address 0x0 - dummy sync flag']
  %s0 = inlined_call_operand.vmem [shape: bf16[128,128], index: 0, kind: input, shape index: {}]
  %s1 = inlined_call_operand.vmem [shape: bf16[128,128], index: 1, kind: input, shape index: {}]
  %s2 = inlined_call_operand.vmem [shape: f32[128,1], index: 2, kind: input, shape index: {}]
  %s3 = inlined_call_operand.vmem [shape: bf16[128,128], index: 3, kind: output, shape index: {0}]
  %s4 = inlined_call_operand.hbm [shape: f32[1,2,128], index: 4, kind: output, shape index: {1}]
  %5 = xla_tuple %s3, %s4
  %s6 = sld [smem:[#allocation0]]
  $region148: #{residual_block_forward.7} parent=0
    _
  %s8 = ssub.s32 1, %s6
  %s9 = scalar_select 0, %s8, %s6
  $region1: #{residual_block_forward.7} parent=0
    #allocation6 [shape = 'u8[1024]{0}', space=vmem, size = 0x400, scoped, tag = 'output window, operand 1, single buffered']
    #allocation7 [shape = 's32[1]{0}', space=sflag, size = 0x4, scoped, tag = 'scoped memory for residual_block_forward.7']
    %10 = vsyncpa [#allocation7], 0
    // Predicated region
    $region2: #{residual_block_forward.7} parent=1 // pred_check
      _
    $region3: #{residual_block_forward.7} parent=1 // pred_check_branch
      %12 = sbr.rel (0) target = $region5
    $region4: #{residual_block_forward.7} parent=1 // pred_region
      _
    $region5: #{residual_block_forward.7} parent=1 // pred_fallthru
      _
    // Predicated region
    $region6: #{residual_block_forward.7} parent=1 // pred_check
      _
    $region7: #{residual_block_forward.7} parent=1 // pred_check_branch
      %14 = sbr.rel (0) target = $region9
    $region8: #{residual_block_forward.7} parent=1 // pred_region
      _
    $region9: #{residual_block_forward.7} parent=1 // pred_fallthru
      _
    %s16 = sadd.s32 0, 0
    %p17 = scmp.eq.s32.totalorder %s16, 0
    // Predicated region
    $region10: #{residual_block_forward.7} parent=1 // pred_check
      %p18 = pneg %p17
    $region11: #{residual_block_forward.7} parent=1 // pred_check_branch
      %20 = sbr.rel (%p18) target = $region13
    $region12: #{residual_block_forward.7} parent=1 // pred_region
      %p22 = scmp.lt.u32.totalorder 64, 8
      %p23 = pneg %p22
      // Predicated region
      $region14: #{residual_block_forward.7} parent=12 // pred_check
        _
      $region15: #{residual_block_forward.7} parent=12 // pred_check_branch
        %25 = sbr.rel (%p22) target = $region17
      $region16: #{residual_block_forward.7} parent=12 // pred_region
        %s40 = sand.u32 64, 7
        %p41 = scmp.eq.s32.totalorder %s40, 0
        // Predicated region
        $region29: #{residual_block_forward.7} parent=16 // pred_check
          %p42 = pneg %p41
        $region30: #{residual_block_forward.7} parent=16 // pred_check_branch
          %44 = sbr.rel (%p42) target = $region32
        $region31: #{residual_block_forward.7} parent=16 // pred_region
          loop: start=0, step=1, limit=1
          $region33: #{residual_block_forward.7} parent=31 // loop_pre_header
            _
          $region34: #{residual_block_forward.7} parent=31 // loop_header
            %s46 = sphi 0, %s50
            %p47 = scmp.ge.s32.totalorder %s46, 1
            %s51 = sphi %s0, %s0
            %s52 = sphi [#allocation2], [#allocation2]
          $region35: #{residual_block_forward.7} parent=31 // loop_header_branch
            %49 = sbr.rel (%p47) target = $region39
          $region36: #{residual_block_forward.7} parent=31 // loop_body
            %v53 = vld [vmem:[%s51] sm:$0xff]
            %54 = vst [vmem:[%s52] sm:$0xff] %v53
            %v55 = vld [vmem:[%s51 + $0x8] sm:$0xff]
            %56 = vst [vmem:[%s52 + $0x8] sm:$0xff] %v55
            %v57 = vld [vmem:[%s51 + $0x10] sm:$0xff]
            %58 = vst [vmem:[%s52 + $0x10] sm:$0xff] %v57
            %v59 = vld [vmem:[%s51 + $0x18] sm:$0xff]
            %60 = vst [vmem:[%s52 + $0x18] sm:$0xff] %v59
            %v61 = vld [vmem:[%s51 + $0x20] sm:$0xff]
            %62 = vst [vmem:[%s52 + $0x20] sm:$0xff] %v61
            %v63 = vld [vmem:[%s51 + $0x28] sm:$0xff]
            %64 = vst [vmem:[%s52 + $0x28] sm:$0xff] %v63
            %v65 = vld [vmem:[%s51 + $0x30] sm:$0xff]
            %66 = vst [vmem:[%s52 + $0x30] sm:$0xff] %v65
            %v67 = vld [vmem:[%s51 + $0x38] sm:$0xff]
            %68 = vst [vmem:[%s52 + $0x38] sm:$0xff] %v67
          $region37: #{residual_block_forward.7} parent=31 // loop_footer
            %s50 = sadd.s32 1, %s46
          $region38: #{residual_block_forward.7} parent=31 // loop_footer_branch
            %45 = sbr.rel target = $region34
          $region39: #{residual_block_forward.7} parent=31 // loop_exit
            _
        $region32: #{residual_block_forward.7} parent=16 // pred_fallthru
          _
        %p69 = pneg %p41
        // Predicated region
        $region40: #{residual_block_forward.7} parent=16 // pred_check
          _
        $region41: #{residual_block_forward.7} parent=16 // pred_check_branch
          %71 = sbr.rel (%p41) target = $region43
        $region42: #{residual_block_forward.7} parent=16 // pred_region
          %s72 = sand.u32 64, 7
        $region43: #{residual_block_forward.7} parent=16 // pred_fallthru
          _
      $region17: #{residual_block_forward.7} parent=12 // pred_fallthru
        _
      // Predicated region
      $region18: #{residual_block_forward.7} parent=12 // pred_check
        %p26 = pneg %p22
      $region19: #{residual_block_forward.7} parent=12 // pred_check_branch
        %28 = sbr.rel (%p26) target = $region21
      $region20: #{residual_block_forward.7} parent=12 // pred_region
        %s29 = sshllo.u32 0, 64
        loop: start=0, step=1, limit=1
        $region22: #{residual_block_forward.7} parent=20 // loop_pre_header
          _
        $region23: #{residual_block_forward.7} parent=20 // loop_header
          %s31 = sphi 0, %s35
          %p32 = scmp.ge.s32.totalorder %s31, 1
          %s36 = sphi %s0, %s0
          %s37 = sphi [#allocation2], [#allocation2]
        $region24: #{residual_block_forward.7} parent=20 // loop_header_branch
          %34 = sbr.rel (%p32) target = $region28
        $region25: #{residual_block_forward.7} parent=20 // loop_body
          %v38 = vld [vmem:[%s36] sm:%s29]
          %39 = vst [vmem:[%s37] sm:%s29] %v38
        $region26: #{residual_block_forward.7} parent=20 // loop_footer
          %s35 = sadd.s32 1, %s31
        $region27: #{residual_block_forward.7} parent=20 // loop_footer_branch
          %30 = sbr.rel target = $region23
        $region28: #{residual_block_forward.7} parent=20 // loop_exit
          _
      $region21: #{residual_block_forward.7} parent=12 // pred_fallthru
        _
      // Predicated region
      $region44: #{residual_block_forward.7} parent=12 // pred_check
        _
      $region45: #{residual_block_forward.7} parent=12 // pred_check_branch
        %75 = sbr.rel (0) target = $region47
      $region46: #{residual_block_forward.7} parent=12 // pred_region
        %76 = vsyncadd [#allocation5], 1024
      $region47: #{residual_block_forward.7} parent=12 // pred_fallthru
        _
    $region13: #{residual_block_forward.7} parent=1 // pred_fallthru
      _
    %p77 = scmp.lt.s32.totalorder %s16, 0
    %s78 = ssub.s32 0, %s16
    %s79 = scalar_select %p77, %s78, %s16
    %s80 = sand.u32 %s79, 1
    %s81 = ssub.s32 0, %s80
    %s82 = scalar_select %p77, %s81, %s80
    %p83 = scmp.ne.s32.totalorder %s82, 0
    %p84 = scmp.lt.s32.totalorder %s82, 0
    %p85 = pnand %p84, %p83
    %p86 = pneg %p85
    %s87 = sadd.s32 %s82, 2
    %s88 = scalar_select %p86, %s87, %s82
    %p89 = scmp.eq.s32.totalorder %s88, 0
    // Predicated region
    $region48: #{residual_block_forward.7} parent=1 // pred_check
      %p90 = pneg %p89
    $region49: #{residual_block_forward.7} parent=1 // pred_check_branch
      %92 = sbr.rel (%p90) target = $region51
    $region50: #{residual_block_forward.7} parent=1 // pred_region
      %s93 = sadd.s32 0, 1
      %p94 = scmp.lt.s32.totalorder %s93, 1
      %s95 = sadd.s32 0, 1
      %p96 = scmp.lt.s32.totalorder %s95, 1
      %p97 = por %p94, %p96
      // Predicated region
      $region52: #{residual_block_forward.7} parent=50 // pred_check
        %p98 = pneg %p97
      $region53: #{residual_block_forward.7} parent=50 // pred_check_branch
        %100 = sbr.rel (%p98) target = $region55
      $region54: #{residual_block_forward.7} parent=50 // pred_region
        %s101 = scalar_select %p94, %s93, 0
        %s102 = smul.u32 %s101, 128
        %s103 = sshra.s32 %s102, 3
        %s104 = sand.u32 %s102, 7
        %s105 = smul.addr %s103, 4
        %s106 = scalar_lea.vmem %s0, %s105
        %s107 = scalar_lea.sflag [#allocation5], 1
        %p109 = scmp.lt.u32.totalorder 64, 8
        %p110 = pneg %p109
        // Predicated region
        $region56: #{residual_block_forward.7} parent=54 // pred_check
          _
        $region57: #{residual_block_forward.7} parent=54 // pred_check_branch
          %112 = sbr.rel (%p109) target = $region59
        $region58: #{residual_block_forward.7} parent=54 // pred_region
          %s127 = sand.u32 64, 7
          %p128 = scmp.eq.s32.totalorder %s127, 0
          // Predicated region
          $region71: #{residual_block_forward.7} parent=58 // pred_check
            %p129 = pneg %p128
          $region72: #{residual_block_forward.7} parent=58 // pred_check_branch
            %131 = sbr.rel (%p129) target = $region74
          $region73: #{residual_block_forward.7} parent=58 // pred_region
            loop: start=0, step=1, limit=1
            $region75: #{residual_block_forward.7} parent=73 // loop_pre_header
              _
            $region76: #{residual_block_forward.7} parent=73 // loop_header
              %s133 = sphi 0, %s137
              %p134 = scmp.ge.s32.totalorder %s133, 1
              %s138 = sphi %s106, %s106
              %s139 = sphi [#allocation3], [#allocation3]
            $region77: #{residual_block_forward.7} parent=73 // loop_header_branch
              %136 = sbr.rel (%p134) target = $region81
            $region78: #{residual_block_forward.7} parent=73 // loop_body
              %v140 = vld [vmem:[%s138] sm:$0xff]
              %141 = vst [vmem:[%s139] sm:$0xff] %v140
              %v142 = vld [vmem:[%s138 + $0x8] sm:$0xff]
              %143 = vst [vmem:[%s139 + $0x8] sm:$0xff] %v142
              %v144 = vld [vmem:[%s138 + $0x10] sm:$0xff]
              %145 = vst [vmem:[%s139 + $0x10] sm:$0xff] %v144
              %v146 = vld [vmem:[%s138 + $0x18] sm:$0xff]
              %147 = vst [vmem:[%s139 + $0x18] sm:$0xff] %v146
              %v148 = vld [vmem:[%s138 + $0x20] sm:$0xff]
              %149 = vst [vmem:[%s139 + $0x20] sm:$0xff] %v148
              %v150 = vld [vmem:[%s138 + $0x28] sm:$0xff]
              %151 = vst [vmem:[%s139 + $0x28] sm:$0xff] %v150
              %v152 = vld [vmem:[%s138 + $0x30] sm:$0xff]
              %153 = vst [vmem:[%s139 + $0x30] sm:$0xff] %v152
              %v154 = vld [vmem:[%s138 + $0x38] sm:$0xff]
              %155 = vst [vmem:[%s139 + $0x38] sm:$0xff] %v154
            $region79: #{residual_block_forward.7} parent=73 // loop_footer
              %s137 = sadd.s32 1, %s133
            $region80: #{residual_block_forward.7} parent=73 // loop_footer_branch
              %132 = sbr.rel target = $region76
            $region81: #{residual_block_forward.7} parent=73 // loop_exit
              _
          $region74: #{residual_block_forward.7} parent=58 // pred_fallthru
            _
          %p156 = pneg %p128
          // Predicated region
          $region82: #{residual_block_forward.7} parent=58 // pred_check
            _
          $region83: #{residual_block_forward.7} parent=58 // pred_check_branch
            %158 = sbr.rel (%p128) target = $region85
          $region84: #{residual_block_forward.7} parent=58 // pred_region
            %s159 = sand.u32 64, 7
          $region85: #{residual_block_forward.7} parent=58 // pred_fallthru
            _
        $region59: #{residual_block_forward.7} parent=54 // pred_fallthru
          _
        // Predicated region
        $region60: #{residual_block_forward.7} parent=54 // pred_check
          %p113 = pneg %p109
        $region61: #{residual_block_forward.7} parent=54 // pred_check_branch
          %115 = sbr.rel (%p113) target = $region63
        $region62: #{residual_block_forward.7} parent=54 // pred_region
          %s116 = sshllo.u32 0, 64
          loop: start=0, step=1, limit=1
          $region64: #{residual_block_forward.7} parent=62 // loop_pre_header
            _
          $region65: #{residual_block_forward.7} parent=62 // loop_header
            %s118 = sphi 0, %s122
            %p119 = scmp.ge.s32.totalorder %s118, 1
            %s123 = sphi %s106, %s106
            %s124 = sphi [#allocation3], [#allocation3]
          $region66: #{residual_block_forward.7} parent=62 // loop_header_branch
            %121 = sbr.rel (%p119) target = $region70
          $region67: #{residual_block_forward.7} parent=62 // loop_body
            %v125 = vld [vmem:[%s123] sm:%s116]
            %126 = vst [vmem:[%s124] sm:%s116] %v125
          $region68: #{residual_block_forward.7} parent=62 // loop_footer
            %s122 = sadd.s32 1, %s118
          $region69: #{residual_block_forward.7} parent=62 // loop_footer_branch
            %117 = sbr.rel target = $region65
          $region70: #{residual_block_forward.7} parent=62 // loop_exit
            _
        $region63: #{residual_block_forward.7} parent=54 // pred_fallthru
          _
        // Predicated region
        $region86: #{residual_block_forward.7} parent=54 // pred_check
          _
        $region87: #{residual_block_forward.7} parent=54 // pred_check_branch
          %162 = sbr.rel (0) target = $region89
        $region88: #{residual_block_forward.7} parent=54 // pred_region
          %163 = vsyncadd %s107, 1024
        $region89: #{residual_block_forward.7} parent=54 // pred_fallthru
          _
      $region55: #{residual_block_forward.7} parent=50 // pred_fallthru
        _
      %s164 = smul.u32 0, 128
      %s165 = smul.u32 4, 16
      %s166 = smul.u32 %s165, 1
      %s167 = sshll.u32 %s166, 4
      %168 = dma.done [#allocation5], %s167
      %v169 = vld [vmem:[#allocation2] sm:$0xff]
      %v170 = vld [vmem:[#allocation2 + $0x8] sm:$0xff]
      %v171 = vld [vmem:[#allocation2 + $0x10] sm:$0xff]
      %v172 = vld [vmem:[#allocation2 + $0x18] sm:$0xff]
      %v173 = vld [vmem:[#allocation2 + $0x20] sm:$0xff]
      %v174 = vld [vmem:[#allocation2 + $0x28] sm:$0xff]
      %v175 = vld [vmem:[#allocation2 + $0x30] sm:$0xff]
      %v176 = vld [vmem:[#allocation2 + $0x38] sm:$0xff]
      %177 = vst [vmem:[#allocation4] sm:$0xff] %v169
      %178 = vst [vmem:[#allocation4 + $0x8] sm:$0xff] %v170
      %179 = vst [vmem:[#allocation4 + $0x10] sm:$0xff] %v171
      %180 = vst [vmem:[#allocation4 + $0x18] sm:$0xff] %v172
      %181 = vst [vmem:[#allocation4 + $0x20] sm:$0xff] %v173
      %182 = vst [vmem:[#allocation4 + $0x28] sm:$0xff] %v174
      %183 = vst [vmem:[#allocation4 + $0x30] sm:$0xff] %v175
      %184 = vst [vmem:[#allocation4 + $0x38] sm:$0xff] %v176
    $region51: #{residual_block_forward.7} parent=1 // pred_fallthru
      _
    %p185 = scmp.eq.s32.totalorder %s88, 1
    // Predicated region
    $region90: #{residual_block_forward.7} parent=1 // pred_check
      %p186 = pneg %p185
    $region91: #{residual_block_forward.7} parent=1 // pred_check_branch
      %188 = sbr.rel (%p186) target = $region93
    $region92: #{residual_block_forward.7} parent=1 // pred_region
      %s189 = sadd.s32 0, 1
      %p190 = scmp.lt.s32.totalorder %s189, 1
      %s191 = sadd.s32 0, 1
      %p192 = scmp.lt.s32.totalorder %s191, 1
      %p193 = por %p190, %p192
      // Predicated region
      $region94: #{residual_block_forward.7} parent=92 // pred_check
        %p194 = pneg %p193
      $region95: #{residual_block_forward.7} parent=92 // pred_check_branch
        %196 = sbr.rel (%p194) target = $region97
      $region96: #{residual_block_forward.7} parent=92 // pred_region
        %s197 = scalar_select %p190, %s189, 0
        %s198 = smul.u32 %s197, 128
        %s199 = sshra.s32 %s198, 3
        %s200 = sand.u32 %s198, 7
        %s201 = smul.addr %s199, 4
        %s202 = scalar_lea.vmem %s0, %s201
        %p204 = scmp.lt.u32.totalorder 64, 8
        %p205 = pneg %p204
        // Predicated region
        $region98: #{residual_block_forward.7} parent=96 // pred_check
          _
        $region99: #{residual_block_forward.7} parent=96 // pred_check_branch
          %207 = sbr.rel (%p204) target = $region101
        $region100: #{residual_block_forward.7} parent=96 // pred_region
          %s222 = sand.u32 64, 7
          %p223 = scmp.eq.s32.totalorder %s222, 0
          // Predicated region
          $region113: #{residual_block_forward.7} parent=100 // pred_check
            %p224 = pneg %p223
          $region114: #{residual_block_forward.7} parent=100 // pred_check_branch
            %226 = sbr.rel (%p224) target = $region116
          $region115: #{residual_block_forward.7} parent=100 // pred_region
            loop: start=0, step=1, limit=1
            $region117: #{residual_block_forward.7} parent=115 // loop_pre_header
              _
            $region118: #{residual_block_forward.7} parent=115 // loop_header
              %s228 = sphi 0, %s232
              %p229 = scmp.ge.s32.totalorder %s228, 1
              %s233 = sphi %s202, %s202
              %s234 = sphi [#allocation2], [#allocation2]
            $region119: #{residual_block_forward.7} parent=115 // loop_header_branch
              %231 = sbr.rel (%p229) target = $region123
            $region120: #{residual_block_forward.7} parent=115 // loop_body
              %v235 = vld [vmem:[%s233] sm:$0xff]
              %236 = vst [vmem:[%s234] sm:$0xff] %v235
              %v237 = vld [vmem:[%s233 + $0x8] sm:$0xff]
              %238 = vst [vmem:[%s234 + $0x8] sm:$0xff] %v237
              %v239 = vld [vmem:[%s233 + $0x10] sm:$0xff]
              %240 = vst [vmem:[%s234 + $0x10] sm:$0xff] %v239
              %v241 = vld [vmem:[%s233 + $0x18] sm:$0xff]
              %242 = vst [vmem:[%s234 + $0x18] sm:$0xff] %v241
              %v243 = vld [vmem:[%s233 + $0x20] sm:$0xff]
              %244 = vst [vmem:[%s234 + $0x20] sm:$0xff] %v243
              %v245 = vld [vmem:[%s233 + $0x28] sm:$0xff]
              %246 = vst [vmem:[%s234 + $0x28] sm:$0xff] %v245
              %v247 = vld [vmem:[%s233 + $0x30] sm:$0xff]
              %248 = vst [vmem:[%s234 + $0x30] sm:$0xff] %v247
              %v249 = vld [vmem:[%s233 + $0x38] sm:$0xff]
              %250 = vst [vmem:[%s234 + $0x38] sm:$0xff] %v249
            $region121: #{residual_block_forward.7} parent=115 // loop_footer
              %s232 = sadd.s32 1, %s228
            $region122: #{residual_block_forward.7} parent=115 // loop_footer_branch
              %227 = sbr.rel target = $region118
            $region123: #{residual_block_forward.7} parent=115 // loop_exit
              _
          $region116: #{residual_block_forward.7} parent=100 // pred_fallthru
            _
          %p251 = pneg %p223
          // Predicated region
          $region124: #{residual_block_forward.7} parent=100 // pred_check
            _
          $region125: #{residual_block_forward.7} parent=100 // pred_check_branch
            %253 = sbr.rel (%p223) target = $region127
          $region126: #{residual_block_forward.7} parent=100 // pred_region
            %s254 = sand.u32 64, 7
          $region127: #{residual_block_forward.7} parent=100 // pred_fallthru
            _
        $region101: #{residual_block_forward.7} parent=96 // pred_fallthru
          _
        // Predicated region
        $region102: #{residual_block_forward.7} parent=96 // pred_check
          %p208 = pneg %p204
        $region103: #{residual_block_forward.7} parent=96 // pred_check_branch
          %210 = sbr.rel (%p208) target = $region105
        $region104: #{residual_block_forward.7} parent=96 // pred_region
          %s211 = sshllo.u32 0, 64
          loop: start=0, step=1, limit=1
          $region106: #{residual_block_forward.7} parent=104 // loop_pre_header
            _
          $region107: #{residual_block_forward.7} parent=104 // loop_header
            %s213 = sphi 0, %s217
            %p214 = scmp.ge.s32.totalorder %s213, 1
            %s218 = sphi %s202, %s202
            %s219 = sphi [#allocation2], [#allocation2]
          $region108: #{residual_block_forward.7} parent=104 // loop_header_branch
            %216 = sbr.rel (%p214) target = $region112
          $region109: #{residual_block_forward.7} parent=104 // loop_body
            %v220 = vld [vmem:[%s218] sm:%s211]
            %221 = vst [vmem:[%s219] sm:%s211] %v220
          $region110: #{residual_block_forward.7} parent=104 // loop_footer
            %s217 = sadd.s32 1, %s213
          $region111: #{residual_block_forward.7} parent=104 // loop_footer_branch
            %212 = sbr.rel target = $region107
          $region112: #{residual_block_forward.7} parent=104 // loop_exit
            _
        $region105: #{residual_block_forward.7} parent=96 // pred_fallthru
          _
        // Predicated region
        $region128: #{residual_block_forward.7} parent=96 // pred_check
          _
        $region129: #{residual_block_forward.7} parent=96 // pred_check_branch
          %257 = sbr.rel (0) target = $region131
        $region130: #{residual_block_forward.7} parent=96 // pred_region
          %258 = vsyncadd [#allocation5], 1024
        $region131: #{residual_block_forward.7} parent=96 // pred_fallthru
          _
      $region97: #{residual_block_forward.7} parent=92 // pred_fallthru
        _
      %s259 = smul.u32 0, 128
      %s260 = scalar_lea.sflag [#allocation5], 1
      %s261 = smul.u32 4, 16
      %s262 = smul.u32 %s261, 1
      %s263 = sshll.u32 %s262, 4
      %264 = dma.done %s260, %s263
      %v265 = vld [vmem:[#allocation3] sm:$0xff]
      %v266 = vld [vmem:[#allocation3 + $0x8] sm:$0xff]
      %v267 = vld [vmem:[#allocation3 + $0x10] sm:$0xff]
      %v268 = vld [vmem:[#allocation3 + $0x18] sm:$0xff]
      %v269 = vld [vmem:[#allocation3 + $0x20] sm:$0xff]
      %v270 = vld [vmem:[#allocation3 + $0x28] sm:$0xff]
      %v271 = vld [vmem:[#allocation3 + $0x30] sm:$0xff]
      %v272 = vld [vmem:[#allocation3 + $0x38] sm:$0xff]
      %273 = vst [vmem:[#allocation4] sm:$0xff] %v265
      %274 = vst [vmem:[#allocation4 + $0x8] sm:$0xff] %v266
      %275 = vst [vmem:[#allocation4 + $0x10] sm:$0xff] %v267
      %276 = vst [vmem:[#allocation4 + $0x18] sm:$0xff] %v268
      %277 = vst [vmem:[#allocation4 + $0x20] sm:$0xff] %v269
      %278 = vst [vmem:[#allocation4 + $0x28] sm:$0xff] %v270
      %279 = vst [vmem:[#allocation4 + $0x30] sm:$0xff] %v271
      %280 = vst [vmem:[#allocation4 + $0x38] sm:$0xff] %v272
    $region93: #{residual_block_forward.7} parent=1 // pred_fallthru
      _
    %v281 = vld [vmem:[#allocation4] sm:$0xff]
    %v282 = vld [vmem:[#allocation4 + $0x8] sm:$0xff]
    %v283 = vld [vmem:[#allocation4 + $0x10] sm:$0xff]
    %v284 = vld [vmem:[#allocation4 + $0x18] sm:$0xff]
    %v285 = vld [vmem:[#allocation4 + $0x20] sm:$0xff]
    %v286 = vld [vmem:[#allocation4 + $0x28] sm:$0xff]
    %v287 = vld [vmem:[#allocation4 + $0x30] sm:$0xff]
    %v288 = vld [vmem:[#allocation4 + $0x38] sm:$0xff]
    %v289 = vld [vmem:[%s1] sm:$0xf]
    %v290 = vld [vmem:[%s1 + $0x4] sm:$0xf]
    %v291 = vld [vmem:[%s1 + $0x8] sm:$0xf]
    %v292 = vld [vmem:[%s1 + $0xc] sm:$0xf]
    %v293 = vld [vmem:[%s1 + $0x10] sm:$0xf]
    %v294 = vld [vmem:[%s1 + $0x14] sm:$0xf]
    %v295 = vld [vmem:[%s1 + $0x18] sm:$0xf]
    %v296 = vld [vmem:[%s1 + $0x1c] sm:$0xf]
    %v297 = vld [vmem:[%s1 + $0x20] sm:$0xf]
    %v298 = vld [vmem:[%s1 + $0x24] sm:$0xf]
    %v299 = vld [vmem:[%s1 + $0x28] sm:$0xf]
    %v300 = vld [vmem:[%s1 + $0x2c] sm:$0xf]
    %v301 = vld [vmem:[%s1 + $0x30] sm:$0xf]
    %v302 = vld [vmem:[%s1 + $0x34] sm:$0xf]
    %v303 = vld [vmem:[%s1 + $0x38] sm:$0xf]
    %v304 = vld [vmem:[%s1 + $0x3c] sm:$0xf]
    %v321 = vunpack.c.l.b16 %v289
    %v322 = vunpack.c.l.b16 %v290
    %v323 = vunpack.c.l.b16 %v291
    %v324 = vunpack.c.l.b16 %v292
    %v325 = vunpack.c.l.b16 %v293
    %v326 = vunpack.c.l.b16 %v294
    %v327 = vunpack.c.l.b16 %v295
    %v328 = vunpack.c.l.b16 %v296
    %v329 = vunpack.c.l.b16 %v297
    %v330 = vunpack.c.l.b16 %v298
    %v331 = vunpack.c.l.b16 %v299
    %v332 = vunpack.c.l.b16 %v300
    %v333 = vunpack.c.l.b16 %v301
    %v334 = vunpack.c.l.b16 %v302
    %v335 = vunpack.c.l.b16 %v303
    %v336 = vunpack.c.l.b16 %v304
    %v337 = vpack.c.b16 %v322, %v321
    %v338 = vpack.c.b16 %v324, %v323
    %v339 = vpack.c.b16 %v326, %v325
    %v340 = vpack.c.b16 %v328, %v327
    %v341 = vpack.c.b16 %v330, %v329
    %v342 = vpack.c.b16 %v332, %v331
    %v343 = vpack.c.b16 %v334, %v333
    %v344 = vpack.c.b16 %v336, %v335
    %353 = vmatprep.subr.bf16.mxu0 0
    %354 = vmatpush1.bf16.msra.mxu0 %v337
    %355 = vmatprep.subr.bf16.mxu0 0
    %356 = vmatpush1.bf16.msra.mxu0 %v338
    %357 = vmatprep.subr.bf16.mxu0 0
    %358 = vmatpush1.bf16.msra.mxu0 %v339
    %359 = vmatprep.subr.bf16.mxu0 0
    %360 = vmatpush1.bf16.msra.mxu0 %v340
    %361 = vmatprep.subr.bf16.mxu0 0
    %362 = vmatpush1.bf16.msra.mxu0 %v341
    %363 = vmatprep.subr.bf16.mxu0 0
    %364 = vmatpush1.bf16.msra.mxu0 %v342
    %365 = vmatprep.subr.bf16.mxu0 0
    %366 = vmatpush1.bf16.msra.mxu0 %v343
    %367 = vmatprep.subr.bf16.mxu0 0
    %368 = vmatpush1.bf16.msra.mxu0 %v344
    %369 = vmatprep.subr.bf16.mxu0 0
    %370 = vmatpush1.bf16.msra.mxu0 0
    %371 = vmatprep.subr.bf16.mxu0 0
    %372 = vmatpush1.bf16.msra.mxu0 0
    %373 = vmatprep.subr.bf16.mxu0 0
    %374 = vmatpush1.bf16.msra.mxu0 0
    %375 = vmatprep.subr.bf16.mxu0 0
    %376 = vmatpush1.bf16.msra.mxu0 0
    %377 = vmatprep.subr.bf16.mxu0 0
    %378 = vmatpush1.bf16.msra.mxu0 0
    %379 = vmatprep.subr.bf16.mxu0 0
    %380 = vmatpush1.bf16.msra.mxu0 0
    %381 = vmatprep.subr.bf16.mxu0 0
    %382 = vmatpush1.bf16.msra.mxu0 0
    %383 = vmatprep.subr.bf16.mxu0 0
    %384 = vmatpush1.bf16.msra.mxu0 0
    %385 = vmatprep.mubr.bf16.mxu0 0
    %386 = vmatmul.mubr.bf16.gmra.mrb[0].mxu0 %v281
    %v387 = vpop.f32.mrb[0].mxu0
    %v388 = vadd.f32 0.0, %v387
    %v389 = vpop.f32.mrb[0].mxu0
    %v390 = vpop.f32.mrb[0].mxu0
    %v391 = vadd.f32 0.0, %v390
    %v392 = vpop.f32.mrb[0].mxu0
    %393 = vmatprep.mubr.bf16.mxu0 0
    %394 = vmatmul.mubr.bf16.gmra.mrb[0].mxu0 %v282
    %v395 = vpop.f32.mrb[0].mxu0
    %v396 = vadd.f32 0.0, %v395
    %v397 = vpop.f32.mrb[0].mxu0
    %v398 = vpop.f32.mrb[0].mxu0
    %v399 = vadd.f32 0.0, %v398
    %v400 = vpop.f32.mrb[0].mxu0
    %401 = vmatprep.mubr.bf16.mxu0 0
    %402 = vmatmul.mubr.bf16.gmra.mrb[0].mxu0 %v283
    %v403 = vpop.f32.mrb[0].mxu0
    %v404 = vadd.f32 0.0, %v403
    %v405 = vpop.f32.mrb[0].mxu0
    %v406 = vpop.f32.mrb[0].mxu0
    %v407 = vadd.f32 0.0, %v406
    %v408 = vpop.f32.mrb[0].mxu0
    %409 = vmatprep.mubr.bf16.mxu0 0
    %410 = vmatmul.mubr.bf16.gmra.mrb[0].mxu0 %v284
    %v411 = vpop.f32.mrb[0].mxu0
    %v412 = vadd.f32 0.0, %v411
    %v413 = vpop.f32.mrb[0].mxu0
    %v414 = vpop.f32.mrb[0].mxu0
    %v415 = vadd.f32 0.0, %v414
    %v416 = vpop.f32.mrb[0].mxu0
    %417 = vmatprep.mubr.bf16.mxu0 0
    %418 = vmatmul.mubr.bf16.gmra.mrb[0].mxu0 %v285
    %v419 = vpop.f32.mrb[0].mxu0
    %v420 = vadd.f32 0.0, %v419
    %v421 = vpop.f32.mrb[0].mxu0
    %v422 = vpop.f32.mrb[0].mxu0
    %v423 = vadd.f32 0.0, %v422
    %v424 = vpop.f32.mrb[0].mxu0
    %425 = vmatprep.mubr.bf16.mxu0 0
    %426 = vmatmul.mubr.bf16.gmra.mrb[0].mxu0 %v286
    %v427 = vpop.f32.mrb[0].mxu0
    %v428 = vadd.f32 0.0, %v427
    %v429 = vpop.f32.mrb[0].mxu0
    %v430 = vpop.f32.mrb[0].mxu0
    %v431 = vadd.f32 0.0, %v430
    %v432 = vpop.f32.mrb[0].mxu0
    %433 = vmatprep.mubr.bf16.mxu0 0
    %434 = vmatmul.mubr.bf16.gmra.mrb[0].mxu0 %v287
    %v435 = vpop.f32.mrb[0].mxu0
    %v436 = vadd.f32 0.0, %v435
    %v437 = vpop.f32.mrb[0].mxu0
    %v438 = vpop.f32.mrb[0].mxu0
    %v439 = vadd.f32 0.0, %v438
    %v440 = vpop.f32.mrb[0].mxu0
    %441 = vmatprep.mubr.bf16.mxu0 0
    %442 = vmatmul.mubr.bf16.gmra.mrb[0].mxu0 %v288
    %v443 = vpop.f32.mrb[0].mxu0
    %v444 = vadd.f32 0.0, %v443
    %v445 = vpop.f32.mrb[0].mxu0
    %v446 = vpop.f32.mrb[0].mxu0
    %v447 = vadd.f32 0.0, %v446
    %v448 = vpop.f32.mrb[0].mxu0
    %449 = vdwg.mxu0
    %v450 = vld [vmem:[%s2] sm:$0xff]
    %v451 = vld [vmem:[%s2 + $0x8] sm:$0xff]
    %v452 = vld [vmem:[%s2 + $0x10] sm:$0xff]
    %v453 = vld [vmem:[%s2 + $0x18] sm:$0xff]
    %v454 = vld [vmem:[%s2 + $0x20] sm:$0xff]
    %v455 = vld [vmem:[%s2 + $0x28] sm:$0xff]
    %v456 = vld [vmem:[%s2 + $0x30] sm:$0xff]
    %v457 = vld [vmem:[%s2 + $0x38] sm:$0xff]
    %v458 = vld [vmem:[%s2 + $0x40] sm:$0xff]
    %v459 = vld [vmem:[%s2 + $0x48] sm:$0xff]
    %v460 = vld [vmem:[%s2 + $0x50] sm:$0xff]
    %v461 = vld [vmem:[%s2 + $0x58] sm:$0xff]
    %v462 = vld [vmem:[%s2 + $0x60] sm:$0xff]
    %v463 = vld [vmem:[%s2 + $0x68] sm:$0xff]
    %v464 = vld [vmem:[%s2 + $0x70] sm:$0xff]
    %v465 = vld [vmem:[%s2 + $0x78] sm:$0xff]
    %467 = vset.pattern.permute.xlu0 0
    %468 = vperm.xlu0 %467, %v450
    %v469 = vpop.permute.xlu0 %468
    %472 = vset.pattern.permute.xlu0 0
    %473 = vperm.xlu0 %472, %v451
    %v474 = vpop.permute.xlu0 %473
    %477 = vset.pattern.permute.xlu0 0
    %478 = vperm.xlu0 %477, %v452
    %v479 = vpop.permute.xlu0 %478
    %482 = vset.pattern.permute.xlu0 0
    %483 = vperm.xlu0 %482, %v453
    %v484 = vpop.permute.xlu0 %483
    %487 = vset.pattern.permute.xlu0 0
    %488 = vperm.xlu0 %487, %v454
    %v489 = vpop.permute.xlu0 %488
    %492 = vset.pattern.permute.xlu0 0
    %493 = vperm.xlu0 %492, %v455
    %v494 = vpop.permute.xlu0 %493
    %497 = vset.pattern.permute.xlu0 0
    %498 = vperm.xlu0 %497, %v456
    %v499 = vpop.permute.xlu0 %498
    %502 = vset.pattern.permute.xlu0 0
    %503 = vperm.xlu0 %502, %v457
    %v504 = vpop.permute.xlu0 %503
    %507 = vset.pattern.permute.xlu0 0
    %508 = vperm.xlu0 %507, %v458
    %v509 = vpop.permute.xlu0 %508
    %512 = vset.pattern.permute.xlu0 0
    %513 = vperm.xlu0 %512, %v459
    %v514 = vpop.permute.xlu0 %513
    %517 = vset.pattern.permute.xlu0 0
    %518 = vperm.xlu0 %517, %v460
    %v519 = vpop.permute.xlu0 %518
    %522 = vset.pattern.permute.xlu0 0
    %523 = vperm.xlu0 %522, %v461
    %v524 = vpop.permute.xlu0 %523
    %527 = vset.pattern.permute.xlu0 0
    %528 = vperm.xlu0 %527, %v462
    %v529 = vpop.permute.xlu0 %528
    %532 = vset.pattern.permute.xlu0 0
    %533 = vperm.xlu0 %532, %v463
    %v534 = vpop.permute.xlu0 %533
    %537 = vset.pattern.permute.xlu0 0
    %538 = vperm.xlu0 %537, %v464
    %v539 = vpop.permute.xlu0 %538
    %542 = vset.pattern.permute.xlu0 0
    %543 = vperm.xlu0 %542, %v465
    %v544 = vpop.permute.xlu0 %543
    %v546 = vmul.f32 %v388, %v469
    %v547 = vmul.f32 %v391, %v474
    %v548 = vmul.f32 %v396, %v479
    %v549 = vmul.f32 %v399, %v484
    %v550 = vmul.f32 %v404, %v489
    %v551 = vmul.f32 %v407, %v494
    %v552 = vmul.f32 %v412, %v499
    %v553 = vmul.f32 %v415, %v504
    %v554 = vmul.f32 %v420, %v509
    %v555 = vmul.f32 %v423, %v514
    %v556 = vmul.f32 %v428, %v519
    %v557 = vmul.f32 %v431, %v524
    %v558 = vmul.f32 %v436, %v529
    %v559 = vmul.f32 %v439, %v534
    %v560 = vmul.f32 %v444, %v539
    %v561 = vmul.f32 %v447, %v544
    %v562 = vadd.f32 %v546, %v547
    %v563 = vadd.f32 %v562, %v548
    %v564 = vadd.f32 %v563, %v549
    %v565 = vadd.f32 %v564, %v550
    %v566 = vadd.f32 %v565, %v551
    %v567 = vadd.f32 %v566, %v552
    %v568 = vadd.f32 %v567, %v553
    %v569 = vadd.f32 %v568, %v554
    %v570 = vadd.f32 %v569, %v555
    %v571 = vadd.f32 %v570, %v556
    %v572 = vadd.f32 %v571, %v557
    %v573 = vadd.f32 %v572, %v558
    %v574 = vadd.f32 %v573, %v559
    %v575 = vadd.f32 %v574, %v560
    %v576 = vadd.f32 %v575, %v561
    %v577 = vrot.slane %v576, 4
    %v578 = vadd.f32 %v576, %v577
    %v579 = vrot.slane %v578, 2
    %v580 = vadd.f32 %v578, %v579
    %v581 = vrot.slane %v580, 1
    %v582 = vadd.f32 %v580, %v581
    %v583 = vmul.f32 %v546, %v546
    %v584 = vmul.f32 %v547, %v547
    %v585 = vmul.f32 %v548, %v548
    %v586 = vmul.f32 %v549, %v549
    %v587 = vmul.f32 %v550, %v550
    %v588 = vmul.f32 %v551, %v551
    %v589 = vmul.f32 %v552, %v552
    %v590 = vmul.f32 %v553, %v553
    %v591 = vmul.f32 %v554, %v554
    %v592 = vmul.f32 %v555, %v555
    %v593 = vmul.f32 %v556, %v556
    %v594 = vmul.f32 %v557, %v557
    %v595 = vmul.f32 %v558, %v558
    %v596 = vmul.f32 %v559, %v559
    %v597 = vmul.f32 %v560, %v560
    %v598 = vmul.f32 %v561, %v561
    %v599 = vadd.f32 %v583, %v584
    %v600 = vadd.f32 %v599, %v585
    %v601 = vadd.f32 %v600, %v586
    %v602 = vadd.f32 %v601, %v587
    %v603 = vadd.f32 %v602, %v588
    %v604 = vadd.f32 %v603, %v589
    %v605 = vadd.f32 %v604, %v590
    %v606 = vadd.f32 %v605, %v591
    %v607 = vadd.f32 %v606, %v592
    %v608 = vadd.f32 %v607, %v593
    %v609 = vadd.f32 %v608, %v594
    %v610 = vadd.f32 %v609, %v595
    %v611 = vadd.f32 %v610, %v596
    %v612 = vadd.f32 %v611, %v597
    %v613 = vadd.f32 %v612, %v598
    %v614 = vrot.slane %v613, 4
    %v615 = vadd.f32 %v613, %v614
    %v616 = vrot.slane %v615, 2
    %v617 = vadd.f32 %v615, %v616
    %v618 = vrot.slane %v617, 1
    %v619 = vadd.f32 %v617, %v618
    %vm620 = vcmask 1040384
    %v621 = vsel %vm620, %v582, %v619
    %622 = vst [vmem:[#allocation6] sm:$0x3] %v621
    %v623 = vpack.c.bf16 %v391, %v388
    %v624 = vpack.c.bf16 %v399, %v396
    %v625 = vpack.c.bf16 %v407, %v404
    %v626 = vpack.c.bf16 %v415, %v412
    %v627 = vpack.c.bf16 %v423, %v420
    %v628 = vpack.c.bf16 %v431, %v428
    %v629 = vpack.c.bf16 %v439, %v436
    %v630 = vpack.c.bf16 %v447, %v444
    %v639 = vunpack.c.l.b16 %v623
    %v640 = vunpack.c.h.b16 %v623
    %v641 = vunpack.c.l.b16 %v624
    %v642 = vunpack.c.h.b16 %v624
    %v643 = vunpack.c.l.b16 %v625
    %v644 = vunpack.c.h.b16 %v625
    %v645 = vunpack.c.l.b16 %v626
    %v646 = vunpack.c.h.b16 %v626
    %v647 = vunpack.c.l.b16 %v627
    %v648 = vunpack.c.h.b16 %v627
    %v649 = vunpack.c.l.b16 %v628
    %v650 = vunpack.c.h.b16 %v628
    %v651 = vunpack.c.l.b16 %v629
    %v652 = vunpack.c.h.b16 %v629
    %v653 = vunpack.c.l.b16 %v630
    %v654 = vunpack.c.h.b16 %v630
    %v655 = vpack.c.b16 %v639, %v639
    %v656 = vpack.c.b16 %v640, %v640
    %v657 = vpack.c.b16 %v641, %v641
    %v658 = vpack.c.b16 %v642, %v642
    %v659 = vpack.c.b16 %v643, %v643
    %v660 = vpack.c.b16 %v644, %v644
    %v661 = vpack.c.b16 %v645, %v645
    %v662 = vpack.c.b16 %v646, %v646
    %v663 = vpack.c.b16 %v647, %v647
    %v664 = vpack.c.b16 %v648, %v648
    %v665 = vpack.c.b16 %v649, %v649
    %v666 = vpack.c.b16 %v650, %v650
    %v667 = vpack.c.b16 %v651, %v651
    %v668 = vpack.c.b16 %v652, %v652
    %v669 = vpack.c.b16 %v653, %v653
    %v670 = vpack.c.b16 %v654, %v654
    %687 = vst [vmem:[%s3] sm:$0xf] %v655
    %688 = vst [vmem:[%s3 + $0x4] sm:$0xf] %v656
    %689 = vst [vmem:[%s3 + $0x8] sm:$0xf] %v657
    %690 = vst [vmem:[%s3 + $0xc] sm:$0xf] %v658
    %691 = vst [vmem:[%s3 + $0x10] sm:$0xf] %v659
    %692 = vst [vmem:[%s3 + $0x14] sm:$0xf] %v660
    %693 = vst [vmem:[%s3 + $0x18] sm:$0xf] %v661
    %694 = vst [vmem:[%s3 + $0x1c] sm:$0xf] %v662
    %695 = vst [vmem:[%s3 + $0x20] sm:$0xf] %v663
    %696 = vst [vmem:[%s3 + $0x24] sm:$0xf] %v664
    %697 = vst [vmem:[%s3 + $0x28] sm:$0xf] %v665
    %698 = vst [vmem:[%s3 + $0x2c] sm:$0xf] %v666
    %699 = vst [vmem:[%s3 + $0x30] sm:$0xf] %v667
    %700 = vst [vmem:[%s3 + $0x34] sm:$0xf] %v668
    %701 = vst [vmem:[%s3 + $0x38] sm:$0xf] %v669
    %702 = vst [vmem:[%s3 + $0x3c] sm:$0xf] %v670
    // Predicated region
    $region132: #{residual_block_forward.7} parent=1 // pred_check
      _
    $region133: #{residual_block_forward.7} parent=1 // pred_check_branch
      %704 = sbr.rel (0) target = $region135
    $region134: #{residual_block_forward.7} parent=1 // pred_region
      _
    $region135: #{residual_block_forward.7} parent=1 // pred_fallthru
      _
    // Predicated region
    $region136: #{residual_block_forward.7} parent=1 // pred_check
      _
    $region137: #{residual_block_forward.7} parent=1 // pred_check_branch
      %706 = sbr.rel (0) target = $region139
    $region138: #{residual_block_forward.7} parent=1 // pred_region
      %s708 = ssub.s32 32, 32
      %709 = vsyncadd [#allocation7], %s708
      %s711 = sshll.u32 [#allocation6], 4
      %s712 = int_to_ptr.vmem [resolvable:$true] %s711
      %714 = dma.vmem_to_hbm [thread:$0]  %s712, 32, %s4, [#allocation7]
    $region139: #{residual_block_forward.7} parent=1 // pred_fallthru
      _
    // Predicated region
    $region140: #{residual_block_forward.7} parent=1 // pred_check
      _
    $region141: #{residual_block_forward.7} parent=1 // pred_check_branch
      %716 = sbr.rel (0) target = $region143
    $region142: #{residual_block_forward.7} parent=1 // pred_region
      _
    $region143: #{residual_block_forward.7} parent=1 // pred_fallthru
      _
    // Predicated region
    $region144: #{residual_block_forward.7} parent=1 // pred_check
      _
    $region145: #{residual_block_forward.7} parent=1 // pred_check_branch
      %718 = sbr.rel (0) target = $region147
    $region146: #{residual_block_forward.7} parent=1 // pred_region
      %719 = dma.done [#allocation7], 32
    $region147: #{residual_block_forward.7} parent=1 // pred_fallthru
      _
    %720 = vsyncpa [#allocation7], 1
  %721 = vsyncmov [#allocation5]
  %s722 = vpop.sfrf %721
  %p723 = scmp.eq.s32.totalorder %s722, 0
  %p724 = pneg %p723
  %726 = shalt.err (%p724)
  %s727 = scalar_lea.sflag [#allocation5], 1
  %728 = vsyncmov %s727
  %s729 = vpop.sfrf %728
  %p730 = scmp.eq.s32.totalorder %s729, 0
  %p731 = pneg %p730
  %733 = shalt.err (%p731)

// kernel: residual_block_forward.5
$region0: #{residual_block_forward.5}
  #allocation0 [shape = 'u32[]', space=smem, size = 0x4, offset = 0x4, fixed_abs, tag = 'smem constant byte address 0x4 - core index']
  #allocation1 [shape = 'u32[144,128]{1,0:T(1,128)}', space=vmem, size = 0x12000, scoped, tag = 'internal scratch']
  #allocation2 [shape = 'bf16[184,128]{1,0:T(8,128)(2,1)}', space=vmem, size = 0xb800, scoped, tag = 'scratch operand']
  #allocation3 [shape = 'bf16[184,128]{1,0:T(8,128)(2,1)}', space=vmem, size = 0xb800, scoped, tag = 'scratch operand']
  #allocation4 [shape = 'bf16[168,512]{1,0:T(8,128)(2,1)}', space=vmem, size = 0x2a000, scoped, tag = 'scratch operand']
  #allocation5 [shape = 's32[2]{0}', space=sflag, size = 0x8, scoped, tag = 'scratch operand']
  #allocation6 [shape = 's32[]', space=sflag, size = 0x4, offset = 0, fixed_abs, tag = 'sflag constant byte address 0x0 - dummy sync flag']
  #allocation7 [shape = 's32[]', space=sflag, size = 0x4, offset = 0, fixed_abs, tag = 'sflag constant byte address 0x0 - dummy sync flag']
  #allocation8 [shape = 's32[]', space=sflag, size = 0x4, offset = 0, fixed_abs, tag = 'sflag constant byte address 0x0 - dummy sync flag']
  %s0 = inlined_call_operand.vmem [shape: bf16[184,128], index: 0, kind: input, shape index: {}]
  %s1 = inlined_call_operand.vmem [shape: bf16[512,128], index: 1, kind: input, shape index: {}]
  %s2 = inlined_call_operand.vmem [shape: f32[168,1], index: 2, kind: input, shape index: {}]
  %s3 = inlined_call_operand.vmem [shape: bf16[168,128], index: 3, kind: output, shape index: {0}]
  %s4 = inlined_call_operand.vmem [shape: f32[1,2,128], index: 4, kind: output, shape index: {1}]
  %5 = xla_tuple %s3, %s4
  %s6 = sld [smem:[#allocation0]]
  $region157: #{residual_block_forward.5} parent=0
    _
  %s8 = ssub.s32 1, %s6
  %s9 = scalar_select 0, %s8, %s6
  // Predicated region
  $region2: #{residual_block_forward.5} parent=0 // pred_check
    _
  $region3: #{residual_block_forward.5} parent=0 // pred_check_branch
    %11 = sbr.rel (0) target = $region5
  $region4: #{residual_block_forward.5} parent=0 // pred_region
    _
  $region5: #{residual_block_forward.5} parent=0 // pred_fallthru
    _
  // Predicated region
  $region6: #{residual_block_forward.5} parent=0 // pred_check
    _
  $region7: #{residual_block_forward.5} parent=0 // pred_check_branch
    %13 = sbr.rel (0) target = $region9
  $region8: #{residual_block_forward.5} parent=0 // pred_region
    _
  $region9: #{residual_block_forward.5} parent=0 // pred_fallthru
    _
  %s15 = sadd.s32 0, 0
  %p16 = scmp.eq.s32.totalorder %s15, 0
  // Predicated region
  $region10: #{residual_block_forward.5} parent=0 // pred_check
    %p17 = pneg %p16
  $region11: #{residual_block_forward.5} parent=0 // pred_check_branch
    %19 = sbr.rel (%p17) target = $region13
  $region12: #{residual_block_forward.5} parent=0 // pred_region
    %p21 = scmp.lt.u32.totalorder 92, 8
    %p22 = pneg %p21
    // Predicated region
    $region14: #{residual_block_forward.5} parent=12 // pred_check
      _
    $region15: #{residual_block_forward.5} parent=12 // pred_check_branch
      %24 = sbr.rel (%p21) target = $region17
    $region16: #{residual_block_forward.5} parent=12 // pred_region
      %s39 = sand.u32 92, 7
      %p40 = scmp.eq.s32.totalorder %s39, 0
      %p41 = pneg %p40
      // Predicated region
      $region29: #{residual_block_forward.5} parent=16 // pred_check
        _
      $region30: #{residual_block_forward.5} parent=16 // pred_check_branch
        %43 = sbr.rel (%p40) target = $region32
      $region31: #{residual_block_forward.5} parent=16 // pred_region
        %s44 = sand.u32 92, 7
        %s45 = ssub.s32 92, %s44
        %s46 = scalar_lea.vmem %s0, %s45
        %s47 = ssub.s32 92, %s44
        %s48 = scalar_lea.vmem [#allocation2], %s47
        loop: start=0, step=1, limit=1
        $region33: #{residual_block_forward.5} parent=31 // loop_pre_header
          _
        $region34: #{residual_block_forward.5} parent=31 // loop_header
          %s50 = sphi 0, %s54
          %p51 = scmp.ge.s32.totalorder %s50, 1
          %s55 = sphi %s0, %s0
          %s56 = sphi [#allocation2], [#allocation2]
        $region35: #{residual_block_forward.5} parent=31 // loop_header_branch
          %53 = sbr.rel (%p51) target = $region39
        $region36: #{residual_block_forward.5} parent=31 // loop_body
          %v57 = vld [vmem:[%s55] sm:$0xff]
          %58 = vst [vmem:[%s56] sm:$0xff] %v57
          %v59 = vld [vmem:[%s55 + $0x8] sm:$0xff]
          %60 = vst [vmem:[%s56 + $0x8] sm:$0xff] %v59
          %v61 = vld [vmem:[%s55 + $0x10] sm:$0xff]
          %62 = vst [vmem:[%s56 + $0x10] sm:$0xff] %v61
          %v63 = vld [vmem:[%s55 + $0x18] sm:$0xff]
          %64 = vst [vmem:[%s56 + $0x18] sm:$0xff] %v63
          %v65 = vld [vmem:[%s55 + $0x20] sm:$0xff]
          %66 = vst [vmem:[%s56 + $0x20] sm:$0xff] %v65
          %v67 = vld [vmem:[%s55 + $0x28] sm:$0xff]
          %68 = vst [vmem:[%s56 + $0x28] sm:$0xff] %v67
          %v69 = vld [vmem:[%s55 + $0x30] sm:$0xff]
          %70 = vst [vmem:[%s56 + $0x30] sm:$0xff] %v69
          %v71 = vld [vmem:[%s55 + $0x38] sm:$0xff]
          %72 = vst [vmem:[%s56 + $0x38] sm:$0xff] %v71
          %v73 = vld [vmem:[%s55 + $0x40] sm:$0xff]
          %74 = vst [vmem:[%s56 + $0x40] sm:$0xff] %v73
          %v75 = vld [vmem:[%s55 + $0x48] sm:$0xff]
          %76 = vst [vmem:[%s56 + $0x48] sm:$0xff] %v75
          %v77 = vld [vmem:[%s55 + $0x50] sm:$0xff]
          %78 = vst [vmem:[%s56 + $0x50] sm:$0xff] %v77
        $region37: #{residual_block_forward.5} parent=31 // loop_footer
          %s54 = sadd.s32 1, %s50
        $region38: #{residual_block_forward.5} parent=31 // loop_footer_branch
          %49 = sbr.rel target = $region34
        $region39: #{residual_block_forward.5} parent=31 // loop_exit
          _
        %s79 = sshllo.u32 0, %s44
        loop: start=0, step=1, limit=1
        $region40: #{residual_block_forward.5} parent=31 // loop_pre_header
          _
        $region41: #{residual_block_forward.5} parent=31 // loop_header
          %s81 = sphi 0, %s85
          %p82 = scmp.ge.s32.totalorder %s81, 1
          %s86 = sphi %s46, %s46
          %s87 = sphi %s48, %s48
        $region42: #{residual_block_forward.5} parent=31 // loop_header_branch
          %84 = sbr.rel (%p82) target = $region46
        $region43: #{residual_block_forward.5} parent=31 // loop_body
          %v88 = vld [vmem:[%s86] sm:%s79]
          %89 = vst [vmem:[%s87] sm:%s79] %v88
        $region44: #{residual_block_forward.5} parent=31 // loop_footer
          %s85 = sadd.s32 1, %s81
        $region45: #{residual_block_forward.5} parent=31 // loop_footer_branch
          %80 = sbr.rel target = $region41
        $region46: #{residual_block_forward.5} parent=31 // loop_exit
          _
      $region32: #{residual_block_forward.5} parent=16 // pred_fallthru
        _
    $region17: #{residual_block_forward.5} parent=12 // pred_fallthru
      _
    // Predicated region
    $region18: #{residual_block_forward.5} parent=12 // pred_check
      %p25 = pneg %p21
    $region19: #{residual_block_forward.5} parent=12 // pred_check_branch
      %27 = sbr.rel (%p25) target = $region21
    $region20: #{residual_block_forward.5} parent=12 // pred_region
      %s28 = sshllo.u32 0, 92
      loop: start=0, step=1, limit=1
      $region22: #{residual_block_forward.5} parent=20 // loop_pre_header
        _
      $region23: #{residual_block_forward.5} parent=20 // loop_header
        %s30 = sphi 0, %s34
        %p31 = scmp.ge.s32.totalorder %s30, 1
        %s35 = sphi %s0, %s0
        %s36 = sphi [#allocation2], [#allocation2]
      $region24: #{residual_block_forward.5} parent=20 // loop_header_branch
        %33 = sbr.rel (%p31) target = $region28
      $region25: #{residual_block_forward.5} parent=20 // loop_body
        %v37 = vld [vmem:[%s35] sm:%s28]
        %38 = vst [vmem:[%s36] sm:%s28] %v37
      $region26: #{residual_block_forward.5} parent=20 // loop_footer
        %s34 = sadd.s32 1, %s30
      $region27: #{residual_block_forward.5} parent=20 // loop_footer_branch
        %29 = sbr.rel target = $region23
      $region28: #{residual_block_forward.5} parent=20 // loop_exit
        _
    $region21: #{residual_block_forward.5} parent=12 // pred_fallthru
      _
    // Predicated region
    $region47: #{residual_block_forward.5} parent=12 // pred_check
      _
    $region48: #{residual_block_forward.5} parent=12 // pred_check_branch
      %92 = sbr.rel (0) target = $region50
    $region49: #{residual_block_forward.5} parent=12 // pred_region
      %93 = vsyncadd [#allocation5], 1472
    $region50: #{residual_block_forward.5} parent=12 // pred_fallthru
      _
  $region13: #{residual_block_forward.5} parent=0 // pred_fallthru
    _
  %p94 = scmp.lt.s32.totalorder %s15, 0
  %s95 = ssub.s32 0, %s15
  %s96 = scalar_select %p94, %s95, %s15
  %s97 = sand.u32 %s96, 1
  %s98 = ssub.s32 0, %s97
  %s99 = scalar_select %p94, %s98, %s97
  %p100 = scmp.ne.s32.totalorder %s99, 0
  %p101 = scmp.lt.s32.totalorder %s99, 0
  %p102 = pnand %p101, %p100
  %p103 = pneg %p102
  %s104 = sadd.s32 %s99, 2
  %s105 = scalar_select %p103, %s104, %s99
  %p106 = scmp.eq.s32.totalorder %s105, 0
  // Predicated region
  $region51: #{residual_block_forward.5} parent=0 // pred_check
    %p107 = pneg %p106
  $region52: #{residual_block_forward.5} parent=0 // pred_check_branch
    %109 = sbr.rel (%p107) target = $region54
  $region53: #{residual_block_forward.5} parent=0 // pred_region
    %s110 = sadd.s32 0, 1
    %p111 = scmp.lt.s32.totalorder %s110, 1
    %s112 = sadd.s32 0, 1
    %p113 = scmp.lt.s32.totalorder %s112, 1
    %p114 = por %p111, %p113
    // Predicated region
    $region55: #{residual_block_forward.5} parent=53 // pred_check
      %p115 = pneg %p114
    $region56: #{residual_block_forward.5} parent=53 // pred_check_branch
      %117 = sbr.rel (%p115) target = $region58
    $region57: #{residual_block_forward.5} parent=53 // pred_region
      %s118 = scalar_select %p111, %s110, 0
      %s119 = smul.u32 %s118, 168
      %s120 = sshra.s32 %s119, 3
      %s121 = sand.u32 %s119, 7
      %s122 = smul.addr %s120, 4
      %s123 = scalar_lea.vmem %s0, %s122
      %s124 = scalar_lea.sflag [#allocation5], 1
      %p126 = scmp.lt.u32.totalorder 92, 8
      %p127 = pneg %p126
      // Predicated region
      $region59: #{residual_block_forward.5} parent=57 // pred_check
        _
      $region60: #{residual_block_forward.5} parent=57 // pred_check_branch
        %129 = sbr.rel (%p126) target = $region62
      $region61: #{residual_block_forward.5} parent=57 // pred_region
        %s144 = sand.u32 92, 7
        %p145 = scmp.eq.s32.totalorder %s144, 0
        %p146 = pneg %p145
        // Predicated region
        $region74: #{residual_block_forward.5} parent=61 // pred_check
          _
        $region75: #{residual_block_forward.5} parent=61 // pred_check_branch
          %148 = sbr.rel (%p145) target = $region77
        $region76: #{residual_block_forward.5} parent=61 // pred_region
          %s149 = sand.u32 92, 7
          %s150 = ssub.s32 92, %s149
          %s151 = scalar_lea.vmem %s123, %s150
          %s152 = ssub.s32 92, %s149
          %s153 = scalar_lea.vmem [#allocation3], %s152
          loop: start=0, step=1, limit=1
          $region78: #{residual_block_forward.5} parent=76 // loop_pre_header
            _
          $region79: #{residual_block_forward.5} parent=76 // loop_header
            %s155 = sphi 0, %s159
            %p156 = scmp.ge.s32.totalorder %s155, 1
            %s160 = sphi %s123, %s123
            %s161 = sphi [#allocation3], [#allocation3]
          $region80: #{residual_block_forward.5} parent=76 // loop_header_branch
            %158 = sbr.rel (%p156) target = $region84
          $region81: #{residual_block_forward.5} parent=76 // loop_body
            %v162 = vld [vmem:[%s160] sm:$0xff]
            %163 = vst [vmem:[%s161] sm:$0xff] %v162
            %v164 = vld [vmem:[%s160 + $0x8] sm:$0xff]
            %165 = vst [vmem:[%s161 + $0x8] sm:$0xff] %v164
            %v166 = vld [vmem:[%s160 + $0x10] sm:$0xff]
            %167 = vst [vmem:[%s161 + $0x10] sm:$0xff] %v166
            %v168 = vld [vmem:[%s160 + $0x18] sm:$0xff]
            %169 = vst [vmem:[%s161 + $0x18] sm:$0xff] %v168
            %v170 = vld [vmem:[%s160 + $0x20] sm:$0xff]
            %171 = vst [vmem:[%s161 + $0x20] sm:$0xff] %v170
            %v172 = vld [vmem:[%s160 + $0x28] sm:$0xff]
            %173 = vst [vmem:[%s161 + $0x28] sm:$0xff] %v172
            %v174 = vld [vmem:[%s160 + $0x30] sm:$0xff]
            %175 = vst [vmem:[%s161 + $0x30] sm:$0xff] %v174
            %v176 = vld [vmem:[%s160 + $0x38] sm:$0xff]
            %177 = vst [vmem:[%s161 + $0x38] sm:$0xff] %v176
            %v178 = vld [vmem:[%s160 + $0x40] sm:$0xff]
            %179 = vst [vmem:[%s161 + $0x40] sm:$0xff] %v178
            %v180 = vld [vmem:[%s160 + $0x48] sm:$0xff]
            %181 = vst [vmem:[%s161 + $0x48] sm:$0xff] %v180
            %v182 = vld [vmem:[%s160 + $0x50] sm:$0xff]
            %183 = vst [vmem:[%s161 + $0x50] sm:$0xff] %v182
          $region82: #{residual_block_forward.5} parent=76 // loop_footer
            %s159 = sadd.s32 1, %s155
          $region83: #{residual_block_forward.5} parent=76 // loop_footer_branch
            %154 = sbr.rel target = $region79
          $region84: #{residual_block_forward.5} parent=76 // loop_exit
            _
          %s184 = sshllo.u32 0, %s149
          loop: start=0, step=1, limit=1
          $region85: #{residual_block_forward.5} parent=76 // loop_pre_header
            _
          $region86: #{residual_block_forward.5} parent=76 // loop_header
            %s186 = sphi 0, %s190
            %p187 = scmp.ge.s32.totalorder %s186, 1
            %s191 = sphi %s151, %s151
            %s192 = sphi %s153, %s153
          $region87: #{residual_block_forward.5} parent=76 // loop_header_branch
            %189 = sbr.rel (%p187) target = $region91
          $region88: #{residual_block_forward.5} parent=76 // loop_body
            %v193 = vld [vmem:[%s191] sm:%s184]
            %194 = vst [vmem:[%s192] sm:%s184] %v193
          $region89: #{residual_block_forward.5} parent=76 // loop_footer
            %s190 = sadd.s32 1, %s186
          $region90: #{residual_block_forward.5} parent=76 // loop_footer_branch
            %185 = sbr.rel target = $region86
          $region91: #{residual_block_forward.5} parent=76 // loop_exit
            _
        $region77: #{residual_block_forward.5} parent=61 // pred_fallthru
          _
      $region62: #{residual_block_forward.5} parent=57 // pred_fallthru
        _
      // Predicated region
      $region63: #{residual_block_forward.5} parent=57 // pred_check
        %p130 = pneg %p126
      $region64: #{residual_block_forward.5} parent=57 // pred_check_branch
        %132 = sbr.rel (%p130) target = $region66
      $region65: #{residual_block_forward.5} parent=57 // pred_region
        %s133 = sshllo.u32 0, 92
        loop: start=0, step=1, limit=1
        $region67: #{residual_block_forward.5} parent=65 // loop_pre_header
          _
        $region68: #{residual_block_forward.5} parent=65 // loop_header
          %s135 = sphi 0, %s139
          %p136 = scmp.ge.s32.totalorder %s135, 1
          %s140 = sphi %s123, %s123
          %s141 = sphi [#allocation3], [#allocation3]
        $region69: #{residual_block_forward.5} parent=65 // loop_header_branch
          %138 = sbr.rel (%p136) target = $region73
        $region70: #{residual_block_forward.5} parent=65 // loop_body
          %v142 = vld [vmem:[%s140] sm:%s133]
          %143 = vst [vmem:[%s141] sm:%s133] %v142
        $region71: #{residual_block_forward.5} parent=65 // loop_footer
          %s139 = sadd.s32 1, %s135
        $region72: #{residual_block_forward.5} parent=65 // loop_footer_branch
          %134 = sbr.rel target = $region68
        $region73: #{residual_block_forward.5} parent=65 // loop_exit
          _
      $region66: #{residual_block_forward.5} parent=57 // pred_fallthru
        _
      // Predicated region
      $region92: #{residual_block_forward.5} parent=57 // pred_check
        _
      $region93: #{residual_block_forward.5} parent=57 // pred_check_branch
        %197 = sbr.rel (0) target = $region95
      $region94: #{residual_block_forward.5} parent=57 // pred_region
        %198 = vsyncadd %s124, 1472
      $region95: #{residual_block_forward.5} parent=57 // pred_fallthru
        _
    $region58: #{residual_block_forward.5} parent=53 // pred_fallthru
      _
    %s199 = smul.u32 0, 168
    %s200 = smul.u32 4, 23
    %s201 = smul.u32 %s200, 1
    %s202 = sshll.u32 %s201, 4
    %203 = dma.done [#allocation5], %s202
    %v204 = vld [vmem:[#allocation2] sm:$0xf]
    %v205 = vld [vmem:[#allocation2 + $0x4] sm:$0xf]
    %v206 = vld [vmem:[#allocation2 + $0x8] sm:$0xf]
    %v207 = vld [vmem:[#allocation2 + $0xc] sm:$0xf]
    %v208 = vld [vmem:[#allocation2 + $0x10] sm:$0xf]
    %v209 = vld [vmem:[#allocation2 + $0x14] sm:$0xf]
    %v210 = vld [vmem:[#allocation2 + $0x18] sm:$0xf]
    %v211 = vld [vmem:[#allocation2 + $0x1c] sm:$0xf]
    %v212 = vld [vmem:[#allocation2 + $0x20] sm:$0xf]
    %v213 = vld [vmem:[#allocation2 + $0x24] sm:$0xf]
    %v214 = vld [vmem:[#allocation2 + $0x28] sm:$0xf]
    %v215 = vld [vmem:[#allocation2 + $0x2c] sm:$0xf]
    %v216 = vld [vmem:[#allocation2 + $0x30] sm:$0xf]
    %v217 = vld [vmem:[#allocation2 + $0x34] sm:$0xf]
    %v218 = vld [vmem:[#allocation2 + $0x38] sm:$0xf]
    %v219 = vld [vmem:[#allocation2 + $0x3c] sm:$0xf]
    %v220 = vld [vmem:[#allocation2 + $0x40] sm:$0xf]
    %v221 = vld [vmem:[#allocation2 + $0x44] sm:$0xf]
    %v222 = vld [vmem:[#allocation2 + $0x48] sm:$0xf]
    %v223 = vld [vmem:[#allocation2 + $0x4c] sm:$0xf]
    %v224 = vld [vmem:[#allocation2 + $0x50] sm:$0xf]
    %225 = vst [vmem:[#allocation4] sm:$0xf] %v204
    %226 = vst [vmem:[#allocation4 + $0x10] sm:$0xf] %v205
    %227 = vst [vmem:[#allocation4 + $0x20] sm:$0xf] %v206
    %228 = vst [vmem:[#allocation4 + $0x30] sm:$0xf] %v207
    %229 = vst [vmem:[#allocation4 + $0x40] sm:$0xf] %v208
    %230 = vst [vmem:[#allocation4 + $0x50] sm:$0xf] %v209
    %231 = vst [vmem:[#allocation4 + $0x60] sm:$0xf] %v210
    %232 = vst [vmem:[#allocation4 + $0x70] sm:$0xf] %v211
    %233 = vst [vmem:[#allocation4 + $0x80] sm:$0xf] %v212
    %234 = vst [vmem:[#allocation4 + $0x90] sm:$0xf] %v213
    %235 = vst [vmem:[#allocation4 + $0xa0] sm:$0xf] %v214
    %236 = vst [vmem:[#allocation4 + $0xb0] sm:$0xf] %v215
    %237 = vst [vmem:[#allocation4 + $0xc0] sm:$0xf] %v216
    %238 = vst [vmem:[#allocation4 + $0xd0] sm:$0xf] %v217
    %239 = vst [vmem:[#allocation4 + $0xe0] sm:$0xf] %v218
    %240 = vst [vmem:[#allocation4 + $0xf0] sm:$0xf] %v219
    %241 = vst [vmem:[#allocation4 + $0x100] sm:$0xf] %v220
    %242 = vst [vmem:[#allocation4 + $0x110] sm:$0xf] %v221
    %243 = vst [vmem:[#allocation4 + $0x120] sm:$0xf] %v222
    %244 = vst [vmem:[#allocation4 + $0x130] sm:$0xf] %v223
    %245 = vst [vmem:[#allocation4 + $0x140] sm:$0xf] %v224
    %v246 = vld [vmem:[#allocation2] sm:$0xf]
    %v247 = vld [vmem:[#allocation2 + $0x4] sm:$0xf]
    %v248 = vld [vmem:[#allocation2 + $0x8] sm:$0xf]
    %v249 = vld [vmem:[#allocation2 + $0xc] sm:$0xf]
    %v250 = vld [vmem:[#allocation2 + $0x10] sm:$0xf]
    %v251 = vld [vmem:[#allocation2 + $0x14] sm:$0xf]
    %v252 = vld [vmem:[#allocation2 + $0x18] sm:$0xf]
    %v253 = vld [vmem:[#allocation2 + $0x1c] sm:$0xf]
    %v254 = vld [vmem:[#allocation2 + $0x20] sm:$0xf]
    %v255 = vld [vmem:[#allocation2 + $0x24] sm:$0xf]
    %v256 = vld [vmem:[#allocation2 + $0x28] sm:$0xf]
    %v257 = vld [vmem:[#allocation2 + $0x2c] sm:$0xf]
    %v258 = vld [vmem:[#allocation2 + $0x30] sm:$0xf]
    %v259 = vld [vmem:[#allocation2 + $0x34] sm:$0xf]
    %v260 = vld [vmem:[#allocation2 + $0x38] sm:$0xf]
    %v261 = vld [vmem:[#allocation2 + $0x3c] sm:$0xf]
    %v262 = vld [vmem:[#allocation2 + $0x40] sm:$0xf]
    %v263 = vld [vmem:[#allocation2 + $0x44] sm:$0xf]
    %v264 = vld [vmem:[#allocation2 + $0x48] sm:$0xf]
    %v265 = vld [vmem:[#allocation2 + $0x4c] sm:$0xf]
    %v266 = vld [vmem:[#allocation2 + $0x50] sm:$0xf]
    %v267 = vld [vmem:[#allocation2 + $0x54] sm:$0x1]
    %vm268 = vsmask.f32 3328
    %vm269 = vsmask.f32 7440
    %vm270 = vmor %vm268, %vm269
    %v272 = vshrl.u32 %v246, 16
    %v274 = vrot.slane %v272, 4
    %v275 = vshll.u32 %v246, 16
    %v277 = vrot.slane %v275, 5
    %v278 = vor.u32 %v274, %v277
    %v279 = vrot.slane %v278, 4
    %v281 = vshll.u32 %v247, 16
    %v283 = vrot.slane %v281, 5
    %v284 = vsel %vm270, %v279, %v283
    %v285 = vshrl.u32 %v247, 16
    %v287 = vrot.slane %v285, 4
    %v288 = vor.u32 %v287, %v283
    %v289 = vrot.slane %v288, 4
    %v291 = vshll.u32 %v248, 16
    %v293 = vrot.slane %v291, 5
    %v294 = vsel %vm270, %v289, %v293
    %v295 = vshrl.u32 %v248, 16
    %v297 = vrot.slane %v295, 4
    %v298 = vor.u32 %v297, %v293
    %v299 = vrot.slane %v298, 4
    %v301 = vshll.u32 %v249, 16
    %v303 = vrot.slane %v301, 5
    %v304 = vsel %vm270, %v299, %v303
    %v305 = vshrl.u32 %v249, 16
    %v307 = vrot.slane %v305, 4
    %v308 = vor.u32 %v307, %v303
    %v309 = vrot.slane %v308, 4
    %v311 = vshll.u32 %v250, 16
    %v313 = vrot.slane %v311, 5
    %v314 = vsel %vm270, %v309, %v313
    %v315 = vshrl.u32 %v250, 16
    %v317 = vrot.slane %v315, 4
    %v318 = vor.u32 %v317, %v313
    %v319 = vrot.slane %v318, 4
    %v321 = vshll.u32 %v251, 16
    %v323 = vrot.slane %v321, 5
    %v324 = vsel %vm270, %v319, %v323
    %v325 = vshrl.u32 %v251, 16
    %v327 = vrot.slane %v325, 4
    %v328 = vor.u32 %v327, %v323
    %v329 = vrot.slane %v328, 4
    %v331 = vshll.u32 %v252, 16
    %v333 = vrot.slane %v331, 5
    %v334 = vsel %vm270, %v329, %v333
    %v335 = vshrl.u32 %v252, 16
    %v337 = vrot.slane %v335, 4
    %v338 = vor.u32 %v337, %v333
    %v339 = vrot.slane %v338, 4
    %v341 = vshll.u32 %v253, 16
    %v343 = vrot.slane %v341, 5
    %v344 = vsel %vm270, %v339, %v343
    %v345 = vshrl.u32 %v253, 16
    %v347 = vrot.slane %v345, 4
    %v348 = vor.u32 %v347, %v343
    %v349 = vrot.slane %v348, 4
    %v351 = vshll.u32 %v254, 16
    %v353 = vrot.slane %v351, 5
    %v354 = vsel %vm270, %v349, %v353
    %v355 = vshrl.u32 %v254, 16
    %v357 = vrot.slane %v355, 4
    %v358 = vor.u32 %v357, %v353
    %v359 = vrot.slane %v358, 4
    %v361 = vshll.u32 %v255, 16
    %v363 = vrot.slane %v361, 5
    %v364 = vsel %vm270, %v359, %v363
    %v365 = vshrl.u32 %v255, 16
    %v367 = vrot.slane %v365, 4
    %v368 = vor.u32 %v367, %v363
    %v369 = vrot.slane %v368, 4
    %v371 = vshll.u32 %v256, 16
    %v373 = vrot.slane %v371, 5
    %v374 = vsel %vm270, %v369, %v373
    %v375 = vshrl.u32 %v256, 16
    %v377 = vrot.slane %v375, 4
    %v378 = vor.u32 %v377, %v373
    %v379 = vrot.slane %v378, 4
    %v381 = vshll.u32 %v257, 16
    %v383 = vrot.slane %v381, 5
    %v384 = vsel %vm270, %v379, %v383
    %v385 = vshrl.u32 %v257, 16
    %v387 = vrot.slane %v385, 4
    %v388 = vor.u32 %v387, %v383
    %v389 = vrot.slane %v388, 4
    %v391 = vshll.u32 %v258, 16
    %v393 = vrot.slane %v391, 5
    %v394 = vsel %vm270, %v389, %v393
    %v395 = vshrl.u32 %v258, 16
    %v397 = vrot.slane %v395, 4
    %v398 = vor.u32 %v397, %v393
    %v399 = vrot.slane %v398, 4
    %v401 = vshll.u32 %v259, 16
    %v403 = vrot.slane %v401, 5
    %v404 = vsel %vm270, %v399, %v403
    %v405 = vshrl.u32 %v259, 16
    %v407 = vrot.slane %v405, 4
    %v408 = vor.u32 %v407, %v403
    %v409 = vrot.slane %v408, 4
    %v411 = vshll.u32 %v260, 16
    %v413 = vrot.slane %v411, 5
    %v414 = vsel %vm270, %v409, %v413
    %v415 = vshrl.u32 %v260, 16
    %v417 = vrot.slane %v415, 4
    %v418 = vor.u32 %v417, %v413
    %v419 = vrot.slane %v418, 4
    %v421 = vshll.u32 %v261, 16
    %v423 = vrot.slane %v421, 5
    %v424 = vsel %vm270, %v419, %v423
    %v425 = vshrl.u32 %v261, 16
    %v427 = vrot.slane %v425, 4
    %v428 = vor.u32 %v427, %v423
    %v429 = vrot.slane %v428, 4
    %v431 = vshll.u32 %v262, 16
    %v433 = vrot.slane %v431, 5
    %v434 = vsel %vm270, %v429, %v433
    %v435 = vshrl.u32 %v262, 16
    %v437 = vrot.slane %v435, 4
    %v438 = vor.u32 %v437, %v433
    %v439 = vrot.slane %v438, 4
    %v441 = vshll.u32 %v263, 16
    %v443 = vrot.slane %v441, 5
    %v444 = vsel %vm270, %v439, %v443
    %v445 = vshrl.u32 %v263, 16
    %v447 = vrot.slane %v445, 4
    %v448 = vor.u32 %v447, %v443
    %v449 = vrot.slane %v448, 4
    %v451 = vshll.u32 %v264, 16
    %v453 = vrot.slane %v451, 5
    %v454 = vsel %vm270, %v449, %v453
    %v455 = vshrl.u32 %v264, 16
    %v457 = vrot.slane %v455, 4
    %v458 = vor.u32 %v457, %v453
    %v459 = vrot.slane %v458, 4
    %v461 = vshll.u32 %v265, 16
    %v463 = vrot.slane %v461, 5
    %v464 = vsel %vm270, %v459, %v463
    %v465 = vshrl.u32 %v265, 16
    %v467 = vrot.slane %v465, 4
    %v468 = vor.u32 %v467, %v463
    %v469 = vrot.slane %v468, 4
    %v471 = vshll.u32 %v266, 16
    %v473 = vrot.slane %v471, 5
    %v474 = vsel %vm270, %v469, %v473
    %v475 = vshrl.u32 %v266, 16
    %v477 = vrot.slane %v475, 4
    %v478 = vor.u32 %v477, %v473
    %v479 = vrot.slane %v478, 4
    %v481 = vshll.u32 %v267, 16
    %v483 = vrot.slane %v481, 5
    %v484 = vsel %vm270, %v479, %v483
    %506 = vst [vmem:[#allocation4 + $0x4] sm:$0xf] %v284
    %507 = vst [vmem:[#allocation4 + $0x14] sm:$0xf] %v294
    %508 = vst [vmem:[#allocation4 + $0x24] sm:$0xf] %v304
    %509 = vst [vmem:[#allocation4 + $0x34] sm:$0xf] %v314
    %510 = vst [vmem:[#allocation4 + $0x44] sm:$0xf] %v324
    %511 = vst [vmem:[#allocation4 + $0x54] sm:$0xf] %v334
    %512 = vst [vmem:[#allocation4 + $0x64] sm:$0xf] %v344
    %513 = vst [vmem:[#allocation4 + $0x74] sm:$0xf] %v354
    %514 = vst [vmem:[#allocation4 + $0x84] sm:$0xf] %v364
    %515 = vst [vmem:[#allocation4 + $0x94] sm:$0xf] %v374
    %516 = vst [vmem:[#allocation4 + $0xa4] sm:$0xf] %v384
    %517 = vst [vmem:[#allocation4 + $0xb4] sm:$0xf] %v394
    %518 = vst [vmem:[#allocation4 + $0xc4] sm:$0xf] %v404
    %519 = vst [vmem:[#allocation4 + $0xd4] sm:$0xf] %v414
    %520 = vst [vmem:[#allocation4 + $0xe4] sm:$0xf] %v424
    %521 = vst [vmem:[#allocation4 + $0xf4] sm:$0xf] %v434
    %522 = vst [vmem:[#allocation4 + $0x104] sm:$0xf] %v444
    %523 = vst [vmem:[#allocation4 + $0x114] sm:$0xf] %v454
    %524 = vst [vmem:[#allocation4 + $0x124] sm:$0xf] %v464
    %525 = vst [vmem:[#allocation4 + $0x134] sm:$0xf] %v474
    %526 = vst [vmem:[#allocation4 + $0x144] sm:$0xf] %v484
    %v527 = vld [vmem:[#allocation2 + $0x4] sm:$0xf]
    %v528 = vld [vmem:[#allocation2 + $0x8] sm:$0xf]
    %v529 = vld [vmem:[#allocation2 + $0xc] sm:$0xf]
    %v530 = vld [vmem:[#allocation2 + $0x10] sm:$0xf]
    %v531 = vld [vmem:[#allocation2 + $0x14] sm:$0xf]
    %v532 = vld [vmem:[#allocation2 + $0x18] sm:$0xf]
    %v533 = vld [vmem:[#allocation2 + $0x1c] sm:$0xf]
    %v534 = vld [vmem:[#allocation2 + $0x20] sm:$0xf]
    %v535 = vld [vmem:[#allocation2 + $0x24] sm:$0xf]
    %v536 = vld [vmem:[#allocation2 + $0x28] sm:$0xf]
    %v537 = vld [vmem:[#allocation2 + $0x2c] sm:$0xf]
    %v538 = vld [vmem:[#allocation2 + $0x30] sm:$0xf]
    %v539 = vld [vmem:[#allocation2 + $0x34] sm:$0xf]
    %v540 = vld [vmem:[#allocation2 + $0x38] sm:$0xf]
    %v541 = vld [vmem:[#allocation2 + $0x3c] sm:$0xf]
    %v542 = vld [vmem:[#allocation2 + $0x40] sm:$0xf]
    %v543 = vld [vmem:[#allocation2 + $0x44] sm:$0xf]
    %v544 = vld [vmem:[#allocation2 + $0x48] sm:$0xf]
    %v545 = vld [vmem:[#allocation2 + $0x4c] sm:$0xf]
    %v546 = vld [vmem:[#allocation2 + $0x50] sm:$0xf]
    %v547 = vld [vmem:[#allocation2 + $0x54] sm:$0xf]
    %v548 = vld [vmem:[#allocation2 + $0x58] sm:$0x1]
    %v550 = vshrl.u32 %v527, 16
    %v552 = vrot.slane %v550, 4
    %v553 = vshll.u32 %v527, 16
    %v555 = vrot.slane %v553, 5
    %v556 = vor.u32 %v552, %v555
    %v557 = vrot.slane %v556, 4
    %v559 = vshll.u32 %v528, 16
    %v561 = vrot.slane %v559, 5
    %v562 = vsel %vm270, %v557, %v561
    %v563 = vshrl.u32 %v528, 16
    %v565 = vrot.slane %v563, 4
    %v566 = vor.u32 %v565, %v561
    %v567 = vrot.slane %v566, 4
    %v569 = vshll.u32 %v529, 16
    %v571 = vrot.slane %v569, 5
    %v572 = vsel %vm270, %v567, %v571
    %v573 = vshrl.u32 %v529, 16
    %v575 = vrot.slane %v573, 4
    %v576 = vor.u32 %v575, %v571
    %v577 = vrot.slane %v576, 4
    %v579 = vshll.u32 %v530, 16
    %v581 = vrot.slane %v579, 5
    %v582 = vsel %vm270, %v577, %v581
    %v583 = vshrl.u32 %v530, 16
    %v585 = vrot.slane %v583, 4
    %v586 = vor.u32 %v585, %v581
    %v587 = vrot.slane %v586, 4
    %v589 = vshll.u32 %v531, 16
    %v591 = vrot.slane %v589, 5
    %v592 = vsel %vm270, %v587, %v591
    %v593 = vshrl.u32 %v531, 16
    %v595 = vrot.slane %v593, 4
    %v596 = vor.u32 %v595, %v591
    %v597 = vrot.slane %v596, 4
    %v599 = vshll.u32 %v532, 16
    %v601 = vrot.slane %v599, 5
    %v602 = vsel %vm270, %v597, %v601
    %v603 = vshrl.u32 %v532, 16
    %v605 = vrot.slane %v603, 4
    %v606 = vor.u32 %v605, %v601
    %v607 = vrot.slane %v606, 4
    %v609 = vshll.u32 %v533, 16
    %v611 = vrot.slane %v609, 5
    %v612 = vsel %vm270, %v607, %v611
    %v613 = vshrl.u32 %v533, 16
    %v615 = vrot.slane %v613, 4
    %v616 = vor.u32 %v615, %v611
    %v617 = vrot.slane %v616, 4
    %v619 = vshll.u32 %v534, 16
    %v621 = vrot.slane %v619, 5
    %v622 = vsel %vm270, %v617, %v621
    %v623 = vshrl.u32 %v534, 16
    %v625 = vrot.slane %v623, 4
    %v626 = vor.u32 %v625, %v621
    %v627 = vrot.slane %v626, 4
    %v629 = vshll.u32 %v535, 16
    %v631 = vrot.slane %v629, 5
    %v632 = vsel %vm270, %v627, %v631
    %v633 = vshrl.u32 %v535, 16
    %v635 = vrot.slane %v633, 4
    %v636 = vor.u32 %v635, %v631
    %v637 = vrot.slane %v636, 4
    %v639 = vshll.u32 %v536, 16
    %v641 = vrot.slane %v639, 5
    %v642 = vsel %vm270, %v637, %v641
    %v643 = vshrl.u32 %v536, 16
    %v645 = vrot.slane %v643, 4
    %v646 = vor.u32 %v645, %v641
    %v647 = vrot.slane %v646, 4
    %v649 = vshll.u32 %v537, 16
    %v651 = vrot.slane %v649, 5
    %v652 = vsel %vm270, %v647, %v651
    %v653 = vshrl.u32 %v537, 16
    %v655 = vrot.slane %v653, 4
    %v656 = vor.u32 %v655, %v651
    %v657 = vrot.slane %v656, 4
    %v659 = vshll.u32 %v538, 16
    %v661 = vrot.slane %v659, 5
    %v662 = vsel %vm270, %v657, %v661
    %v663 = vshrl.u32 %v538, 16
    %v665 = vrot.slane %v663, 4
    %v666 = vor.u32 %v665, %v661
    %v667 = vrot.slane %v666, 4
    %v669 = vshll.u32 %v539, 16
    %v671 = vrot.slane %v669, 5
    %v672 = vsel %vm270, %v667, %v671
    %v673 = vshrl.u32 %v539, 16
    %v675 = vrot.slane %v673, 4
    %v676 = vor.u32 %v675, %v671
    %v677 = vrot.slane %v676, 4
    %v679 = vshll.u32 %v540, 16
    %v681 = vrot.slane %v679, 5
    %v682 = vsel %vm270, %v677, %v681
    %v683 = vshrl.u32 %v540, 16
    %v685 = vrot.slane %v683, 4
    %v686 = vor.u32 %v685, %v681
    %v687 = vrot.slane %v686, 4
    %v689 = vshll.u32 %v541, 16
    %v691 = vrot.slane %v689, 5
    %v692 = vsel %vm270, %v687, %v691
    %v693 = vshrl.u32 %v541, 16
    %v695 = vrot.slane %v693, 4
    %v696 = vor.u32 %v695, %v691
    %v697 = vrot.slane %v696, 4
    %v699 = vshll.u32 %v542, 16
    %v701 = vrot.slane %v699, 5
    %v702 = vsel %vm270, %v697, %v701
    %v703 = vshrl.u32 %v542, 16
    %v705 = vrot.slane %v703, 4
    %v706 = vor.u32 %v705, %v701
    %v707 = vrot.slane %v706, 4
    %v709 = vshll.u32 %v543, 16
    %v711 = vrot.slane %v709, 5
    %v712 = vsel %vm270, %v707, %v711
    %v713 = vshrl.u32 %v543, 16
    %v715 = vrot.slane %v713, 4
    %v716 = vor.u32 %v715, %v711
    %v717 = vrot.slane %v716, 4
    %v719 = vshll.u32 %v544, 16
    %v721 = vrot.slane %v719, 5
    %v722 = vsel %vm270, %v717, %v721
    %v723 = vshrl.u32 %v544, 16
    %v725 = vrot.slane %v723, 4
    %v726 = vor.u32 %v725, %v721
    %v727 = vrot.slane %v726, 4
    %v729 = vshll.u32 %v545, 16
    %v731 = vrot.slane %v729, 5
    %v732 = vsel %vm270, %v727, %v731
    %v733 = vshrl.u32 %v545, 16
    %v735 = vrot.slane %v733, 4
    %v736 = vor.u32 %v735, %v731
    %v737 = vrot.slane %v736, 4
    %v739 = vshll.u32 %v546, 16
    %v741 = vrot.slane %v739, 5
    %v742 = vsel %vm270, %v737, %v741
    %v743 = vshrl.u32 %v546, 16
    %v745 = vrot.slane %v743, 4
    %v746 = vor.u32 %v745, %v741
    %v747 = vrot.slane %v746, 4
    %v749 = vshll.u32 %v547, 16
    %v751 = vrot.slane %v749, 5
    %v752 = vsel %vm270, %v747, %v751
    %v753 = vshrl.u32 %v547, 16
    %v755 = vrot.slane %v753, 4
    %v756 = vor.u32 %v755, %v751
    %v757 = vrot.slane %v756, 4
    %v759 = vshll.u32 %v548, 16
    %v761 = vrot.slane %v759, 5
    %v762 = vsel %vm270, %v757, %v761
    %784 = vst [vmem:[#allocation4 + $0x8] sm:$0xf] %v562
    %785 = vst [vmem:[#allocation4 + $0x18] sm:$0xf] %v572
    %786 = vst [vmem:[#allocation4 + $0x28] sm:$0xf] %v582
    %787 = vst [vmem:[#allocation4 + $0x38] sm:$0xf] %v592
    %788 = vst [vmem:[#allocation4 + $0x48] sm:$0xf] %v602
    %789 = vst [vmem:[#allocation4 + $0x58] sm:$0xf] %v612
    %790 = vst [vmem:[#allocation4 + $0x68] sm:$0xf] %v622
    %791 = vst [vmem:[#allocation4 + $0x78] sm:$0xf] %v632
    %792 = vst [vmem:[#allocation4 + $0x88] sm:$0xf] %v642
    %793 = vst [vmem:[#allocation4 + $0x98] sm:$0xf] %v652
    %794 = vst [vmem:[#allocation4 + $0xa8] sm:$0xf] %v662
    %795 = vst [vmem:[#allocation4 + $0xb8] sm:$0xf] %v672
    %796 = vst [vmem:[#allocation4 + $0xc8] sm:$0xf] %v682
    %797 = vst [vmem:[#allocation4 + $0xd8] sm:$0xf] %v692
    %798 = vst [vmem:[#allocation4 + $0xe8] sm:$0xf] %v702
    %799 = vst [vmem:[#allocation4 + $0xf8] sm:$0xf] %v712
    %800 = vst [vmem:[#allocation4 + $0x108] sm:$0xf] %v722
    %801 = vst [vmem:[#allocation4 + $0x118] sm:$0xf] %v732
    %802 = vst [vmem:[#allocation4 + $0x128] sm:$0xf] %v742
    %803 = vst [vmem:[#allocation4 + $0x138] sm:$0xf] %v752
    %804 = vst [vmem:[#allocation4 + $0x148] sm:$0xf] %v762
    %v805 = vld [vmem:[#allocation2 + $0x4] sm:$0xe]
    %v806 = vld [vmem:[#allocation2 + $0x8] sm:$0xf]
    %v807 = vld [vmem:[#allocation2 + $0xc] sm:$0xf]
    %v808 = vld [vmem:[#allocation2 + $0x10] sm:$0xf]
    %v809 = vld [vmem:[#allocation2 + $0x14] sm:$0xf]
    %v810 = vld [vmem:[#allocation2 + $0x18] sm:$0xf]
    %v811 = vld [vmem:[#allocation2 + $0x1c] sm:$0xf]
    %v812 = vld [vmem:[#allocation2 + $0x20] sm:$0xf]
    %v813 = vld [vmem:[#allocation2 + $0x24] sm:$0xf]
    %v814 = vld [vmem:[#allocation2 + $0x28] sm:$0xf]
    %v815 = vld [vmem:[#allocation2 + $0x2c] sm:$0xf]
    %v816 = vld [vmem:[#allocation2 + $0x30] sm:$0xf]
    %v817 = vld [vmem:[#allocation2 + $0x34] sm:$0xf]
    %v818 = vld [vmem:[#allocation2 + $0x38] sm:$0xf]
    %v819 = vld [vmem:[#allocation2 + $0x3c] sm:$0xf]
    %v820 = vld [vmem:[#allocation2 + $0x40] sm:$0xf]
    %v821 = vld [vmem:[#allocation2 + $0x44] sm:$0xf]
    %v822 = vld [vmem:[#allocation2 + $0x48] sm:$0xf]
    %v823 = vld [vmem:[#allocation2 + $0x4c] sm:$0xf]
    %v824 = vld [vmem:[#allocation2 + $0x50] sm:$0xf]
    %v825 = vld [vmem:[#allocation2 + $0x54] sm:$0xf]
    %v826 = vld [vmem:[#allocation2 + $0x58] sm:$0x1]
    %vm849 = vcmask 1042432
    %vm850 = vcmask 1046532
    %vm851 = vmor %vm849, %vm850
    %v852 = vrot.slane %v805, 5
    %v853 = vrot.slane %v852, 4
    %v854 = vrot.slane %v806, 5
    %v855 = vsel %vm851, %v853, %v854
    %v856 = vrot.slane %v854, 4
    %v857 = vrot.slane %v807, 5
    %v858 = vsel %vm851, %v856, %v857
    %v859 = vrot.slane %v857, 4
    %v860 = vrot.slane %v808, 5
    %v861 = vsel %vm851, %v859, %v860
    %v862 = vrot.slane %v860, 4
    %v863 = vrot.slane %v809, 5
    %v864 = vsel %vm851, %v862, %v863
    %v865 = vrot.slane %v863, 4
    %v866 = vrot.slane %v810, 5
    %v867 = vsel %vm851, %v865, %v866
    %v868 = vrot.slane %v866, 4
    %v869 = vrot.slane %v811, 5
    %v870 = vsel %vm851, %v868, %v869
    %v871 = vrot.slane %v869, 4
    %v872 = vrot.slane %v812, 5
    %v873 = vsel %vm851, %v871, %v872
    %v874 = vrot.slane %v872, 4
    %v875 = vrot.slane %v813, 5
    %v876 = vsel %vm851, %v874, %v875
    %v877 = vrot.slane %v875, 4
    %v878 = vrot.slane %v814, 5
    %v879 = vsel %vm851, %v877, %v878
    %v880 = vrot.slane %v878, 4
    %v881 = vrot.slane %v815, 5
    %v882 = vsel %vm851, %v880, %v881
    %v883 = vrot.slane %v881, 4
    %v884 = vrot.slane %v816, 5
    %v885 = vsel %vm851, %v883, %v884
    %v886 = vrot.slane %v884, 4
    %v887 = vrot.slane %v817, 5
    %v888 = vsel %vm851, %v886, %v887
    %v889 = vrot.slane %v887, 4
    %v890 = vrot.slane %v818, 5
    %v891 = vsel %vm851, %v889, %v890
    %v892 = vrot.slane %v890, 4
    %v893 = vrot.slane %v819, 5
    %v894 = vsel %vm851, %v892, %v893
    %v895 = vrot.slane %v893, 4
    %v896 = vrot.slane %v820, 5
    %v897 = vsel %vm851, %v895, %v896
    %v898 = vrot.slane %v896, 4
    %v899 = vrot.slane %v821, 5
    %v900 = vsel %vm851, %v898, %v899
    %v901 = vrot.slane %v899, 4
    %v902 = vrot.slane %v822, 5
    %v903 = vsel %vm851, %v901, %v902
    %v904 = vrot.slane %v902, 4
    %v905 = vrot.slane %v823, 5
    %v906 = vsel %vm851, %v904, %v905
    %v907 = vrot.slane %v905, 4
    %v908 = vrot.slane %v824, 5
    %v909 = vsel %vm851, %v907, %v908
    %v910 = vrot.slane %v908, 4
    %v911 = vrot.slane %v825, 5
    %v912 = vsel %vm851, %v910, %v911
    %v913 = vrot.slane %v911, 4
    %v914 = vrot.slane %v826, 5
    %v915 = vsel %vm851, %v913, %v914
    %937 = vst [vmem:[#allocation4 + $0xc] sm:$0xf] %v855
    %938 = vst [vmem:[#allocation4 + $0x1c] sm:$0xf] %v858
    %939 = vst [vmem:[#allocation4 + $0x2c] sm:$0xf] %v861
    %940 = vst [vmem:[#allocation4 + $0x3c] sm:$0xf] %v864
    %941 = vst [vmem:[#allocation4 + $0x4c] sm:$0xf] %v867
    %942 = vst [vmem:[#allocation4 + $0x5c] sm:$0xf] %v870
    %943 = vst [vmem:[#allocation4 + $0x6c] sm:$0xf] %v873
    %944 = vst [vmem:[#allocation4 + $0x7c] sm:$0xf] %v876
    %945 = vst [vmem:[#allocation4 + $0x8c] sm:$0xf] %v879
    %946 = vst [vmem:[#allocation4 + $0x9c] sm:$0xf] %v882
    %947 = vst [vmem:[#allocation4 + $0xac] sm:$0xf] %v885
    %948 = vst [vmem:[#allocation4 + $0xbc] sm:$0xf] %v888
    %949 = vst [vmem:[#allocation4 + $0xcc] sm:$0xf] %v891
    %950 = vst [vmem:[#allocation4 + $0xdc] sm:$0xf] %v894
    %951 = vst [vmem:[#allocation4 + $0xec] sm:$0xf] %v897
    %952 = vst [vmem:[#allocation4 + $0xfc] sm:$0xf] %v900
    %953 = vst [vmem:[#allocation4 + $0x10c] sm:$0xf] %v903
    %954 = vst [vmem:[#allocation4 + $0x11c] sm:$0xf] %v906
    %955 = vst [vmem:[#allocation4 + $0x12c] sm:$0xf] %v909
    %956 = vst [vmem:[#allocation4 + $0x13c] sm:$0xf] %v912
    %957 = vst [vmem:[#allocation4 + $0x14c] sm:$0xf] %v915
  $region54: #{residual_block_forward.5} parent=0 // pred_fallthru
    _
  %p958 = scmp.eq.s32.totalorder %s105, 1
  // Predicated region
  $region96: #{residual_block_forward.5} parent=0 // pred_check
    %p959 = pneg %p958
  $region97: #{residual_block_forward.5} parent=0 // pred_check_branch
    %961 = sbr.rel (%p959) target = $region99
  $region98: #{residual_block_forward.5} parent=0 // pred_region
    %s962 = sadd.s32 0, 1
    %p963 = scmp.lt.s32.totalorder %s962, 1
    %s964 = sadd.s32 0, 1
    %p965 = scmp.lt.s32.totalorder %s964, 1
    %p966 = por %p963, %p965
    // Predicated region
    $region100: #{residual_block_forward.5} parent=98 // pred_check
      %p967 = pneg %p966
    $region101: #{residual_block_forward.5} parent=98 // pred_check_branch
      %969 = sbr.rel (%p967) target = $region103
    $region102: #{residual_block_forward.5} parent=98 // pred_region
      %s970 = scalar_select %p963, %s962, 0
      %s971 = smul.u32 %s970, 168
      %s972 = sshra.s32 %s971, 3
      %s973 = sand.u32 %s971, 7
      %s974 = smul.addr %s972, 4
      %s975 = scalar_lea.vmem %s0, %s974
      %p977 = scmp.lt.u32.totalorder 92, 8
      %p978 = pneg %p977
      // Predicated region
      $region104: #{residual_block_forward.5} parent=102 // pred_check
        _
      $region105: #{residual_block_forward.5} parent=102 // pred_check_branch
        %980 = sbr.rel (%p977) target = $region107
      $region106: #{residual_block_forward.5} parent=102 // pred_region
        %s995 = sand.u32 92, 7
        %p996 = scmp.eq.s32.totalorder %s995, 0
        %p997 = pneg %p996
        // Predicated region
        $region119: #{residual_block_forward.5} parent=106 // pred_check
          _
        $region120: #{residual_block_forward.5} parent=106 // pred_check_branch
          %999 = sbr.rel (%p996) target = $region122
        $region121: #{residual_block_forward.5} parent=106 // pred_region
          %s1000 = sand.u32 92, 7
          %s1001 = ssub.s32 92, %s1000
          %s1002 = scalar_lea.vmem %s975, %s1001
          %s1003 = ssub.s32 92, %s1000
          %s1004 = scalar_lea.vmem [#allocation2], %s1003
          loop: start=0, step=1, limit=1
          $region123: #{residual_block_forward.5} parent=121 // loop_pre_header
            _
          $region124: #{residual_block_forward.5} parent=121 // loop_header
            %s1006 = sphi 0, %s1010
            %p1007 = scmp.ge.s32.totalorder %s1006, 1
            %s1011 = sphi %s975, %s975
            %s1012 = sphi [#allocation2], [#allocation2]
          $region125: #{residual_block_forward.5} parent=121 // loop_header_branch
            %1009 = sbr.rel (%p1007) target = $region129
          $region126: #{residual_block_forward.5} parent=121 // loop_body
            %v1013 = vld [vmem:[%s1011] sm:$0xff]
            %1014 = vst [vmem:[%s1012] sm:$0xff] %v1013
            %v1015 = vld [vmem:[%s1011 + $0x8] sm:$0xff]
            %1016 = vst [vmem:[%s1012 + $0x8] sm:$0xff] %v1015
            %v1017 = vld [vmem:[%s1011 + $0x10] sm:$0xff]
            %1018 = vst [vmem:[%s1012 + $0x10] sm:$0xff] %v1017
            %v1019 = vld [vmem:[%s1011 + $0x18] sm:$0xff]
            %1020 = vst [vmem:[%s1012 + $0x18] sm:$0xff] %v1019
            %v1021 = vld [vmem:[%s1011 + $0x20] sm:$0xff]
            %1022 = vst [vmem:[%s1012 + $0x20] sm:$0xff] %v1021
            %v1023 = vld [vmem:[%s1011 + $0x28] sm:$0xff]
            %1024 = vst [vmem:[%s1012 + $0x28] sm:$0xff] %v1023
            %v1025 = vld [vmem:[%s1011 + $0x30] sm:$0xff]
            %1026 = vst [vmem:[%s1012 + $0x30] sm:$0xff] %v1025
            %v1027 = vld [vmem:[%s1011 + $0x38] sm:$0xff]
            %1028 = vst [vmem:[%s1012 + $0x38] sm:$0xff] %v1027
            %v1029 = vld [vmem:[%s1011 + $0x40] sm:$0xff]
            %1030 = vst [vmem:[%s1012 + $0x40] sm:$0xff] %v1029
            %v1031 = vld [vmem:[%s1011 + $0x48] sm:$0xff]
            %1032 = vst [vmem:[%s1012 + $0x48] sm:$0xff] %v1031
            %v1033 = vld [vmem:[%s1011 + $0x50] sm:$0xff]
            %1034 = vst [vmem:[%s1012 + $0x50] sm:$0xff] %v1033
          $region127: #{residual_block_forward.5} parent=121 // loop_footer
            %s1010 = sadd.s32 1, %s1006
          $region128: #{residual_block_forward.5} parent=121 // loop_footer_branch
            %1005 = sbr.rel target = $region124
          $region129: #{residual_block_forward.5} parent=121 // loop_exit
            _
          %s1035 = sshllo.u32 0, %s1000
          loop: start=0, step=1, limit=1
          $region130: #{residual_block_forward.5} parent=121 // loop_pre_header
            _
          $region131: #{residual_block_forward.5} parent=121 // loop_header
            %s1037 = sphi 0, %s1041
            %p1038 = scmp.ge.s32.totalorder %s1037, 1
            %s1042 = sphi %s1002, %s1002
            %s1043 = sphi %s1004, %s1004
          $region132: #{residual_block_forward.5} parent=121 // loop_header_branch
            %1040 = sbr.rel (%p1038) target = $region136
          $region133: #{residual_block_forward.5} parent=121 // loop_body
            %v1044 = vld [vmem:[%s1042] sm:%s1035]
            %1045 = vst [vmem:[%s1043] sm:%s1035] %v1044
          $region134: #{residual_block_forward.5} parent=121 // loop_footer
            %s1041 = sadd.s32 1, %s1037
          $region135: #{residual_block_forward.5} parent=121 // loop_footer_branch
            %1036 = sbr.rel target = $region131
          $region136: #{residual_block_forward.5} parent=121 // loop_exit
            _
        $region122: #{residual_block_forward.5} parent=106 // pred_fallthru
          _
      $region107: #{residual_block_forward.5} parent=102 // pred_fallthru
        _
      // Predicated region
      $region108: #{residual_block_forward.5} parent=102 // pred_check
        %p981 = pneg %p977
      $region109: #{residual_block_forward.5} parent=102 // pred_check_branch
        %983 = sbr.rel (%p981) target = $region111
      $region110: #{residual_block_forward.5} parent=102 // pred_region
        %s984 = sshllo.u32 0, 92
        loop: start=0, step=1, limit=1
        $region112: #{residual_block_forward.5} parent=110 // loop_pre_header
          _
        $region113: #{residual_block_forward.5} parent=110 // loop_header
          %s986 = sphi 0, %s990
          %p987 = scmp.ge.s32.totalorder %s986, 1
          %s991 = sphi %s975, %s975
          %s992 = sphi [#allocation2], [#allocation2]
        $region114: #{residual_block_forward.5} parent=110 // loop_header_branch
          %989 = sbr.rel (%p987) target = $region118
        $region115: #{residual_block_forward.5} parent=110 // loop_body
          %v993 = vld [vmem:[%s991] sm:%s984]
          %994 = vst [vmem:[%s992] sm:%s984] %v993
        $region116: #{residual_block_forward.5} parent=110 // loop_footer
          %s990 = sadd.s32 1, %s986
        $region117: #{residual_block_forward.5} parent=110 // loop_footer_branch
          %985 = sbr.rel target = $region113
        $region118: #{residual_block_forward.5} parent=110 // loop_exit
          _
      $region111: #{residual_block_forward.5} parent=102 // pred_fallthru
        _
      // Predicated region
      $region137: #{residual_block_forward.5} parent=102 // pred_check
        _
      $region138: #{residual_block_forward.5} parent=102 // pred_check_branch
        %1048 = sbr.rel (0) target = $region140
      $region139: #{residual_block_forward.5} parent=102 // pred_region
        %1049 = vsyncadd [#allocation5], 1472
      $region140: #{residual_block_forward.5} parent=102 // pred_fallthru
        _
    $region103: #{residual_block_forward.5} parent=98 // pred_fallthru
      _
    %s1050 = smul.u32 0, 168
    %s1051 = scalar_lea.sflag [#allocation5], 1
    %s1052 = smul.u32 4, 23
    %s1053 = smul.u32 %s1052, 1
    %s1054 = sshll.u32 %s1053, 4
    %1055 = dma.done %s1051, %s1054
    %v1056 = vld [vmem:[#allocation3] sm:$0xf]
    %v1057 = vld [vmem:[#allocation3 + $0x4] sm:$0xf]
    %v1058 = vld [vmem:[#allocation3 + $0x8] sm:$0xf]
    %v1059 = vld [vmem:[#allocation3 + $0xc] sm:$0xf]
    %v1060 = vld [vmem:[#allocation3 + $0x10] sm:$0xf]
    %v1061 = vld [vmem:[#allocation3 + $0x14] sm:$0xf]
    %v1062 = vld [vmem:[#allocation3 + $0x18] sm:$0xf]
    %v1063 = vld [vmem:[#allocation3 + $0x1c] sm:$0xf]
    %v1064 = vld [vmem:[#allocation3 + $0x20] sm:$0xf]
    %v1065 = vld [vmem:[#allocation3 + $0x24] sm:$0xf]
    %v1066 = vld [vmem:[#allocation3 + $0x28] sm:$0xf]
    %v1067 = vld [vmem:[#allocation3 + $0x2c] sm:$0xf]
    %v1068 = vld [vmem:[#allocation3 + $0x30] sm:$0xf]
    %v1069 = vld [vmem:[#allocation3 + $0x34] sm:$0xf]
    %v1070 = vld [vmem:[#allocation3 + $0x38] sm:$0xf]
    %v1071 = vld [vmem:[#allocation3 + $0x3c] sm:$0xf]
    %v1072 = vld [vmem:[#allocation3 + $0x40] sm:$0xf]
    %v1073 = vld [vmem:[#allocation3 + $0x44] sm:$0xf]
    %v1074 = vld [vmem:[#allocation3 + $0x48] sm:$0xf]
    %v1075 = vld [vmem:[#allocation3 + $0x4c] sm:$0xf]
    %v1076 = vld [vmem:[#allocation3 + $0x50] sm:$0xf]
    %1077 = vst [vmem:[#allocation4] sm:$0xf] %v1056
    %1078 = vst [vmem:[#allocation4 + $0x10] sm:$0xf] %v1057
    %1079 = vst [vmem:[#allocation4 + $0x20] sm:$0xf] %v1058
    %1080 = vst [vmem:[#allocation4 + $0x30] sm:$0xf] %v1059
    %1081 = vst [vmem:[#allocation4 + $0x40] sm:$0xf] %v1060
    %1082 = vst [vmem:[#allocation4 + $0x50] sm:$0xf] %v1061
    %1083 = vst [vmem:[#allocation4 + $0x60] sm:$0xf] %v1062
    %1084 = vst [vmem:[#allocation4 + $0x70] sm:$0xf] %v1063
    %1085 = vst [vmem:[#allocation4 + $0x80] sm:$0xf] %v1064
    %1086 = vst [vmem:[#allocation4 + $0x90] sm:$0xf] %v1065
    %1087 = vst [vmem:[#allocation4 + $0xa0] sm:$0xf] %v1066
    %1088 = vst [vmem:[#allocation4 + $0xb0] sm:$0xf] %v1067
    %1089 = vst [vmem:[#allocation4 + $0xc0] sm:$0xf] %v1068
    %1090 = vst [vmem:[#allocation4 + $0xd0] sm:$0xf] %v1069
    %1091 = vst [vmem:[#allocation4 + $0xe0] sm:$0xf] %v1070
    %1092 = vst [vmem:[#allocation4 + $0xf0] sm:$0xf] %v1071
    %1093 = vst [vmem:[#allocation4 + $0x100] sm:$0xf] %v1072
    %1094 = vst [vmem:[#allocation4 + $0x110] sm:$0xf] %v1073
    %1095 = vst [vmem:[#allocation4 + $0x120] sm:$0xf] %v1074
    %1096 = vst [vmem:[#allocation4 + $0x130] sm:$0xf] %v1075
    %1097 = vst [vmem:[#allocation4 + $0x140] sm:$0xf] %v1076
    %v1098 = vld [vmem:[#allocation3] sm:$0xf]
    %v1099 = vld [vmem:[#allocation3 + $0x4] sm:$0xf]
    %v1100 = vld [vmem:[#allocation3 + $0x8] sm:$0xf]
    %v1101 = vld [vmem:[#allocation3 + $0xc] sm:$0xf]
    %v1102 = vld [vmem:[#allocation3 + $0x10] sm:$0xf]
    %v1103 = vld [vmem:[#allocation3 + $0x14] sm:$0xf]
    %v1104 = vld [vmem:[#allocation3 + $0x18] sm:$0xf]
    %v1105 = vld [vmem:[#allocation3 + $0x1c] sm:$0xf]
    %v1106 = vld [vmem:[#allocation3 + $0x20] sm:$0xf]
    %v1107 = vld [vmem:[#allocation3 + $0x24] sm:$0xf]
    %v1108 = vld [vmem:[#allocation3 + $0x28] sm:$0xf]
    %v1109 = vld [vmem:[#allocation3 + $0x2c] sm:$0xf]
    %v1110 = vld [vmem:[#allocation3 + $0x30] sm:$0xf]
    %v1111 = vld [vmem:[#allocation3 + $0x34] sm:$0xf]
    %v1112 = vld [vmem:[#allocation3 + $0x38] sm:$0xf]
    %v1113 = vld [vmem:[#allocation3 + $0x3c] sm:$0xf]
    %v1114 = vld [vmem:[#allocation3 + $0x40] sm:$0xf]
    %v1115 = vld [vmem:[#allocation3 + $0x44] sm:$0xf]
    %v1116 = vld [vmem:[#allocation3 + $0x48] sm:$0xf]
    %v1117 = vld [vmem:[#allocation3 + $0x4c] sm:$0xf]
    %v1118 = vld [vmem:[#allocation3 + $0x50] sm:$0xf]
    %v1119 = vld [vmem:[#allocation3 + $0x54] sm:$0x1]
    %vm1120 = vsmask.f32 3328
    %vm1121 = vsmask.f32 7440
    %vm1122 = vmor %vm1120, %vm1121
    %v1124 = vshrl.u32 %v1098, 16
    %v1126 = vrot.slane %v1124, 4
    %v1127 = vshll.u32 %v1098, 16
    %v1129 = vrot.slane %v1127, 5
    %v1130 = vor.u32 %v1126, %v1129
    %v1131 = vrot.slane %v1130, 4
    %v1133 = vshll.u32 %v1099, 16
    %v1135 = vrot.slane %v1133, 5
    %v1136 = vsel %vm1122, %v1131, %v1135
    %v1137 = vshrl.u32 %v1099, 16
    %v1139 = vrot.slane %v1137, 4
    %v1140 = vor.u32 %v1139, %v1135
    %v1141 = vrot.slane %v1140, 4
    %v1143 = vshll.u32 %v1100, 16
    %v1145 = vrot.slane %v1143, 5
    %v1146 = vsel %vm1122, %v1141, %v1145
    %v1147 = vshrl.u32 %v1100, 16
    %v1149 = vrot.slane %v1147, 4
    %v1150 = vor.u32 %v1149, %v1145
    %v1151 = vrot.slane %v1150, 4
    %v1153 = vshll.u32 %v1101, 16
    %v1155 = vrot.slane %v1153, 5
    %v1156 = vsel %vm1122, %v1151, %v1155
    %v1157 = vshrl.u32 %v1101, 16
    %v1159 = vrot.slane %v1157, 4
    %v1160 = vor.u32 %v1159, %v1155
    %v1161 = vrot.slane %v1160, 4
    %v1163 = vshll.u32 %v1102, 16
    %v1165 = vrot.slane %v1163, 5
    %v1166 = vsel %vm1122, %v1161, %v1165
    %v1167 = vshrl.u32 %v1102, 16
    %v1169 = vrot.slane %v1167, 4
    %v1170 = vor.u32 %v1169, %v1165
    %v1171 = vrot.slane %v1170, 4
    %v1173 = vshll.u32 %v1103, 16
    %v1175 = vrot.slane %v1173, 5
    %v1176 = vsel %vm1122, %v1171, %v1175
    %v1177 = vshrl.u32 %v1103, 16
    %v1179 = vrot.slane %v1177, 4
    %v1180 = vor.u32 %v1179, %v1175
    %v1181 = vrot.slane %v1180, 4
    %v1183 = vshll.u32 %v1104, 16
    %v1185 = vrot.slane %v1183, 5
    %v1186 = vsel %vm1122, %v1181, %v1185
    %v1187 = vshrl.u32 %v1104, 16
    %v1189 = vrot.slane %v1187, 4
    %v1190 = vor.u32 %v1189, %v1185
    %v1191 = vrot.slane %v1190, 4
    %v1193 = vshll.u32 %v1105, 16
    %v1195 = vrot.slane %v1193, 5
    %v1196 = vsel %vm1122, %v1191, %v1195
    %v1197 = vshrl.u32 %v1105, 16
    %v1199 = vrot.slane %v1197, 4
    %v1200 = vor.u32 %v1199, %v1195
    %v1201 = vrot.slane %v1200, 4
    %v1203 = vshll.u32 %v1106, 16
    %v1205 = vrot.slane %v1203, 5
    %v1206 = vsel %vm1122, %v1201, %v1205
    %v1207 = vshrl.u32 %v1106, 16
    %v1209 = vrot.slane %v1207, 4
    %v1210 = vor.u32 %v1209, %v1205
    %v1211 = vrot.slane %v1210, 4
    %v1213 = vshll.u32 %v1107, 16
    %v1215 = vrot.slane %v1213, 5
    %v1216 = vsel %vm1122, %v1211, %v1215
    %v1217 = vshrl.u32 %v1107, 16
    %v1219 = vrot.slane %v1217, 4
    %v1220 = vor.u32 %v1219, %v1215
    %v1221 = vrot.slane %v1220, 4
    %v1223 = vshll.u32 %v1108, 16
    %v1225 = vrot.slane %v1223, 5
    %v1226 = vsel %vm1122, %v1221, %v1225
    %v1227 = vshrl.u32 %v1108, 16
    %v1229 = vrot.slane %v1227, 4
    %v1230 = vor.u32 %v1229, %v1225
    %v1231 = vrot.slane %v1230, 4
    %v1233 = vshll.u32 %v1109, 16
    %v1235 = vrot.slane %v1233, 5
    %v1236 = vsel %vm1122, %v1231, %v1235
    %v1237 = vshrl.u32 %v1109, 16
    %v1239 = vrot.slane %v1237, 4
    %v1240 = vor.u32 %v1239, %v1235
    %v1241 = vrot.slane %v1240, 4
    %v1243 = vshll.u32 %v1110, 16
    %v1245 = vrot.slane %v1243, 5
    %v1246 = vsel %vm1122, %v1241, %v1245
    %v1247 = vshrl.u32 %v1110, 16
    %v1249 = vrot.slane %v1247, 4
    %v1250 = vor.u32 %v1249, %v1245
    %v1251 = vrot.slane %v1250, 4
    %v1253 = vshll.u32 %v1111, 16
    %v1255 = vrot.slane %v1253, 5
    %v1256 = vsel %vm1122, %v1251, %v1255
    %v1257 = vshrl.u32 %v1111, 16
    %v1259 = vrot.slane %v1257, 4
    %v1260 = vor.u32 %v1259, %v1255
    %v1261 = vrot.slane %v1260, 4
    %v1263 = vshll.u32 %v1112, 16
    %v1265 = vrot.slane %v1263, 5
    %v1266 = vsel %vm1122, %v1261, %v1265
    %v1267 = vshrl.u32 %v1112, 16
    %v1269 = vrot.slane %v1267, 4
    %v1270 = vor.u32 %v1269, %v1265
    %v1271 = vrot.slane %v1270, 4
    %v1273 = vshll.u32 %v1113, 16
    %v1275 = vrot.slane %v1273, 5
    %v1276 = vsel %vm1122, %v1271, %v1275
    %v1277 = vshrl.u32 %v1113, 16
    %v1279 = vrot.slane %v1277, 4
    %v1280 = vor.u32 %v1279, %v1275
    %v1281 = vrot.slane %v1280, 4
    %v1283 = vshll.u32 %v1114, 16
    %v1285 = vrot.slane %v1283, 5
    %v1286 = vsel %vm1122, %v1281, %v1285
    %v1287 = vshrl.u32 %v1114, 16
    %v1289 = vrot.slane %v1287, 4
    %v1290 = vor.u32 %v1289, %v1285
    %v1291 = vrot.slane %v1290, 4
    %v1293 = vshll.u32 %v1115, 16
    %v1295 = vrot.slane %v1293, 5
    %v1296 = vsel %vm1122, %v1291, %v1295
    %v1297 = vshrl.u32 %v1115, 16
    %v1299 = vrot.slane %v1297, 4
    %v1300 = vor.u32 %v1299, %v1295
    %v1301 = vrot.slane %v1300, 4
    %v1303 = vshll.u32 %v1116, 16
    %v1305 = vrot.slane %v1303, 5
    %v1306 = vsel %vm1122, %v1301, %v1305
    %v1307 = vshrl.u32 %v1116, 16
    %v1309 = vrot.slane %v1307, 4
    %v1310 = vor.u32 %v1309, %v1305
    %v1311 = vrot.slane %v1310, 4
    %v1313 = vshll.u32 %v1117, 16
    %v1315 = vrot.slane %v1313, 5
    %v1316 = vsel %vm1122, %v1311, %v1315
    %v1317 = vshrl.u32 %v1117, 16
    %v1319 = vrot.slane %v1317, 4
    %v1320 = vor.u32 %v1319, %v1315
    %v1321 = vrot.slane %v1320, 4
    %v1323 = vshll.u32 %v1118, 16
    %v1325 = vrot.slane %v1323, 5
    %v1326 = vsel %vm1122, %v1321, %v1325
    %v1327 = vshrl.u32 %v1118, 16
    %v1329 = vrot.slane %v1327, 4
    %v1330 = vor.u32 %v1329, %v1325
    %v1331 = vrot.slane %v1330, 4
    %v1333 = vshll.u32 %v1119, 16
    %v1335 = vrot.slane %v1333, 5
    %v1336 = vsel %vm1122, %v1331, %v1335
    %1358 = vst [vmem:[#allocation4 + $0x4] sm:$0xf] %v1136
    %1359 = vst [vmem:[#allocation4 + $0x14] sm:$0xf] %v1146
    %1360 = vst [vmem:[#allocation4 + $0x24] sm:$0xf] %v1156
    %1361 = vst [vmem:[#allocation4 + $0x34] sm:$0xf] %v1166
    %1362 = vst [vmem:[#allocation4 + $0x44] sm:$0xf] %v1176
    %1363 = vst [vmem:[#allocation4 + $0x54] sm:$0xf] %v1186
    %1364 = vst [vmem:[#allocation4 + $0x64] sm:$0xf] %v1196
    %1365 = vst [vmem:[#allocation4 + $0x74] sm:$0xf] %v1206
    %1366 = vst [vmem:[#allocation4 + $0x84] sm:$0xf] %v1216
    %1367 = vst [vmem:[#allocation4 + $0x94] sm:$0xf] %v1226
    %1368 = vst [vmem:[#allocation4 + $0xa4] sm:$0xf] %v1236
    %1369 = vst [vmem:[#allocation4 + $0xb4] sm:$0xf] %v1246
    %1370 = vst [vmem:[#allocation4 + $0xc4] sm:$0xf] %v1256
    %1371 = vst [vmem:[#allocation4 + $0xd4] sm:$0xf] %v1266
    %1372 = vst [vmem:[#allocation4 + $0xe4] sm:$0xf] %v1276
    %1373 = vst [vmem:[#allocation4 + $0xf4] sm:$0xf] %v1286
    %1374 = vst [vmem:[#allocation4 + $0x104] sm:$0xf] %v1296
    %1375 = vst [vmem:[#allocation4 + $0x114] sm:$0xf] %v1306
    %1376 = vst [vmem:[#allocation4 + $0x124] sm:$0xf] %v1316
    %1377 = vst [vmem:[#allocation4 + $0x134] sm:$0xf] %v1326
    %1378 = vst [vmem:[#allocation4 + $0x144] sm:$0xf] %v1336
    %v1379 = vld [vmem:[#allocation3 + $0x4] sm:$0xf]
    %v1380 = vld [vmem:[#allocation3 + $0x8] sm:$0xf]
    %v1381 = vld [vmem:[#allocation3 + $0xc] sm:$0xf]
    %v1382 = vld [vmem:[#allocation3 + $0x10] sm:$0xf]
    %v1383 = vld [vmem:[#allocation3 + $0x14] sm:$0xf]
    %v1384 = vld [vmem:[#allocation3 + $0x18] sm:$0xf]
    %v1385 = vld [vmem:[#allocation3 + $0x1c] sm:$0xf]
    %v1386 = vld [vmem:[#allocation3 + $0x20] sm:$0xf]
    %v1387 = vld [vmem:[#allocation3 + $0x24] sm:$0xf]
    %v1388 = vld [vmem:[#allocation3 + $0x28] sm:$0xf]
    %v1389 = vld [vmem:[#allocation3 + $0x2c] sm:$0xf]
    %v1390 = vld [vmem:[#allocation3 + $0x30] sm:$0xf]
    %v1391 = vld [vmem:[#allocation3 + $0x34] sm:$0xf]
    %v1392 = vld [vmem:[#allocation3 + $0x38] sm:$0xf]
    %v1393 = vld [vmem:[#allocation3 + $0x3c] sm:$0xf]
    %v1394 = vld [vmem:[#allocation3 + $0x40] sm:$0xf]
    %v1395 = vld [vmem:[#allocation3 + $0x44] sm:$0xf]
    %v1396 = vld [vmem:[#allocation3 + $0x48] sm:$0xf]
    %v1397 = vld [vmem:[#allocation3 + $0x4c] sm:$0xf]
    %v1398 = vld [vmem:[#allocation3 + $0x50] sm:$0xf]
    %v1399 = vld [vmem:[#allocation3 + $0x54] sm:$0xf]
    %v1400 = vld [vmem:[#allocation3 + $0x58] sm:$0x1]
    %v1402 = vshrl.u32 %v1379, 16
    %v1404 = vrot.slane %v1402, 4
    %v1405 = vshll.u32 %v1379, 16
    %v1407 = vrot.slane %v1405, 5
    %v1408 = vor.u32 %v1404, %v1407
    %v1409 = vrot.slane %v1408, 4
    %v1411 = vshll.u32 %v1380, 16
    %v1413 = vrot.slane %v1411, 5
    %v1414 = vsel %vm1122, %v1409, %v1413
    %v1415 = vshrl.u32 %v1380, 16
    %v1417 = vrot.slane %v1415, 4
    %v1418 = vor.u32 %v1417, %v1413
    %v1419 = vrot.slane %v1418, 4
    %v1421 = vshll.u32 %v1381, 16
    %v1423 = vrot.slane %v1421, 5
    %v1424 = vsel %vm1122, %v1419, %v1423
    %v1425 = vshrl.u32 %v1381, 16
    %v1427 = vrot.slane %v1425, 4
    %v1428 = vor.u32 %v1427, %v1423
    %v1429 = vrot.slane %v1428, 4
    %v1431 = vshll.u32 %v1382, 16
    %v1433 = vrot.slane %v1431, 5
    %v1434 = vsel %vm1122, %v1429, %v1433
    %v1435 = vshrl.u32 %v1382, 16
    %v1437 = vrot.slane %v1435, 4
    %v1438 = vor.u32 %v1437, %v1433
    %v1439 = vrot.slane %v1438, 4
    %v1441 = vshll.u32 %v1383, 16
    %v1443 = vrot.slane %v1441, 5
    %v1444 = vsel %vm1122, %v1439, %v1443
    %v1445 = vshrl.u32 %v1383, 16
    %v1447 = vrot.slane %v1445, 4
    %v1448 = vor.u32 %v1447, %v1443
    %v1449 = vrot.slane %v1448, 4
    %v1451 = vshll.u32 %v1384, 16
    %v1453 = vrot.slane %v1451, 5
    %v1454 = vsel %vm1122, %v1449, %v1453
    %v1455 = vshrl.u32 %v1384, 16
    %v1457 = vrot.slane %v1455, 4
    %v1458 = vor.u32 %v1457, %v1453
    %v1459 = vrot.slane %v1458, 4
    %v1461 = vshll.u32 %v1385, 16
    %v1463 = vrot.slane %v1461, 5
    %v1464 = vsel %vm1122, %v1459, %v1463
    %v1465 = vshrl.u32 %v1385, 16
    %v1467 = vrot.slane %v1465, 4
    %v1468 = vor.u32 %v1467, %v1463
    %v1469 = vrot.slane %v1468, 4
    %v1471 = vshll.u32 %v1386, 16
    %v1473 = vrot.slane %v1471, 5
    %v1474 = vsel %vm1122, %v1469, %v1473
    %v1475 = vshrl.u32 %v1386, 16
    %v1477 = vrot.slane %v1475, 4
    %v1478 = vor.u32 %v1477, %v1473
    %v1479 = vrot.slane %v1478, 4
    %v1481 = vshll.u32 %v1387, 16
    %v1483 = vrot.slane %v1481, 5
    %v1484 = vsel %vm1122, %v1479, %v1483
    %v1485 = vshrl.u32 %v1387, 16
    %v1487 = vrot.slane %v1485, 4
    %v1488 = vor.u32 %v1487, %v1483
    %v1489 = vrot.slane %v1488, 4
    %v1491 = vshll.u32 %v1388, 16
    %v1493 = vrot.slane %v1491, 5
    %v1494 = vsel %vm1122, %v1489, %v1493
    %v1495 = vshrl.u32 %v1388, 16
    %v1497 = vrot.slane %v1495, 4
    %v1498 = vor.u32 %v1497, %v1493
    %v1499 = vrot.slane %v1498, 4
    %v1501 = vshll.u32 %v1389, 16
    %v1503 = vrot.slane %v1501, 5
    %v1504 = vsel %vm1122, %v1499, %v1503
    %v1505 = vshrl.u32 %v1389, 16
    %v1507 = vrot.slane %v1505, 4
    %v1508 = vor.u32 %v1507, %v1503
    %v1509 = vrot.slane %v1508, 4
    %v1511 = vshll.u32 %v1390, 16
    %v1513 = vrot.slane %v1511, 5
    %v1514 = vsel %vm1122, %v1509, %v1513
    %v1515 = vshrl.u32 %v1390, 16
    %v1517 = vrot.slane %v1515, 4
    %v1518 = vor.u32 %v1517, %v1513
    %v1519 = vrot.slane %v1518, 4
    %v1521 = vshll.u32 %v1391, 16
    %v1523 = vrot.slane %v1521, 5
    %v1524 = vsel %vm1122, %v1519, %v1523
    %v1525 = vshrl.u32 %v1391, 16
    %v1527 = vrot.slane %v1525, 4
    %v1528 = vor.u32 %v1527, %v1523
    %v1529 = vrot.slane %v1528, 4
    %v1531 = vshll.u32 %v1392, 16
    %v1533 = vrot.slane %v1531, 5
    %v1534 = vsel %vm1122, %v1529, %v1533
    %v1535 = vshrl.u32 %v1392, 16
    %v1537 = vrot.slane %v1535, 4
    %v1538 = vor.u32 %v1537, %v1533
    %v1539 = vrot.slane %v1538, 4
    %v1541 = vshll.u32 %v1393, 16
    %v1543 = vrot.slane %v1541, 5
    %v1544 = vsel %vm1122, %v1539, %v1543
    %v1545 = vshrl.u32 %v1393, 16
    %v1547 = vrot.slane %v1545, 4
    %v1548 = vor.u32 %v1547, %v1543
    %v1549 = vrot.slane %v1548, 4
    %v1551 = vshll.u32 %v1394, 16
    %v1553 = vrot.slane %v1551, 5
    %v1554 = vsel %vm1122, %v1549, %v1553
    %v1555 = vshrl.u32 %v1394, 16
    %v1557 = vrot.slane %v1555, 4
    %v1558 = vor.u32 %v1557, %v1553
    %v1559 = vrot.slane %v1558, 4
    %v1561 = vshll.u32 %v1395, 16
    %v1563 = vrot.slane %v1561, 5
    %v1564 = vsel %vm1122, %v1559, %v1563
    %v1565 = vshrl.u32 %v1395, 16
    %v1567 = vrot.slane %v1565, 4
    %v1568 = vor.u32 %v1567, %v1563
    %v1569 = vrot.slane %v1568, 4
    %v1571 = vshll.u32 %v1396, 16
    %v1573 = vrot.slane %v1571, 5
    %v1574 = vsel %vm1122, %v1569, %v1573
    %v1575 = vshrl.u32 %v1396, 16
    %v1577 = vrot.slane %v1575, 4
    %v1578 = vor.u32 %v1577, %v1573
    %v1579 = vrot.slane %v1578, 4
    %v1581 = vshll.u32 %v1397, 16
    %v1583 = vrot.slane %v1581, 5
    %v1584 = vsel %vm1122, %v1579, %v1583
    %v1585 = vshrl.u32 %v1397, 16
    %v1587 = vrot.slane %v1585, 4
    %v1588 = vor.u32 %v1587, %v1583
    %v1589 = vrot.slane %v1588, 4
    %v1591 = vshll.u32 %v1398, 16
    %v1593 = vrot.slane %v1591, 5
    %v1594 = vsel %vm1122, %v1589, %v1593
    %v1595 = vshrl.u32 %v1398, 16
    %v1597 = vrot.slane %v1595, 4
    %v1598 = vor.u32 %v1597, %v1593
    %v1599 = vrot.slane %v1598, 4
    %v1601 = vshll.u32 %v1399, 16
    %v1603 = vrot.slane %v1601, 5
    %v1604 = vsel %vm1122, %v1599, %v1603
    %v1605 = vshrl.u32 %v1399, 16
    %v1607 = vrot.slane %v1605, 4
    %v1608 = vor.u32 %v1607, %v1603
    %v1609 = vrot.slane %v1608, 4
    %v1611 = vshll.u32 %v1400, 16
    %v1613 = vrot.slane %v1611, 5
    %v1614 = vsel %vm1122, %v1609, %v1613
    %1636 = vst [vmem:[#allocation4 + $0x8] sm:$0xf] %v1414
    %1637 = vst [vmem:[#allocation4 + $0x18] sm:$0xf] %v1424
    %1638 = vst [vmem:[#allocation4 + $0x28] sm:$0xf] %v1434
    %1639 = vst [vmem:[#allocation4 + $0x38] sm:$0xf] %v1444
    %1640 = vst [vmem:[#allocation4 + $0x48] sm:$0xf] %v1454
    %1641 = vst [vmem:[#allocation4 + $0x58] sm:$0xf] %v1464
    %1642 = vst [vmem:[#allocation4 + $0x68] sm:$0xf] %v1474
    %1643 = vst [vmem:[#allocation4 + $0x78] sm:$0xf] %v1484
    %1644 = vst [vmem:[#allocation4 + $0x88] sm:$0xf] %v1494
    %1645 = vst [vmem:[#allocation4 + $0x98] sm:$0xf] %v1504
    %1646 = vst [vmem:[#allocation4 + $0xa8] sm:$0xf] %v1514
    %1647 = vst [vmem:[#allocation4 + $0xb8] sm:$0xf] %v1524
    %1648 = vst [vmem:[#allocation4 + $0xc8] sm:$0xf] %v1534
    %1649 = vst [vmem:[#allocation4 + $0xd8] sm:$0xf] %v1544
    %1650 = vst [vmem:[#allocation4 + $0xe8] sm:$0xf] %v1554
    %1651 = vst [vmem:[#allocation4 + $0xf8] sm:$0xf] %v1564
    %1652 = vst [vmem:[#allocation4 + $0x108] sm:$0xf] %v1574
    %1653 = vst [vmem:[#allocation4 + $0x118] sm:$0xf] %v1584
    %1654 = vst [vmem:[#allocation4 + $0x128] sm:$0xf] %v1594
    %1655 = vst [vmem:[#allocation4 + $0x138] sm:$0xf] %v1604
    %1656 = vst [vmem:[#allocation4 + $0x148] sm:$0xf] %v1614
    %v1657 = vld [vmem:[#allocation3 + $0x4] sm:$0xe]
    %v1658 = vld [vmem:[#allocation3 + $0x8] sm:$0xf]
    %v1659 = vld [vmem:[#allocation3 + $0xc] sm:$0xf]
    %v1660 = vld [vmem:[#allocation3 + $0x10] sm:$0xf]
    %v1661 = vld [vmem:[#allocation3 + $0x14] sm:$0xf]
    %v1662 = vld [vmem:[#allocation3 + $0x18] sm:$0xf]
    %v1663 = vld [vmem:[#allocation3 + $0x1c] sm:$0xf]
    %v1664 = vld [vmem:[#allocation3 + $0x20] sm:$0xf]
    %v1665 = vld [vmem:[#allocation3 + $0x24] sm:$0xf]
    %v1666 = vld [vmem:[#allocation3 + $0x28] sm:$0xf]
    %v1667 = vld [vmem:[#allocation3 + $0x2c] sm:$0xf]
    %v1668 = vld [vmem:[#allocation3 + $0x30] sm:$0xf]
    %v1669 = vld [vmem:[#allocation3 + $0x34] sm:$0xf]
    %v1670 = vld [vmem:[#allocation3 + $0x38] sm:$0xf]
    %v1671 = vld [vmem:[#allocation3 + $0x3c] sm:$0xf]
    %v1672 = vld [vmem:[#allocation3 + $0x40] sm:$0xf]
    %v1673 = vld [vmem:[#allocation3 + $0x44] sm:$0xf]
    %v1674 = vld [vmem:[#allocation3 + $0x48] sm:$0xf]
    %v1675 = vld [vmem:[#allocation3 + $0x4c] sm:$0xf]
    %v1676 = vld [vmem:[#allocation3 + $0x50] sm:$0xf]
    %v1677 = vld [vmem:[#allocation3 + $0x54] sm:$0xf]
    %v1678 = vld [vmem:[#allocation3 + $0x58] sm:$0x1]
    %vm1701 = vcmask 1042432
    %vm1702 = vcmask 1046532
    %vm1703 = vmor %vm1701, %vm1702
    %v1704 = vrot.slane %v1657, 5
    %v1705 = vrot.slane %v1704, 4
    %v1706 = vrot.slane %v1658, 5
    %v1707 = vsel %vm1703, %v1705, %v1706
    %v1708 = vrot.slane %v1706, 4
    %v1709 = vrot.slane %v1659, 5
    %v1710 = vsel %vm1703, %v1708, %v1709
    %v1711 = vrot.slane %v1709, 4
    %v1712 = vrot.slane %v1660, 5
    %v1713 = vsel %vm1703, %v1711, %v1712
    %v1714 = vrot.slane %v1712, 4
    %v1715 = vrot.slane %v1661, 5
    %v1716 = vsel %vm1703, %v1714, %v1715
    %v1717 = vrot.slane %v1715, 4
    %v1718 = vrot.slane %v1662, 5
    %v1719 = vsel %vm1703, %v1717, %v1718
    %v1720 = vrot.slane %v1718, 4
    %v1721 = vrot.slane %v1663, 5
    %v1722 = vsel %vm1703, %v1720, %v1721
    %v1723 = vrot.slane %v1721, 4
    %v1724 = vrot.slane %v1664, 5
    %v1725 = vsel %vm1703, %v1723, %v1724
    %v1726 = vrot.slane %v1724, 4
    %v1727 = vrot.slane %v1665, 5
    %v1728 = vsel %vm1703, %v1726, %v1727
    %v1729 = vrot.slane %v1727, 4
    %v1730 = vrot.slane %v1666, 5
    %v1731 = vsel %vm1703, %v1729, %v1730
    %v1732 = vrot.slane %v1730, 4
    %v1733 = vrot.slane %v1667, 5
    %v1734 = vsel %vm1703, %v1732, %v1733
    %v1735 = vrot.slane %v1733, 4
    %v1736 = vrot.slane %v1668, 5
    %v1737 = vsel %vm1703, %v1735, %v1736
    %v1738 = vrot.slane %v1736, 4
    %v1739 = vrot.slane %v1669, 5
    %v1740 = vsel %vm1703, %v1738, %v1739
    %v1741 = vrot.slane %v1739, 4
    %v1742 = vrot.slane %v1670, 5
    %v1743 = vsel %vm1703, %v1741, %v1742
    %v1744 = vrot.slane %v1742, 4
    %v1745 = vrot.slane %v1671, 5
    %v1746 = vsel %vm1703, %v1744, %v1745
    %v1747 = vrot.slane %v1745, 4
    %v1748 = vrot.slane %v1672, 5
    %v1749 = vsel %vm1703, %v1747, %v1748
    %v1750 = vrot.slane %v1748, 4
    %v1751 = vrot.slane %v1673, 5
    %v1752 = vsel %vm1703, %v1750, %v1751
    %v1753 = vrot.slane %v1751, 4
    %v1754 = vrot.slane %v1674, 5
    %v1755 = vsel %vm1703, %v1753, %v1754
    %v1756 = vrot.slane %v1754, 4
    %v1757 = vrot.slane %v1675, 5
    %v1758 = vsel %vm1703, %v1756, %v1757
    %v1759 = vrot.slane %v1757, 4
    %v1760 = vrot.slane %v1676, 5
    %v1761 = vsel %vm1703, %v1759, %v1760
    %v1762 = vrot.slane %v1760, 4
    %v1763 = vrot.slane %v1677, 5
    %v1764 = vsel %vm1703, %v1762, %v1763
    %v1765 = vrot.slane %v1763, 4
    %v1766 = vrot.slane %v1678, 5
    %v1767 = vsel %vm1703, %v1765, %v1766
    %1789 = vst [vmem:[#allocation4 + $0xc] sm:$0xf] %v1707
    %1790 = vst [vmem:[#allocation4 + $0x1c] sm:$0xf] %v1710
    %1791 = vst [vmem:[#allocation4 + $0x2c] sm:$0xf] %v1713
    %1792 = vst [vmem:[#allocation4 + $0x3c] sm:$0xf] %v1716
    %1793 = vst [vmem:[#allocation4 + $0x4c] sm:$0xf] %v1719
    %1794 = vst [vmem:[#allocation4 + $0x5c] sm:$0xf] %v1722
    %1795 = vst [vmem:[#allocation4 + $0x6c] sm:$0xf] %v1725
    %1796 = vst [vmem:[#allocation4 + $0x7c] sm:$0xf] %v1728
    %1797 = vst [vmem:[#allocation4 + $0x8c] sm:$0xf] %v1731
    %1798 = vst [vmem:[#allocation4 + $0x9c] sm:$0xf] %v1734
    %1799 = vst [vmem:[#allocation4 + $0xac] sm:$0xf] %v1737
    %1800 = vst [vmem:[#allocation4 + $0xbc] sm:$0xf] %v1740
    %1801 = vst [vmem:[#allocation4 + $0xcc] sm:$0xf] %v1743
    %1802 = vst [vmem:[#allocation4 + $0xdc] sm:$0xf] %v1746
    %1803 = vst [vmem:[#allocation4 + $0xec] sm:$0xf] %v1749
    %1804 = vst [vmem:[#allocation4 + $0xfc] sm:$0xf] %v1752
    %1805 = vst [vmem:[#allocation4 + $0x10c] sm:$0xf] %v1755
    %1806 = vst [vmem:[#allocation4 + $0x11c] sm:$0xf] %v1758
    %1807 = vst [vmem:[#allocation4 + $0x12c] sm:$0xf] %v1761
    %1808 = vst [vmem:[#allocation4 + $0x13c] sm:$0xf] %v1764
    %1809 = vst [vmem:[#allocation4 + $0x14c] sm:$0xf] %v1767
  $region99: #{residual_block_forward.5} parent=0 // pred_fallthru
    _
  %v1810 = vld [vmem:[#allocation4] sm:$0xff]
  %v1811 = vld [vmem:[#allocation4 + $0x8] sm:$0xff]
  %v1812 = vld [vmem:[#allocation4 + $0x10] sm:$0xff]
  %v1813 = vld [vmem:[#allocation4 + $0x18] sm:$0xff]
  %v1814 = vld [vmem:[#allocation4 + $0x20] sm:$0xff]
  %v1815 = vld [vmem:[#allocation4 + $0x28] sm:$0xff]
  %v1816 = vld [vmem:[#allocation4 + $0x30] sm:$0xff]
  %v1817 = vld [vmem:[#allocation4 + $0x38] sm:$0xff]
  %v1818 = vld [vmem:[#allocation4 + $0x40] sm:$0xff]
  %v1819 = vld [vmem:[#allocation4 + $0x48] sm:$0xff]
  %v1820 = vld [vmem:[#allocation4 + $0x50] sm:$0xff]
  %v1821 = vld [vmem:[#allocation4 + $0x58] sm:$0xff]
  %v1822 = vld [vmem:[#allocation4 + $0x60] sm:$0xff]
  %v1823 = vld [vmem:[#allocation4 + $0x68] sm:$0xff]
  %v1824 = vld [vmem:[#allocation4 + $0x70] sm:$0xff]
  %v1825 = vld [vmem:[#allocation4 + $0x78] sm:$0xff]
  %v1826 = vld [vmem:[#allocation4 + $0x80] sm:$0xff]
  %v1827 = vld [vmem:[#allocation4 + $0x88] sm:$0xff]
  %v1828 = vld [vmem:[#allocation4 + $0x90] sm:$0xff]
  %v1829 = vld [vmem:[#allocation4 + $0x98] sm:$0xff]
  %v1830 = vld [vmem:[#allocation4 + $0xa0] sm:$0xff]
  %v1831 = vld [vmem:[#allocation4 + $0xa8] sm:$0xff]
  %v1832 = vld [vmem:[#allocation4 + $0xb0] sm:$0xff]
  %v1833 = vld [vmem:[#allocation4 + $0xb8] sm:$0xff]
  %v1834 = vld [vmem:[#allocation4 + $0xc0] sm:$0xff]
  %v1835 = vld [vmem:[#allocation4 + $0xc8] sm:$0xff]
  %v1836 = vld [vmem:[#allocation4 + $0xd0] sm:$0xff]
  %v1837 = vld [vmem:[#allocation4 + $0xd8] sm:$0xff]
  %v1838 = vld [vmem:[#allocation4 + $0xe0] sm:$0xff]
  %v1839 = vld [vmem:[#allocation4 + $0xe8] sm:$0xff]
  %v1840 = vld [vmem:[#allocation4 + $0xf0] sm:$0xff]
  %v1841 = vld [vmem:[#allocation4 + $0xf8] sm:$0xff]
  %v1842 = vld [vmem:[#allocation4 + $0x100] sm:$0xff]
  %v1843 = vld [vmem:[#allocation4 + $0x108] sm:$0xff]
  %v1844 = vld [vmem:[#allocation4 + $0x110] sm:$0xff]
  %v1845 = vld [vmem:[#allocation4 + $0x118] sm:$0xff]
  %v1846 = vld [vmem:[#allocation4 + $0x120] sm:$0xff]
  %v1847 = vld [vmem:[#allocation4 + $0x128] sm:$0xff]
  %v1848 = vld [vmem:[#allocation4 + $0x130] sm:$0xff]
  %v1849 = vld [vmem:[#allocation4 + $0x138] sm:$0xff]
  %v1850 = vld [vmem:[#allocation4 + $0x140] sm:$0xff]
  %v1851 = vld [vmem:[#allocation4 + $0x148] sm:$0xff]
  %v1852 = vld [vmem:[%s1] sm:$0xf]
  %v1853 = vld [vmem:[%s1 + $0x4] sm:$0xf]
  %v1854 = vld [vmem:[%s1 + $0x8] sm:$0xf]
  %v1855 = vld [vmem:[%s1 + $0xc] sm:$0xf]
  %v1856 = vld [vmem:[%s1 + $0x10] sm:$0xf]
  %v1857 = vld [vmem:[%s1 + $0x14] sm:$0xf]
  %v1858 = vld [vmem:[%s1 + $0x18] sm:$0xf]
  %v1859 = vld [vmem:[%s1 + $0x1c] sm:$0xf]
  %v1860 = vld [vmem:[%s1 + $0x20] sm:$0xf]
  %v1861 = vld [vmem:[%s1 + $0x24] sm:$0xf]
  %v1862 = vld [vmem:[%s1 + $0x28] sm:$0xf]
  %v1863 = vld [vmem:[%s1 + $0x2c] sm:$0xf]
  %v1864 = vld [vmem:[%s1 + $0x30] sm:$0xf]
  %v1865 = vld [vmem:[%s1 + $0x34] sm:$0xf]
  %v1866 = vld [vmem:[%s1 + $0x38] sm:$0xf]
  %v1867 = vld [vmem:[%s1 + $0x3c] sm:$0xf]
  %v1868 = vld [vmem:[%s1 + $0x40] sm:$0xf]
  %v1869 = vld [vmem:[%s1 + $0x44] sm:$0xf]
  %v1870 = vld [vmem:[%s1 + $0x48] sm:$0xf]
  %v1871 = vld [vmem:[%s1 + $0x4c] sm:$0xf]
  %v1872 = vld [vmem:[%s1 + $0x50] sm:$0xf]
  %v1873 = vld [vmem:[%s1 + $0x54] sm:$0xf]
  %v1874 = vld [vmem:[%s1 + $0x58] sm:$0xf]
  %v1875 = vld [vmem:[%s1 + $0x5c] sm:$0xf]
  %v1876 = vld [vmem:[%s1 + $0x60] sm:$0xf]
  %v1877 = vld [vmem:[%s1 + $0x64] sm:$0xf]
  %v1878 = vld [vmem:[%s1 + $0x68] sm:$0xf]
  %v1879 = vld [vmem:[%s1 + $0x6c] sm:$0xf]
  %v1880 = vld [vmem:[%s1 + $0x70] sm:$0xf]
  %v1881 = vld [vmem:[%s1 + $0x74] sm:$0xf]
  %v1882 = vld [vmem:[%s1 + $0x78] sm:$0xf]
  %v1883 = vld [vmem:[%s1 + $0x7c] sm:$0xf]
  %v1884 = vld [vmem:[%s1 + $0x80] sm:$0xf]
  %v1885 = vld [vmem:[%s1 + $0x84] sm:$0xf]
  %v1886 = vld [vmem:[%s1 + $0x88] sm:$0xf]
  %v1887 = vld [vmem:[%s1 + $0x8c] sm:$0xf]
  %v1888 = vld [vmem:[%s1 + $0x90] sm:$0xf]
  %v1889 = vld [vmem:[%s1 + $0x94] sm:$0xf]
  %v1890 = vld [vmem:[%s1 + $0x98] sm:$0xf]
  %v1891 = vld [vmem:[%s1 + $0x9c] sm:$0xf]
  %v1892 = vld [vmem:[%s1 + $0xa0] sm:$0xf]
  %v1893 = vld [vmem:[%s1 + $0xa4] sm:$0xf]
  %v1894 = vld [vmem:[%s1 + $0xa8] sm:$0xf]
  %v1895 = vld [vmem:[%s1 + $0xac] sm:$0xf]
  %v1896 = vld [vmem:[%s1 + $0xb0] sm:$0xf]
  %v1897 = vld [vmem:[%s1 + $0xb4] sm:$0xf]
  %v1898 = vld [vmem:[%s1 + $0xb8] sm:$0xf]
  %v1899 = vld [vmem:[%s1 + $0xbc] sm:$0xf]
  %v1900 = vld [vmem:[%s1 + $0xc0] sm:$0xf]
  %v1901 = vld [vmem:[%s1 + $0xc4] sm:$0xf]
  %v1902 = vld [vmem:[%s1 + $0xc8] sm:$0xf]
  %v1903 = vld [vmem:[%s1 + $0xcc] sm:$0xf]
  %v1904 = vld [vmem:[%s1 + $0xd0] sm:$0xf]
  %v1905 = vld [vmem:[%s1 + $0xd4] sm:$0xf]
  %v1906 = vld [vmem:[%s1 + $0xd8] sm:$0xf]
  %v1907 = vld [vmem:[%s1 + $0xdc] sm:$0xf]
  %v1908 = vld [vmem:[%s1 + $0xe0] sm:$0xf]
  %v1909 = vld [vmem:[%s1 + $0xe4] sm:$0xf]
  %v1910 = vld [vmem:[%s1 + $0xe8] sm:$0xf]
  %v1911 = vld [vmem:[%s1 + $0xec] sm:$0xf]
  %v1912 = vld [vmem:[%s1 + $0xf0] sm:$0xf]
  %v1913 = vld [vmem:[%s1 + $0xf4] sm:$0xf]
  %v1914 = vld [vmem:[%s1 + $0xf8] sm:$0xf]
  %v1915 = vld [vmem:[%s1 + $0xfc] sm:$0xf]
  %v1958 = vunpack.c.l.b16 %v1810
  %v1959 = vunpack.c.h.b16 %v1810
  %v1960 = vunpack.c.l.b16 %v1811
  %v1961 = vunpack.c.h.b16 %v1811
  %v1962 = vunpack.c.l.b16 %v1812
  %v1963 = vunpack.c.h.b16 %v1812
  %v1964 = vunpack.c.l.b16 %v1813
  %v1965 = vunpack.c.h.b16 %v1813
  %v1966 = vunpack.c.l.b16 %v1814
  %v1967 = vunpack.c.h.b16 %v1814
  %v1968 = vunpack.c.l.b16 %v1815
  %v1969 = vunpack.c.h.b16 %v1815
  %v1970 = vunpack.c.l.b16 %v1816
  %v1971 = vunpack.c.h.b16 %v1816
  %v1972 = vunpack.c.l.b16 %v1817
  %v1973 = vunpack.c.h.b16 %v1817
  %v1974 = vunpack.c.l.b16 %v1818
  %v1975 = vunpack.c.h.b16 %v1818
  %v1976 = vunpack.c.l.b16 %v1819
  %v1977 = vunpack.c.h.b16 %v1819
  %v1978 = vunpack.c.l.b16 %v1820
  %v1979 = vunpack.c.h.b16 %v1820
  %v1980 = vunpack.c.l.b16 %v1821
  %v1981 = vunpack.c.h.b16 %v1821
  %v1982 = vunpack.c.l.b16 %v1822
  %v1983 = vunpack.c.h.b16 %v1822
  %v1984 = vunpack.c.l.b16 %v1823
  %v1985 = vunpack.c.h.b16 %v1823
  %v1986 = vunpack.c.l.b16 %v1824
  %v1987 = vunpack.c.h.b16 %v1824
  %v1988 = vunpack.c.l.b16 %v1825
  %v1989 = vunpack.c.h.b16 %v1825
  %v1990 = vunpack.c.l.b16 %v1826
  %v1991 = vunpack.c.h.b16 %v1826
  %v1992 = vunpack.c.l.b16 %v1827
  %v1993 = vunpack.c.h.b16 %v1827
  %v1994 = vunpack.c.l.b16 %v1828
  %v1995 = vunpack.c.h.b16 %v1828
  %v1996 = vunpack.c.l.b16 %v1829
  %v1997 = vunpack.c.h.b16 %v1829
  %v1998 = vunpack.c.l.b16 %v1830
  %v1999 = vunpack.c.h.b16 %v1830
  %v2000 = vunpack.c.l.b16 %v1831
  %v2001 = vunpack.c.h.b16 %v1831
  %v2002 = vunpack.c.l.b16 %v1832
  %v2003 = vunpack.c.h.b16 %v1832
  %v2004 = vunpack.c.l.b16 %v1833
  %v2005 = vunpack.c.h.b16 %v1833
  %v2006 = vunpack.c.l.b16 %v1834
  %v2007 = vunpack.c.h.b16 %v1834
  %v2008 = vunpack.c.l.b16 %v1835
  %v2009 = vunpack.c.h.b16 %v1835
  %v2010 = vunpack.c.l.b16 %v1836
  %v2011 = vunpack.c.h.b16 %v1836
  %v2012 = vunpack.c.l.b16 %v1837
  %v2013 = vunpack.c.h.b16 %v1837
  %v2014 = vunpack.c.l.b16 %v1838
  %v2015 = vunpack.c.h.b16 %v1838
  %v2016 = vunpack.c.l.b16 %v1839
  %v2017 = vunpack.c.h.b16 %v1839
  %v2018 = vunpack.c.l.b16 %v1840
  %v2019 = vunpack.c.h.b16 %v1840
  %v2020 = vunpack.c.l.b16 %v1841
  %v2021 = vunpack.c.h.b16 %v1841
  %v2022 = vunpack.c.l.b16 %v1842
  %v2023 = vunpack.c.h.b16 %v1842
  %v2024 = vunpack.c.l.b16 %v1843
  %v2025 = vunpack.c.h.b16 %v1843
  %v2026 = vunpack.c.l.b16 %v1844
  %v2027 = vunpack.c.h.b16 %v1844
  %v2028 = vunpack.c.l.b16 %v1845
  %v2029 = vunpack.c.h.b16 %v1845
  %v2030 = vunpack.c.l.b16 %v1846
  %v2031 = vunpack.c.h.b16 %v1846
  %v2032 = vunpack.c.l.b16 %v1847
  %v2033 = vunpack.c.h.b16 %v1847
  %v2034 = vunpack.c.l.b16 %v1848
  %v2035 = vunpack.c.h.b16 %v1848
  %v2036 = vunpack.c.l.b16 %v1849
  %v2037 = vunpack.c.h.b16 %v1849
  %v2038 = vunpack.c.l.b16 %v1850
  %v2039 = vunpack.c.h.b16 %v1850
  %v2040 = vunpack.c.l.b16 %v1851
  %v2041 = vunpack.c.h.b16 %v1851
  %v2042 = vpack.c.b16 %v1962, %v1958
  %v2043 = vpack.c.b16 %v1963, %v1959
  %v2044 = vpack.c.b16 %v1964, %v1960
  %v2045 = vpack.c.b16 %v1965, %v1961
  %v2046 = vpack.c.b16 %v1970, %v1966
  %v2047 = vpack.c.b16 %v1971, %v1967
  %v2048 = vpack.c.b16 %v1972, %v1968
  %v2049 = vpack.c.b16 %v1973, %v1969
  %v2050 = vpack.c.b16 %v1978, %v1974
  %v2051 = vpack.c.b16 %v1979, %v1975
  %v2052 = vpack.c.b16 %v1980, %v1976
  %v2053 = vpack.c.b16 %v1981, %v1977
  %v2054 = vpack.c.b16 %v1986, %v1982
  %v2055 = vpack.c.b16 %v1987, %v1983
  %v2056 = vpack.c.b16 %v1988, %v1984
  %v2057 = vpack.c.b16 %v1989, %v1985
  %v2058 = vpack.c.b16 %v1994, %v1990
  %v2059 = vpack.c.b16 %v1995, %v1991
  %v2060 = vpack.c.b16 %v1996, %v1992
  %v2061 = vpack.c.b16 %v1997, %v1993
  %v2062 = vpack.c.b16 %v2002, %v1998
  %v2063 = vpack.c.b16 %v2003, %v1999
  %v2064 = vpack.c.b16 %v2004, %v2000
  %v2065 = vpack.c.b16 %v2005, %v2001
  %v2066 = vpack.c.b16 %v2010, %v2006
  %v2067 = vpack.c.b16 %v2011, %v2007
  %v2068 = vpack.c.b16 %v2012, %v2008
  %v2069 = vpack.c.b16 %v2013, %v2009
  %v2070 = vpack.c.b16 %v2018, %v2014
  %v2071 = vpack.c.b16 %v2019, %v2015
  %v2072 = vpack.c.b16 %v2020, %v2016
  %v2073 = vpack.c.b16 %v2021, %v2017
  %v2074 = vpack.c.b16 %v2026, %v2022
  %v2075 = vpack.c.b16 %v2027, %v2023
  %v2076 = vpack.c.b16 %v2028, %v2024
  %v2077 = vpack.c.b16 %v2029, %v2025
  %v2078 = vpack.c.b16 %v2034, %v2030
  %v2079 = vpack.c.b16 %v2035, %v2031
  %v2080 = vpack.c.b16 %v2036, %v2032
  %v2081 = vpack.c.b16 %v2037, %v2033
  %v2082 = vpack.c.b16 %v2038, %v2038
  %v2083 = vpack.c.b16 %v2039, %v2039
  %v2084 = vpack.c.b16 %v2040, %v2040
  %v2085 = vpack.c.b16 %v2041, %v2041
  %v2194 = vunpack.c.l.b16 %v1852
  %v2195 = vunpack.c.l.b16 %v1853
  %v2196 = vunpack.c.l.b16 %v1854
  %v2197 = vunpack.c.l.b16 %v1855
  %v2198 = vunpack.c.l.b16 %v1856
  %v2199 = vunpack.c.l.b16 %v1857
  %v2200 = vunpack.c.l.b16 %v1858
  %v2201 = vunpack.c.l.b16 %v1859
  %v2202 = vunpack.c.l.b16 %v1860
  %v2203 = vunpack.c.l.b16 %v1861
  %v2204 = vunpack.c.l.b16 %v1862
  %v2205 = vunpack.c.l.b16 %v1863
  %v2206 = vunpack.c.l.b16 %v1864
  %v2207 = vunpack.c.l.b16 %v1865
  %v2208 = vunpack.c.l.b16 %v1866
  %v2209 = vunpack.c.l.b16 %v1867
  %v2210 = vunpack.c.l.b16 %v1868
  %v2211 = vunpack.c.l.b16 %v1869
  %v2212 = vunpack.c.l.b16 %v1870
  %v2213 = vunpack.c.l.b16 %v1871
  %v2214 = vunpack.c.l.b16 %v1872
  %v2215 = vunpack.c.l.b16 %v1873
  %v2216 = vunpack.c.l.b16 %v1874
  %v2217 = vunpack.c.l.b16 %v1875
  %v2218 = vunpack.c.l.b16 %v1876
  %v2219 = vunpack.c.l.b16 %v1877
  %v2220 = vunpack.c.l.b16 %v1878
  %v2221 = vunpack.c.l.b16 %v1879
  %v2222 = vunpack.c.l.b16 %v1880
  %v2223 = vunpack.c.l.b16 %v1881
  %v2224 = vunpack.c.l.b16 %v1882
  %v2225 = vunpack.c.l.b16 %v1883
  %v2226 = vunpack.c.l.b16 %v1884
  %v2227 = vunpack.c.l.b16 %v1885
  %v2228 = vunpack.c.l.b16 %v1886
  %v2229 = vunpack.c.l.b16 %v1887
  %v2230 = vunpack.c.l.b16 %v1888
  %v2231 = vunpack.c.l.b16 %v1889
  %v2232 = vunpack.c.l.b16 %v1890
  %v2233 = vunpack.c.l.b16 %v1891
  %v2234 = vunpack.c.l.b16 %v1892
  %v2235 = vunpack.c.l.b16 %v1893
  %v2236 = vunpack.c.l.b16 %v1894
  %v2237 = vunpack.c.l.b16 %v1895
  %v2238 = vunpack.c.l.b16 %v1896
  %v2239 = vunpack.c.l.b16 %v1897
  %v2240 = vunpack.c.l.b16 %v1898
  %v2241 = vunpack.c.l.b16 %v1899
  %v2242 = vunpack.c.l.b16 %v1900
  %v2243 = vunpack.c.l.b16 %v1901
  %v2244 = vunpack.c.l.b16 %v1902
  %v2245 = vunpack.c.l.b16 %v1903
  %v2246 = vunpack.c.l.b16 %v1904
  %v2247 = vunpack.c.l.b16 %v1905
  %v2248 = vunpack.c.l.b16 %v1906
  %v2249 = vunpack.c.l.b16 %v1907
  %v2250 = vunpack.c.l.b16 %v1908
  %v2251 = vunpack.c.l.b16 %v1909
  %v2252 = vunpack.c.l.b16 %v1910
  %v2253 = vunpack.c.l.b16 %v1911
  %v2254 = vunpack.c.l.b16 %v1912
  %v2255 = vunpack.c.l.b16 %v1913
  %v2256 = vunpack.c.l.b16 %v1914
  %v2257 = vunpack.c.l.b16 %v1915
  %v2258 = vpack.c.b16 %v2195, %v2194
  %v2259 = vpack.c.b16 %v2197, %v2196
  %v2260 = vpack.c.b16 %v2199, %v2198
  %v2261 = vpack.c.b16 %v2201, %v2200
  %v2262 = vpack.c.b16 %v2203, %v2202
  %v2263 = vpack.c.b16 %v2205, %v2204
  %v2264 = vpack.c.b16 %v2207, %v2206
  %v2265 = vpack.c.b16 %v2209, %v2208
  %v2266 = vpack.c.b16 %v2211, %v2210
  %v2267 = vpack.c.b16 %v2213, %v2212
  %v2268 = vpack.c.b16 %v2215, %v2214
  %v2269 = vpack.c.b16 %v2217, %v2216
  %v2270 = vpack.c.b16 %v2219, %v2218
  %v2271 = vpack.c.b16 %v2221, %v2220
  %v2272 = vpack.c.b16 %v2223, %v2222
  %v2273 = vpack.c.b16 %v2225, %v2224
  %v2274 = vpack.c.b16 %v2227, %v2226
  %v2275 = vpack.c.b16 %v2229, %v2228
  %v2276 = vpack.c.b16 %v2231, %v2230
  %v2277 = vpack.c.b16 %v2233, %v2232
  %v2278 = vpack.c.b16 %v2235, %v2234
  %v2279 = vpack.c.b16 %v2237, %v2236
  %v2280 = vpack.c.b16 %v2239, %v2238
  %v2281 = vpack.c.b16 %v2241, %v2240
  %v2282 = vpack.c.b16 %v2243, %v2242
  %v2283 = vpack.c.b16 %v2245, %v2244
  %v2284 = vpack.c.b16 %v2247, %v2246
  %v2285 = vpack.c.b16 %v2249, %v2248
  %v2286 = vpack.c.b16 %v2251, %v2250
  %v2287 = vpack.c.b16 %v2253, %v2252
  %v2288 = vpack.c.b16 %v2255, %v2254
  %v2289 = vpack.c.b16 %v2257, %v2256
  %2322 = vmatprep.subr.bf16.mxu0 0
  %2323 = vmatpush1.bf16.msra.mxu0 %v2258
  %2324 = vmatprep.subr.bf16.mxu0 0
  %2325 = vmatpush1.bf16.msra.mxu0 %v2259
  %2326 = vmatprep.subr.bf16.mxu0 0
  %2327 = vmatpush1.bf16.msra.mxu0 %v2260
  %2328 = vmatprep.subr.bf16.mxu0 0
  %2329 = vmatpush1.bf16.msra.mxu0 %v2261
  %2330 = vmatprep.subr.bf16.mxu0 0
  %2331 = vmatpush1.bf16.msra.mxu0 %v2262
  %2332 = vmatprep.subr.bf16.mxu0 0
  %2333 = vmatpush1.bf16.msra.mxu0 %v2263
  %2334 = vmatprep.subr.bf16.mxu0 0
  %2335 = vmatpush1.bf16.msra.mxu0 %v2264
  %2336 = vmatprep.subr.bf16.mxu0 0
  %2337 = vmatpush1.bf16.msra.mxu0 %v2265
  %2338 = vmatprep.subr.bf16.mxu0 0
  %2339 = vmatpush1.bf16.msra.mxu0 %v2266
  %2340 = vmatprep.subr.bf16.mxu0 0
  %2341 = vmatpush1.bf16.msra.mxu0 %v2267
  %2342 = vmatprep.subr.bf16.mxu0 0
  %2343 = vmatpush1.bf16.msra.mxu0 %v2268
  %2344 = vmatprep.subr.bf16.mxu0 0
  %2345 = vmatpush1.bf16.msra.mxu0 %v2269
  %2346 = vmatprep.subr.bf16.mxu0 0
  %2347 = vmatpush1.bf16.msra.mxu0 %v2270
  %2348 = vmatprep.subr.bf16.mxu0 0
  %2349 = vmatpush1.bf16.msra.mxu0 %v2271
  %2350 = vmatprep.subr.bf16.mxu0 0
  %2351 = vmatpush1.bf16.msra.mxu0 %v2272
  %2352 = vmatprep.subr.bf16.mxu0 0
  %2353 = vmatpush1.bf16.msra.mxu0 %v2273
  %2354 = vmatprep.mubr.bf16.mxu0 %v2043
  %2355 = vmatmul.mubr.bf16.gmra.mrb[0].mxu0 %v2042
  %v2356 = vpop.f32.mrb[0].mxu0
  %v2357 = vadd.f32 0.0, %v2356
  %v2358 = vpop.f32.mrb[0].mxu0
  %v2359 = vpop.f32.mrb[0].mxu0
  %v2360 = vadd.f32 0.0, %v2359
  %v2361 = vpop.f32.mrb[0].mxu0
  %2362 = vmatprep.mubr.bf16.mxu0 %v2047
  %2363 = vmatmul.mubr.bf16.gmra.mrb[0].mxu0 %v2046
  %v2364 = vpop.f32.mrb[0].mxu0
  %v2365 = vadd.f32 0.0, %v2364
  %v2366 = vpop.f32.mrb[0].mxu0
  %v2367 = vpop.f32.mrb[0].mxu0
  %v2368 = vadd.f32 0.0, %v2367
  %v2369 = vpop.f32.mrb[0].mxu0
  %2370 = vmatprep.mubr.bf16.mxu0 %v2051
  %2371 = vmatmul.mubr.bf16.gmra.mrb[0].mxu0 %v2050
  %v2372 = vpop.f32.mrb[0].mxu0
  %v2373 = vadd.f32 0.0, %v2372
  %v2374 = vpop.f32.mrb[0].mxu0
  %v2375 = vpop.f32.mrb[0].mxu0
  %v2376 = vadd.f32 0.0, %v2375
  %v2377 = vpop.f32.mrb[0].mxu0
  %2378 = vmatprep.mubr.bf16.mxu0 %v2055
  %2379 = vmatmul.mubr.bf16.gmra.mrb[0].mxu0 %v2054
  %v2380 = vpop.f32.mrb[0].mxu0
  %v2381 = vadd.f32 0.0, %v2380
  %v2382 = vpop.f32.mrb[0].mxu0
  %v2383 = vpop.f32.mrb[0].mxu0
  %v2384 = vadd.f32 0.0, %v2383
  %v2385 = vpop.f32.mrb[0].mxu0
  %2386 = vmatprep.mubr.bf16.mxu0 %v2059
  %2387 = vmatmul.mubr.bf16.gmra.mrb[0].mxu0 %v2058
  %v2388 = vpop.f32.mrb[0].mxu0
  %v2389 = vadd.f32 0.0, %v2388
  %v2390 = vpop.f32.mrb[0].mxu0
  %v2391 = vpop.f32.mrb[0].mxu0
  %v2392 = vadd.f32 0.0, %v2391
  %v2393 = vpop.f32.mrb[0].mxu0
  %2394 = vmatprep.mubr.bf16.mxu0 %v2063
  %2395 = vmatmul.mubr.bf16.gmra.mrb[0].mxu0 %v2062
  %v2396 = vpop.f32.mrb[0].mxu0
  %v2397 = vadd.f32 0.0, %v2396
  %v2398 = vpop.f32.mrb[0].mxu0
  %v2399 = vpop.f32.mrb[0].mxu0
  %v2400 = vadd.f32 0.0, %v2399
  %v2401 = vpop.f32.mrb[0].mxu0
  %2402 = vmatprep.mubr.bf16.mxu0 %v2067
  %2403 = vmatmul.mubr.bf16.gmra.mrb[0].mxu0 %v2066
  %v2404 = vpop.f32.mrb[0].mxu0
  %v2405 = vadd.f32 0.0, %v2404
  %v2406 = vpop.f32.mrb[0].mxu0
  %v2407 = vpop.f32.mrb[0].mxu0
  %v2408 = vadd.f32 0.0, %v2407
  %v2409 = vpop.f32.mrb[0].mxu0
  %2410 = vmatprep.mubr.bf16.mxu0 %v2071
  %2411 = vmatmul.mubr.bf16.gmra.mrb[0].mxu0 %v2070
  %v2412 = vpop.f32.mrb[0].mxu0
  %v2413 = vadd.f32 0.0, %v2412
  %v2414 = vpop.f32.mrb[0].mxu0
  %v2415 = vpop.f32.mrb[0].mxu0
  %v2416 = vadd.f32 0.0, %v2415
  %v2417 = vpop.f32.mrb[0].mxu0
  %2418 = vmatprep.mubr.bf16.mxu0 %v2075
  %2419 = vmatmul.mubr.bf16.gmra.mrb[0].mxu0 %v2074
  %v2420 = vpop.f32.mrb[0].mxu0
  %v2421 = vadd.f32 0.0, %v2420
  %v2422 = vpop.f32.mrb[0].mxu0
  %v2423 = vpop.f32.mrb[0].mxu0
  %v2424 = vadd.f32 0.0, %v2423
  %v2425 = vpop.f32.mrb[0].mxu0
  %2426 = vmatprep.mubr.bf16.mxu0 %v2079
  %2427 = vmatmul.mubr.bf16.gmra.mrb[0].mxu0 %v2078
  %v2428 = vpop.f32.mrb[0].mxu0
  %v2429 = vadd.f32 0.0, %v2428
  %v2430 = vpop.f32.mrb[0].mxu0
  %v2431 = vpop.f32.mrb[0].mxu0
  %v2432 = vadd.f32 0.0, %v2431
  %v2433 = vpop.f32.mrb[0].mxu0
  %2434 = vmatprep.mubr.bf16.mxu0 %v2083
  %2435 = vmatmul.mubr.bf16.gmra.mrb[0].mxu0 %v2082
  %v2436 = vpop.f32.mrb[0].mxu0
  %v2437 = vadd.f32 0.0, %v2436
  %v2438 = vpop.f32.mrb[0].mxu0
  %v2439 = vpop.f32.mrb[0].mxu0
  %v2440 = vpop.f32.mrb[0].mxu0
  %2441 = vdwg.mxu0
  %2442 = vmatprep.subr.bf16.mxu0 0
  %2443 = vmatpush1.bf16.msra.mxu0 %v2274
  %2444 = vmatprep.subr.bf16.mxu0 0
  %2445 = vmatpush1.bf16.msra.mxu0 %v2275
  %2446 = vmatprep.subr.bf16.mxu0 0
  %2447 = vmatpush1.bf16.msra.mxu0 %v2276
  %2448 = vmatprep.subr.bf16.mxu0 0
  %2449 = vmatpush1.bf16.msra.mxu0 %v2277
  %2450 = vmatprep.subr.bf16.mxu0 0
  %2451 = vmatpush1.bf16.msra.mxu0 %v2278
  %2452 = vmatprep.subr.bf16.mxu0 0
  %2453 = vmatpush1.bf16.msra.mxu0 %v2279
  %2454 = vmatprep.subr.bf16.mxu0 0
  %2455 = vmatpush1.bf16.msra.mxu0 %v2280
  %2456 = vmatprep.subr.bf16.mxu0 0
  %2457 = vmatpush1.bf16.msra.mxu0 %v2281
  %2458 = vmatprep.subr.bf16.mxu0 0
  %2459 = vmatpush1.bf16.msra.mxu0 %v2282
  %2460 = vmatprep.subr.bf16.mxu0 0
  %2461 = vmatpush1.bf16.msra.mxu0 %v2283
  %2462 = vmatprep.subr.bf16.mxu0 0
  %2463 = vmatpush1.bf16.msra.mxu0 %v2284
  %2464 = vmatprep.subr.bf16.mxu0 0
  %2465 = vmatpush1.bf16.msra.mxu0 %v2285
  %2466 = vmatprep.subr.bf16.mxu0 0
  %2467 = vmatpush1.bf16.msra.mxu0 %v2286
  %2468 = vmatprep.subr.bf16.mxu0 0
  %2469 = vmatpush1.bf16.msra.mxu0 %v2287
  %2470 = vmatprep.subr.bf16.mxu0 0
  %2471 = vmatpush1.bf16.msra.mxu0 %v2288
  %2472 = vmatprep.subr.bf16.mxu0 0
  %2473 = vmatpush1.bf16.msra.mxu0 %v2289
  %2474 = vmatprep.mubr.bf16.mxu0 %v2045
  %2475 = vmatmul.mubr.bf16.gmra.mrb[0].mxu0 %v2044
  %v2476 = vpop.f32.mrb[0].mxu0
  %v2477 = vadd.f32 %v2357, %v2476
  %v2478 = vpop.f32.mrb[0].mxu0
  %v2479 = vpop.f32.mrb[0].mxu0
  %v2480 = vadd.f32 %v2360, %v2479
  %v2481 = vpop.f32.mrb[0].mxu0
  %2482 = vmatprep.mubr.bf16.mxu0 %v2049
  %2483 = vmatmul.mubr.bf16.gmra.mrb[0].mxu0 %v2048
  %v2484 = vpop.f32.mrb[0].mxu0
  %v2485 = vadd.f32 %v2365, %v2484
  %v2486 = vpop.f32.mrb[0].mxu0
  %v2487 = vpop.f32.mrb[0].mxu0
  %v2488 = vadd.f32 %v2368, %v2487
  %v2489 = vpop.f32.mrb[0].mxu0
  %2490 = vmatprep.mubr.bf16.mxu0 %v2053
  %2491 = vmatmul.mubr.bf16.gmra.mrb[0].mxu0 %v2052
  %v2492 = vpop.f32.mrb[0].mxu0
  %v2493 = vadd.f32 %v2373, %v2492
  %v2494 = vpop.f32.mrb[0].mxu0
  %v2495 = vpop.f32.mrb[0].mxu0
  %v2496 = vadd.f32 %v2376, %v2495
  %v2497 = vpop.f32.mrb[0].mxu0
  %2498 = vmatprep.mubr.bf16.mxu0 %v2057
  %2499 = vmatmul.mubr.bf16.gmra.mrb[0].mxu0 %v2056
  %v2500 = vpop.f32.mrb[0].mxu0
  %v2501 = vadd.f32 %v2381, %v2500
  %v2502 = vpop.f32.mrb[0].mxu0
  %v2503 = vpop.f32.mrb[0].mxu0
  %v2504 = vadd.f32 %v2384, %v2503
  %v2505 = vpop.f32.mrb[0].mxu0
  %2506 = vmatprep.mubr.bf16.mxu0 %v2061
  %2507 = vmatmul.mubr.bf16.gmra.mrb[0].mxu0 %v2060
  %v2508 = vpop.f32.mrb[0].mxu0
  %v2509 = vadd.f32 %v2389, %v2508
  %v2510 = vpop.f32.mrb[0].mxu0
  %v2511 = vpop.f32.mrb[0].mxu0
  %v2512 = vadd.f32 %v2392, %v2511
  %v2513 = vpop.f32.mrb[0].mxu0
  %2514 = vmatprep.mubr.bf16.mxu0 %v2065
  %2515 = vmatmul.mubr.bf16.gmra.mrb[0].mxu0 %v2064
  %v2516 = vpop.f32.mrb[0].mxu0
  %v2517 = vadd.f32 %v2397, %v2516
  %v2518 = vpop.f32.mrb[0].mxu0
  %v2519 = vpop.f32.mrb[0].mxu0
  %v2520 = vadd.f32 %v2400, %v2519
  %v2521 = vpop.f32.mrb[0].mxu0
  %2522 = vmatprep.mubr.bf16.mxu0 %v2069
  %2523 = vmatmul.mubr.bf16.gmra.mrb[0].mxu0 %v2068
  %v2524 = vpop.f32.mrb[0].mxu0
  %v2525 = vadd.f32 %v2405, %v2524
  %v2526 = vpop.f32.mrb[0].mxu0
  %v2527 = vpop.f32.mrb[0].mxu0
  %v2528 = vadd.f32 %v2408, %v2527
  %v2529 = vpop.f32.mrb[0].mxu0
  %2530 = vmatprep.mubr.bf16.mxu0 %v2073
  %2531 = vmatmul.mubr.bf16.gmra.mrb[0].mxu0 %v2072
  %v2532 = vpop.f32.mrb[0].mxu0
  %v2533 = vadd.f32 %v2413, %v2532
  %v2534 = vpop.f32.mrb[0].mxu0
  %v2535 = vpop.f32.mrb[0].mxu0
  %v2536 = vadd.f32 %v2416, %v2535
  %v2537 = vpop.f32.mrb[0].mxu0
  %2538 = vmatprep.mubr.bf16.mxu0 %v2077
  %2539 = vmatmul.mubr.bf16.gmra.mrb[0].mxu0 %v2076
  %v2540 = vpop.f32.mrb[0].mxu0
  %v2541 = vadd.f32 %v2421, %v2540
  %v2542 = vpop.f32.mrb[0].mxu0
  %v2543 = vpop.f32.mrb[0].mxu0
  %v2544 = vadd.f32 %v2424, %v2543
  %v2545 = vpop.f32.mrb[0].mxu0
  %2546 = vmatprep.mubr.bf16.mxu0 %v2081
  %2547 = vmatmul.mubr.bf16.gmra.mrb[0].mxu0 %v2080
  %v2548 = vpop.f32.mrb[0].mxu0
  %v2549 = vadd.f32 %v2429, %v2548
  %v2550 = vpop.f32.mrb[0].mxu0
  %v2551 = vpop.f32.mrb[0].mxu0
  %v2552 = vadd.f32 %v2432, %v2551
  %v2553 = vpop.f32.mrb[0].mxu0
  %2554 = vmatprep.mubr.bf16.mxu0 %v2085
  %2555 = vmatmul.mubr.bf16.gmra.mrb[0].mxu0 %v2084
  %v2556 = vpop.f32.mrb[0].mxu0
  %v2557 = vadd.f32 %v2437, %v2556
  %v2558 = vpop.f32.mrb[0].mxu0
  %v2559 = vpop.f32.mrb[0].mxu0
  %v2560 = vpop.f32.mrb[0].mxu0
  %2561 = vdwg.mxu0
  %v2562 = vld [vmem:[%s2] sm:$0xff]
  %v2563 = vld [vmem:[%s2 + $0x8] sm:$0xff]
  %v2564 = vld [vmem:[%s2 + $0x10] sm:$0xff]
  %v2565 = vld [vmem:[%s2 + $0x18] sm:$0xff]
  %v2566 = vld [vmem:[%s2 + $0x20] sm:$0xff]
  %v2567 = vld [vmem:[%s2 + $0x28] sm:$0xff]
  %v2568 = vld [vmem:[%s2 + $0x30] sm:$0xff]
  %v2569 = vld [vmem:[%s2 + $0x38] sm:$0xff]
  %v2570 = vld [vmem:[%s2 + $0x40] sm:$0xff]
  %v2571 = vld [vmem:[%s2 + $0x48] sm:$0xff]
  %v2572 = vld [vmem:[%s2 + $0x50] sm:$0xff]
  %v2573 = vld [vmem:[%s2 + $0x58] sm:$0xff]
  %v2574 = vld [vmem:[%s2 + $0x60] sm:$0xff]
  %v2575 = vld [vmem:[%s2 + $0x68] sm:$0xff]
  %v2576 = vld [vmem:[%s2 + $0x70] sm:$0xff]
  %v2577 = vld [vmem:[%s2 + $0x78] sm:$0xff]
  %v2578 = vld [vmem:[%s2 + $0x80] sm:$0xff]
  %v2579 = vld [vmem:[%s2 + $0x88] sm:$0xff]
  %v2580 = vld [vmem:[%s2 + $0x90] sm:$0xff]
  %v2581 = vld [vmem:[%s2 + $0x98] sm:$0xff]
  %v2582 = vld [vmem:[%s2 + $0xa0] sm:$0xff]
  %2584 = vset.pattern.permute.xlu0 0
  %2585 = vperm.xlu0 %2584, %v2562
  %v2586 = vpop.permute.xlu0 %2585
  %2589 = vset.pattern.permute.xlu0 0
  %2590 = vperm.xlu0 %2589, %v2563
  %v2591 = vpop.permute.xlu0 %2590
  %2594 = vset.pattern.permute.xlu0 0
  %2595 = vperm.xlu0 %2594, %v2564
  %v2596 = vpop.permute.xlu0 %2595
  %2599 = vset.pattern.permute.xlu0 0
  %2600 = vperm.xlu0 %2599, %v2565
  %v2601 = vpop.permute.xlu0 %2600
  %2604 = vset.pattern.permute.xlu0 0
  %2605 = vperm.xlu0 %2604, %v2566
  %v2606 = vpop.permute.xlu0 %2605
  %2609 = vset.pattern.permute.xlu0 0
  %2610 = vperm.xlu0 %2609, %v2567
  %v2611 = vpop.permute.xlu0 %2610
  %2614 = vset.pattern.permute.xlu0 0
  %2615 = vperm.xlu0 %2614, %v2568
  %v2616 = vpop.permute.xlu0 %2615
  %2619 = vset.pattern.permute.xlu0 0
  %2620 = vperm.xlu0 %2619, %v2569
  %v2621 = vpop.permute.xlu0 %2620
  %2624 = vset.pattern.permute.xlu0 0
  %2625 = vperm.xlu0 %2624, %v2570
  %v2626 = vpop.permute.xlu0 %2625
  %2629 = vset.pattern.permute.xlu0 0
  %2630 = vperm.xlu0 %2629, %v2571
  %v2631 = vpop.permute.xlu0 %2630
  %2634 = vset.pattern.permute.xlu0 0
  %2635 = vperm.xlu0 %2634, %v2572
  %v2636 = vpop.permute.xlu0 %2635
  %2639 = vset.pattern.permute.xlu0 0
  %2640 = vperm.xlu0 %2639, %v2573
  %v2641 = vpop.permute.xlu0 %2640
  %2644 = vset.pattern.permute.xlu0 0
  %2645 = vperm.xlu0 %2644, %v2574
  %v2646 = vpop.permute.xlu0 %2645
  %2649 = vset.pattern.permute.xlu0 0
  %2650 = vperm.xlu0 %2649, %v2575
  %v2651 = vpop.permute.xlu0 %2650
  %2654 = vset.pattern.permute.xlu0 0
  %2655 = vperm.xlu0 %2654, %v2576
  %v2656 = vpop.permute.xlu0 %2655
  %2659 = vset.pattern.permute.xlu0 0
  %2660 = vperm.xlu0 %2659, %v2577
  %v2661 = vpop.permute.xlu0 %2660
  %2664 = vset.pattern.permute.xlu0 0
  %2665 = vperm.xlu0 %2664, %v2578
  %v2666 = vpop.permute.xlu0 %2665
  %2669 = vset.pattern.permute.xlu0 0
  %2670 = vperm.xlu0 %2669, %v2579
  %v2671 = vpop.permute.xlu0 %2670
  %2674 = vset.pattern.permute.xlu0 0
  %2675 = vperm.xlu0 %2674, %v2580
  %v2676 = vpop.permute.xlu0 %2675
  %2679 = vset.pattern.permute.xlu0 0
  %2680 = vperm.xlu0 %2679, %v2581
  %v2681 = vpop.permute.xlu0 %2680
  %2684 = vset.pattern.permute.xlu0 0
  %2685 = vperm.xlu0 %2684, %v2582
  %v2686 = vpop.permute.xlu0 %2685
  %v2688 = vmul.f32 %v2477, %v2586
  %v2689 = vmul.f32 %v2480, %v2591
  %v2690 = vmul.f32 %v2485, %v2596
  %v2691 = vmul.f32 %v2488, %v2601
  %v2692 = vmul.f32 %v2493, %v2606
  %v2693 = vmul.f32 %v2496, %v2611
  %v2694 = vmul.f32 %v2501, %v2616
  %v2695 = vmul.f32 %v2504, %v2621
  %v2696 = vmul.f32 %v2509, %v2626
  %v2697 = vmul.f32 %v2512, %v2631
  %v2698 = vmul.f32 %v2517, %v2636
  %v2699 = vmul.f32 %v2520, %v2641
  %v2700 = vmul.f32 %v2525, %v2646
  %v2701 = vmul.f32 %v2528, %v2651
  %v2702 = vmul.f32 %v2533, %v2656
  %v2703 = vmul.f32 %v2536, %v2661
  %v2704 = vmul.f32 %v2541, %v2666
  %v2705 = vmul.f32 %v2544, %v2671
  %v2706 = vmul.f32 %v2549, %v2676
  %v2707 = vmul.f32 %v2552, %v2681
  %v2708 = vmul.f32 %v2557, %v2686
  %v2709 = vadd.f32 %v2688, %v2689
  %v2710 = vadd.f32 %v2709, %v2690
  %v2711 = vadd.f32 %v2710, %v2691
  %v2712 = vadd.f32 %v2711, %v2692
  %v2713 = vadd.f32 %v2712, %v2693
  %v2714 = vadd.f32 %v2713, %v2694
  %v2715 = vadd.f32 %v2714, %v2695
  %v2716 = vadd.f32 %v2715, %v2696
  %v2717 = vadd.f32 %v2716, %v2697
  %v2718 = vadd.f32 %v2717, %v2698
  %v2719 = vadd.f32 %v2718, %v2699
  %v2720 = vadd.f32 %v2719, %v2700
  %v2721 = vadd.f32 %v2720, %v2701
  %v2722 = vadd.f32 %v2721, %v2702
  %v2723 = vadd.f32 %v2722, %v2703
  %v2724 = vadd.f32 %v2723, %v2704
  %v2725 = vadd.f32 %v2724, %v2705
  %v2726 = vadd.f32 %v2725, %v2706
  %v2727 = vadd.f32 %v2726, %v2707
  %v2728 = vadd.f32 %v2727, %v2708
  %v2729 = vrot.slane %v2728, 4
  %v2730 = vadd.f32 %v2728, %v2729
  %v2731 = vrot.slane %v2730, 2
  %v2732 = vadd.f32 %v2730, %v2731
  %v2733 = vrot.slane %v2732, 1
  %v2734 = vadd.f32 %v2732, %v2733
  %v2735 = vmul.f32 %v2688, %v2688
  %v2736 = vmul.f32 %v2689, %v2689
  %v2737 = vmul.f32 %v2690, %v2690
  %v2738 = vmul.f32 %v2691, %v2691
  %v2739 = vmul.f32 %v2692, %v2692
  %v2740 = vmul.f32 %v2693, %v2693
  %v2741 = vmul.f32 %v2694, %v2694
  %v2742 = vmul.f32 %v2695, %v2695
  %v2743 = vmul.f32 %v2696, %v2696
  %v2744 = vmul.f32 %v2697, %v2697
  %v2745 = vmul.f32 %v2698, %v2698
  %v2746 = vmul.f32 %v2699, %v2699
  %v2747 = vmul.f32 %v2700, %v2700
  %v2748 = vmul.f32 %v2701, %v2701
  %v2749 = vmul.f32 %v2702, %v2702
  %v2750 = vmul.f32 %v2703, %v2703
  %v2751 = vmul.f32 %v2704, %v2704
  %v2752 = vmul.f32 %v2705, %v2705
  %v2753 = vmul.f32 %v2706, %v2706
  %v2754 = vmul.f32 %v2707, %v2707
  %v2755 = vmul.f32 %v2708, %v2708
  %v2756 = vadd.f32 %v2735, %v2736
  %v2757 = vadd.f32 %v2756, %v2737
  %v2758 = vadd.f32 %v2757, %v2738
  %v2759 = vadd.f32 %v2758, %v2739
  %v2760 = vadd.f32 %v2759, %v2740
  %v2761 = vadd.f32 %v2760, %v2741
  %v2762 = vadd.f32 %v2761, %v2742
  %v2763 = vadd.f32 %v2762, %v2743
  %v2764 = vadd.f32 %v2763, %v2744
  %v2765 = vadd.f32 %v2764, %v2745
  %v2766 = vadd.f32 %v2765, %v2746
  %v2767 = vadd.f32 %v2766, %v2747
  %v2768 = vadd.f32 %v2767, %v2748
  %v2769 = vadd.f32 %v2768, %v2749
  %v2770 = vadd.f32 %v2769, %v2750
  %v2771 = vadd.f32 %v2770, %v2751
  %v2772 = vadd.f32 %v2771, %v2752
  %v2773 = vadd.f32 %v2772, %v2753
  %v2774 = vadd.f32 %v2773, %v2754
  %v2775 = vadd.f32 %v2774, %v2755
  %v2776 = vrot.slane %v2775, 4
  %v2777 = vadd.f32 %v2775, %v2776
  %v2778 = vrot.slane %v2777, 2
  %v2779 = vadd.f32 %v2777, %v2778
  %v2780 = vrot.slane %v2779, 1
  %v2781 = vadd.f32 %v2779, %v2780
  %vm2782 = vcmask 1040384
  %v2783 = vsel %vm2782, %v2734, %v2781
  %2784 = vst [vmem:[%s4] sm:$0x3] %v2783
  %v2785 = vpack.c.bf16 %v2480, %v2477
  %v2786 = vpack.c.bf16 %v2488, %v2485
  %v2787 = vpack.c.bf16 %v2496, %v2493
  %v2788 = vpack.c.bf16 %v2504, %v2501
  %v2789 = vpack.c.bf16 %v2512, %v2509
  %v2790 = vpack.c.bf16 %v2520, %v2517
  %v2791 = vpack.c.bf16 %v2528, %v2525
  %v2792 = vpack.c.bf16 %v2536, %v2533
  %v2793 = vpack.c.bf16 %v2544, %v2541
  %v2794 = vpack.c.bf16 %v2552, %v2549
  %v2795 = vpack.c.bf16 %v2557, %v2557
  %v2807 = vunpack.c.l.b16 %v2785
  %v2808 = vunpack.c.h.b16 %v2785
  %v2809 = vunpack.c.l.b16 %v2786
  %v2810 = vunpack.c.h.b16 %v2786
  %v2811 = vunpack.c.l.b16 %v2787
  %v2812 = vunpack.c.h.b16 %v2787
  %v2813 = vunpack.c.l.b16 %v2788
  %v2814 = vunpack.c.h.b16 %v2788
  %v2815 = vunpack.c.l.b16 %v2789
  %v2816 = vunpack.c.h.b16 %v2789
  %v2817 = vunpack.c.l.b16 %v2790
  %v2818 = vunpack.c.h.b16 %v2790
  %v2819 = vunpack.c.l.b16 %v2791
  %v2820 = vunpack.c.h.b16 %v2791
  %v2821 = vunpack.c.l.b16 %v2792
  %v2822 = vunpack.c.h.b16 %v2792
  %v2823 = vunpack.c.l.b16 %v2793
  %v2824 = vunpack.c.h.b16 %v2793
  %v2825 = vunpack.c.l.b16 %v2794
  %v2826 = vunpack.c.h.b16 %v2794
  %v2827 = vunpack.c.l.b16 %v2795
  %v2828 = vpack.c.b16 %v2807, %v2807
  %v2829 = vpack.c.b16 %v2808, %v2808
  %v2830 = vpack.c.b16 %v2809, %v2809
  %v2831 = vpack.c.b16 %v2810, %v2810
  %v2832 = vpack.c.b16 %v2811, %v2811
  %v2833 = vpack.c.b16 %v2812, %v2812
  %v2834 = vpack.c.b16 %v2813, %v2813
  %v2835 = vpack.c.b16 %v2814, %v2814
  %v2836 = vpack.c.b16 %v2815, %v2815
  %v2837 = vpack.c.b16 %v2816, %v2816
  %v2838 = vpack.c.b16 %v2817, %v2817
  %v2839 = vpack.c.b16 %v2818, %v2818
  %v2840 = vpack.c.b16 %v2819, %v2819
  %v2841 = vpack.c.b16 %v2820, %v2820
  %v2842 = vpack.c.b16 %v2821, %v2821
  %v2843 = vpack.c.b16 %v2822, %v2822
  %v2844 = vpack.c.b16 %v2823, %v2823
  %v2845 = vpack.c.b16 %v2824, %v2824
  %v2846 = vpack.c.b16 %v2825, %v2825
  %v2847 = vpack.c.b16 %v2826, %v2826
  %v2848 = vpack.c.b16 %v2827, %v2827
  %2870 = vst [vmem:[%s3] sm:$0xf] %v2828
  %2871 = vst [vmem:[%s3 + $0x4] sm:$0xf] %v2829
  %2872 = vst [vmem:[%s3 + $0x8] sm:$0xf] %v2830
  %2873 = vst [vmem:[%s3 + $0xc] sm:$0xf] %v2831
  %2874 = vst [vmem:[%s3 + $0x10] sm:$0xf] %v2832
  %2875 = vst [vmem:[%s3 + $0x14] sm:$0xf] %v2833
  %2876 = vst [vmem:[%s3 + $0x18] sm:$0xf] %v2834
  %2877 = vst [vmem:[%s3 + $0x1c] sm:$0xf] %v2835
  %2878 = vst [vmem:[%s3 + $0x20] sm:$0xf] %v2836
  %2879 = vst [vmem:[%s3 + $0x24] sm:$0xf] %v2837
  %2880 = vst [vmem:[%s3 + $0x28] sm:$0xf] %v2838
  %2881 = vst [vmem:[%s3 + $0x2c] sm:$0xf] %v2839
  %2882 = vst [vmem:[%s3 + $0x30] sm:$0xf] %v2840
  %2883 = vst [vmem:[%s3 + $0x34] sm:$0xf] %v2841
  %2884 = vst [vmem:[%s3 + $0x38] sm:$0xf] %v2842
  %2885 = vst [vmem:[%s3 + $0x3c] sm:$0xf] %v2843
  %2886 = vst [vmem:[%s3 + $0x40] sm:$0xf] %v2844
  %2887 = vst [vmem:[%s3 + $0x44] sm:$0xf] %v2845
  %2888 = vst [vmem:[%s3 + $0x48] sm:$0xf] %v2846
  %2889 = vst [vmem:[%s3 + $0x4c] sm:$0xf] %v2847
  %2890 = vst [vmem:[%s3 + $0x50] sm:$0xf] %v2848
  // Predicated region
  $region141: #{residual_block_forward.5} parent=0 // pred_check
    _
  $region142: #{residual_block_forward.5} parent=0 // pred_check_branch
    %2892 = sbr.rel (0) target = $region144
  $region143: #{residual_block_forward.5} parent=0 // pred_region
    _
  $region144: #{residual_block_forward.5} parent=0 // pred_fallthru
    _
  // Predicated region
  $region145: #{residual_block_forward.5} parent=0 // pred_check
    _
  $region146: #{residual_block_forward.5} parent=0 // pred_check_branch
    %2894 = sbr.rel (0) target = $region148
  $region147: #{residual_block_forward.5} parent=0 // pred_region
    _
  $region148: #{residual_block_forward.5} parent=0 // pred_fallthru
    _
  // Predicated region
  $region149: #{residual_block_forward.5} parent=0 // pred_check
    _
  $region150: #{residual_block_forward.5} parent=0 // pred_check_branch
    %2896 = sbr.rel (0) target = $region152
  $region151: #{residual_block_forward.5} parent=0 // pred_region
    _
  $region152: #{residual_block_forward.5} parent=0 // pred_fallthru
    _
  // Predicated region
  $region153: #{residual_block_forward.5} parent=0 // pred_check
    _
  $region154: #{residual_block_forward.5} parent=0 // pred_check_branch
    %2898 = sbr.rel (0) target = $region156
  $region155: #{residual_block_forward.5} parent=0 // pred_region
    _
  $region156: #{residual_block_forward.5} parent=0 // pred_fallthru
    _
  %2899 = vsyncmov [#allocation5]
  %s2900 = vpop.sfrf %2899
  %p2901 = scmp.eq.s32.totalorder %s2900, 0
  %p2902 = pneg %p2901
  %2904 = shalt.err (%p2902)
  %s2905 = scalar_lea.sflag [#allocation5], 1
  %2906 = vsyncmov %s2905
  %s2907 = vpop.sfrf %2906
  %p2908 = scmp.eq.s32.totalorder %s2907, 0
  %p2909 = pneg %p2908
  %2911 = shalt.err (%p2909)

// kernel: residual_block_forward.9
$region0: #{residual_block_forward.9}
  #allocation0 [shape = 'u32[]', space=smem, size = 0x4, offset = 0x4, fixed_abs, tag = 'smem constant byte address 0x4 - core index']
  #allocation1 [shape = 'u32[144,128]{1,0:T(1,128)}', space=vmem, size = 0x12000, scoped, tag = 'internal scratch']
  %s0 = inlined_call_operand.vmem [shape: f32[1,128], index: 0, kind: input, shape index: {}]
  %s1 = inlined_call_operand.vmem [shape: f32[1,128], index: 1, kind: input, shape index: {}]
  %s2 = inlined_call_operand.vmem [shape: bf16[200,128], index: 2, kind: input, shape index: {}]
  %s3 = inlined_call_operand.vmem [shape: f32[200,128], index: 3, kind: output, shape index: {}]
  %s4 = sld [smem:[#allocation0]]
  $region22: #{residual_block_forward.9} parent=0
    _
  %s6 = ssub.s32 1, %s4
  %s7 = scalar_select 0, %s6, %s4
  // Predicated region
  $region2: #{residual_block_forward.9} parent=0 // pred_check
    _
  $region3: #{residual_block_forward.9} parent=0 // pred_check_branch
    %9 = sbr.rel (0) target = $region5
  $region4: #{residual_block_forward.9} parent=0 // pred_region
    _
  $region5: #{residual_block_forward.9} parent=0 // pred_fallthru
    _
  // Predicated region
  $region6: #{residual_block_forward.9} parent=0 // pred_check
    _
  $region7: #{residual_block_forward.9} parent=0 // pred_check_branch
    %11 = sbr.rel (0) target = $region9
  $region8: #{residual_block_forward.9} parent=0 // pred_region
    _
  $region9: #{residual_block_forward.9} parent=0 // pred_fallthru
    _
  // Predicated region
  $region10: #{residual_block_forward.9} parent=0 // pred_check
    _
  $region11: #{residual_block_forward.9} parent=0 // pred_check_branch
    %13 = sbr.rel (0) target = $region13
  $region12: #{residual_block_forward.9} parent=0 // pred_region
    _
  $region13: #{residual_block_forward.9} parent=0 // pred_fallthru
    _
  %v14 = vld [vmem:[%s2] sm:$0xf]
  %v15 = vld [vmem:[%s2 + $0x4] sm:$0xf]
  %v16 = vld [vmem:[%s2 + $0x8] sm:$0xf]
  %v17 = vld [vmem:[%s2 + $0xc] sm:$0xf]
  %v18 = vld [vmem:[%s2 + $0x10] sm:$0xf]
  %v19 = vld [vmem:[%s2 + $0x14] sm:$0xf]
  %v20 = vld [vmem:[%s2 + $0x18] sm:$0xf]
  %v21 = vld [vmem:[%s2 + $0x1c] sm:$0xf]
  %v22 = vld [vmem:[%s2 + $0x20] sm:$0xf]
  %v23 = vld [vmem:[%s2 + $0x24] sm:$0xf]
  %v24 = vld [vmem:[%s2 + $0x28] sm:$0xf]
  %v25 = vld [vmem:[%s2 + $0x2c] sm:$0xf]
  %v26 = vld [vmem:[%s2 + $0x30] sm:$0xf]
  %v27 = vld [vmem:[%s2 + $0x34] sm:$0xf]
  %v28 = vld [vmem:[%s2 + $0x38] sm:$0xf]
  %v29 = vld [vmem:[%s2 + $0x3c] sm:$0xf]
  %v30 = vld [vmem:[%s2 + $0x40] sm:$0xf]
  %v31 = vld [vmem:[%s2 + $0x44] sm:$0xf]
  %v32 = vld [vmem:[%s2 + $0x48] sm:$0xf]
  %v33 = vld [vmem:[%s2 + $0x4c] sm:$0xf]
  %v34 = vld [vmem:[%s2 + $0x50] sm:$0xf]
  %v35 = vld [vmem:[%s2 + $0x54] sm:$0xf]
  %v36 = vld [vmem:[%s2 + $0x58] sm:$0xf]
  %v37 = vld [vmem:[%s2 + $0x5c] sm:$0xf]
  %v38 = vld [vmem:[%s2 + $0x60] sm:$0xf]
  %v39 = vunpack.c.l.bf16 %v14
  %v40 = vunpack.c.l.bf16 %v15
  %v41 = vunpack.c.l.bf16 %v16
  %v42 = vunpack.c.l.bf16 %v17
  %v43 = vunpack.c.l.bf16 %v18
  %v44 = vunpack.c.l.bf16 %v19
  %v45 = vunpack.c.l.bf16 %v20
  %v46 = vunpack.c.l.bf16 %v21
  %v47 = vunpack.c.l.bf16 %v22
  %v48 = vunpack.c.l.bf16 %v23
  %v49 = vunpack.c.l.bf16 %v24
  %v50 = vunpack.c.l.bf16 %v25
  %v51 = vunpack.c.l.bf16 %v26
  %v52 = vunpack.c.l.bf16 %v27
  %v53 = vunpack.c.l.bf16 %v28
  %v54 = vunpack.c.l.bf16 %v29
  %v55 = vunpack.c.l.bf16 %v30
  %v56 = vunpack.c.l.bf16 %v31
  %v57 = vunpack.c.l.bf16 %v32
  %v58 = vunpack.c.l.bf16 %v33
  %v59 = vunpack.c.l.bf16 %v34
  %v60 = vunpack.c.l.bf16 %v35
  %v61 = vunpack.c.l.bf16 %v36
  %v62 = vunpack.c.l.bf16 %v37
  %v63 = vunpack.c.l.bf16 %v38
  %v64 = vld [vmem:[%s0] sm:$0x1]
  %v66 = vlaneseq
  %v67 = vshrl.u32 %v66, 7
  %v68 = vsub.s32 0, %v67
  %v69 = vrot.slane %v64, %v68
  %v71 = vsub.f32 %v39, %v69
  %v72 = vsub.f32 %v40, %v69
  %v73 = vsub.f32 %v41, %v69
  %v74 = vsub.f32 %v42, %v69
  %v75 = vsub.f32 %v43, %v69
  %v76 = vsub.f32 %v44, %v69
  %v77 = vsub.f32 %v45, %v69
  %v78 = vsub.f32 %v46, %v69
  %v79 = vsub.f32 %v47, %v69
  %v80 = vsub.f32 %v48, %v69
  %v81 = vsub.f32 %v49, %v69
  %v82 = vsub.f32 %v50, %v69
  %v83 = vsub.f32 %v51, %v69
  %v84 = vsub.f32 %v52, %v69
  %v85 = vsub.f32 %v53, %v69
  %v86 = vsub.f32 %v54, %v69
  %v87 = vsub.f32 %v55, %v69
  %v88 = vsub.f32 %v56, %v69
  %v89 = vsub.f32 %v57, %v69
  %v90 = vsub.f32 %v58, %v69
  %v91 = vsub.f32 %v59, %v69
  %v92 = vsub.f32 %v60, %v69
  %v93 = vsub.f32 %v61, %v69
  %v94 = vsub.f32 %v62, %v69
  %v95 = vsub.f32 %v63, %v69
  %v96 = vld [vmem:[%s1] sm:$0x1]
  %v98 = vlaneseq
  %v99 = vshrl.u32 %v98, 7
  %v100 = vsub.s32 0, %v99
  %v101 = vrot.slane %v96, %v100
  %v103 = vmul.f32 %v71, %v101
  %v104 = vmul.f32 %v72, %v101
  %v105 = vmul.f32 %v73, %v101
  %v106 = vmul.f32 %v74, %v101
  %v107 = vmul.f32 %v75, %v101
  %v108 = vmul.f32 %v76, %v101
  %v109 = vmul.f32 %v77, %v101
  %v110 = vmul.f32 %v78, %v101
  %v111 = vmul.f32 %v79, %v101
  %v112 = vmul.f32 %v80, %v101
  %v113 = vmul.f32 %v81, %v101
  %v114 = vmul.f32 %v82, %v101
  %v115 = vmul.f32 %v83, %v101
  %v116 = vmul.f32 %v84, %v101
  %v117 = vmul.f32 %v85, %v101
  %v118 = vmul.f32 %v86, %v101
  %v119 = vmul.f32 %v87, %v101
  %v120 = vmul.f32 %v88, %v101
  %v121 = vmul.f32 %v89, %v101
  %v122 = vmul.f32 %v90, %v101
  %v123 = vmul.f32 %v91, %v101
  %v124 = vmul.f32 %v92, %v101
  %v125 = vmul.f32 %v93, %v101
  %v126 = vmul.f32 %v94, %v101
  %v127 = vmul.f32 %v95, %v101
  %v128 = vmax.f32 %v103, 0.0
  %v129 = vmax.f32 %v104, 0.0
  %v130 = vmax.f32 %v105, 0.0
  %v131 = vmax.f32 %v106, 0.0
  %v132 = vmax.f32 %v107, 0.0
  %v133 = vmax.f32 %v108, 0.0
  %v134 = vmax.f32 %v109, 0.0
  %v135 = vmax.f32 %v110, 0.0
  %v136 = vmax.f32 %v111, 0.0
  %v137 = vmax.f32 %v112, 0.0
  %v138 = vmax.f32 %v113, 0.0
  %v139 = vmax.f32 %v114, 0.0
  %v140 = vmax.f32 %v115, 0.0
  %v141 = vmax.f32 %v116, 0.0
  %v142 = vmax.f32 %v117, 0.0
  %v143 = vmax.f32 %v118, 0.0
  %v144 = vmax.f32 %v119, 0.0
  %v145 = vmax.f32 %v120, 0.0
  %v146 = vmax.f32 %v121, 0.0
  %v147 = vmax.f32 %v122, 0.0
  %v148 = vmax.f32 %v123, 0.0
  %v149 = vmax.f32 %v124, 0.0
  %v150 = vmax.f32 %v125, 0.0
  %v151 = vmax.f32 %v126, 0.0
  %v152 = vmax.f32 %v127, 0.0
  %153 = vst [vmem:[%s3] sm:$0xff] %v128
  %154 = vst [vmem:[%s3 + $0x8] sm:$0xff] %v129
  %155 = vst [vmem:[%s3 + $0x10] sm:$0xff] %v130
  %156 = vst [vmem:[%s3 + $0x18] sm:$0xff] %v131
  %157 = vst [vmem:[%s3 + $0x20] sm:$0xff] %v132
  %158 = vst [vmem:[%s3 + $0x28] sm:$0xff] %v133
  %159 = vst [vmem:[%s3 + $0x30] sm:$0xff] %v134
  %160 = vst [vmem:[%s3 + $0x38] sm:$0xff] %v135
  %161 = vst [vmem:[%s3 + $0x40] sm:$0xff] %v136
  %162 = vst [vmem:[%s3 + $0x48] sm:$0xff] %v137
  %163 = vst [vmem:[%s3 + $0x50] sm:$0xff] %v138
  %164 = vst [vmem:[%s3 + $0x58] sm:$0xff] %v139
  %165 = vst [vmem:[%s3 + $0x60] sm:$0xff] %v140
  %166 = vst [vmem:[%s3 + $0x68] sm:$0xff] %v141
  %167 = vst [vmem:[%s3 + $0x70] sm:$0xff] %v142
  %168 = vst [vmem:[%s3 + $0x78] sm:$0xff] %v143
  %169 = vst [vmem:[%s3 + $0x80] sm:$0xff] %v144
  %170 = vst [vmem:[%s3 + $0x88] sm:$0xff] %v145
  %171 = vst [vmem:[%s3 + $0x90] sm:$0xff] %v146
  %172 = vst [vmem:[%s3 + $0x98] sm:$0xff] %v147
  %173 = vst [vmem:[%s3 + $0xa0] sm:$0xff] %v148
  %174 = vst [vmem:[%s3 + $0xa8] sm:$0xff] %v149
  %175 = vst [vmem:[%s3 + $0xb0] sm:$0xff] %v150
  %176 = vst [vmem:[%s3 + $0xb8] sm:$0xff] %v151
  %177 = vst [vmem:[%s3 + $0xc0] sm:$0xff] %v152
  // Predicated region
  $region14: #{residual_block_forward.9} parent=0 // pred_check
    _
  $region15: #{residual_block_forward.9} parent=0 // pred_check_branch
    %179 = sbr.rel (0) target = $region17
  $region16: #{residual_block_forward.9} parent=0 // pred_region
    _
  $region17: #{residual_block_forward.9} parent=0 // pred_fallthru
    _
  // Predicated region
  $region18: #{residual_block_forward.9} parent=0 // pred_check
    _
  $region19: #{residual_block_forward.9} parent=0 // pred_check_branch
    %181 = sbr.rel (0) target = $region21
  $region20: #{residual_block_forward.9} parent=0 // pred_region
    _
  $region21: #{residual_block_forward.9} parent=0 // pred_fallthru
    _

// kernel: residual_block_forward.8
$region0: #{residual_block_forward.8}
  #allocation0 [shape = 'u32[]', space=smem, size = 0x4, offset = 0x4, fixed_abs, tag = 'smem constant byte address 0x4 - core index']
  #allocation1 [shape = 'u32[144,128]{1,0:T(1,128)}', space=vmem, size = 0x12000, scoped, tag = 'internal scratch']
  #allocation2 [shape = 'bf16[224,128]{1,0:T(16,128)(2,1)}', space=vmem, size = 0xe000, scoped, tag = 'scratch operand']
  #allocation3 [shape = 'bf16[224,128]{1,0:T(16,128)(2,1)}', space=vmem, size = 0xe000, scoped, tag = 'scratch operand']
  #allocation4 [shape = 'bf16[200,1152]{1,0:T(8,128)(2,1)}', space=vmem, size = 0x70800, scoped, tag = 'scratch operand']
  #allocation5 [shape = 's32[2]{0}', space=sflag, size = 0x8, scoped, tag = 'scratch operand']
  #allocation6 [shape = 's32[]', space=sflag, size = 0x4, offset = 0, fixed_abs, tag = 'sflag constant byte address 0x0 - dummy sync flag']
  #allocation7 [shape = 's32[]', space=sflag, size = 0x4, offset = 0, fixed_abs, tag = 'sflag constant byte address 0x0 - dummy sync flag']
  #allocation8 [shape = 's32[]', space=sflag, size = 0x4, offset = 0, fixed_abs, tag = 'sflag constant byte address 0x0 - dummy sync flag']
  %s0 = inlined_call_operand.vmem [shape: bf16[224,128], index: 0, kind: input, shape index: {}]
  %s1 = inlined_call_operand.vmem [shape: bf16[1152,128], index: 1, kind: input, shape index: {}]
  %s2 = inlined_call_operand.vmem [shape: f32[200,1], index: 2, kind: input, shape index: {}]
  %s3 = inlined_call_operand.vmem [shape: bf16[200,128], index: 3, kind: input, shape index: {}]
  %s4 = inlined_call_operand.vmem [shape: bf16[200,128], index: 4, kind: output, shape index: {0}]
  %s5 = inlined_call_operand.vmem [shape: f32[1,2,128], index: 5, kind: output, shape index: {1}]
  %6 = xla_tuple %s4, %s5
  %s7 = sld [smem:[#allocation0]]
  $region152: #{residual_block_forward.8} parent=0
    _
  %s9 = ssub.s32 1, %s7
  %s10 = scalar_select 0, %s9, %s7
  // Predicated region
  $region2: #{residual_block_forward.8} parent=0 // pred_check
    _
  $region3: #{residual_block_forward.8} parent=0 // pred_check_branch
    %12 = sbr.rel (0) target = $region5
  $region4: #{residual_block_forward.8} parent=0 // pred_region
    _
  $region5: #{residual_block_forward.8} parent=0 // pred_fallthru
    _
  // Predicated region
  $region6: #{residual_block_forward.8} parent=0 // pred_check
    _
  $region7: #{residual_block_forward.8} parent=0 // pred_check_branch
    %14 = sbr.rel (0) target = $region9
  $region8: #{residual_block_forward.8} parent=0 // pred_region
    _
  $region9: #{residual_block_forward.8} parent=0 // pred_fallthru
    _
  // Predicated region
  $region10: #{residual_block_forward.8} parent=0 // pred_check
    _
  $region11: #{residual_block_forward.8} parent=0 // pred_check_branch
    %16 = sbr.rel (0) target = $region13
  $region12: #{residual_block_forward.8} parent=0 // pred_region
    _
  $region13: #{residual_block_forward.8} parent=0 // pred_fallthru
    _
  %s18 = sadd.s32 0, 0
  %p19 = scmp.eq.s32.totalorder %s18, 0
  // Predicated region
  $region14: #{residual_block_forward.8} parent=0 // pred_check
    %p20 = pneg %p19
  $region15: #{residual_block_forward.8} parent=0 // pred_check_branch
    %22 = sbr.rel (%p20) target = $region17
  $region16: #{residual_block_forward.8} parent=0 // pred_region
    %p24 = scmp.lt.u32.totalorder 112, 8
    %p25 = pneg %p24
    // Predicated region
    $region18: #{residual_block_forward.8} parent=16 // pred_check
      _
    $region19: #{residual_block_forward.8} parent=16 // pred_check_branch
      %27 = sbr.rel (%p24) target = $region21
    $region20: #{residual_block_forward.8} parent=16 // pred_region
      %s42 = sand.u32 112, 7
      %p43 = scmp.eq.s32.totalorder %s42, 0
      // Predicated region
      $region33: #{residual_block_forward.8} parent=20 // pred_check
        %p44 = pneg %p43
      $region34: #{residual_block_forward.8} parent=20 // pred_check_branch
        %46 = sbr.rel (%p44) target = $region36
      $region35: #{residual_block_forward.8} parent=20 // pred_region
        loop: start=0, step=1, limit=1
        $region37: #{residual_block_forward.8} parent=35 // loop_pre_header
          _
        $region38: #{residual_block_forward.8} parent=35 // loop_header
          %s48 = sphi 0, %s52
          %p49 = scmp.ge.s32.totalorder %s48, 1
          %s53 = sphi %s0, %s0
          %s54 = sphi [#allocation2], [#allocation2]
        $region39: #{residual_block_forward.8} parent=35 // loop_header_branch
          %51 = sbr.rel (%p49) target = $region43
        $region40: #{residual_block_forward.8} parent=35 // loop_body
          %v55 = vld [vmem:[%s53] sm:$0xff]
          %56 = vst [vmem:[%s54] sm:$0xff] %v55
          %v57 = vld [vmem:[%s53 + $0x8] sm:$0xff]
          %58 = vst [vmem:[%s54 + $0x8] sm:$0xff] %v57
          %v59 = vld [vmem:[%s53 + $0x10] sm:$0xff]
          %60 = vst [vmem:[%s54 + $0x10] sm:$0xff] %v59
          %v61 = vld [vmem:[%s53 + $0x18] sm:$0xff]
          %62 = vst [vmem:[%s54 + $0x18] sm:$0xff] %v61
          %v63 = vld [vmem:[%s53 + $0x20] sm:$0xff]
          %64 = vst [vmem:[%s54 + $0x20] sm:$0xff] %v63
          %v65 = vld [vmem:[%s53 + $0x28] sm:$0xff]
          %66 = vst [vmem:[%s54 + $0x28] sm:$0xff] %v65
          %v67 = vld [vmem:[%s53 + $0x30] sm:$0xff]
          %68 = vst [vmem:[%s54 + $0x30] sm:$0xff] %v67
          %v69 = vld [vmem:[%s53 + $0x38] sm:$0xff]
          %70 = vst [vmem:[%s54 + $0x38] sm:$0xff] %v69
          %v71 = vld [vmem:[%s53 + $0x40] sm:$0xff]
          %72 = vst [vmem:[%s54 + $0x40] sm:$0xff] %v71
          %v73 = vld [vmem:[%s53 + $0x48] sm:$0xff]
          %74 = vst [vmem:[%s54 + $0x48] sm:$0xff] %v73
          %v75 = vld [vmem:[%s53 + $0x50] sm:$0xff]
          %76 = vst [vmem:[%s54 + $0x50] sm:$0xff] %v75
          %v77 = vld [vmem:[%s53 + $0x58] sm:$0xff]
          %78 = vst [vmem:[%s54 + $0x58] sm:$0xff] %v77
          %v79 = vld [vmem:[%s53 + $0x60] sm:$0xff]
          %80 = vst [vmem:[%s54 + $0x60] sm:$0xff] %v79
          %v81 = vld [vmem:[%s53 + $0x68] sm:$0xff]
          %82 = vst [vmem:[%s54 + $0x68] sm:$0xff] %v81
        $region41: #{residual_block_forward.8} parent=35 // loop_footer
          %s52 = sadd.s32 1, %s48
        $region42: #{residual_block_forward.8} parent=35 // loop_footer_branch
          %47 = sbr.rel target = $region38
        $region43: #{residual_block_forward.8} parent=35 // loop_exit
          _
      $region36: #{residual_block_forward.8} parent=20 // pred_fallthru
        _
      %p83 = pneg %p43
      // Predicated region
      $region44: #{residual_block_forward.8} parent=20 // pred_check
        _
      $region45: #{residual_block_forward.8} parent=20 // pred_check_branch
        %85 = sbr.rel (%p43) target = $region47
      $region46: #{residual_block_forward.8} parent=20 // pred_region
        %s86 = sand.u32 112, 7
      $region47: #{residual_block_forward.8} parent=20 // pred_fallthru
        _
    $region21: #{residual_block_forward.8} parent=16 // pred_fallthru
      _
    // Predicated region
    $region22: #{residual_block_forward.8} parent=16 // pred_check
      %p28 = pneg %p24
    $region23: #{residual_block_forward.8} parent=16 // pred_check_branch
      %30 = sbr.rel (%p28) target = $region25
    $region24: #{residual_block_forward.8} parent=16 // pred_region
      %s31 = sshllo.u32 0, 112
      loop: start=0, step=1, limit=1
      $region26: #{residual_block_forward.8} parent=24 // loop_pre_header
        _
      $region27: #{residual_block_forward.8} parent=24 // loop_header
        %s33 = sphi 0, %s37
        %p34 = scmp.ge.s32.totalorder %s33, 1
        %s38 = sphi %s0, %s0
        %s39 = sphi [#allocation2], [#allocation2]
      $region28: #{residual_block_forward.8} parent=24 // loop_header_branch
        %36 = sbr.rel (%p34) target = $region32
      $region29: #{residual_block_forward.8} parent=24 // loop_body
        %v40 = vld [vmem:[%s38] sm:%s31]
        %41 = vst [vmem:[%s39] sm:%s31] %v40
      $region30: #{residual_block_forward.8} parent=24 // loop_footer
        %s37 = sadd.s32 1, %s33
      $region31: #{residual_block_forward.8} parent=24 // loop_footer_branch
        %32 = sbr.rel target = $region27
      $region32: #{residual_block_forward.8} parent=24 // loop_exit
        _
    $region25: #{residual_block_forward.8} parent=16 // pred_fallthru
      _
    // Predicated region
    $region48: #{residual_block_forward.8} parent=16 // pred_check
      _
    $region49: #{residual_block_forward.8} parent=16 // pred_check_branch
      %89 = sbr.rel (0) target = $region51
    $region50: #{residual_block_forward.8} parent=16 // pred_region
      %90 = vsyncadd [#allocation5], 1792
    $region51: #{residual_block_forward.8} parent=16 // pred_fallthru
      _
  $region17: #{residual_block_forward.8} parent=0 // pred_fallthru
    _
  %p91 = scmp.lt.s32.totalorder %s18, 0
  %s92 = ssub.s32 0, %s18
  %s93 = scalar_select %p91, %s92, %s18
  %s94 = sand.u32 %s93, 1
  %s95 = ssub.s32 0, %s94
  %s96 = scalar_select %p91, %s95, %s94
  %p97 = scmp.ne.s32.totalorder %s96, 0
  %p98 = scmp.lt.s32.totalorder %s96, 0
  %p99 = pnand %p98, %p97
  %p100 = pneg %p99
  %s101 = sadd.s32 %s96, 2
  %s102 = scalar_select %p100, %s101, %s96
  %p103 = scmp.eq.s32.totalorder %s102, 0
  // Predicated region
  $region52: #{residual_block_forward.8} parent=0 // pred_check
    %p104 = pneg %p103
  $region53: #{residual_block_forward.8} parent=0 // pred_check_branch
    %106 = sbr.rel (%p104) target = $region55
  $region54: #{residual_block_forward.8} parent=0 // pred_region
    %s107 = sadd.s32 0, 1
    %p108 = scmp.lt.s32.totalorder %s107, 1
    %s109 = sadd.s32 0, 1
    %p110 = scmp.lt.s32.totalorder %s109, 1
    %p111 = por %p108, %p110
    // Predicated region
    $region56: #{residual_block_forward.8} parent=54 // pred_check
      %p112 = pneg %p111
    $region57: #{residual_block_forward.8} parent=54 // pred_check_branch
      %114 = sbr.rel (%p112) target = $region59
    $region58: #{residual_block_forward.8} parent=54 // pred_region
      %s115 = scalar_select %p108, %s107, 0
      %s116 = smul.u32 %s115, 200
      %s117 = sshra.s32 %s116, 3
      %s118 = sand.u32 %s116, 7
      %s119 = smul.addr %s117, 4
      %s120 = scalar_lea.vmem %s0, %s119
      %s121 = scalar_lea.sflag [#allocation5], 1
      %p123 = scmp.lt.u32.totalorder 112, 8
      %p124 = pneg %p123
      // Predicated region
      $region60: #{residual_block_forward.8} parent=58 // pred_check
        _
      $region61: #{residual_block_forward.8} parent=58 // pred_check_branch
        %126 = sbr.rel (%p123) target = $region63
      $region62: #{residual_block_forward.8} parent=58 // pred_region
        %s141 = sand.u32 112, 7
        %p142 = scmp.eq.s32.totalorder %s141, 0
        // Predicated region
        $region75: #{residual_block_forward.8} parent=62 // pred_check
          %p143 = pneg %p142
        $region76: #{residual_block_forward.8} parent=62 // pred_check_branch
          %145 = sbr.rel (%p143) target = $region78
        $region77: #{residual_block_forward.8} parent=62 // pred_region
          loop: start=0, step=1, limit=1
          $region79: #{residual_block_forward.8} parent=77 // loop_pre_header
            _
          $region80: #{residual_block_forward.8} parent=77 // loop_header
            %s147 = sphi 0, %s151
            %p148 = scmp.ge.s32.totalorder %s147, 1
            %s152 = sphi %s120, %s120
            %s153 = sphi [#allocation3], [#allocation3]
          $region81: #{residual_block_forward.8} parent=77 // loop_header_branch
            %150 = sbr.rel (%p148) target = $region85
          $region82: #{residual_block_forward.8} parent=77 // loop_body
            %v154 = vld [vmem:[%s152] sm:$0xff]
            %155 = vst [vmem:[%s153] sm:$0xff] %v154
            %v156 = vld [vmem:[%s152 + $0x8] sm:$0xff]
            %157 = vst [vmem:[%s153 + $0x8] sm:$0xff] %v156
            %v158 = vld [vmem:[%s152 + $0x10] sm:$0xff]
            %159 = vst [vmem:[%s153 + $0x10] sm:$0xff] %v158
            %v160 = vld [vmem:[%s152 + $0x18] sm:$0xff]
            %161 = vst [vmem:[%s153 + $0x18] sm:$0xff] %v160
            %v162 = vld [vmem:[%s152 + $0x20] sm:$0xff]
            %163 = vst [vmem:[%s153 + $0x20] sm:$0xff] %v162
            %v164 = vld [vmem:[%s152 + $0x28] sm:$0xff]
            %165 = vst [vmem:[%s153 + $0x28] sm:$0xff] %v164
            %v166 = vld [vmem:[%s152 + $0x30] sm:$0xff]
            %167 = vst [vmem:[%s153 + $0x30] sm:$0xff] %v166
            %v168 = vld [vmem:[%s152 + $0x38] sm:$0xff]
            %169 = vst [vmem:[%s153 + $0x38] sm:$0xff] %v168
            %v170 = vld [vmem:[%s152 + $0x40] sm:$0xff]
            %171 = vst [vmem:[%s153 + $0x40] sm:$0xff] %v170
            %v172 = vld [vmem:[%s152 + $0x48] sm:$0xff]
            %173 = vst [vmem:[%s153 + $0x48] sm:$0xff] %v172
            %v174 = vld [vmem:[%s152 + $0x50] sm:$0xff]
            %175 = vst [vmem:[%s153 + $0x50] sm:$0xff] %v174
            %v176 = vld [vmem:[%s152 + $0x58] sm:$0xff]
            %177 = vst [vmem:[%s153 + $0x58] sm:$0xff] %v176
            %v178 = vld [vmem:[%s152 + $0x60] sm:$0xff]
            %179 = vst [vmem:[%s153 + $0x60] sm:$0xff] %v178
            %v180 = vld [vmem:[%s152 + $0x68] sm:$0xff]
            %181 = vst [vmem:[%s153 + $0x68] sm:$0xff] %v180
          $region83: #{residual_block_forward.8} parent=77 // loop_footer
            %s151 = sadd.s32 1, %s147
          $region84: #{residual_block_forward.8} parent=77 // loop_footer_branch
            %146 = sbr.rel target = $region80
          $region85: #{residual_block_forward.8} parent=77 // loop_exit
            _
        $region78: #{residual_block_forward.8} parent=62 // pred_fallthru
          _
        %p182 = pneg %p142
        // Predicated region
        $region86: #{residual_block_forward.8} parent=62 // pred_check
          _
        $region87: #{residual_block_forward.8} parent=62 // pred_check_branch
          %184 = sbr.rel (%p142) target = $region89
        $region88: #{residual_block_forward.8} parent=62 // pred_region
          %s185 = sand.u32 112, 7
        $region89: #{residual_block_forward.8} parent=62 // pred_fallthru
          _
      $region63: #{residual_block_forward.8} parent=58 // pred_fallthru
        _
      // Predicated region
      $region64: #{residual_block_forward.8} parent=58 // pred_check
        %p127 = pneg %p123
      $region65: #{residual_block_forward.8} parent=58 // pred_check_branch
        %129 = sbr.rel (%p127) target = $region67
      $region66: #{residual_block_forward.8} parent=58 // pred_region
        %s130 = sshllo.u32 0, 112
        loop: start=0, step=1, limit=1
        $region68: #{residual_block_forward.8} parent=66 // loop_pre_header
          _
        $region69: #{residual_block_forward.8} parent=66 // loop_header
          %s132 = sphi 0, %s136
          %p133 = scmp.ge.s32.totalorder %s132, 1
          %s137 = sphi %s120, %s120
          %s138 = sphi [#allocation3], [#allocation3]
        $region70: #{residual_block_forward.8} parent=66 // loop_header_branch
          %135 = sbr.rel (%p133) target = $region74
        $region71: #{residual_block_forward.8} parent=66 // loop_body
          %v139 = vld [vmem:[%s137] sm:%s130]
          %140 = vst [vmem:[%s138] sm:%s130] %v139
        $region72: #{residual_block_forward.8} parent=66 // loop_footer
          %s136 = sadd.s32 1, %s132
        $region73: #{residual_block_forward.8} parent=66 // loop_footer_branch
          %131 = sbr.rel target = $region69
        $region74: #{residual_block_forward.8} parent=66 // loop_exit
          _
      $region67: #{residual_block_forward.8} parent=58 // pred_fallthru
        _
      // Predicated region
      $region90: #{residual_block_forward.8} parent=58 // pred_check
        _
      $region91: #{residual_block_forward.8} parent=58 // pred_check_branch
        %188 = sbr.rel (0) target = $region93
      $region92: #{residual_block_forward.8} parent=58 // pred_region
        %189 = vsyncadd %s121, 1792
      $region93: #{residual_block_forward.8} parent=58 // pred_fallthru
        _
    $region59: #{residual_block_forward.8} parent=54 // pred_fallthru
      _
    %s190 = smul.u32 0, 200
    %s191 = smul.u32 4, 28
    %s192 = smul.u32 %s191, 1
    %s193 = sshll.u32 %s192, 4
    %194 = dma.done [#allocation5], %s193
    %v195 = vld [vmem:[#allocation2] sm:$0xff]
    %v196 = vld [vmem:[#allocation2 + $0x8] sm:$0xff]
    %v197 = vld [vmem:[#allocation2 + $0x10] sm:$0xff]
    %v198 = vld [vmem:[#allocation2 + $0x18] sm:$0xff]
    %v199 = vld [vmem:[#allocation2 + $0x20] sm:$0xff]
    %v200 = vld [vmem:[#allocation2 + $0x28] sm:$0xff]
    %v201 = vld [vmem:[#allocation2 + $0x30] sm:$0xff]
    %v202 = vld [vmem:[#allocation2 + $0x38] sm:$0xff]
    %v203 = vld [vmem:[#allocation2 + $0x40] sm:$0xff]
    %v204 = vld [vmem:[#allocation2 + $0x48] sm:$0xff]
    %v205 = vld [vmem:[#allocation2 + $0x50] sm:$0xff]
    %v206 = vld [vmem:[#allocation2 + $0x58] sm:$0xff]
    %v207 = vld [vmem:[#allocation2 + $0x60] sm:$0xf]
    %v221 = vunpack.c.l.b16 %v195
    %v222 = vunpack.c.h.b16 %v195
    %v223 = vunpack.c.l.b16 %v196
    %v224 = vunpack.c.h.b16 %v196
    %v225 = vunpack.c.l.b16 %v197
    %v226 = vunpack.c.h.b16 %v197
    %v227 = vunpack.c.l.b16 %v198
    %v228 = vunpack.c.h.b16 %v198
    %v229 = vunpack.c.l.b16 %v199
    %v230 = vunpack.c.h.b16 %v199
    %v231 = vunpack.c.l.b16 %v200
    %v232 = vunpack.c.h.b16 %v200
    %v233 = vunpack.c.l.b16 %v201
    %v234 = vunpack.c.h.b16 %v201
    %v235 = vunpack.c.l.b16 %v202
    %v236 = vunpack.c.h.b16 %v202
    %v237 = vunpack.c.l.b16 %v203
    %v238 = vunpack.c.h.b16 %v203
    %v239 = vunpack.c.l.b16 %v204
    %v240 = vunpack.c.h.b16 %v204
    %v241 = vunpack.c.l.b16 %v205
    %v242 = vunpack.c.h.b16 %v205
    %v243 = vunpack.c.l.b16 %v206
    %v244 = vunpack.c.h.b16 %v206
    %v245 = vunpack.c.l.b16 %v207
    %v246 = vpack.c.b16 %v221, %v221
    %v247 = vpack.c.b16 %v222, %v222
    %v248 = vpack.c.b16 %v223, %v223
    %v249 = vpack.c.b16 %v224, %v224
    %v250 = vpack.c.b16 %v225, %v225
    %v251 = vpack.c.b16 %v226, %v226
    %v252 = vpack.c.b16 %v227, %v227
    %v253 = vpack.c.b16 %v228, %v228
    %v254 = vpack.c.b16 %v229, %v229
    %v255 = vpack.c.b16 %v230, %v230
    %v256 = vpack.c.b16 %v231, %v231
    %v257 = vpack.c.b16 %v232, %v232
    %v258 = vpack.c.b16 %v233, %v233
    %v259 = vpack.c.b16 %v234, %v234
    %v260 = vpack.c.b16 %v235, %v235
    %v261 = vpack.c.b16 %v236, %v236
    %v262 = vpack.c.b16 %v237, %v237
    %v263 = vpack.c.b16 %v238, %v238
    %v264 = vpack.c.b16 %v239, %v239
    %v265 = vpack.c.b16 %v240, %v240
    %v266 = vpack.c.b16 %v241, %v241
    %v267 = vpack.c.b16 %v242, %v242
    %v268 = vpack.c.b16 %v243, %v243
    %v269 = vpack.c.b16 %v244, %v244
    %v270 = vpack.c.b16 %v245, %v245
    %296 = vst [vmem:[#allocation4] sm:$0xf] %v246
    %297 = vst [vmem:[#allocation4 + $0x24] sm:$0xf] %v247
    %298 = vst [vmem:[#allocation4 + $0x48] sm:$0xf] %v248
    %299 = vst [vmem:[#allocation4 + $0x6c] sm:$0xf] %v249
    %300 = vst [vmem:[#allocation4 + $0x90] sm:$0xf] %v250
    %301 = vst [vmem:[#allocation4 + $0xb4] sm:$0xf] %v251
    %302 = vst [vmem:[#allocation4 + $0xd8] sm:$0xf] %v252
    %303 = vst [vmem:[#allocation4 + $0xfc] sm:$0xf] %v253
    %304 = vst [vmem:[#allocation4 + $0x120] sm:$0xf] %v254
    %305 = vst [vmem:[#allocation4 + $0x144] sm:$0xf] %v255
    %306 = vst [vmem:[#allocation4 + $0x168] sm:$0xf] %v256
    %307 = vst [vmem:[#allocation4 + $0x18c] sm:$0xf] %v257
    %308 = vst [vmem:[#allocation4 + $0x1b0] sm:$0xf] %v258
    %309 = vst [vmem:[#allocation4 + $0x1d4] sm:$0xf] %v259
    %310 = vst [vmem:[#allocation4 + $0x1f8] sm:$0xf] %v260
    %311 = vst [vmem:[#allocation4 + $0x21c] sm:$0xf] %v261
    %312 = vst [vmem:[#allocation4 + $0x240] sm:$0xf] %v262
    %313 = vst [vmem:[#allocation4 + $0x264] sm:$0xf] %v263
    %314 = vst [vmem:[#allocation4 + $0x288] sm:$0xf] %v264
    %315 = vst [vmem:[#allocation4 + $0x2ac] sm:$0xf] %v265
    %316 = vst [vmem:[#allocation4 + $0x2d0] sm:$0xf] %v266
    %317 = vst [vmem:[#allocation4 + $0x2f4] sm:$0xf] %v267
    %318 = vst [vmem:[#allocation4 + $0x318] sm:$0xf] %v268
    %319 = vst [vmem:[#allocation4 + $0x33c] sm:$0xf] %v269
    %320 = vst [vmem:[#allocation4 + $0x360] sm:$0xf] %v270
    %v321 = vld [vmem:[#allocation2] sm:$0xff]
    %v322 = vld [vmem:[#allocation2 + $0x8] sm:$0xff]
    %v323 = vld [vmem:[#allocation2 + $0x10] sm:$0xff]
    %v324 = vld [vmem:[#allocation2 + $0x18] sm:$0xff]
    %v325 = vld [vmem:[#allocation2 + $0x20] sm:$0xff]
    %v326 = vld [vmem:[#allocation2 + $0x28] sm:$0xff]
    %v327 = vld [vmem:[#allocation2 + $0x30] sm:$0xff]
    %v328 = vld [vmem:[#allocation2 + $0x38] sm:$0xff]
    %v329 = vld [vmem:[#allocation2 + $0x40] sm:$0xff]
    %v330 = vld [vmem:[#allocation2 + $0x48] sm:$0xff]
    %v331 = vld [vmem:[#allocation2 + $0x50] sm:$0xff]
    %v332 = vld [vmem:[#allocation2 + $0x58] sm:$0xff]
    %v333 = vld [vmem:[#allocation2 + $0x60] sm:$0x1f]
    %v347 = vunpack.c.l.b16 %v321
    %v348 = vunpack.c.h.b16 %v321
    %v349 = vunpack.c.l.b16 %v322
    %v350 = vunpack.c.h.b16 %v322
    %v351 = vunpack.c.l.b16 %v323
    %v352 = vunpack.c.h.b16 %v323
    %v353 = vunpack.c.l.b16 %v324
    %v354 = vunpack.c.h.b16 %v324
    %v355 = vunpack.c.l.b16 %v325
    %v356 = vunpack.c.h.b16 %v325
    %v357 = vunpack.c.l.b16 %v326
    %v358 = vunpack.c.h.b16 %v326
    %v359 = vunpack.c.l.b16 %v327
    %v360 = vunpack.c.h.b16 %v327
    %v361 = vunpack.c.l.b16 %v328
    %v362 = vunpack.c.h.b16 %v328
    %v363 = vunpack.c.l.b16 %v329
    %v364 = vunpack.c.h.b16 %v329
    %v365 = vunpack.c.l.b16 %v330
    %v366 = vunpack.c.h.b16 %v330
    %v367 = vunpack.c.l.b16 %v331
    %v368 = vunpack.c.h.b16 %v331
    %v369 = vunpack.c.l.b16 %v332
    %v370 = vunpack.c.h.b16 %v332
    %v371 = vunpack.c.l.b16 %v333
    %v372 = vunpack.c.h.b16 %v333
    %v373 = vpack.c.b16 %v347, %v347
    %v374 = vpack.c.b16 %v348, %v348
    %v375 = vpack.c.b16 %v349, %v349
    %v376 = vpack.c.b16 %v350, %v350
    %v377 = vpack.c.b16 %v351, %v351
    %v378 = vpack.c.b16 %v352, %v352
    %v379 = vpack.c.b16 %v353, %v353
    %v380 = vpack.c.b16 %v354, %v354
    %v381 = vpack.c.b16 %v355, %v355
    %v382 = vpack.c.b16 %v356, %v356
    %v383 = vpack.c.b16 %v357, %v357
    %v384 = vpack.c.b16 %v358, %v358
    %v385 = vpack.c.b16 %v359, %v359
    %v386 = vpack.c.b16 %v360, %v360
    %v387 = vpack.c.b16 %v361, %v361
    %v388 = vpack.c.b16 %v362, %v362
    %v389 = vpack.c.b16 %v363, %v363
    %v390 = vpack.c.b16 %v364, %v364
    %v391 = vpack.c.b16 %v365, %v365
    %v392 = vpack.c.b16 %v366, %v366
    %v393 = vpack.c.b16 %v367, %v367
    %v394 = vpack.c.b16 %v368, %v368
    %v395 = vpack.c.b16 %v369, %v369
    %v396 = vpack.c.b16 %v370, %v370
    %v397 = vpack.c.b16 %v371, %v371
    %v398 = vpack.c.b16 %v372, %v372
    %vm399 = vsmask.f32 3328
    %vm400 = vsmask.f32 7440
    %vm401 = vmor %vm399, %vm400
    %v403 = vshrl.u32 %v373, 16
    %v405 = vrot.slane %v403, 4
    %v406 = vshll.u32 %v373, 16
    %v408 = vrot.slane %v406, 5
    %v409 = vor.u32 %v405, %v408
    %v410 = vrot.slane %v409, 4
    %v412 = vshll.u32 %v374, 16
    %v414 = vrot.slane %v412, 5
    %v415 = vsel %vm401, %v410, %v414
    %v416 = vshrl.u32 %v374, 16
    %v418 = vrot.slane %v416, 4
    %v419 = vor.u32 %v418, %v414
    %v420 = vrot.slane %v419, 4
    %v422 = vshll.u32 %v375, 16
    %v424 = vrot.slane %v422, 5
    %v425 = vsel %vm401, %v420, %v424
    %v426 = vshrl.u32 %v375, 16
    %v428 = vrot.slane %v426, 4
    %v429 = vor.u32 %v428, %v424
    %v430 = vrot.slane %v429, 4
    %v432 = vshll.u32 %v376, 16
    %v434 = vrot.slane %v432, 5
    %v435 = vsel %vm401, %v430, %v434
    %v436 = vshrl.u32 %v376, 16
    %v438 = vrot.slane %v436, 4
    %v439 = vor.u32 %v438, %v434
    %v440 = vrot.slane %v439, 4
    %v442 = vshll.u32 %v377, 16
    %v444 = vrot.slane %v442, 5
    %v445 = vsel %vm401, %v440, %v444
    %v446 = vshrl.u32 %v377, 16
    %v448 = vrot.slane %v446, 4
    %v449 = vor.u32 %v448, %v444
    %v450 = vrot.slane %v449, 4
    %v452 = vshll.u32 %v378, 16
    %v454 = vrot.slane %v452, 5
    %v455 = vsel %vm401, %v450, %v454
    %v456 = vshrl.u32 %v378, 16
    %v458 = vrot.slane %v456, 4
    %v459 = vor.u32 %v458, %v454
    %v460 = vrot.slane %v459, 4
    %v462 = vshll.u32 %v379, 16
    %v464 = vrot.slane %v462, 5
    %v465 = vsel %vm401, %v460, %v464
    %v466 = vshrl.u32 %v379, 16
    %v468 = vrot.slane %v466, 4
    %v469 = vor.u32 %v468, %v464
    %v470 = vrot.slane %v469, 4
    %v472 = vshll.u32 %v380, 16
    %v474 = vrot.slane %v472, 5
    %v475 = vsel %vm401, %v470, %v474
    %v476 = vshrl.u32 %v380, 16
    %v478 = vrot.slane %v476, 4
    %v479 = vor.u32 %v478, %v474
    %v480 = vrot.slane %v479, 4
    %v482 = vshll.u32 %v381, 16
    %v484 = vrot.slane %v482, 5
    %v485 = vsel %vm401, %v480, %v484
    %v486 = vshrl.u32 %v381, 16
    %v488 = vrot.slane %v486, 4
    %v489 = vor.u32 %v488, %v484
    %v490 = vrot.slane %v489, 4
    %v492 = vshll.u32 %v382, 16
    %v494 = vrot.slane %v492, 5
    %v495 = vsel %vm401, %v490, %v494
    %v496 = vshrl.u32 %v382, 16
    %v498 = vrot.slane %v496, 4
    %v499 = vor.u32 %v498, %v494
    %v500 = vrot.slane %v499, 4
    %v502 = vshll.u32 %v383, 16
    %v504 = vrot.slane %v502, 5
    %v505 = vsel %vm401, %v500, %v504
    %v506 = vshrl.u32 %v383, 16
    %v508 = vrot.slane %v506, 4
    %v509 = vor.u32 %v508, %v504
    %v510 = vrot.slane %v509, 4
    %v512 = vshll.u32 %v384, 16
    %v514 = vrot.slane %v512, 5
    %v515 = vsel %vm401, %v510, %v514
    %v516 = vshrl.u32 %v384, 16
    %v518 = vrot.slane %v516, 4
    %v519 = vor.u32 %v518, %v514
    %v520 = vrot.slane %v519, 4
    %v522 = vshll.u32 %v385, 16
    %v524 = vrot.slane %v522, 5
    %v525 = vsel %vm401, %v520, %v524
    %v526 = vshrl.u32 %v385, 16
    %v528 = vrot.slane %v526, 4
    %v529 = vor.u32 %v528, %v524
    %v530 = vrot.slane %v529, 4
    %v532 = vshll.u32 %v386, 16
    %v534 = vrot.slane %v532, 5
    %v535 = vsel %vm401, %v530, %v534
    %v536 = vshrl.u32 %v386, 16
    %v538 = vrot.slane %v536, 4
    %v539 = vor.u32 %v538, %v534
    %v540 = vrot.slane %v539, 4
    %v542 = vshll.u32 %v387, 16
    %v544 = vrot.slane %v542, 5
    %v545 = vsel %vm401, %v540, %v544
    %v546 = vshrl.u32 %v387, 16
    %v548 = vrot.slane %v546, 4
    %v549 = vor.u32 %v548, %v544
    %v550 = vrot.slane %v549, 4
    %v552 = vshll.u32 %v388, 16
    %v554 = vrot.slane %v552, 5
    %v555 = vsel %vm401, %v550, %v554
    %v556 = vshrl.u32 %v388, 16
    %v558 = vrot.slane %v556, 4
    %v559 = vor.u32 %v558, %v554
    %v560 = vrot.slane %v559, 4
    %v562 = vshll.u32 %v389, 16
    %v564 = vrot.slane %v562, 5
    %v565 = vsel %vm401, %v560, %v564
    %v566 = vshrl.u32 %v389, 16
    %v568 = vrot.slane %v566, 4
    %v569 = vor.u32 %v568, %v564
    %v570 = vrot.slane %v569, 4
    %v572 = vshll.u32 %v390, 16
    %v574 = vrot.slane %v572, 5
    %v575 = vsel %vm401, %v570, %v574
    %v576 = vshrl.u32 %v390, 16
    %v578 = vrot.slane %v576, 4
    %v579 = vor.u32 %v578, %v574
    %v580 = vrot.slane %v579, 4
    %v582 = vshll.u32 %v391, 16
    %v584 = vrot.slane %v582, 5
    %v585 = vsel %vm401, %v580, %v584
    %v586 = vshrl.u32 %v391, 16
    %v588 = vrot.slane %v586, 4
    %v589 = vor.u32 %v588, %v584
    %v590 = vrot.slane %v589, 4
    %v592 = vshll.u32 %v392, 16
    %v594 = vrot.slane %v592, 5
    %v595 = vsel %vm401, %v590, %v594
    %v596 = vshrl.u32 %v392, 16
    %v598 = vrot.slane %v596, 4
    %v599 = vor.u32 %v598, %v594
    %v600 = vrot.slane %v599, 4
    %v602 = vshll.u32 %v393, 16
    %v604 = vrot.slane %v602, 5
    %v605 = vsel %vm401, %v600, %v604
    %v606 = vshrl.u32 %v393, 16
    %v608 = vrot.slane %v606, 4
    %v609 = vor.u32 %v608, %v604
    %v610 = vrot.slane %v609, 4
    %v612 = vshll.u32 %v394, 16
    %v614 = vrot.slane %v612, 5
    %v615 = vsel %vm401, %v610, %v614
    %v616 = vshrl.u32 %v394, 16
    %v618 = vrot.slane %v616, 4
    %v619 = vor.u32 %v618, %v614
    %v620 = vrot.slane %v619, 4
    %v622 = vshll.u32 %v395, 16
    %v624 = vrot.slane %v622, 5
    %v625 = vsel %vm401, %v620, %v624
    %v626 = vshrl.u32 %v395, 16
    %v628 = vrot.slane %v626, 4
    %v629 = vor.u32 %v628, %v624
    %v630 = vrot.slane %v629, 4
    %v632 = vshll.u32 %v396, 16
    %v634 = vrot.slane %v632, 5
    %v635 = vsel %vm401, %v630, %v634
    %v636 = vshrl.u32 %v396, 16
    %v638 = vrot.slane %v636, 4
    %v639 = vor.u32 %v638, %v634
    %v640 = vrot.slane %v639, 4
    %v642 = vshll.u32 %v397, 16
    %v644 = vrot.slane %v642, 5
    %v645 = vsel %vm401, %v640, %v644
    %v646 = vshrl.u32 %v397, 16
    %v648 = vrot.slane %v646, 4
    %v649 = vor.u32 %v648, %v644
    %v650 = vrot.slane %v649, 4
    %v652 = vshll.u32 %v398, 16
    %v654 = vrot.slane %v652, 5
    %v655 = vsel %vm401, %v650, %v654
    %681 = vst [vmem:[#allocation4 + $0x4] sm:$0xf] %v415
    %682 = vst [vmem:[#allocation4 + $0x28] sm:$0xf] %v425
    %683 = vst [vmem:[#allocation4 + $0x4c] sm:$0xf] %v435
    %684 = vst [vmem:[#allocation4 + $0x70] sm:$0xf] %v445
    %685 = vst [vmem:[#allocation4 + $0x94] sm:$0xf] %v455
    %686 = vst [vmem:[#allocation4 + $0xb8] sm:$0xf] %v465
    %687 = vst [vmem:[#allocation4 + $0xdc] sm:$0xf] %v475
    %688 = vst [vmem:[#allocation4 + $0x100] sm:$0xf] %v485
    %689 = vst [vmem:[#allocation4 + $0x124] sm:$0xf] %v495
    %690 = vst [vmem:[#allocation4 + $0x148] sm:$0xf] %v505
    %691 = vst [vmem:[#allocation4 + $0x16c] sm:$0xf] %v515
    %692 = vst [vmem:[#allocation4 + $0x190] sm:$0xf] %v525
    %693 = vst [vmem:[#allocation4 + $0x1b4] sm:$0xf] %v535
    %694 = vst [vmem:[#allocation4 + $0x1d8] sm:$0xf] %v545
    %695 = vst [vmem:[#allocation4 + $0x1fc] sm:$0xf] %v555
    %696 = vst [vmem:[#allocation4 + $0x220] sm:$0xf] %v565
    %697 = vst [vmem:[#allocation4 + $0x244] sm:$0xf] %v575
    %698 = vst [vmem:[#allocation4 + $0x268] sm:$0xf] %v585
    %699 = vst [vmem:[#allocation4 + $0x28c] sm:$0xf] %v595
    %700 = vst [vmem:[#allocation4 + $0x2b0] sm:$0xf] %v605
    %701 = vst [vmem:[#allocation4 + $0x2d4] sm:$0xf] %v615
    %702 = vst [vmem:[#allocation4 + $0x2f8] sm:$0xf] %v625
    %703 = vst [vmem:[#allocation4 + $0x31c] sm:$0xf] %v635
    %704 = vst [vmem:[#allocation4 + $0x340] sm:$0xf] %v645
    %705 = vst [vmem:[#allocation4 + $0x364] sm:$0xf] %v655
    %v706 = vld [vmem:[#allocation2] sm:$0xfe]
    %v707 = vld [vmem:[#allocation2 + $0x8] sm:$0xff]
    %v708 = vld [vmem:[#allocation2 + $0x10] sm:$0xff]
    %v709 = vld [vmem:[#allocation2 + $0x18] sm:$0xff]
    %v710 = vld [vmem:[#allocation2 + $0x20] sm:$0xff]
    %v711 = vld [vmem:[#allocation2 + $0x28] sm:$0xff]
    %v712 = vld [vmem:[#allocation2 + $0x30] sm:$0xff]
    %v713 = vld [vmem:[#allocation2 + $0x38] sm:$0xff]
    %v714 = vld [vmem:[#allocation2 + $0x40] sm:$0xff]
    %v715 = vld [vmem:[#allocation2 + $0x48] sm:$0xff]
    %v716 = vld [vmem:[#allocation2 + $0x50] sm:$0xff]
    %v717 = vld [vmem:[#allocation2 + $0x58] sm:$0xff]
    %v718 = vld [vmem:[#allocation2 + $0x60] sm:$0x1f]
    %v732 = vunpack.c.l.b16 %v706
    %v733 = vunpack.c.h.b16 %v706
    %v734 = vunpack.c.l.b16 %v707
    %v735 = vunpack.c.h.b16 %v707
    %v736 = vunpack.c.l.b16 %v708
    %v737 = vunpack.c.h.b16 %v708
    %v738 = vunpack.c.l.b16 %v709
    %v739 = vunpack.c.h.b16 %v709
    %v740 = vunpack.c.l.b16 %v710
    %v741 = vunpack.c.h.b16 %v710
    %v742 = vunpack.c.l.b16 %v711
    %v743 = vunpack.c.h.b16 %v711
    %v744 = vunpack.c.l.b16 %v712
    %v745 = vunpack.c.h.b16 %v712
    %v746 = vunpack.c.l.b16 %v713
    %v747 = vunpack.c.h.b16 %v713
    %v748 = vunpack.c.l.b16 %v714
    %v749 = vunpack.c.h.b16 %v714
    %v750 = vunpack.c.l.b16 %v715
    %v751 = vunpack.c.h.b16 %v715
    %v752 = vunpack.c.l.b16 %v716
    %v753 = vunpack.c.h.b16 %v716
    %v754 = vunpack.c.l.b16 %v717
    %v755 = vunpack.c.h.b16 %v717
    %v756 = vunpack.c.l.b16 %v718
    %v757 = vunpack.c.h.b16 %v718
    %v758 = vpack.c.b16 %v732, %v732
    %v759 = vpack.c.b16 %v733, %v733
    %v760 = vpack.c.b16 %v734, %v734
    %v761 = vpack.c.b16 %v735, %v735
    %v762 = vpack.c.b16 %v736, %v736
    %v763 = vpack.c.b16 %v737, %v737
    %v764 = vpack.c.b16 %v738, %v738
    %v765 = vpack.c.b16 %v739, %v739
    %v766 = vpack.c.b16 %v740, %v740
    %v767 = vpack.c.b16 %v741, %v741
    %v768 = vpack.c.b16 %v742, %v742
    %v769 = vpack.c.b16 %v743, %v743
    %v770 = vpack.c.b16 %v744, %v744
    %v771 = vpack.c.b16 %v745, %v745
    %v772 = vpack.c.b16 %v746, %v746
    %v773 = vpack.c.b16 %v747, %v747
    %v774 = vpack.c.b16 %v748, %v748
    %v775 = vpack.c.b16 %v749, %v749
    %v776 = vpack.c.b16 %v750, %v750
    %v777 = vpack.c.b16 %v751, %v751
    %v778 = vpack.c.b16 %v752, %v752
    %v779 = vpack.c.b16 %v753, %v753
    %v780 = vpack.c.b16 %v754, %v754
    %v781 = vpack.c.b16 %v755, %v755
    %v782 = vpack.c.b16 %v756, %v756
    %v783 = vpack.c.b16 %v757, %v757
    %vm784 = vcmask 1042432
    %vm785 = vcmask 1046532
    %vm786 = vmor %vm784, %vm785
    %v787 = vrot.slane %v758, 5
    %v788 = vrot.slane %v787, 4
    %v789 = vrot.slane %v759, 5
    %v790 = vsel %vm786, %v788, %v789
    %v791 = vrot.slane %v789, 4
    %v792 = vrot.slane %v760, 5
    %v793 = vsel %vm786, %v791, %v792
    %v794 = vrot.slane %v792, 4
    %v795 = vrot.slane %v761, 5
    %v796 = vsel %vm786, %v794, %v795
    %v797 = vrot.slane %v795, 4
    %v798 = vrot.slane %v762, 5
    %v799 = vsel %vm786, %v797, %v798
    %v800 = vrot.slane %v798, 4
    %v801 = vrot.slane %v763, 5
    %v802 = vsel %vm786, %v800, %v801
    %v803 = vrot.slane %v801, 4
    %v804 = vrot.slane %v764, 5
    %v805 = vsel %vm786, %v803, %v804
    %v806 = vrot.slane %v804, 4
    %v807 = vrot.slane %v765, 5
    %v808 = vsel %vm786, %v806, %v807
    %v809 = vrot.slane %v807, 4
    %v810 = vrot.slane %v766, 5
    %v811 = vsel %vm786, %v809, %v810
    %v812 = vrot.slane %v810, 4
    %v813 = vrot.slane %v767, 5
    %v814 = vsel %vm786, %v812, %v813
    %v815 = vrot.slane %v813, 4
    %v816 = vrot.slane %v768, 5
    %v817 = vsel %vm786, %v815, %v816
    %v818 = vrot.slane %v816, 4
    %v819 = vrot.slane %v769, 5
    %v820 = vsel %vm786, %v818, %v819
    %v821 = vrot.slane %v819, 4
    %v822 = vrot.slane %v770, 5
    %v823 = vsel %vm786, %v821, %v822
    %v824 = vrot.slane %v822, 4
    %v825 = vrot.slane %v771, 5
    %v826 = vsel %vm786, %v824, %v825
    %v827 = vrot.slane %v825, 4
    %v828 = vrot.slane %v772, 5
    %v829 = vsel %vm786, %v827, %v828
    %v830 = vrot.slane %v828, 4
    %v831 = vrot.slane %v773, 5
    %v832 = vsel %vm786, %v830, %v831
    %v833 = vrot.slane %v831, 4
    %v834 = vrot.slane %v774, 5
    %v835 = vsel %vm786, %v833, %v834
    %v836 = vrot.slane %v834, 4
    %v837 = vrot.slane %v775, 5
    %v838 = vsel %vm786, %v836, %v837
    %v839 = vrot.slane %v837, 4
    %v840 = vrot.slane %v776, 5
    %v841 = vsel %vm786, %v839, %v840
    %v842 = vrot.slane %v840, 4
    %v843 = vrot.slane %v777, 5
    %v844 = vsel %vm786, %v842, %v843
    %v845 = vrot.slane %v843, 4
    %v846 = vrot.slane %v778, 5
    %v847 = vsel %vm786, %v845, %v846
    %v848 = vrot.slane %v846, 4
    %v849 = vrot.slane %v779, 5
    %v850 = vsel %vm786, %v848, %v849
    %v851 = vrot.slane %v849, 4
    %v852 = vrot.slane %v780, 5
    %v853 = vsel %vm786, %v851, %v852
    %v854 = vrot.slane %v852, 4
    %v855 = vrot.slane %v781, 5
    %v856 = vsel %vm786, %v854, %v855
    %v857 = vrot.slane %v855, 4
    %v858 = vrot.slane %v782, 5
    %v859 = vsel %vm786, %v857, %v858
    %v860 = vrot.slane %v858, 4
    %v861 = vrot.slane %v783, 5
    %v862 = vsel %vm786, %v860, %v861
    %888 = vst [vmem:[#allocation4 + $0x8] sm:$0xf] %v790
    %889 = vst [vmem:[#allocation4 + $0x2c] sm:$0xf] %v793
    %890 = vst [vmem:[#allocation4 + $0x50] sm:$0xf] %v796
    %891 = vst [vmem:[#allocation4 + $0x74] sm:$0xf] %v799
    %892 = vst [vmem:[#allocation4 + $0x98] sm:$0xf] %v802
    %893 = vst [vmem:[#allocation4 + $0xbc] sm:$0xf] %v805
    %894 = vst [vmem:[#allocation4 + $0xe0] sm:$0xf] %v808
    %895 = vst [vmem:[#allocation4 + $0x104] sm:$0xf] %v811
    %896 = vst [vmem:[#allocation4 + $0x128] sm:$0xf] %v814
    %897 = vst [vmem:[#allocation4 + $0x14c] sm:$0xf] %v817
    %898 = vst [vmem:[#allocation4 + $0x170] sm:$0xf] %v820
    %899 = vst [vmem:[#allocation4 + $0x194] sm:$0xf] %v823
    %900 = vst [vmem:[#allocation4 + $0x1b8] sm:$0xf] %v826
    %901 = vst [vmem:[#allocation4 + $0x1dc] sm:$0xf] %v829
    %902 = vst [vmem:[#allocation4 + $0x200] sm:$0xf] %v832
    %903 = vst [vmem:[#allocation4 + $0x224] sm:$0xf] %v835
    %904 = vst [vmem:[#allocation4 + $0x248] sm:$0xf] %v838
    %905 = vst [vmem:[#allocation4 + $0x26c] sm:$0xf] %v841
    %906 = vst [vmem:[#allocation4 + $0x290] sm:$0xf] %v844
    %907 = vst [vmem:[#allocation4 + $0x2b4] sm:$0xf] %v847
    %908 = vst [vmem:[#allocation4 + $0x2d8] sm:$0xf] %v850
    %909 = vst [vmem:[#allocation4 + $0x2fc] sm:$0xf] %v853
    %910 = vst [vmem:[#allocation4 + $0x320] sm:$0xf] %v856
    %911 = vst [vmem:[#allocation4 + $0x344] sm:$0xf] %v859
    %912 = vst [vmem:[#allocation4 + $0x368] sm:$0xf] %v862
    %v913 = vld [vmem:[#allocation2] sm:$0xe0]
    %v914 = vld [vmem:[#allocation2 + $0x8] sm:$0xff]
    %v915 = vld [vmem:[#allocation2 + $0x10] sm:$0xff]
    %v916 = vld [vmem:[#allocation2 + $0x18] sm:$0xff]
    %v917 = vld [vmem:[#allocation2 + $0x20] sm:$0xff]
    %v918 = vld [vmem:[#allocation2 + $0x28] sm:$0xff]
    %v919 = vld [vmem:[#allocation2 + $0x30] sm:$0xff]
    %v920 = vld [vmem:[#allocation2 + $0x38] sm:$0xff]
    %v921 = vld [vmem:[#allocation2 + $0x40] sm:$0xff]
    %v922 = vld [vmem:[#allocation2 + $0x48] sm:$0xff]
    %v923 = vld [vmem:[#allocation2 + $0x50] sm:$0xff]
    %v924 = vld [vmem:[#allocation2 + $0x58] sm:$0xff]
    %v925 = vld [vmem:[#allocation2 + $0x60] sm:$0xff]
    %v926 = vld [vmem:[#allocation2 + $0x68] sm:$0x1]
    %v941 = vunpack.c.h.b16 %v913
    %v942 = vunpack.c.l.b16 %v914
    %v943 = vunpack.c.h.b16 %v914
    %v944 = vunpack.c.l.b16 %v915
    %v945 = vunpack.c.h.b16 %v915
    %v946 = vunpack.c.l.b16 %v916
    %v947 = vunpack.c.h.b16 %v916
    %v948 = vunpack.c.l.b16 %v917
    %v949 = vunpack.c.h.b16 %v917
    %v950 = vunpack.c.l.b16 %v918
    %v951 = vunpack.c.h.b16 %v918
    %v952 = vunpack.c.l.b16 %v919
    %v953 = vunpack.c.h.b16 %v919
    %v954 = vunpack.c.l.b16 %v920
    %v955 = vunpack.c.h.b16 %v920
    %v956 = vunpack.c.l.b16 %v921
    %v957 = vunpack.c.h.b16 %v921
    %v958 = vunpack.c.l.b16 %v922
    %v959 = vunpack.c.h.b16 %v922
    %v960 = vunpack.c.l.b16 %v923
    %v961 = vunpack.c.h.b16 %v923
    %v962 = vunpack.c.l.b16 %v924
    %v963 = vunpack.c.h.b16 %v924
    %v964 = vunpack.c.l.b16 %v925
    %v965 = vunpack.c.h.b16 %v925
    %v966 = vunpack.c.l.b16 %v926
    %v967 = vpack.c.b16 %v941, %v941
    %v968 = vpack.c.b16 %v942, %v942
    %v969 = vpack.c.b16 %v943, %v943
    %v970 = vpack.c.b16 %v944, %v944
    %v971 = vpack.c.b16 %v945, %v945
    %v972 = vpack.c.b16 %v946, %v946
    %v973 = vpack.c.b16 %v947, %v947
    %v974 = vpack.c.b16 %v948, %v948
    %v975 = vpack.c.b16 %v949, %v949
    %v976 = vpack.c.b16 %v950, %v950
    %v977 = vpack.c.b16 %v951, %v951
    %v978 = vpack.c.b16 %v952, %v952
    %v979 = vpack.c.b16 %v953, %v953
    %v980 = vpack.c.b16 %v954, %v954
    %v981 = vpack.c.b16 %v955, %v955
    %v982 = vpack.c.b16 %v956, %v956
    %v983 = vpack.c.b16 %v957, %v957
    %v984 = vpack.c.b16 %v958, %v958
    %v985 = vpack.c.b16 %v959, %v959
    %v986 = vpack.c.b16 %v960, %v960
    %v987 = vpack.c.b16 %v961, %v961
    %v988 = vpack.c.b16 %v962, %v962
    %v989 = vpack.c.b16 %v963, %v963
    %v990 = vpack.c.b16 %v964, %v964
    %v991 = vpack.c.b16 %v965, %v965
    %v992 = vpack.c.b16 %v966, %v966
    %v993 = vrot.slane %v967, 5
    %v994 = vrot.slane %v993, 4
    %v995 = vrot.slane %v968, 5
    %v996 = vsel %vm786, %v994, %v995
    %v997 = vrot.slane %v995, 4
    %v998 = vrot.slane %v969, 5
    %v999 = vsel %vm786, %v997, %v998
    %v1000 = vrot.slane %v998, 4
    %v1001 = vrot.slane %v970, 5
    %v1002 = vsel %vm786, %v1000, %v1001
    %v1003 = vrot.slane %v1001, 4
    %v1004 = vrot.slane %v971, 5
    %v1005 = vsel %vm786, %v1003, %v1004
    %v1006 = vrot.slane %v1004, 4
    %v1007 = vrot.slane %v972, 5
    %v1008 = vsel %vm786, %v1006, %v1007
    %v1009 = vrot.slane %v1007, 4
    %v1010 = vrot.slane %v973, 5
    %v1011 = vsel %vm786, %v1009, %v1010
    %v1012 = vrot.slane %v1010, 4
    %v1013 = vrot.slane %v974, 5
    %v1014 = vsel %vm786, %v1012, %v1013
    %v1015 = vrot.slane %v1013, 4
    %v1016 = vrot.slane %v975, 5
    %v1017 = vsel %vm786, %v1015, %v1016
    %v1018 = vrot.slane %v1016, 4
    %v1019 = vrot.slane %v976, 5
    %v1020 = vsel %vm786, %v1018, %v1019
    %v1021 = vrot.slane %v1019, 4
    %v1022 = vrot.slane %v977, 5
    %v1023 = vsel %vm786, %v1021, %v1022
    %v1024 = vrot.slane %v1022, 4
    %v1025 = vrot.slane %v978, 5
    %v1026 = vsel %vm786, %v1024, %v1025
    %v1027 = vrot.slane %v1025, 4
    %v1028 = vrot.slane %v979, 5
    %v1029 = vsel %vm786, %v1027, %v1028
    %v1030 = vrot.slane %v1028, 4
    %v1031 = vrot.slane %v980, 5
    %v1032 = vsel %vm786, %v1030, %v1031
    %v1033 = vrot.slane %v1031, 4
    %v1034 = vrot.slane %v981, 5
    %v1035 = vsel %vm786, %v1033, %v1034
    %v1036 = vrot.slane %v1034, 4
    %v1037 = vrot.slane %v982, 5
    %v1038 = vsel %vm786, %v1036, %v1037
    %v1039 = vrot.slane %v1037, 4
    %v1040 = vrot.slane %v983, 5
    %v1041 = vsel %vm786, %v1039, %v1040
    %v1042 = vrot.slane %v1040, 4
    %v1043 = vrot.slane %v984, 5
    %v1044 = vsel %vm786, %v1042, %v1043
    %v1045 = vrot.slane %v1043, 4
    %v1046 = vrot.slane %v985, 5
    %v1047 = vsel %vm786, %v1045, %v1046
    %v1048 = vrot.slane %v1046, 4
    %v1049 = vrot.slane %v986, 5
    %v1050 = vsel %vm786, %v1048, %v1049
    %v1051 = vrot.slane %v1049, 4
    %v1052 = vrot.slane %v987, 5
    %v1053 = vsel %vm786, %v1051, %v1052
    %v1054 = vrot.slane %v1052, 4
    %v1055 = vrot.slane %v988, 5
    %v1056 = vsel %vm786, %v1054, %v1055
    %v1057 = vrot.slane %v1055, 4
    %v1058 = vrot.slane %v989, 5
    %v1059 = vsel %vm786, %v1057, %v1058
    %v1060 = vrot.slane %v1058, 4
    %v1061 = vrot.slane %v990, 5
    %v1062 = vsel %vm786, %v1060, %v1061
    %v1063 = vrot.slane %v1061, 4
    %v1064 = vrot.slane %v991, 5
    %v1065 = vsel %vm786, %v1063, %v1064
    %v1066 = vrot.slane %v1064, 4
    %v1067 = vrot.slane %v992, 5
    %v1068 = vsel %vm786, %v1066, %v1067
    %1094 = vst [vmem:[#allocation4 + $0xc] sm:$0xf] %v996
    %1095 = vst [vmem:[#allocation4 + $0x30] sm:$0xf] %v999
    %1096 = vst [vmem:[#allocation4 + $0x54] sm:$0xf] %v1002
    %1097 = vst [vmem:[#allocation4 + $0x78] sm:$0xf] %v1005
    %1098 = vst [vmem:[#allocation4 + $0x9c] sm:$0xf] %v1008
    %1099 = vst [vmem:[#allocation4 + $0xc0] sm:$0xf] %v1011
    %1100 = vst [vmem:[#allocation4 + $0xe4] sm:$0xf] %v1014
    %1101 = vst [vmem:[#allocation4 + $0x108] sm:$0xf] %v1017
    %1102 = vst [vmem:[#allocation4 + $0x12c] sm:$0xf] %v1020
    %1103 = vst [vmem:[#allocation4 + $0x150] sm:$0xf] %v1023
    %1104 = vst [vmem:[#allocation4 + $0x174] sm:$0xf] %v1026
    %1105 = vst [vmem:[#allocation4 + $0x198] sm:$0xf] %v1029
    %1106 = vst [vmem:[#allocation4 + $0x1bc] sm:$0xf] %v1032
    %1107 = vst [vmem:[#allocation4 + $0x1e0] sm:$0xf] %v1035
    %1108 = vst [vmem:[#allocation4 + $0x204] sm:$0xf] %v1038
    %1109 = vst [vmem:[#allocation4 + $0x228] sm:$0xf] %v1041
    %1110 = vst [vmem:[#allocation4 + $0x24c] sm:$0xf] %v1044
    %1111 = vst [vmem:[#allocation4 + $0x270] sm:$0xf] %v1047
    %1112 = vst [vmem:[#allocation4 + $0x294] sm:$0xf] %v1050
    %1113 = vst [vmem:[#allocation4 + $0x2b8] sm:$0xf] %v1053
    %1114 = vst [vmem:[#allocation4 + $0x2dc] sm:$0xf] %v1056
    %1115 = vst [vmem:[#allocation4 + $0x300] sm:$0xf] %v1059
    %1116 = vst [vmem:[#allocation4 + $0x324] sm:$0xf] %v1062
    %1117 = vst [vmem:[#allocation4 + $0x348] sm:$0xf] %v1065
    %1118 = vst [vmem:[#allocation4 + $0x36c] sm:$0xf] %v1068
    %v1119 = vld [vmem:[#allocation2] sm:$0xe0]
    %v1120 = vld [vmem:[#allocation2 + $0x8] sm:$0xff]
    %v1121 = vld [vmem:[#allocation2 + $0x10] sm:$0xff]
    %v1122 = vld [vmem:[#allocation2 + $0x18] sm:$0xff]
    %v1123 = vld [vmem:[#allocation2 + $0x20] sm:$0xff]
    %v1124 = vld [vmem:[#allocation2 + $0x28] sm:$0xff]
    %v1125 = vld [vmem:[#allocation2 + $0x30] sm:$0xff]
    %v1126 = vld [vmem:[#allocation2 + $0x38] sm:$0xff]
    %v1127 = vld [vmem:[#allocation2 + $0x40] sm:$0xff]
    %v1128 = vld [vmem:[#allocation2 + $0x48] sm:$0xff]
    %v1129 = vld [vmem:[#allocation2 + $0x50] sm:$0xff]
    %v1130 = vld [vmem:[#allocation2 + $0x58] sm:$0xff]
    %v1131 = vld [vmem:[#allocation2 + $0x60] sm:$0xff]
    %v1132 = vld [vmem:[#allocation2 + $0x68] sm:$0x3]
    %v1147 = vunpack.c.h.b16 %v1119
    %v1148 = vunpack.c.l.b16 %v1120
    %v1149 = vunpack.c.h.b16 %v1120
    %v1150 = vunpack.c.l.b16 %v1121
    %v1151 = vunpack.c.h.b16 %v1121
    %v1152 = vunpack.c.l.b16 %v1122
    %v1153 = vunpack.c.h.b16 %v1122
    %v1154 = vunpack.c.l.b16 %v1123
    %v1155 = vunpack.c.h.b16 %v1123
    %v1156 = vunpack.c.l.b16 %v1124
    %v1157 = vunpack.c.h.b16 %v1124
    %v1158 = vunpack.c.l.b16 %v1125
    %v1159 = vunpack.c.h.b16 %v1125
    %v1160 = vunpack.c.l.b16 %v1126
    %v1161 = vunpack.c.h.b16 %v1126
    %v1162 = vunpack.c.l.b16 %v1127
    %v1163 = vunpack.c.h.b16 %v1127
    %v1164 = vunpack.c.l.b16 %v1128
    %v1165 = vunpack.c.h.b16 %v1128
    %v1166 = vunpack.c.l.b16 %v1129
    %v1167 = vunpack.c.h.b16 %v1129
    %v1168 = vunpack.c.l.b16 %v1130
    %v1169 = vunpack.c.h.b16 %v1130
    %v1170 = vunpack.c.l.b16 %v1131
    %v1171 = vunpack.c.h.b16 %v1131
    %v1172 = vunpack.c.l.b16 %v1132
    %v1173 = vpack.c.b16 %v1147, %v1147
    %v1174 = vpack.c.b16 %v1148, %v1148
    %v1175 = vpack.c.b16 %v1149, %v1149
    %v1176 = vpack.c.b16 %v1150, %v1150
    %v1177 = vpack.c.b16 %v1151, %v1151
    %v1178 = vpack.c.b16 %v1152, %v1152
    %v1179 = vpack.c.b16 %v1153, %v1153
    %v1180 = vpack.c.b16 %v1154, %v1154
    %v1181 = vpack.c.b16 %v1155, %v1155
    %v1182 = vpack.c.b16 %v1156, %v1156
    %v1183 = vpack.c.b16 %v1157, %v1157
    %v1184 = vpack.c.b16 %v1158, %v1158
    %v1185 = vpack.c.b16 %v1159, %v1159
    %v1186 = vpack.c.b16 %v1160, %v1160
    %v1187 = vpack.c.b16 %v1161, %v1161
    %v1188 = vpack.c.b16 %v1162, %v1162
    %v1189 = vpack.c.b16 %v1163, %v1163
    %v1190 = vpack.c.b16 %v1164, %v1164
    %v1191 = vpack.c.b16 %v1165, %v1165
    %v1192 = vpack.c.b16 %v1166, %v1166
    %v1193 = vpack.c.b16 %v1167, %v1167
    %v1194 = vpack.c.b16 %v1168, %v1168
    %v1195 = vpack.c.b16 %v1169, %v1169
    %v1196 = vpack.c.b16 %v1170, %v1170
    %v1197 = vpack.c.b16 %v1171, %v1171
    %v1198 = vpack.c.b16 %v1172, %v1172
    %vm1199 = vsmask.f32 2304
    %vm1200 = vsmask.f32 6416
    %vm1201 = vmor %vm1199, %vm1200
    %v1203 = vshrl.u32 %v1173, 16
    %v1205 = vrot.slane %v1203, 5
    %v1206 = vshll.u32 %v1173, 16
    %v1208 = vrot.slane %v1206, 6
    %v1209 = vor.u32 %v1205, %v1208
    %v1210 = vrot.slane %v1209, 4
    %v1212 = vshrl.u32 %v1174, 16
    %v1214 = vrot.slane %v1212, 5
    %v1215 = vshll.u32 %v1174, 16
    %v1217 = vrot.slane %v1215, 6
    %v1218 = vor.u32 %v1214, %v1217
    %v1219 = vsel %vm1201, %v1210, %v1218
    %v1220 = vrot.slane %v1218, 4
    %v1222 = vshrl.u32 %v1175, 16
    %v1224 = vrot.slane %v1222, 5
    %v1225 = vshll.u32 %v1175, 16
    %v1227 = vrot.slane %v1225, 6
    %v1228 = vor.u32 %v1224, %v1227
    %v1229 = vsel %vm1201, %v1220, %v1228
    %v1230 = vrot.slane %v1228, 4
    %v1232 = vshrl.u32 %v1176, 16
    %v1234 = vrot.slane %v1232, 5
    %v1235 = vshll.u32 %v1176, 16
    %v1237 = vrot.slane %v1235, 6
    %v1238 = vor.u32 %v1234, %v1237
    %v1239 = vsel %vm1201, %v1230, %v1238
    %v1240 = vrot.slane %v1238, 4
    %v1242 = vshrl.u32 %v1177, 16
    %v1244 = vrot.slane %v1242, 5
    %v1245 = vshll.u32 %v1177, 16
    %v1247 = vrot.slane %v1245, 6
    %v1248 = vor.u32 %v1244, %v1247
    %v1249 = vsel %vm1201, %v1240, %v1248
    %v1250 = vrot.slane %v1248, 4
    %v1252 = vshrl.u32 %v1178, 16
    %v1254 = vrot.slane %v1252, 5
    %v1255 = vshll.u32 %v1178, 16
    %v1257 = vrot.slane %v1255, 6
    %v1258 = vor.u32 %v1254, %v1257
    %v1259 = vsel %vm1201, %v1250, %v1258
    %v1260 = vrot.slane %v1258, 4
    %v1262 = vshrl.u32 %v1179, 16
    %v1264 = vrot.slane %v1262, 5
    %v1265 = vshll.u32 %v1179, 16
    %v1267 = vrot.slane %v1265, 6
    %v1268 = vor.u32 %v1264, %v1267
    %v1269 = vsel %vm1201, %v1260, %v1268
    %v1270 = vrot.slane %v1268, 4
    %v1272 = vshrl.u32 %v1180, 16
    %v1274 = vrot.slane %v1272, 5
    %v1275 = vshll.u32 %v1180, 16
    %v1277 = vrot.slane %v1275, 6
    %v1278 = vor.u32 %v1274, %v1277
    %v1279 = vsel %vm1201, %v1270, %v1278
    %v1280 = vrot.slane %v1278, 4
    %v1282 = vshrl.u32 %v1181, 16
    %v1284 = vrot.slane %v1282, 5
    %v1285 = vshll.u32 %v1181, 16
    %v1287 = vrot.slane %v1285, 6
    %v1288 = vor.u32 %v1284, %v1287
    %v1289 = vsel %vm1201, %v1280, %v1288
    %v1290 = vrot.slane %v1288, 4
    %v1292 = vshrl.u32 %v1182, 16
    %v1294 = vrot.slane %v1292, 5
    %v1295 = vshll.u32 %v1182, 16
    %v1297 = vrot.slane %v1295, 6
    %v1298 = vor.u32 %v1294, %v1297
    %v1299 = vsel %vm1201, %v1290, %v1298
    %v1300 = vrot.slane %v1298, 4
    %v1302 = vshrl.u32 %v1183, 16
    %v1304 = vrot.slane %v1302, 5
    %v1305 = vshll.u32 %v1183, 16
    %v1307 = vrot.slane %v1305, 6
    %v1308 = vor.u32 %v1304, %v1307
    %v1309 = vsel %vm1201, %v1300, %v1308
    %v1310 = vrot.slane %v1308, 4
    %v1312 = vshrl.u32 %v1184, 16
    %v1314 = vrot.slane %v1312, 5
    %v1315 = vshll.u32 %v1184, 16
    %v1317 = vrot.slane %v1315, 6
    %v1318 = vor.u32 %v1314, %v1317
    %v1319 = vsel %vm1201, %v1310, %v1318
    %v1320 = vrot.slane %v1318, 4
    %v1322 = vshrl.u32 %v1185, 16
    %v1324 = vrot.slane %v1322, 5
    %v1325 = vshll.u32 %v1185, 16
    %v1327 = vrot.slane %v1325, 6
    %v1328 = vor.u32 %v1324, %v1327
    %v1329 = vsel %vm1201, %v1320, %v1328
    %v1330 = vrot.slane %v1328, 4
    %v1332 = vshrl.u32 %v1186, 16
    %v1334 = vrot.slane %v1332, 5
    %v1335 = vshll.u32 %v1186, 16
    %v1337 = vrot.slane %v1335, 6
    %v1338 = vor.u32 %v1334, %v1337
    %v1339 = vsel %vm1201, %v1330, %v1338
    %v1340 = vrot.slane %v1338, 4
    %v1342 = vshrl.u32 %v1187, 16
    %v1344 = vrot.slane %v1342, 5
    %v1345 = vshll.u32 %v1187, 16
    %v1347 = vrot.slane %v1345, 6
    %v1348 = vor.u32 %v1344, %v1347
    %v1349 = vsel %vm1201, %v1340, %v1348
    %v1350 = vrot.slane %v1348, 4
    %v1352 = vshrl.u32 %v1188, 16
    %v1354 = vrot.slane %v1352, 5
    %v1355 = vshll.u32 %v1188, 16
    %v1357 = vrot.slane %v1355, 6
    %v1358 = vor.u32 %v1354, %v1357
    %v1359 = vsel %vm1201, %v1350, %v1358
    %v1360 = vrot.slane %v1358, 4
    %v1362 = vshrl.u32 %v1189, 16
    %v1364 = vrot.slane %v1362, 5
    %v1365 = vshll.u32 %v1189, 16
    %v1367 = vrot.slane %v1365, 6
    %v1368 = vor.u32 %v1364, %v1367
    %v1369 = vsel %vm1201, %v1360, %v1368
    %v1370 = vrot.slane %v1368, 4
    %v1372 = vshrl.u32 %v1190, 16
    %v1374 = vrot.slane %v1372, 5
    %v1375 = vshll.u32 %v1190, 16
    %v1377 = vrot.slane %v1375, 6
    %v1378 = vor.u32 %v1374, %v1377
    %v1379 = vsel %vm1201, %v1370, %v1378
    %v1380 = vrot.slane %v1378, 4
    %v1382 = vshrl.u32 %v1191, 16
    %v1384 = vrot.slane %v1382, 5
    %v1385 = vshll.u32 %v1191, 16
    %v1387 = vrot.slane %v1385, 6
    %v1388 = vor.u32 %v1384, %v1387
    %v1389 = vsel %vm1201, %v1380, %v1388
    %v1390 = vrot.slane %v1388, 4
    %v1392 = vshrl.u32 %v1192, 16
    %v1394 = vrot.slane %v1392, 5
    %v1395 = vshll.u32 %v1192, 16
    %v1397 = vrot.slane %v1395, 6
    %v1398 = vor.u32 %v1394, %v1397
    %v1399 = vsel %vm1201, %v1390, %v1398
    %v1400 = vrot.slane %v1398, 4
    %v1402 = vshrl.u32 %v1193, 16
    %v1404 = vrot.slane %v1402, 5
    %v1405 = vshll.u32 %v1193, 16
    %v1407 = vrot.slane %v1405, 6
    %v1408 = vor.u32 %v1404, %v1407
    %v1409 = vsel %vm1201, %v1400, %v1408
    %v1410 = vrot.slane %v1408, 4
    %v1412 = vshrl.u32 %v1194, 16
    %v1414 = vrot.slane %v1412, 5
    %v1415 = vshll.u32 %v1194, 16
    %v1417 = vrot.slane %v1415, 6
    %v1418 = vor.u32 %v1414, %v1417
    %v1419 = vsel %vm1201, %v1410, %v1418
    %v1420 = vrot.slane %v1418, 4
    %v1422 = vshrl.u32 %v1195, 16
    %v1424 = vrot.slane %v1422, 5
    %v1425 = vshll.u32 %v1195, 16
    %v1427 = vrot.slane %v1425, 6
    %v1428 = vor.u32 %v1424, %v1427
    %v1429 = vsel %vm1201, %v1420, %v1428
    %v1430 = vrot.slane %v1428, 4
    %v1432 = vshrl.u32 %v1196, 16
    %v1434 = vrot.slane %v1432, 5
    %v1435 = vshll.u32 %v1196, 16
    %v1437 = vrot.slane %v1435, 6
    %v1438 = vor.u32 %v1434, %v1437
    %v1439 = vsel %vm1201, %v1430, %v1438
    %v1440 = vrot.slane %v1438, 4
    %v1442 = vshrl.u32 %v1197, 16
    %v1444 = vrot.slane %v1442, 5
    %v1445 = vshll.u32 %v1197, 16
    %v1447 = vrot.slane %v1445, 6
    %v1448 = vor.u32 %v1444, %v1447
    %v1449 = vsel %vm1201, %v1440, %v1448
    %v1450 = vrot.slane %v1448, 4
    %v1452 = vshrl.u32 %v1198, 16
    %v1454 = vrot.slane %v1452, 5
    %v1455 = vshll.u32 %v1198, 16
    %v1457 = vrot.slane %v1455, 6
    %v1458 = vor.u32 %v1454, %v1457
    %v1459 = vsel %vm1201, %v1450, %v1458
    %1485 = vst [vmem:[#allocation4 + $0x10] sm:$0xf] %v1219
    %1486 = vst [vmem:[#allocation4 + $0x34] sm:$0xf] %v1229
    %1487 = vst [vmem:[#allocation4 + $0x58] sm:$0xf] %v1239
    %1488 = vst [vmem:[#allocation4 + $0x7c] sm:$0xf] %v1249
    %1489 = vst [vmem:[#allocation4 + $0xa0] sm:$0xf] %v1259
    %1490 = vst [vmem:[#allocation4 + $0xc4] sm:$0xf] %v1269
    %1491 = vst [vmem:[#allocation4 + $0xe8] sm:$0xf] %v1279
    %1492 = vst [vmem:[#allocation4 + $0x10c] sm:$0xf] %v1289
    %1493 = vst [vmem:[#allocation4 + $0x130] sm:$0xf] %v1299
    %1494 = vst [vmem:[#allocation4 + $0x154] sm:$0xf] %v1309
    %1495 = vst [vmem:[#allocation4 + $0x178] sm:$0xf] %v1319
    %1496 = vst [vmem:[#allocation4 + $0x19c] sm:$0xf] %v1329
    %1497 = vst [vmem:[#allocation4 + $0x1c0] sm:$0xf] %v1339
    %1498 = vst [vmem:[#allocation4 + $0x1e4] sm:$0xf] %v1349
    %1499 = vst [vmem:[#allocation4 + $0x208] sm:$0xf] %v1359
    %1500 = vst [vmem:[#allocation4 + $0x22c] sm:$0xf] %v1369
    %1501 = vst [vmem:[#allocation4 + $0x250] sm:$0xf] %v1379
    %1502 = vst [vmem:[#allocation4 + $0x274] sm:$0xf] %v1389
    %1503 = vst [vmem:[#allocation4 + $0x298] sm:$0xf] %v1399
    %1504 = vst [vmem:[#allocation4 + $0x2bc] sm:$0xf] %v1409
    %1505 = vst [vmem:[#allocation4 + $0x2e0] sm:$0xf] %v1419
    %1506 = vst [vmem:[#allocation4 + $0x304] sm:$0xf] %v1429
    %1507 = vst [vmem:[#allocation4 + $0x328] sm:$0xf] %v1439
    %1508 = vst [vmem:[#allocation4 + $0x34c] sm:$0xf] %v1449
    %1509 = vst [vmem:[#allocation4 + $0x370] sm:$0xf] %v1459
    %v1510 = vld [vmem:[#allocation2] sm:$0xc0]
    %v1511 = vld [vmem:[#allocation2 + $0x8] sm:$0xff]
    %v1512 = vld [vmem:[#allocation2 + $0x10] sm:$0xff]
    %v1513 = vld [vmem:[#allocation2 + $0x18] sm:$0xff]
    %v1514 = vld [vmem:[#allocation2 + $0x20] sm:$0xff]
    %v1515 = vld [vmem:[#allocation2 + $0x28] sm:$0xff]
    %v1516 = vld [vmem:[#allocation2 + $0x30] sm:$0xff]
    %v1517 = vld [vmem:[#allocation2 + $0x38] sm:$0xff]
    %v1518 = vld [vmem:[#allocation2 + $0x40] sm:$0xff]
    %v1519 = vld [vmem:[#allocation2 + $0x48] sm:$0xff]
    %v1520 = vld [vmem:[#allocation2 + $0x50] sm:$0xff]
    %v1521 = vld [vmem:[#allocation2 + $0x58] sm:$0xff]
    %v1522 = vld [vmem:[#allocation2 + $0x60] sm:$0xff]
    %v1523 = vld [vmem:[#allocation2 + $0x68] sm:$0x3]
    %v1538 = vunpack.c.h.b16 %v1510
    %v1539 = vunpack.c.l.b16 %v1511
    %v1540 = vunpack.c.h.b16 %v1511
    %v1541 = vunpack.c.l.b16 %v1512
    %v1542 = vunpack.c.h.b16 %v1512
    %v1543 = vunpack.c.l.b16 %v1513
    %v1544 = vunpack.c.h.b16 %v1513
    %v1545 = vunpack.c.l.b16 %v1514
    %v1546 = vunpack.c.h.b16 %v1514
    %v1547 = vunpack.c.l.b16 %v1515
    %v1548 = vunpack.c.h.b16 %v1515
    %v1549 = vunpack.c.l.b16 %v1516
    %v1550 = vunpack.c.h.b16 %v1516
    %v1551 = vunpack.c.l.b16 %v1517
    %v1552 = vunpack.c.h.b16 %v1517
    %v1553 = vunpack.c.l.b16 %v1518
    %v1554 = vunpack.c.h.b16 %v1518
    %v1555 = vunpack.c.l.b16 %v1519
    %v1556 = vunpack.c.h.b16 %v1519
    %v1557 = vunpack.c.l.b16 %v1520
    %v1558 = vunpack.c.h.b16 %v1520
    %v1559 = vunpack.c.l.b16 %v1521
    %v1560 = vunpack.c.h.b16 %v1521
    %v1561 = vunpack.c.l.b16 %v1522
    %v1562 = vunpack.c.h.b16 %v1522
    %v1563 = vunpack.c.l.b16 %v1523
    %v1564 = vpack.c.b16 %v1538, %v1538
    %v1565 = vpack.c.b16 %v1539, %v1539
    %v1566 = vpack.c.b16 %v1540, %v1540
    %v1567 = vpack.c.b16 %v1541, %v1541
    %v1568 = vpack.c.b16 %v1542, %v1542
    %v1569 = vpack.c.b16 %v1543, %v1543
    %v1570 = vpack.c.b16 %v1544, %v1544
    %v1571 = vpack.c.b16 %v1545, %v1545
    %v1572 = vpack.c.b16 %v1546, %v1546
    %v1573 = vpack.c.b16 %v1547, %v1547
    %v1574 = vpack.c.b16 %v1548, %v1548
    %v1575 = vpack.c.b16 %v1549, %v1549
    %v1576 = vpack.c.b16 %v1550, %v1550
    %v1577 = vpack.c.b16 %v1551, %v1551
    %v1578 = vpack.c.b16 %v1552, %v1552
    %v1579 = vpack.c.b16 %v1553, %v1553
    %v1580 = vpack.c.b16 %v1554, %v1554
    %v1581 = vpack.c.b16 %v1555, %v1555
    %v1582 = vpack.c.b16 %v1556, %v1556
    %v1583 = vpack.c.b16 %v1557, %v1557
    %v1584 = vpack.c.b16 %v1558, %v1558
    %v1585 = vpack.c.b16 %v1559, %v1559
    %v1586 = vpack.c.b16 %v1560, %v1560
    %v1587 = vpack.c.b16 %v1561, %v1561
    %v1588 = vpack.c.b16 %v1562, %v1562
    %v1589 = vpack.c.b16 %v1563, %v1563
    %vm1590 = vcmask 1041408
    %vm1591 = vcmask 1045508
    %vm1592 = vmor %vm1590, %vm1591
    %v1593 = vrot.slane %v1564, 6
    %v1594 = vrot.slane %v1593, 4
    %v1595 = vrot.slane %v1565, 6
    %v1596 = vsel %vm1592, %v1594, %v1595
    %v1597 = vrot.slane %v1595, 4
    %v1598 = vrot.slane %v1566, 6
    %v1599 = vsel %vm1592, %v1597, %v1598
    %v1600 = vrot.slane %v1598, 4
    %v1601 = vrot.slane %v1567, 6
    %v1602 = vsel %vm1592, %v1600, %v1601
    %v1603 = vrot.slane %v1601, 4
    %v1604 = vrot.slane %v1568, 6
    %v1605 = vsel %vm1592, %v1603, %v1604
    %v1606 = vrot.slane %v1604, 4
    %v1607 = vrot.slane %v1569, 6
    %v1608 = vsel %vm1592, %v1606, %v1607
    %v1609 = vrot.slane %v1607, 4
    %v1610 = vrot.slane %v1570, 6
    %v1611 = vsel %vm1592, %v1609, %v1610
    %v1612 = vrot.slane %v1610, 4
    %v1613 = vrot.slane %v1571, 6
    %v1614 = vsel %vm1592, %v1612, %v1613
    %v1615 = vrot.slane %v1613, 4
    %v1616 = vrot.slane %v1572, 6
    %v1617 = vsel %vm1592, %v1615, %v1616
    %v1618 = vrot.slane %v1616, 4
    %v1619 = vrot.slane %v1573, 6
    %v1620 = vsel %vm1592, %v1618, %v1619
    %v1621 = vrot.slane %v1619, 4
    %v1622 = vrot.slane %v1574, 6
    %v1623 = vsel %vm1592, %v1621, %v1622
    %v1624 = vrot.slane %v1622, 4
    %v1625 = vrot.slane %v1575, 6
    %v1626 = vsel %vm1592, %v1624, %v1625
    %v1627 = vrot.slane %v1625, 4
    %v1628 = vrot.slane %v1576, 6
    %v1629 = vsel %vm1592, %v1627, %v1628
    %v1630 = vrot.slane %v1628, 4
    %v1631 = vrot.slane %v1577, 6
    %v1632 = vsel %vm1592, %v1630, %v1631
    %v1633 = vrot.slane %v1631, 4
    %v1634 = vrot.slane %v1578, 6
    %v1635 = vsel %vm1592, %v1633, %v1634
    %v1636 = vrot.slane %v1634, 4
    %v1637 = vrot.slane %v1579, 6
    %v1638 = vsel %vm1592, %v1636, %v1637
    %v1639 = vrot.slane %v1637, 4
    %v1640 = vrot.slane %v1580, 6
    %v1641 = vsel %vm1592, %v1639, %v1640
    %v1642 = vrot.slane %v1640, 4
    %v1643 = vrot.slane %v1581, 6
    %v1644 = vsel %vm1592, %v1642, %v1643
    %v1645 = vrot.slane %v1643, 4
    %v1646 = vrot.slane %v1582, 6
    %v1647 = vsel %vm1592, %v1645, %v1646
    %v1648 = vrot.slane %v1646, 4
    %v1649 = vrot.slane %v1583, 6
    %v1650 = vsel %vm1592, %v1648, %v1649
    %v1651 = vrot.slane %v1649, 4
    %v1652 = vrot.slane %v1584, 6
    %v1653 = vsel %vm1592, %v1651, %v1652
    %v1654 = vrot.slane %v1652, 4
    %v1655 = vrot.slane %v1585, 6
    %v1656 = vsel %vm1592, %v1654, %v1655
    %v1657 = vrot.slane %v1655, 4
    %v1658 = vrot.slane %v1586, 6
    %v1659 = vsel %vm1592, %v1657, %v1658
    %v1660 = vrot.slane %v1658, 4
    %v1661 = vrot.slane %v1587, 6
    %v1662 = vsel %vm1592, %v1660, %v1661
    %v1663 = vrot.slane %v1661, 4
    %v1664 = vrot.slane %v1588, 6
    %v1665 = vsel %vm1592, %v1663, %v1664
    %v1666 = vrot.slane %v1664, 4
    %v1667 = vrot.slane %v1589, 6
    %v1668 = vsel %vm1592, %v1666, %v1667
    %1694 = vst [vmem:[#allocation4 + $0x14] sm:$0xf] %v1596
    %1695 = vst [vmem:[#allocation4 + $0x38] sm:$0xf] %v1599
    %1696 = vst [vmem:[#allocation4 + $0x5c] sm:$0xf] %v1602
    %1697 = vst [vmem:[#allocation4 + $0x80] sm:$0xf] %v1605
    %1698 = vst [vmem:[#allocation4 + $0xa4] sm:$0xf] %v1608
    %1699 = vst [vmem:[#allocation4 + $0xc8] sm:$0xf] %v1611
    %1700 = vst [vmem:[#allocation4 + $0xec] sm:$0xf] %v1614
    %1701 = vst [vmem:[#allocation4 + $0x110] sm:$0xf] %v1617
    %1702 = vst [vmem:[#allocation4 + $0x134] sm:$0xf] %v1620
    %1703 = vst [vmem:[#allocation4 + $0x158] sm:$0xf] %v1623
    %1704 = vst [vmem:[#allocation4 + $0x17c] sm:$0xf] %v1626
    %1705 = vst [vmem:[#allocation4 + $0x1a0] sm:$0xf] %v1629
    %1706 = vst [vmem:[#allocation4 + $0x1c4] sm:$0xf] %v1632
    %1707 = vst [vmem:[#allocation4 + $0x1e8] sm:$0xf] %v1635
    %1708 = vst [vmem:[#allocation4 + $0x20c] sm:$0xf] %v1638
    %1709 = vst [vmem:[#allocation4 + $0x230] sm:$0xf] %v1641
    %1710 = vst [vmem:[#allocation4 + $0x254] sm:$0xf] %v1644
    %1711 = vst [vmem:[#allocation4 + $0x278] sm:$0xf] %v1647
    %1712 = vst [vmem:[#allocation4 + $0x29c] sm:$0xf] %v1650
    %1713 = vst [vmem:[#allocation4 + $0x2c0] sm:$0xf] %v1653
    %1714 = vst [vmem:[#allocation4 + $0x2e4] sm:$0xf] %v1656
    %1715 = vst [vmem:[#allocation4 + $0x308] sm:$0xf] %v1659
    %1716 = vst [vmem:[#allocation4 + $0x32c] sm:$0xf] %v1662
    %1717 = vst [vmem:[#allocation4 + $0x350] sm:$0xf] %v1665
    %1718 = vst [vmem:[#allocation4 + $0x374] sm:$0xf] %v1668
    %v1719 = vld [vmem:[#allocation2 + $0x8] sm:$0xfc]
    %v1720 = vld [vmem:[#allocation2 + $0x10] sm:$0xff]
    %v1721 = vld [vmem:[#allocation2 + $0x18] sm:$0xff]
    %v1722 = vld [vmem:[#allocation2 + $0x20] sm:$0xff]
    %v1723 = vld [vmem:[#allocation2 + $0x28] sm:$0xff]
    %v1724 = vld [vmem:[#allocation2 + $0x30] sm:$0xff]
    %v1725 = vld [vmem:[#allocation2 + $0x38] sm:$0xff]
    %v1726 = vld [vmem:[#allocation2 + $0x40] sm:$0xff]
    %v1727 = vld [vmem:[#allocation2 + $0x48] sm:$0xff]
    %v1728 = vld [vmem:[#allocation2 + $0x50] sm:$0xff]
    %v1729 = vld [vmem:[#allocation2 + $0x58] sm:$0xff]
    %v1730 = vld [vmem:[#allocation2 + $0x60] sm:$0xff]
    %v1731 = vld [vmem:[#allocation2 + $0x68] sm:$0x3f]
    %v1745 = vunpack.c.l.b16 %v1719
    %v1746 = vunpack.c.h.b16 %v1719
    %v1747 = vunpack.c.l.b16 %v1720
    %v1748 = vunpack.c.h.b16 %v1720
    %v1749 = vunpack.c.l.b16 %v1721
    %v1750 = vunpack.c.h.b16 %v1721
    %v1751 = vunpack.c.l.b16 %v1722
    %v1752 = vunpack.c.h.b16 %v1722
    %v1753 = vunpack.c.l.b16 %v1723
    %v1754 = vunpack.c.h.b16 %v1723
    %v1755 = vunpack.c.l.b16 %v1724
    %v1756 = vunpack.c.h.b16 %v1724
    %v1757 = vunpack.c.l.b16 %v1725
    %v1758 = vunpack.c.h.b16 %v1725
    %v1759 = vunpack.c.l.b16 %v1726
    %v1760 = vunpack.c.h.b16 %v1726
    %v1761 = vunpack.c.l.b16 %v1727
    %v1762 = vunpack.c.h.b16 %v1727
    %v1763 = vunpack.c.l.b16 %v1728
    %v1764 = vunpack.c.h.b16 %v1728
    %v1765 = vunpack.c.l.b16 %v1729
    %v1766 = vunpack.c.h.b16 %v1729
    %v1767 = vunpack.c.l.b16 %v1730
    %v1768 = vunpack.c.h.b16 %v1730
    %v1769 = vunpack.c.l.b16 %v1731
    %v1770 = vunpack.c.h.b16 %v1731
    %v1771 = vpack.c.b16 %v1745, %v1745
    %v1772 = vpack.c.b16 %v1746, %v1746
    %v1773 = vpack.c.b16 %v1747, %v1747
    %v1774 = vpack.c.b16 %v1748, %v1748
    %v1775 = vpack.c.b16 %v1749, %v1749
    %v1776 = vpack.c.b16 %v1750, %v1750
    %v1777 = vpack.c.b16 %v1751, %v1751
    %v1778 = vpack.c.b16 %v1752, %v1752
    %v1779 = vpack.c.b16 %v1753, %v1753
    %v1780 = vpack.c.b16 %v1754, %v1754
    %v1781 = vpack.c.b16 %v1755, %v1755
    %v1782 = vpack.c.b16 %v1756, %v1756
    %v1783 = vpack.c.b16 %v1757, %v1757
    %v1784 = vpack.c.b16 %v1758, %v1758
    %v1785 = vpack.c.b16 %v1759, %v1759
    %v1786 = vpack.c.b16 %v1760, %v1760
    %v1787 = vpack.c.b16 %v1761, %v1761
    %v1788 = vpack.c.b16 %v1762, %v1762
    %v1789 = vpack.c.b16 %v1763, %v1763
    %v1790 = vpack.c.b16 %v1764, %v1764
    %v1791 = vpack.c.b16 %v1765, %v1765
    %v1792 = vpack.c.b16 %v1766, %v1766
    %v1793 = vpack.c.b16 %v1767, %v1767
    %v1794 = vpack.c.b16 %v1768, %v1768
    %v1795 = vpack.c.b16 %v1769, %v1769
    %v1796 = vpack.c.b16 %v1770, %v1770
    %v1797 = vrot.slane %v1771, 6
    %v1798 = vrot.slane %v1797, 4
    %v1799 = vrot.slane %v1772, 6
    %v1800 = vsel %vm1592, %v1798, %v1799
    %v1801 = vrot.slane %v1799, 4
    %v1802 = vrot.slane %v1773, 6
    %v1803 = vsel %vm1592, %v1801, %v1802
    %v1804 = vrot.slane %v1802, 4
    %v1805 = vrot.slane %v1774, 6
    %v1806 = vsel %vm1592, %v1804, %v1805
    %v1807 = vrot.slane %v1805, 4
    %v1808 = vrot.slane %v1775, 6
    %v1809 = vsel %vm1592, %v1807, %v1808
    %v1810 = vrot.slane %v1808, 4
    %v1811 = vrot.slane %v1776, 6
    %v1812 = vsel %vm1592, %v1810, %v1811
    %v1813 = vrot.slane %v1811, 4
    %v1814 = vrot.slane %v1777, 6
    %v1815 = vsel %vm1592, %v1813, %v1814
    %v1816 = vrot.slane %v1814, 4
    %v1817 = vrot.slane %v1778, 6
    %v1818 = vsel %vm1592, %v1816, %v1817
    %v1819 = vrot.slane %v1817, 4
    %v1820 = vrot.slane %v1779, 6
    %v1821 = vsel %vm1592, %v1819, %v1820
    %v1822 = vrot.slane %v1820, 4
    %v1823 = vrot.slane %v1780, 6
    %v1824 = vsel %vm1592, %v1822, %v1823
    %v1825 = vrot.slane %v1823, 4
    %v1826 = vrot.slane %v1781, 6
    %v1827 = vsel %vm1592, %v1825, %v1826
    %v1828 = vrot.slane %v1826, 4
    %v1829 = vrot.slane %v1782, 6
    %v1830 = vsel %vm1592, %v1828, %v1829
    %v1831 = vrot.slane %v1829, 4
    %v1832 = vrot.slane %v1783, 6
    %v1833 = vsel %vm1592, %v1831, %v1832
    %v1834 = vrot.slane %v1832, 4
    %v1835 = vrot.slane %v1784, 6
    %v1836 = vsel %vm1592, %v1834, %v1835
    %v1837 = vrot.slane %v1835, 4
    %v1838 = vrot.slane %v1785, 6
    %v1839 = vsel %vm1592, %v1837, %v1838
    %v1840 = vrot.slane %v1838, 4
    %v1841 = vrot.slane %v1786, 6
    %v1842 = vsel %vm1592, %v1840, %v1841
    %v1843 = vrot.slane %v1841, 4
    %v1844 = vrot.slane %v1787, 6
    %v1845 = vsel %vm1592, %v1843, %v1844
    %v1846 = vrot.slane %v1844, 4
    %v1847 = vrot.slane %v1788, 6
    %v1848 = vsel %vm1592, %v1846, %v1847
    %v1849 = vrot.slane %v1847, 4
    %v1850 = vrot.slane %v1789, 6
    %v1851 = vsel %vm1592, %v1849, %v1850
    %v1852 = vrot.slane %v1850, 4
    %v1853 = vrot.slane %v1790, 6
    %v1854 = vsel %vm1592, %v1852, %v1853
    %v1855 = vrot.slane %v1853, 4
    %v1856 = vrot.slane %v1791, 6
    %v1857 = vsel %vm1592, %v1855, %v1856
    %v1858 = vrot.slane %v1856, 4
    %v1859 = vrot.slane %v1792, 6
    %v1860 = vsel %vm1592, %v1858, %v1859
    %v1861 = vrot.slane %v1859, 4
    %v1862 = vrot.slane %v1793, 6
    %v1863 = vsel %vm1592, %v1861, %v1862
    %v1864 = vrot.slane %v1862, 4
    %v1865 = vrot.slane %v1794, 6
    %v1866 = vsel %vm1592, %v1864, %v1865
    %v1867 = vrot.slane %v1865, 4
    %v1868 = vrot.slane %v1795, 6
    %v1869 = vsel %vm1592, %v1867, %v1868
    %v1870 = vrot.slane %v1868, 4
    %v1871 = vrot.slane %v1796, 6
    %v1872 = vsel %vm1592, %v1870, %v1871
    %1898 = vst [vmem:[#allocation4 + $0x18] sm:$0xf] %v1800
    %1899 = vst [vmem:[#allocation4 + $0x3c] sm:$0xf] %v1803
    %1900 = vst [vmem:[#allocation4 + $0x60] sm:$0xf] %v1806
    %1901 = vst [vmem:[#allocation4 + $0x84] sm:$0xf] %v1809
    %1902 = vst [vmem:[#allocation4 + $0xa8] sm:$0xf] %v1812
    %1903 = vst [vmem:[#allocation4 + $0xcc] sm:$0xf] %v1815
    %1904 = vst [vmem:[#allocation4 + $0xf0] sm:$0xf] %v1818
    %1905 = vst [vmem:[#allocation4 + $0x114] sm:$0xf] %v1821
    %1906 = vst [vmem:[#allocation4 + $0x138] sm:$0xf] %v1824
    %1907 = vst [vmem:[#allocation4 + $0x15c] sm:$0xf] %v1827
    %1908 = vst [vmem:[#allocation4 + $0x180] sm:$0xf] %v1830
    %1909 = vst [vmem:[#allocation4 + $0x1a4] sm:$0xf] %v1833
    %1910 = vst [vmem:[#allocation4 + $0x1c8] sm:$0xf] %v1836
    %1911 = vst [vmem:[#allocation4 + $0x1ec] sm:$0xf] %v1839
    %1912 = vst [vmem:[#allocation4 + $0x210] sm:$0xf] %v1842
    %1913 = vst [vmem:[#allocation4 + $0x234] sm:$0xf] %v1845
    %1914 = vst [vmem:[#allocation4 + $0x258] sm:$0xf] %v1848
    %1915 = vst [vmem:[#allocation4 + $0x27c] sm:$0xf] %v1851
    %1916 = vst [vmem:[#allocation4 + $0x2a0] sm:$0xf] %v1854
    %1917 = vst [vmem:[#allocation4 + $0x2c4] sm:$0xf] %v1857
    %1918 = vst [vmem:[#allocation4 + $0x2e8] sm:$0xf] %v1860
    %1919 = vst [vmem:[#allocation4 + $0x30c] sm:$0xf] %v1863
    %1920 = vst [vmem:[#allocation4 + $0x330] sm:$0xf] %v1866
    %1921 = vst [vmem:[#allocation4 + $0x354] sm:$0xf] %v1869
    %1922 = vst [vmem:[#allocation4 + $0x378] sm:$0xf] %v1872
    %v1923 = vld [vmem:[#allocation2 + $0x8] sm:$0xfc]
    %v1924 = vld [vmem:[#allocation2 + $0x10] sm:$0xff]
    %v1925 = vld [vmem:[#allocation2 + $0x18] sm:$0xff]
    %v1926 = vld [vmem:[#allocation2 + $0x20] sm:$0xff]
    %v1927 = vld [vmem:[#allocation2 + $0x28] sm:$0xff]
    %v1928 = vld [vmem:[#allocation2 + $0x30] sm:$0xff]
    %v1929 = vld [vmem:[#allocation2 + $0x38] sm:$0xff]
    %v1930 = vld [vmem:[#allocation2 + $0x40] sm:$0xff]
    %v1931 = vld [vmem:[#allocation2 + $0x48] sm:$0xff]
    %v1932 = vld [vmem:[#allocation2 + $0x50] sm:$0xff]
    %v1933 = vld [vmem:[#allocation2 + $0x58] sm:$0xff]
    %v1934 = vld [vmem:[#allocation2 + $0x60] sm:$0xff]
    %v1935 = vld [vmem:[#allocation2 + $0x68] sm:$0x7f]
    %v1949 = vunpack.c.l.b16 %v1923
    %v1950 = vunpack.c.h.b16 %v1923
    %v1951 = vunpack.c.l.b16 %v1924
    %v1952 = vunpack.c.h.b16 %v1924
    %v1953 = vunpack.c.l.b16 %v1925
    %v1954 = vunpack.c.h.b16 %v1925
    %v1955 = vunpack.c.l.b16 %v1926
    %v1956 = vunpack.c.h.b16 %v1926
    %v1957 = vunpack.c.l.b16 %v1927
    %v1958 = vunpack.c.h.b16 %v1927
    %v1959 = vunpack.c.l.b16 %v1928
    %v1960 = vunpack.c.h.b16 %v1928
    %v1961 = vunpack.c.l.b16 %v1929
    %v1962 = vunpack.c.h.b16 %v1929
    %v1963 = vunpack.c.l.b16 %v1930
    %v1964 = vunpack.c.h.b16 %v1930
    %v1965 = vunpack.c.l.b16 %v1931
    %v1966 = vunpack.c.h.b16 %v1931
    %v1967 = vunpack.c.l.b16 %v1932
    %v1968 = vunpack.c.h.b16 %v1932
    %v1969 = vunpack.c.l.b16 %v1933
    %v1970 = vunpack.c.h.b16 %v1933
    %v1971 = vunpack.c.l.b16 %v1934
    %v1972 = vunpack.c.h.b16 %v1934
    %v1973 = vunpack.c.l.b16 %v1935
    %v1974 = vunpack.c.h.b16 %v1935
    %v1975 = vpack.c.b16 %v1949, %v1949
    %v1976 = vpack.c.b16 %v1950, %v1950
    %v1977 = vpack.c.b16 %v1951, %v1951
    %v1978 = vpack.c.b16 %v1952, %v1952
    %v1979 = vpack.c.b16 %v1953, %v1953
    %v1980 = vpack.c.b16 %v1954, %v1954
    %v1981 = vpack.c.b16 %v1955, %v1955
    %v1982 = vpack.c.b16 %v1956, %v1956
    %v1983 = vpack.c.b16 %v1957, %v1957
    %v1984 = vpack.c.b16 %v1958, %v1958
    %v1985 = vpack.c.b16 %v1959, %v1959
    %v1986 = vpack.c.b16 %v1960, %v1960
    %v1987 = vpack.c.b16 %v1961, %v1961
    %v1988 = vpack.c.b16 %v1962, %v1962
    %v1989 = vpack.c.b16 %v1963, %v1963
    %v1990 = vpack.c.b16 %v1964, %v1964
    %v1991 = vpack.c.b16 %v1965, %v1965
    %v1992 = vpack.c.b16 %v1966, %v1966
    %v1993 = vpack.c.b16 %v1967, %v1967
    %v1994 = vpack.c.b16 %v1968, %v1968
    %v1995 = vpack.c.b16 %v1969, %v1969
    %v1996 = vpack.c.b16 %v1970, %v1970
    %v1997 = vpack.c.b16 %v1971, %v1971
    %v1998 = vpack.c.b16 %v1972, %v1972
    %v1999 = vpack.c.b16 %v1973, %v1973
    %v2000 = vpack.c.b16 %v1974, %v1974
    %vm2001 = vsmask.f32 1280
    %vm2002 = vsmask.f32 5392
    %vm2003 = vmor %vm2001, %vm2002
    %v2005 = vshrl.u32 %v1975, 16
    %v2007 = vrot.slane %v2005, 6
    %v2008 = vshll.u32 %v1975, 16
    %v2010 = vrot.slane %v2008, 7
    %v2011 = vor.u32 %v2007, %v2010
    %v2012 = vrot.slane %v2011, 4
    %v2014 = vshrl.u32 %v1976, 16
    %v2016 = vrot.slane %v2014, 6
    %v2017 = vshll.u32 %v1976, 16
    %v2019 = vrot.slane %v2017, 7
    %v2020 = vor.u32 %v2016, %v2019
    %v2021 = vsel %vm2003, %v2012, %v2020
    %v2022 = vrot.slane %v2020, 4
    %v2024 = vshrl.u32 %v1977, 16
    %v2026 = vrot.slane %v2024, 6
    %v2027 = vshll.u32 %v1977, 16
    %v2029 = vrot.slane %v2027, 7
    %v2030 = vor.u32 %v2026, %v2029
    %v2031 = vsel %vm2003, %v2022, %v2030
    %v2032 = vrot.slane %v2030, 4
    %v2034 = vshrl.u32 %v1978, 16
    %v2036 = vrot.slane %v2034, 6
    %v2037 = vshll.u32 %v1978, 16
    %v2039 = vrot.slane %v2037, 7
    %v2040 = vor.u32 %v2036, %v2039
    %v2041 = vsel %vm2003, %v2032, %v2040
    %v2042 = vrot.slane %v2040, 4
    %v2044 = vshrl.u32 %v1979, 16
    %v2046 = vrot.slane %v2044, 6
    %v2047 = vshll.u32 %v1979, 16
    %v2049 = vrot.slane %v2047, 7
    %v2050 = vor.u32 %v2046, %v2049
    %v2051 = vsel %vm2003, %v2042, %v2050
    %v2052 = vrot.slane %v2050, 4
    %v2054 = vshrl.u32 %v1980, 16
    %v2056 = vrot.slane %v2054, 6
    %v2057 = vshll.u32 %v1980, 16
    %v2059 = vrot.slane %v2057, 7
    %v2060 = vor.u32 %v2056, %v2059
    %v2061 = vsel %vm2003, %v2052, %v2060
    %v2062 = vrot.slane %v2060, 4
    %v2064 = vshrl.u32 %v1981, 16
    %v2066 = vrot.slane %v2064, 6
    %v2067 = vshll.u32 %v1981, 16
    %v2069 = vrot.slane %v2067, 7
    %v2070 = vor.u32 %v2066, %v2069
    %v2071 = vsel %vm2003, %v2062, %v2070
    %v2072 = vrot.slane %v2070, 4
    %v2074 = vshrl.u32 %v1982, 16
    %v2076 = vrot.slane %v2074, 6
    %v2077 = vshll.u32 %v1982, 16
    %v2079 = vrot.slane %v2077, 7
    %v2080 = vor.u32 %v2076, %v2079
    %v2081 = vsel %vm2003, %v2072, %v2080
    %v2082 = vrot.slane %v2080, 4
    %v2084 = vshrl.u32 %v1983, 16
    %v2086 = vrot.slane %v2084, 6
    %v2087 = vshll.u32 %v1983, 16
    %v2089 = vrot.slane %v2087, 7
    %v2090 = vor.u32 %v2086, %v2089
    %v2091 = vsel %vm2003, %v2082, %v2090
    %v2092 = vrot.slane %v2090, 4
    %v2094 = vshrl.u32 %v1984, 16
    %v2096 = vrot.slane %v2094, 6
    %v2097 = vshll.u32 %v1984, 16
    %v2099 = vrot.slane %v2097, 7
    %v2100 = vor.u32 %v2096, %v2099
    %v2101 = vsel %vm2003, %v2092, %v2100
    %v2102 = vrot.slane %v2100, 4
    %v2104 = vshrl.u32 %v1985, 16
    %v2106 = vrot.slane %v2104, 6
    %v2107 = vshll.u32 %v1985, 16
    %v2109 = vrot.slane %v2107, 7
    %v2110 = vor.u32 %v2106, %v2109
    %v2111 = vsel %vm2003, %v2102, %v2110
    %v2112 = vrot.slane %v2110, 4
    %v2114 = vshrl.u32 %v1986, 16
    %v2116 = vrot.slane %v2114, 6
    %v2117 = vshll.u32 %v1986, 16
    %v2119 = vrot.slane %v2117, 7
    %v2120 = vor.u32 %v2116, %v2119
    %v2121 = vsel %vm2003, %v2112, %v2120
    %v2122 = vrot.slane %v2120, 4
    %v2124 = vshrl.u32 %v1987, 16
    %v2126 = vrot.slane %v2124, 6
    %v2127 = vshll.u32 %v1987, 16
    %v2129 = vrot.slane %v2127, 7
    %v2130 = vor.u32 %v2126, %v2129
    %v2131 = vsel %vm2003, %v2122, %v2130
    %v2132 = vrot.slane %v2130, 4
    %v2134 = vshrl.u32 %v1988, 16
    %v2136 = vrot.slane %v2134, 6
    %v2137 = vshll.u32 %v1988, 16
    %v2139 = vrot.slane %v2137, 7
    %v2140 = vor.u32 %v2136, %v2139
    %v2141 = vsel %vm2003, %v2132, %v2140
    %v2142 = vrot.slane %v2140, 4
    %v2144 = vshrl.u32 %v1989, 16
    %v2146 = vrot.slane %v2144, 6
    %v2147 = vshll.u32 %v1989, 16
    %v2149 = vrot.slane %v2147, 7
    %v2150 = vor.u32 %v2146, %v2149
    %v2151 = vsel %vm2003, %v2142, %v2150
    %v2152 = vrot.slane %v2150, 4
    %v2154 = vshrl.u32 %v1990, 16
    %v2156 = vrot.slane %v2154, 6
    %v2157 = vshll.u32 %v1990, 16
    %v2159 = vrot.slane %v2157, 7
    %v2160 = vor.u32 %v2156, %v2159
    %v2161 = vsel %vm2003, %v2152, %v2160
    %v2162 = vrot.slane %v2160, 4
    %v2164 = vshrl.u32 %v1991, 16
    %v2166 = vrot.slane %v2164, 6
    %v2167 = vshll.u32 %v1991, 16
    %v2169 = vrot.slane %v2167, 7
    %v2170 = vor.u32 %v2166, %v2169
    %v2171 = vsel %vm2003, %v2162, %v2170
    %v2172 = vrot.slane %v2170, 4
    %v2174 = vshrl.u32 %v1992, 16
    %v2176 = vrot.slane %v2174, 6
    %v2177 = vshll.u32 %v1992, 16
    %v2179 = vrot.slane %v2177, 7
    %v2180 = vor.u32 %v2176, %v2179
    %v2181 = vsel %vm2003, %v2172, %v2180
    %v2182 = vrot.slane %v2180, 4
    %v2184 = vshrl.u32 %v1993, 16
    %v2186 = vrot.slane %v2184, 6
    %v2187 = vshll.u32 %v1993, 16
    %v2189 = vrot.slane %v2187, 7
    %v2190 = vor.u32 %v2186, %v2189
    %v2191 = vsel %vm2003, %v2182, %v2190
    %v2192 = vrot.slane %v2190, 4
    %v2194 = vshrl.u32 %v1994, 16
    %v2196 = vrot.slane %v2194, 6
    %v2197 = vshll.u32 %v1994, 16
    %v2199 = vrot.slane %v2197, 7
    %v2200 = vor.u32 %v2196, %v2199
    %v2201 = vsel %vm2003, %v2192, %v2200
    %v2202 = vrot.slane %v2200, 4
    %v2204 = vshrl.u32 %v1995, 16
    %v2206 = vrot.slane %v2204, 6
    %v2207 = vshll.u32 %v1995, 16
    %v2209 = vrot.slane %v2207, 7
    %v2210 = vor.u32 %v2206, %v2209
    %v2211 = vsel %vm2003, %v2202, %v2210
    %v2212 = vrot.slane %v2210, 4
    %v2214 = vshrl.u32 %v1996, 16
    %v2216 = vrot.slane %v2214, 6
    %v2217 = vshll.u32 %v1996, 16
    %v2219 = vrot.slane %v2217, 7
    %v2220 = vor.u32 %v2216, %v2219
    %v2221 = vsel %vm2003, %v2212, %v2220
    %v2222 = vrot.slane %v2220, 4
    %v2224 = vshrl.u32 %v1997, 16
    %v2226 = vrot.slane %v2224, 6
    %v2227 = vshll.u32 %v1997, 16
    %v2229 = vrot.slane %v2227, 7
    %v2230 = vor.u32 %v2226, %v2229
    %v2231 = vsel %vm2003, %v2222, %v2230
    %v2232 = vrot.slane %v2230, 4
    %v2234 = vshrl.u32 %v1998, 16
    %v2236 = vrot.slane %v2234, 6
    %v2237 = vshll.u32 %v1998, 16
    %v2239 = vrot.slane %v2237, 7
    %v2240 = vor.u32 %v2236, %v2239
    %v2241 = vsel %vm2003, %v2232, %v2240
    %v2242 = vrot.slane %v2240, 4
    %v2244 = vshrl.u32 %v1999, 16
    %v2246 = vrot.slane %v2244, 6
    %v2247 = vshll.u32 %v1999, 16
    %v2249 = vrot.slane %v2247, 7
    %v2250 = vor.u32 %v2246, %v2249
    %v2251 = vsel %vm2003, %v2242, %v2250
    %v2252 = vrot.slane %v2250, 4
    %v2254 = vshrl.u32 %v2000, 16
    %v2256 = vrot.slane %v2254, 6
    %v2257 = vshll.u32 %v2000, 16
    %v2259 = vrot.slane %v2257, 7
    %v2260 = vor.u32 %v2256, %v2259
    %v2261 = vsel %vm2003, %v2252, %v2260
    %2287 = vst [vmem:[#allocation4 + $0x1c] sm:$0xf] %v2021
    %2288 = vst [vmem:[#allocation4 + $0x40] sm:$0xf] %v2031
    %2289 = vst [vmem:[#allocation4 + $0x64] sm:$0xf] %v2041
    %2290 = vst [vmem:[#allocation4 + $0x88] sm:$0xf] %v2051
    %2291 = vst [vmem:[#allocation4 + $0xac] sm:$0xf] %v2061
    %2292 = vst [vmem:[#allocation4 + $0xd0] sm:$0xf] %v2071
    %2293 = vst [vmem:[#allocation4 + $0xf4] sm:$0xf] %v2081
    %2294 = vst [vmem:[#allocation4 + $0x118] sm:$0xf] %v2091
    %2295 = vst [vmem:[#allocation4 + $0x13c] sm:$0xf] %v2101
    %2296 = vst [vmem:[#allocation4 + $0x160] sm:$0xf] %v2111
    %2297 = vst [vmem:[#allocation4 + $0x184] sm:$0xf] %v2121
    %2298 = vst [vmem:[#allocation4 + $0x1a8] sm:$0xf] %v2131
    %2299 = vst [vmem:[#allocation4 + $0x1cc] sm:$0xf] %v2141
    %2300 = vst [vmem:[#allocation4 + $0x1f0] sm:$0xf] %v2151
    %2301 = vst [vmem:[#allocation4 + $0x214] sm:$0xf] %v2161
    %2302 = vst [vmem:[#allocation4 + $0x238] sm:$0xf] %v2171
    %2303 = vst [vmem:[#allocation4 + $0x25c] sm:$0xf] %v2181
    %2304 = vst [vmem:[#allocation4 + $0x280] sm:$0xf] %v2191
    %2305 = vst [vmem:[#allocation4 + $0x2a4] sm:$0xf] %v2201
    %2306 = vst [vmem:[#allocation4 + $0x2c8] sm:$0xf] %v2211
    %2307 = vst [vmem:[#allocation4 + $0x2ec] sm:$0xf] %v2221
    %2308 = vst [vmem:[#allocation4 + $0x310] sm:$0xf] %v2231
    %2309 = vst [vmem:[#allocation4 + $0x334] sm:$0xf] %v2241
    %2310 = vst [vmem:[#allocation4 + $0x358] sm:$0xf] %v2251
    %2311 = vst [vmem:[#allocation4 + $0x37c] sm:$0xf] %v2261
    %v2312 = vld [vmem:[#allocation2 + $0x8] sm:$0xf8]
    %v2313 = vld [vmem:[#allocation2 + $0x10] sm:$0xff]
    %v2314 = vld [vmem:[#allocation2 + $0x18] sm:$0xff]
    %v2315 = vld [vmem:[#allocation2 + $0x20] sm:$0xff]
    %v2316 = vld [vmem:[#allocation2 + $0x28] sm:$0xff]
    %v2317 = vld [vmem:[#allocation2 + $0x30] sm:$0xff]
    %v2318 = vld [vmem:[#allocation2 + $0x38] sm:$0xff]
    %v2319 = vld [vmem:[#allocation2 + $0x40] sm:$0xff]
    %v2320 = vld [vmem:[#allocation2 + $0x48] sm:$0xff]
    %v2321 = vld [vmem:[#allocation2 + $0x50] sm:$0xff]
    %v2322 = vld [vmem:[#allocation2 + $0x58] sm:$0xff]
    %v2323 = vld [vmem:[#allocation2 + $0x60] sm:$0xff]
    %v2324 = vld [vmem:[#allocation2 + $0x68] sm:$0x7f]
    %v2338 = vunpack.c.l.b16 %v2312
    %v2339 = vunpack.c.h.b16 %v2312
    %v2340 = vunpack.c.l.b16 %v2313
    %v2341 = vunpack.c.h.b16 %v2313
    %v2342 = vunpack.c.l.b16 %v2314
    %v2343 = vunpack.c.h.b16 %v2314
    %v2344 = vunpack.c.l.b16 %v2315
    %v2345 = vunpack.c.h.b16 %v2315
    %v2346 = vunpack.c.l.b16 %v2316
    %v2347 = vunpack.c.h.b16 %v2316
    %v2348 = vunpack.c.l.b16 %v2317
    %v2349 = vunpack.c.h.b16 %v2317
    %v2350 = vunpack.c.l.b16 %v2318
    %v2351 = vunpack.c.h.b16 %v2318
    %v2352 = vunpack.c.l.b16 %v2319
    %v2353 = vunpack.c.h.b16 %v2319
    %v2354 = vunpack.c.l.b16 %v2320
    %v2355 = vunpack.c.h.b16 %v2320
    %v2356 = vunpack.c.l.b16 %v2321
    %v2357 = vunpack.c.h.b16 %v2321
    %v2358 = vunpack.c.l.b16 %v2322
    %v2359 = vunpack.c.h.b16 %v2322
    %v2360 = vunpack.c.l.b16 %v2323
    %v2361 = vunpack.c.h.b16 %v2323
    %v2362 = vunpack.c.l.b16 %v2324
    %v2363 = vunpack.c.h.b16 %v2324
    %v2364 = vpack.c.b16 %v2338, %v2338
    %v2365 = vpack.c.b16 %v2339, %v2339
    %v2366 = vpack.c.b16 %v2340, %v2340
    %v2367 = vpack.c.b16 %v2341, %v2341
    %v2368 = vpack.c.b16 %v2342, %v2342
    %v2369 = vpack.c.b16 %v2343, %v2343
    %v2370 = vpack.c.b16 %v2344, %v2344
    %v2371 = vpack.c.b16 %v2345, %v2345
    %v2372 = vpack.c.b16 %v2346, %v2346
    %v2373 = vpack.c.b16 %v2347, %v2347
    %v2374 = vpack.c.b16 %v2348, %v2348
    %v2375 = vpack.c.b16 %v2349, %v2349
    %v2376 = vpack.c.b16 %v2350, %v2350
    %v2377 = vpack.c.b16 %v2351, %v2351
    %v2378 = vpack.c.b16 %v2352, %v2352
    %v2379 = vpack.c.b16 %v2353, %v2353
    %v2380 = vpack.c.b16 %v2354, %v2354
    %v2381 = vpack.c.b16 %v2355, %v2355
    %v2382 = vpack.c.b16 %v2356, %v2356
    %v2383 = vpack.c.b16 %v2357, %v2357
    %v2384 = vpack.c.b16 %v2358, %v2358
    %v2385 = vpack.c.b16 %v2359, %v2359
    %v2386 = vpack.c.b16 %v2360, %v2360
    %v2387 = vpack.c.b16 %v2361, %v2361
    %v2388 = vpack.c.b16 %v2362, %v2362
    %v2389 = vpack.c.b16 %v2363, %v2363
    %vm2390 = vcmask 1040384
    %vm2391 = vcmask 1044484
    %vm2392 = vmor %vm2390, %vm2391
    %v2393 = vrot.slane %v2364, 7
    %v2394 = vrot.slane %v2393, 4
    %v2395 = vrot.slane %v2365, 7
    %v2396 = vsel %vm2392, %v2394, %v2395
    %v2397 = vrot.slane %v2395, 4
    %v2398 = vrot.slane %v2366, 7
    %v2399 = vsel %vm2392, %v2397, %v2398
    %v2400 = vrot.slane %v2398, 4
    %v2401 = vrot.slane %v2367, 7
    %v2402 = vsel %vm2392, %v2400, %v2401
    %v2403 = vrot.slane %v2401, 4
    %v2404 = vrot.slane %v2368, 7
    %v2405 = vsel %vm2392, %v2403, %v2404
    %v2406 = vrot.slane %v2404, 4
    %v2407 = vrot.slane %v2369, 7
    %v2408 = vsel %vm2392, %v2406, %v2407
    %v2409 = vrot.slane %v2407, 4
    %v2410 = vrot.slane %v2370, 7
    %v2411 = vsel %vm2392, %v2409, %v2410
    %v2412 = vrot.slane %v2410, 4
    %v2413 = vrot.slane %v2371, 7
    %v2414 = vsel %vm2392, %v2412, %v2413
    %v2415 = vrot.slane %v2413, 4
    %v2416 = vrot.slane %v2372, 7
    %v2417 = vsel %vm2392, %v2415, %v2416
    %v2418 = vrot.slane %v2416, 4
    %v2419 = vrot.slane %v2373, 7
    %v2420 = vsel %vm2392, %v2418, %v2419
    %v2421 = vrot.slane %v2419, 4
    %v2422 = vrot.slane %v2374, 7
    %v2423 = vsel %vm2392, %v2421, %v2422
    %v2424 = vrot.slane %v2422, 4
    %v2425 = vrot.slane %v2375, 7
    %v2426 = vsel %vm2392, %v2424, %v2425
    %v2427 = vrot.slane %v2425, 4
    %v2428 = vrot.slane %v2376, 7
    %v2429 = vsel %vm2392, %v2427, %v2428
    %v2430 = vrot.slane %v2428, 4
    %v2431 = vrot.slane %v2377, 7
    %v2432 = vsel %vm2392, %v2430, %v2431
    %v2433 = vrot.slane %v2431, 4
    %v2434 = vrot.slane %v2378, 7
    %v2435 = vsel %vm2392, %v2433, %v2434
    %v2436 = vrot.slane %v2434, 4
    %v2437 = vrot.slane %v2379, 7
    %v2438 = vsel %vm2392, %v2436, %v2437
    %v2439 = vrot.slane %v2437, 4
    %v2440 = vrot.slane %v2380, 7
    %v2441 = vsel %vm2392, %v2439, %v2440
    %v2442 = vrot.slane %v2440, 4
    %v2443 = vrot.slane %v2381, 7
    %v2444 = vsel %vm2392, %v2442, %v2443
    %v2445 = vrot.slane %v2443, 4
    %v2446 = vrot.slane %v2382, 7
    %v2447 = vsel %vm2392, %v2445, %v2446
    %v2448 = vrot.slane %v2446, 4
    %v2449 = vrot.slane %v2383, 7
    %v2450 = vsel %vm2392, %v2448, %v2449
    %v2451 = vrot.slane %v2449, 4
    %v2452 = vrot.slane %v2384, 7
    %v2453 = vsel %vm2392, %v2451, %v2452
    %v2454 = vrot.slane %v2452, 4
    %v2455 = vrot.slane %v2385, 7
    %v2456 = vsel %vm2392, %v2454, %v2455
    %v2457 = vrot.slane %v2455, 4
    %v2458 = vrot.slane %v2386, 7
    %v2459 = vsel %vm2392, %v2457, %v2458
    %v2460 = vrot.slane %v2458, 4
    %v2461 = vrot.slane %v2387, 7
    %v2462 = vsel %vm2392, %v2460, %v2461
    %v2463 = vrot.slane %v2461, 4
    %v2464 = vrot.slane %v2388, 7
    %v2465 = vsel %vm2392, %v2463, %v2464
    %v2466 = vrot.slane %v2464, 4
    %v2467 = vrot.slane %v2389, 7
    %v2468 = vsel %vm2392, %v2466, %v2467
    %2494 = vst [vmem:[#allocation4 + $0x20] sm:$0xf] %v2396
    %2495 = vst [vmem:[#allocation4 + $0x44] sm:$0xf] %v2399
    %2496 = vst [vmem:[#allocation4 + $0x68] sm:$0xf] %v2402
    %2497 = vst [vmem:[#allocation4 + $0x8c] sm:$0xf] %v2405
    %2498 = vst [vmem:[#allocation4 + $0xb0] sm:$0xf] %v2408
    %2499 = vst [vmem:[#allocation4 + $0xd4] sm:$0xf] %v2411
    %2500 = vst [vmem:[#allocation4 + $0xf8] sm:$0xf] %v2414
    %2501 = vst [vmem:[#allocation4 + $0x11c] sm:$0xf] %v2417
    %2502 = vst [vmem:[#allocation4 + $0x140] sm:$0xf] %v2420
    %2503 = vst [vmem:[#allocation4 + $0x164] sm:$0xf] %v2423
    %2504 = vst [vmem:[#allocation4 + $0x188] sm:$0xf] %v2426
    %2505 = vst [vmem:[#allocation4 + $0x1ac] sm:$0xf] %v2429
    %2506 = vst [vmem:[#allocation4 + $0x1d0] sm:$0xf] %v2432
    %2507 = vst [vmem:[#allocation4 + $0x1f4] sm:$0xf] %v2435
    %2508 = vst [vmem:[#allocation4 + $0x218] sm:$0xf] %v2438
    %2509 = vst [vmem:[#allocation4 + $0x23c] sm:$0xf] %v2441
    %2510 = vst [vmem:[#allocation4 + $0x260] sm:$0xf] %v2444
    %2511 = vst [vmem:[#allocation4 + $0x284] sm:$0xf] %v2447
    %2512 = vst [vmem:[#allocation4 + $0x2a8] sm:$0xf] %v2450
    %2513 = vst [vmem:[#allocation4 + $0x2cc] sm:$0xf] %v2453
    %2514 = vst [vmem:[#allocation4 + $0x2f0] sm:$0xf] %v2456
    %2515 = vst [vmem:[#allocation4 + $0x314] sm:$0xf] %v2459
    %2516 = vst [vmem:[#allocation4 + $0x338] sm:$0xf] %v2462
    %2517 = vst [vmem:[#allocation4 + $0x35c] sm:$0xf] %v2465
    %2518 = vst [vmem:[#allocation4 + $0x380] sm:$0xf] %v2468
  $region55: #{residual_block_forward.8} parent=0 // pred_fallthru
    _
  %p2519 = scmp.eq.s32.totalorder %s102, 1
  // Predicated region
  $region94: #{residual_block_forward.8} parent=0 // pred_check
    %p2520 = pneg %p2519
  $region95: #{residual_block_forward.8} parent=0 // pred_check_branch
    %2522 = sbr.rel (%p2520) target = $region97
  $region96: #{residual_block_forward.8} parent=0 // pred_region
    %s2523 = sadd.s32 0, 1
    %p2524 = scmp.lt.s32.totalorder %s2523, 1
    %s2525 = sadd.s32 0, 1
    %p2526 = scmp.lt.s32.totalorder %s2525, 1
    %p2527 = por %p2524, %p2526
    // Predicated region
    $region98: #{residual_block_forward.8} parent=96 // pred_check
      %p2528 = pneg %p2527
    $region99: #{residual_block_forward.8} parent=96 // pred_check_branch
      %2530 = sbr.rel (%p2528) target = $region101
    $region100: #{residual_block_forward.8} parent=96 // pred_region
      %s2531 = scalar_select %p2524, %s2523, 0
      %s2532 = smul.u32 %s2531, 200
      %s2533 = sshra.s32 %s2532, 3
      %s2534 = sand.u32 %s2532, 7
      %s2535 = smul.addr %s2533, 4
      %s2536 = scalar_lea.vmem %s0, %s2535
      %p2538 = scmp.lt.u32.totalorder 112, 8
      %p2539 = pneg %p2538
      // Predicated region
      $region102: #{residual_block_forward.8} parent=100 // pred_check
        _
      $region103: #{residual_block_forward.8} parent=100 // pred_check_branch
        %2541 = sbr.rel (%p2538) target = $region105
      $region104: #{residual_block_forward.8} parent=100 // pred_region
        %s2556 = sand.u32 112, 7
        %p2557 = scmp.eq.s32.totalorder %s2556, 0
        // Predicated region
        $region117: #{residual_block_forward.8} parent=104 // pred_check
          %p2558 = pneg %p2557
        $region118: #{residual_block_forward.8} parent=104 // pred_check_branch
          %2560 = sbr.rel (%p2558) target = $region120
        $region119: #{residual_block_forward.8} parent=104 // pred_region
          loop: start=0, step=1, limit=1
          $region121: #{residual_block_forward.8} parent=119 // loop_pre_header
            _
          $region122: #{residual_block_forward.8} parent=119 // loop_header
            %s2562 = sphi 0, %s2566
            %p2563 = scmp.ge.s32.totalorder %s2562, 1
            %s2567 = sphi %s2536, %s2536
            %s2568 = sphi [#allocation2], [#allocation2]
          $region123: #{residual_block_forward.8} parent=119 // loop_header_branch
            %2565 = sbr.rel (%p2563) target = $region127
          $region124: #{residual_block_forward.8} parent=119 // loop_body
            %v2569 = vld [vmem:[%s2567] sm:$0xff]
            %2570 = vst [vmem:[%s2568] sm:$0xff] %v2569
            %v2571 = vld [vmem:[%s2567 + $0x8] sm:$0xff]
            %2572 = vst [vmem:[%s2568 + $0x8] sm:$0xff] %v2571
            %v2573 = vld [vmem:[%s2567 + $0x10] sm:$0xff]
            %2574 = vst [vmem:[%s2568 + $0x10] sm:$0xff] %v2573
            %v2575 = vld [vmem:[%s2567 + $0x18] sm:$0xff]
            %2576 = vst [vmem:[%s2568 + $0x18] sm:$0xff] %v2575
            %v2577 = vld [vmem:[%s2567 + $0x20] sm:$0xff]
            %2578 = vst [vmem:[%s2568 + $0x20] sm:$0xff] %v2577
            %v2579 = vld [vmem:[%s2567 + $0x28] sm:$0xff]
            %2580 = vst [vmem:[%s2568 + $0x28] sm:$0xff] %v2579
            %v2581 = vld [vmem:[%s2567 + $0x30] sm:$0xff]
            %2582 = vst [vmem:[%s2568 + $0x30] sm:$0xff] %v2581
            %v2583 = vld [vmem:[%s2567 + $0x38] sm:$0xff]
            %2584 = vst [vmem:[%s2568 + $0x38] sm:$0xff] %v2583
            %v2585 = vld [vmem:[%s2567 + $0x40] sm:$0xff]
            %2586 = vst [vmem:[%s2568 + $0x40] sm:$0xff] %v2585
            %v2587 = vld [vmem:[%s2567 + $0x48] sm:$0xff]
            %2588 = vst [vmem:[%s2568 + $0x48] sm:$0xff] %v2587
            %v2589 = vld [vmem:[%s2567 + $0x50] sm:$0xff]
            %2590 = vst [vmem:[%s2568 + $0x50] sm:$0xff] %v2589
            %v2591 = vld [vmem:[%s2567 + $0x58] sm:$0xff]
            %2592 = vst [vmem:[%s2568 + $0x58] sm:$0xff] %v2591
            %v2593 = vld [vmem:[%s2567 + $0x60] sm:$0xff]
            %2594 = vst [vmem:[%s2568 + $0x60] sm:$0xff] %v2593
            %v2595 = vld [vmem:[%s2567 + $0x68] sm:$0xff]
            %2596 = vst [vmem:[%s2568 + $0x68] sm:$0xff] %v2595
          $region125: #{residual_block_forward.8} parent=119 // loop_footer
            %s2566 = sadd.s32 1, %s2562
          $region126: #{residual_block_forward.8} parent=119 // loop_footer_branch
            %2561 = sbr.rel target = $region122
          $region127: #{residual_block_forward.8} parent=119 // loop_exit
            _
        $region120: #{residual_block_forward.8} parent=104 // pred_fallthru
          _
        %p2597 = pneg %p2557
        // Predicated region
        $region128: #{residual_block_forward.8} parent=104 // pred_check
          _
        $region129: #{residual_block_forward.8} parent=104 // pred_check_branch
          %2599 = sbr.rel (%p2557) target = $region131
        $region130: #{residual_block_forward.8} parent=104 // pred_region
          %s2600 = sand.u32 112, 7
        $region131: #{residual_block_forward.8} parent=104 // pred_fallthru
          _
      $region105: #{residual_block_forward.8} parent=100 // pred_fallthru
        _
      // Predicated region
      $region106: #{residual_block_forward.8} parent=100 // pred_check
        %p2542 = pneg %p2538
      $region107: #{residual_block_forward.8} parent=100 // pred_check_branch
        %2544 = sbr.rel (%p2542) target = $region109
      $region108: #{residual_block_forward.8} parent=100 // pred_region
        %s2545 = sshllo.u32 0, 112
        loop: start=0, step=1, limit=1
        $region110: #{residual_block_forward.8} parent=108 // loop_pre_header
          _
        $region111: #{residual_block_forward.8} parent=108 // loop_header
          %s2547 = sphi 0, %s2551
          %p2548 = scmp.ge.s32.totalorder %s2547, 1
          %s2552 = sphi %s2536, %s2536
          %s2553 = sphi [#allocation2], [#allocation2]
        $region112: #{residual_block_forward.8} parent=108 // loop_header_branch
          %2550 = sbr.rel (%p2548) target = $region116
        $region113: #{residual_block_forward.8} parent=108 // loop_body
          %v2554 = vld [vmem:[%s2552] sm:%s2545]
          %2555 = vst [vmem:[%s2553] sm:%s2545] %v2554
        $region114: #{residual_block_forward.8} parent=108 // loop_footer
          %s2551 = sadd.s32 1, %s2547
        $region115: #{residual_block_forward.8} parent=108 // loop_footer_branch
          %2546 = sbr.rel target = $region111
        $region116: #{residual_block_forward.8} parent=108 // loop_exit
          _
      $region109: #{residual_block_forward.8} parent=100 // pred_fallthru
        _
      // Predicated region
      $region132: #{residual_block_forward.8} parent=100 // pred_check
        _
      $region133: #{residual_block_forward.8} parent=100 // pred_check_branch
        %2603 = sbr.rel (0) target = $region135
      $region134: #{residual_block_forward.8} parent=100 // pred_region
        %2604 = vsyncadd [#allocation5], 1792
      $region135: #{residual_block_forward.8} parent=100 // pred_fallthru
        _
    $region101: #{residual_block_forward.8} parent=96 // pred_fallthru
      _
    %s2605 = smul.u32 0, 200
    %s2606 = scalar_lea.sflag [#allocation5], 1
    %s2607 = smul.u32 4, 28
    %s2608 = smul.u32 %s2607, 1
    %s2609 = sshll.u32 %s2608, 4
    %2610 = dma.done %s2606, %s2609
    %v2611 = vld [vmem:[#allocation3] sm:$0xff]
    %v2612 = vld [vmem:[#allocation3 + $0x8] sm:$0xff]
    %v2613 = vld [vmem:[#allocation3 + $0x10] sm:$0xff]
    %v2614 = vld [vmem:[#allocation3 + $0x18] sm:$0xff]
    %v2615 = vld [vmem:[#allocation3 + $0x20] sm:$0xff]
    %v2616 = vld [vmem:[#allocation3 + $0x28] sm:$0xff]
    %v2617 = vld [vmem:[#allocation3 + $0x30] sm:$0xff]
    %v2618 = vld [vmem:[#allocation3 + $0x38] sm:$0xff]
    %v2619 = vld [vmem:[#allocation3 + $0x40] sm:$0xff]
    %v2620 = vld [vmem:[#allocation3 + $0x48] sm:$0xff]
    %v2621 = vld [vmem:[#allocation3 + $0x50] sm:$0xff]
    %v2622 = vld [vmem:[#allocation3 + $0x58] sm:$0xff]
    %v2623 = vld [vmem:[#allocation3 + $0x60] sm:$0xf]
    %v2637 = vunpack.c.l.b16 %v2611
    %v2638 = vunpack.c.h.b16 %v2611
    %v2639 = vunpack.c.l.b16 %v2612
    %v2640 = vunpack.c.h.b16 %v2612
    %v2641 = vunpack.c.l.b16 %v2613
    %v2642 = vunpack.c.h.b16 %v2613
    %v2643 = vunpack.c.l.b16 %v2614
    %v2644 = vunpack.c.h.b16 %v2614
    %v2645 = vunpack.c.l.b16 %v2615
    %v2646 = vunpack.c.h.b16 %v2615
    %v2647 = vunpack.c.l.b16 %v2616
    %v2648 = vunpack.c.h.b16 %v2616
    %v2649 = vunpack.c.l.b16 %v2617
    %v2650 = vunpack.c.h.b16 %v2617
    %v2651 = vunpack.c.l.b16 %v2618
    %v2652 = vunpack.c.h.b16 %v2618
    %v2653 = vunpack.c.l.b16 %v2619
    %v2654 = vunpack.c.h.b16 %v2619
    %v2655 = vunpack.c.l.b16 %v2620
    %v2656 = vunpack.c.h.b16 %v2620
    %v2657 = vunpack.c.l.b16 %v2621
    %v2658 = vunpack.c.h.b16 %v2621
    %v2659 = vunpack.c.l.b16 %v2622
    %v2660 = vunpack.c.h.b16 %v2622
    %v2661 = vunpack.c.l.b16 %v2623
    %v2662 = vpack.c.b16 %v2637, %v2637
    %v2663 = vpack.c.b16 %v2638, %v2638
    %v2664 = vpack.c.b16 %v2639, %v2639
    %v2665 = vpack.c.b16 %v2640, %v2640
    %v2666 = vpack.c.b16 %v2641, %v2641
    %v2667 = vpack.c.b16 %v2642, %v2642
    %v2668 = vpack.c.b16 %v2643, %v2643
    %v2669 = vpack.c.b16 %v2644, %v2644
    %v2670 = vpack.c.b16 %v2645, %v2645
    %v2671 = vpack.c.b16 %v2646, %v2646
    %v2672 = vpack.c.b16 %v2647, %v2647
    %v2673 = vpack.c.b16 %v2648, %v2648
    %v2674 = vpack.c.b16 %v2649, %v2649
    %v2675 = vpack.c.b16 %v2650, %v2650
    %v2676 = vpack.c.b16 %v2651, %v2651
    %v2677 = vpack.c.b16 %v2652, %v2652
    %v2678 = vpack.c.b16 %v2653, %v2653
    %v2679 = vpack.c.b16 %v2654, %v2654
    %v2680 = vpack.c.b16 %v2655, %v2655
    %v2681 = vpack.c.b16 %v2656, %v2656
    %v2682 = vpack.c.b16 %v2657, %v2657
    %v2683 = vpack.c.b16 %v2658, %v2658
    %v2684 = vpack.c.b16 %v2659, %v2659
    %v2685 = vpack.c.b16 %v2660, %v2660
    %v2686 = vpack.c.b16 %v2661, %v2661
    %2712 = vst [vmem:[#allocation4] sm:$0xf] %v2662
    %2713 = vst [vmem:[#allocation4 + $0x24] sm:$0xf] %v2663
    %2714 = vst [vmem:[#allocation4 + $0x48] sm:$0xf] %v2664
    %2715 = vst [vmem:[#allocation4 + $0x6c] sm:$0xf] %v2665
    %2716 = vst [vmem:[#allocation4 + $0x90] sm:$0xf] %v2666
    %2717 = vst [vmem:[#allocation4 + $0xb4] sm:$0xf] %v2667
    %2718 = vst [vmem:[#allocation4 + $0xd8] sm:$0xf] %v2668
    %2719 = vst [vmem:[#allocation4 + $0xfc] sm:$0xf] %v2669
    %2720 = vst [vmem:[#allocation4 + $0x120] sm:$0xf] %v2670
    %2721 = vst [vmem:[#allocation4 + $0x144] sm:$0xf] %v2671
    %2722 = vst [vmem:[#allocation4 + $0x168] sm:$0xf] %v2672
    %2723 = vst [vmem:[#allocation4 + $0x18c] sm:$0xf] %v2673
    %2724 = vst [vmem:[#allocation4 + $0x1b0] sm:$0xf] %v2674
    %2725 = vst [vmem:[#allocation4 + $0x1d4] sm:$0xf] %v2675
    %2726 = vst [vmem:[#allocation4 + $0x1f8] sm:$0xf] %v2676
    %2727 = vst [vmem:[#allocation4 + $0x21c] sm:$0xf] %v2677
    %2728 = vst [vmem:[#allocation4 + $0x240] sm:$0xf] %v2678
    %2729 = vst [vmem:[#allocation4 + $0x264] sm:$0xf] %v2679
    %2730 = vst [vmem:[#allocation4 + $0x288] sm:$0xf] %v2680
    %2731 = vst [vmem:[#allocation4 + $0x2ac] sm:$0xf] %v2681
    %2732 = vst [vmem:[#allocation4 + $0x2d0] sm:$0xf] %v2682
    %2733 = vst [vmem:[#allocation4 + $0x2f4] sm:$0xf] %v2683
    %2734 = vst [vmem:[#allocation4 + $0x318] sm:$0xf] %v2684
    %2735 = vst [vmem:[#allocation4 + $0x33c] sm:$0xf] %v2685
    %2736 = vst [vmem:[#allocation4 + $0x360] sm:$0xf] %v2686
    %v2737 = vld [vmem:[#allocation3] sm:$0xff]
    %v2738 = vld [vmem:[#allocation3 + $0x8] sm:$0xff]
    %v2739 = vld [vmem:[#allocation3 + $0x10] sm:$0xff]
    %v2740 = vld [vmem:[#allocation3 + $0x18] sm:$0xff]
    %v2741 = vld [vmem:[#allocation3 + $0x20] sm:$0xff]
    %v2742 = vld [vmem:[#allocation3 + $0x28] sm:$0xff]
    %v2743 = vld [vmem:[#allocation3 + $0x30] sm:$0xff]
    %v2744 = vld [vmem:[#allocation3 + $0x38] sm:$0xff]
    %v2745 = vld [vmem:[#allocation3 + $0x40] sm:$0xff]
    %v2746 = vld [vmem:[#allocation3 + $0x48] sm:$0xff]
    %v2747 = vld [vmem:[#allocation3 + $0x50] sm:$0xff]
    %v2748 = vld [vmem:[#allocation3 + $0x58] sm:$0xff]
    %v2749 = vld [vmem:[#allocation3 + $0x60] sm:$0x1f]
    %v2763 = vunpack.c.l.b16 %v2737
    %v2764 = vunpack.c.h.b16 %v2737
    %v2765 = vunpack.c.l.b16 %v2738
    %v2766 = vunpack.c.h.b16 %v2738
    %v2767 = vunpack.c.l.b16 %v2739
    %v2768 = vunpack.c.h.b16 %v2739
    %v2769 = vunpack.c.l.b16 %v2740
    %v2770 = vunpack.c.h.b16 %v2740
    %v2771 = vunpack.c.l.b16 %v2741
    %v2772 = vunpack.c.h.b16 %v2741
    %v2773 = vunpack.c.l.b16 %v2742
    %v2774 = vunpack.c.h.b16 %v2742
    %v2775 = vunpack.c.l.b16 %v2743
    %v2776 = vunpack.c.h.b16 %v2743
    %v2777 = vunpack.c.l.b16 %v2744
    %v2778 = vunpack.c.h.b16 %v2744
    %v2779 = vunpack.c.l.b16 %v2745
    %v2780 = vunpack.c.h.b16 %v2745
    %v2781 = vunpack.c.l.b16 %v2746
    %v2782 = vunpack.c.h.b16 %v2746
    %v2783 = vunpack.c.l.b16 %v2747
    %v2784 = vunpack.c.h.b16 %v2747
    %v2785 = vunpack.c.l.b16 %v2748
    %v2786 = vunpack.c.h.b16 %v2748
    %v2787 = vunpack.c.l.b16 %v2749
    %v2788 = vunpack.c.h.b16 %v2749
    %v2789 = vpack.c.b16 %v2763, %v2763
    %v2790 = vpack.c.b16 %v2764, %v2764
    %v2791 = vpack.c.b16 %v2765, %v2765
    %v2792 = vpack.c.b16 %v2766, %v2766
    %v2793 = vpack.c.b16 %v2767, %v2767
    %v2794 = vpack.c.b16 %v2768, %v2768
    %v2795 = vpack.c.b16 %v2769, %v2769
    %v2796 = vpack.c.b16 %v2770, %v2770
    %v2797 = vpack.c.b16 %v2771, %v2771
    %v2798 = vpack.c.b16 %v2772, %v2772
    %v2799 = vpack.c.b16 %v2773, %v2773
    %v2800 = vpack.c.b16 %v2774, %v2774
    %v2801 = vpack.c.b16 %v2775, %v2775
    %v2802 = vpack.c.b16 %v2776, %v2776
    %v2803 = vpack.c.b16 %v2777, %v2777
    %v2804 = vpack.c.b16 %v2778, %v2778
    %v2805 = vpack.c.b16 %v2779, %v2779
    %v2806 = vpack.c.b16 %v2780, %v2780
    %v2807 = vpack.c.b16 %v2781, %v2781
    %v2808 = vpack.c.b16 %v2782, %v2782
    %v2809 = vpack.c.b16 %v2783, %v2783
    %v2810 = vpack.c.b16 %v2784, %v2784
    %v2811 = vpack.c.b16 %v2785, %v2785
    %v2812 = vpack.c.b16 %v2786, %v2786
    %v2813 = vpack.c.b16 %v2787, %v2787
    %v2814 = vpack.c.b16 %v2788, %v2788
    %vm2815 = vsmask.f32 3328
    %vm2816 = vsmask.f32 7440
    %vm2817 = vmor %vm2815, %vm2816
    %v2819 = vshrl.u32 %v2789, 16
    %v2821 = vrot.slane %v2819, 4
    %v2822 = vshll.u32 %v2789, 16
    %v2824 = vrot.slane %v2822, 5
    %v2825 = vor.u32 %v2821, %v2824
    %v2826 = vrot.slane %v2825, 4
    %v2828 = vshll.u32 %v2790, 16
    %v2830 = vrot.slane %v2828, 5
    %v2831 = vsel %vm2817, %v2826, %v2830
    %v2832 = vshrl.u32 %v2790, 16
    %v2834 = vrot.slane %v2832, 4
    %v2835 = vor.u32 %v2834, %v2830
    %v2836 = vrot.slane %v2835, 4
    %v2838 = vshll.u32 %v2791, 16
    %v2840 = vrot.slane %v2838, 5
    %v2841 = vsel %vm2817, %v2836, %v2840
    %v2842 = vshrl.u32 %v2791, 16
    %v2844 = vrot.slane %v2842, 4
    %v2845 = vor.u32 %v2844, %v2840
    %v2846 = vrot.slane %v2845, 4
    %v2848 = vshll.u32 %v2792, 16
    %v2850 = vrot.slane %v2848, 5
    %v2851 = vsel %vm2817, %v2846, %v2850
    %v2852 = vshrl.u32 %v2792, 16
    %v2854 = vrot.slane %v2852, 4
    %v2855 = vor.u32 %v2854, %v2850
    %v2856 = vrot.slane %v2855, 4
    %v2858 = vshll.u32 %v2793, 16
    %v2860 = vrot.slane %v2858, 5
    %v2861 = vsel %vm2817, %v2856, %v2860
    %v2862 = vshrl.u32 %v2793, 16
    %v2864 = vrot.slane %v2862, 4
    %v2865 = vor.u32 %v2864, %v2860
    %v2866 = vrot.slane %v2865, 4
    %v2868 = vshll.u32 %v2794, 16
    %v2870 = vrot.slane %v2868, 5
    %v2871 = vsel %vm2817, %v2866, %v2870
    %v2872 = vshrl.u32 %v2794, 16
    %v2874 = vrot.slane %v2872, 4
    %v2875 = vor.u32 %v2874, %v2870
    %v2876 = vrot.slane %v2875, 4
    %v2878 = vshll.u32 %v2795, 16
    %v2880 = vrot.slane %v2878, 5
    %v2881 = vsel %vm2817, %v2876, %v2880
    %v2882 = vshrl.u32 %v2795, 16
    %v2884 = vrot.slane %v2882, 4
    %v2885 = vor.u32 %v2884, %v2880
    %v2886 = vrot.slane %v2885, 4
    %v2888 = vshll.u32 %v2796, 16
    %v2890 = vrot.slane %v2888, 5
    %v2891 = vsel %vm2817, %v2886, %v2890
    %v2892 = vshrl.u32 %v2796, 16
    %v2894 = vrot.slane %v2892, 4
    %v2895 = vor.u32 %v2894, %v2890
    %v2896 = vrot.slane %v2895, 4
    %v2898 = vshll.u32 %v2797, 16
    %v2900 = vrot.slane %v2898, 5
    %v2901 = vsel %vm2817, %v2896, %v2900
    %v2902 = vshrl.u32 %v2797, 16
    %v2904 = vrot.slane %v2902, 4
    %v2905 = vor.u32 %v2904, %v2900
    %v2906 = vrot.slane %v2905, 4
    %v2908 = vshll.u32 %v2798, 16
    %v2910 = vrot.slane %v2908, 5
    %v2911 = vsel %vm2817, %v2906, %v2910
    %v2912 = vshrl.u32 %v2798, 16
    %v2914 = vrot.slane %v2912, 4
    %v2915 = vor.u32 %v2914, %v2910
    %v2916 = vrot.slane %v2915, 4
    %v2918 = vshll.u32 %v2799, 16
    %v2920 = vrot.slane %v2918, 5
    %v2921 = vsel %vm2817, %v2916, %v2920
    %v2922 = vshrl.u32 %v2799, 16
    %v2924 = vrot.slane %v2922, 4
    %v2925 = vor.u32 %v2924, %v2920
    %v2926 = vrot.slane %v2925, 4
    %v2928 = vshll.u32 %v2800, 16
    %v2930 = vrot.slane %v2928, 5
    %v2931 = vsel %vm2817, %v2926, %v2930
    %v2932 = vshrl.u32 %v2800, 16
    %v2934 = vrot.slane %v2932, 4
    %v2935 = vor.u32 %v2934, %v2930
    %v2936 = vrot.slane %v2935, 4
    %v2938 = vshll.u32 %v2801, 16
    %v2940 = vrot.slane %v2938, 5
    %v2941 = vsel %vm2817, %v2936, %v2940
    %v2942 = vshrl.u32 %v2801, 16
    %v2944 = vrot.slane %v2942, 4
    %v2945 = vor.u32 %v2944, %v2940
    %v2946 = vrot.slane %v2945, 4
    %v2948 = vshll.u32 %v2802, 16
    %v2950 = vrot.slane %v2948, 5
    %v2951 = vsel %vm2817, %v2946, %v2950
    %v2952 = vshrl.u32 %v2802, 16
    %v2954 = vrot.slane %v2952, 4
    %v2955 = vor.u32 %v2954, %v2950
    %v2956 = vrot.slane %v2955, 4
    %v2958 = vshll.u32 %v2803, 16
    %v2960 = vrot.slane %v2958, 5
    %v2961 = vsel %vm2817, %v2956, %v2960
    %v2962 = vshrl.u32 %v2803, 16
    %v2964 = vrot.slane %v2962, 4
    %v2965 = vor.u32 %v2964, %v2960
    %v2966 = vrot.slane %v2965, 4
    %v2968 = vshll.u32 %v2804, 16
    %v2970 = vrot.slane %v2968, 5
    %v2971 = vsel %vm2817, %v2966, %v2970
    %v2972 = vshrl.u32 %v2804, 16
    %v2974 = vrot.slane %v2972, 4
    %v2975 = vor.u32 %v2974, %v2970
    %v2976 = vrot.slane %v2975, 4
    %v2978 = vshll.u32 %v2805, 16
    %v2980 = vrot.slane %v2978, 5
    %v2981 = vsel %vm2817, %v2976, %v2980
    %v2982 = vshrl.u32 %v2805, 16
    %v2984 = vrot.slane %v2982, 4
    %v2985 = vor.u32 %v2984, %v2980
    %v2986 = vrot.slane %v2985, 4
    %v2988 = vshll.u32 %v2806, 16
    %v2990 = vrot.slane %v2988, 5
    %v2991 = vsel %vm2817, %v2986, %v2990
    %v2992 = vshrl.u32 %v2806, 16
    %v2994 = vrot.slane %v2992, 4
    %v2995 = vor.u32 %v2994, %v2990
    %v2996 = vrot.slane %v2995, 4
    %v2998 = vshll.u32 %v2807, 16
    %v3000 = vrot.slane %v2998, 5
    %v3001 = vsel %vm2817, %v2996, %v3000
    %v3002 = vshrl.u32 %v2807, 16
    %v3004 = vrot.slane %v3002, 4
    %v3005 = vor.u32 %v3004, %v3000
    %v3006 = vrot.slane %v3005, 4
    %v3008 = vshll.u32 %v2808, 16
    %v3010 = vrot.slane %v3008, 5
    %v3011 = vsel %vm2817, %v3006, %v3010
    %v3012 = vshrl.u32 %v2808, 16
    %v3014 = vrot.slane %v3012, 4
    %v3015 = vor.u32 %v3014, %v3010
    %v3016 = vrot.slane %v3015, 4
    %v3018 = vshll.u32 %v2809, 16
    %v3020 = vrot.slane %v3018, 5
    %v3021 = vsel %vm2817, %v3016, %v3020
    %v3022 = vshrl.u32 %v2809, 16
    %v3024 = vrot.slane %v3022, 4
    %v3025 = vor.u32 %v3024, %v3020
    %v3026 = vrot.slane %v3025, 4
    %v3028 = vshll.u32 %v2810, 16
    %v3030 = vrot.slane %v3028, 5
    %v3031 = vsel %vm2817, %v3026, %v3030
    %v3032 = vshrl.u32 %v2810, 16
    %v3034 = vrot.slane %v3032, 4
    %v3035 = vor.u32 %v3034, %v3030
    %v3036 = vrot.slane %v3035, 4
    %v3038 = vshll.u32 %v2811, 16
    %v3040 = vrot.slane %v3038, 5
    %v3041 = vsel %vm2817, %v3036, %v3040
    %v3042 = vshrl.u32 %v2811, 16
    %v3044 = vrot.slane %v3042, 4
    %v3045 = vor.u32 %v3044, %v3040
    %v3046 = vrot.slane %v3045, 4
    %v3048 = vshll.u32 %v2812, 16
    %v3050 = vrot.slane %v3048, 5
    %v3051 = vsel %vm2817, %v3046, %v3050
    %v3052 = vshrl.u32 %v2812, 16
    %v3054 = vrot.slane %v3052, 4
    %v3055 = vor.u32 %v3054, %v3050
    %v3056 = vrot.slane %v3055, 4
    %v3058 = vshll.u32 %v2813, 16
    %v3060 = vrot.slane %v3058, 5
    %v3061 = vsel %vm2817, %v3056, %v3060
    %v3062 = vshrl.u32 %v2813, 16
    %v3064 = vrot.slane %v3062, 4
    %v3065 = vor.u32 %v3064, %v3060
    %v3066 = vrot.slane %v3065, 4
    %v3068 = vshll.u32 %v2814, 16
    %v3070 = vrot.slane %v3068, 5
    %v3071 = vsel %vm2817, %v3066, %v3070
    %3097 = vst [vmem:[#allocation4 + $0x4] sm:$0xf] %v2831
    %3098 = vst [vmem:[#allocation4 + $0x28] sm:$0xf] %v2841
    %3099 = vst [vmem:[#allocation4 + $0x4c] sm:$0xf] %v2851
    %3100 = vst [vmem:[#allocation4 + $0x70] sm:$0xf] %v2861
    %3101 = vst [vmem:[#allocation4 + $0x94] sm:$0xf] %v2871
    %3102 = vst [vmem:[#allocation4 + $0xb8] sm:$0xf] %v2881
    %3103 = vst [vmem:[#allocation4 + $0xdc] sm:$0xf] %v2891
    %3104 = vst [vmem:[#allocation4 + $0x100] sm:$0xf] %v2901
    %3105 = vst [vmem:[#allocation4 + $0x124] sm:$0xf] %v2911
    %3106 = vst [vmem:[#allocation4 + $0x148] sm:$0xf] %v2921
    %3107 = vst [vmem:[#allocation4 + $0x16c] sm:$0xf] %v2931
    %3108 = vst [vmem:[#allocation4 + $0x190] sm:$0xf] %v2941
    %3109 = vst [vmem:[#allocation4 + $0x1b4] sm:$0xf] %v2951
    %3110 = vst [vmem:[#allocation4 + $0x1d8] sm:$0xf] %v2961
    %3111 = vst [vmem:[#allocation4 + $0x1fc] sm:$0xf] %v2971
    %3112 = vst [vmem:[#allocation4 + $0x220] sm:$0xf] %v2981
    %3113 = vst [vmem:[#allocation4 + $0x244] sm:$0xf] %v2991
    %3114 = vst [vmem:[#allocation4 + $0x268] sm:$0xf] %v3001
    %3115 = vst [vmem:[#allocation4 + $0x28c] sm:$0xf] %v3011
    %3116 = vst [vmem:[#allocation4 + $0x2b0] sm:$0xf] %v3021
    %3117 = vst [vmem:[#allocation4 + $0x2d4] sm:$0xf] %v3031
    %3118 = vst [vmem:[#allocation4 + $0x2f8] sm:$0xf] %v3041
    %3119 = vst [vmem:[#allocation4 + $0x31c] sm:$0xf] %v3051
    %3120 = vst [vmem:[#allocation4 + $0x340] sm:$0xf] %v3061
    %3121 = vst [vmem:[#allocation4 + $0x364] sm:$0xf] %v3071
    %v3122 = vld [vmem:[#allocation3] sm:$0xfe]
    %v3123 = vld [vmem:[#allocation3 + $0x8] sm:$0xff]
    %v3124 = vld [vmem:[#allocation3 + $0x10] sm:$0xff]
    %v3125 = vld [vmem:[#allocation3 + $0x18] sm:$0xff]
    %v3126 = vld [vmem:[#allocation3 + $0x20] sm:$0xff]
    %v3127 = vld [vmem:[#allocation3 + $0x28] sm:$0xff]
    %v3128 = vld [vmem:[#allocation3 + $0x30] sm:$0xff]
    %v3129 = vld [vmem:[#allocation3 + $0x38] sm:$0xff]
    %v3130 = vld [vmem:[#allocation3 + $0x40] sm:$0xff]
    %v3131 = vld [vmem:[#allocation3 + $0x48] sm:$0xff]
    %v3132 = vld [vmem:[#allocation3 + $0x50] sm:$0xff]
    %v3133 = vld [vmem:[#allocation3 + $0x58] sm:$0xff]
    %v3134 = vld [vmem:[#allocation3 + $0x60] sm:$0x1f]
    %v3148 = vunpack.c.l.b16 %v3122
    %v3149 = vunpack.c.h.b16 %v3122
    %v3150 = vunpack.c.l.b16 %v3123
    %v3151 = vunpack.c.h.b16 %v3123
    %v3152 = vunpack.c.l.b16 %v3124
    %v3153 = vunpack.c.h.b16 %v3124
    %v3154 = vunpack.c.l.b16 %v3125
    %v3155 = vunpack.c.h.b16 %v3125
    %v3156 = vunpack.c.l.b16 %v3126
    %v3157 = vunpack.c.h.b16 %v3126
    %v3158 = vunpack.c.l.b16 %v3127
    %v3159 = vunpack.c.h.b16 %v3127
    %v3160 = vunpack.c.l.b16 %v3128
    %v3161 = vunpack.c.h.b16 %v3128
    %v3162 = vunpack.c.l.b16 %v3129
    %v3163 = vunpack.c.h.b16 %v3129
    %v3164 = vunpack.c.l.b16 %v3130
    %v3165 = vunpack.c.h.b16 %v3130
    %v3166 = vunpack.c.l.b16 %v3131
    %v3167 = vunpack.c.h.b16 %v3131
    %v3168 = vunpack.c.l.b16 %v3132
    %v3169 = vunpack.c.h.b16 %v3132
    %v3170 = vunpack.c.l.b16 %v3133
    %v3171 = vunpack.c.h.b16 %v3133
    %v3172 = vunpack.c.l.b16 %v3134
    %v3173 = vunpack.c.h.b16 %v3134
    %v3174 = vpack.c.b16 %v3148, %v3148
    %v3175 = vpack.c.b16 %v3149, %v3149
    %v3176 = vpack.c.b16 %v3150, %v3150
    %v3177 = vpack.c.b16 %v3151, %v3151
    %v3178 = vpack.c.b16 %v3152, %v3152
    %v3179 = vpack.c.b16 %v3153, %v3153
    %v3180 = vpack.c.b16 %v3154, %v3154
    %v3181 = vpack.c.b16 %v3155, %v3155
    %v3182 = vpack.c.b16 %v3156, %v3156
    %v3183 = vpack.c.b16 %v3157, %v3157
    %v3184 = vpack.c.b16 %v3158, %v3158
    %v3185 = vpack.c.b16 %v3159, %v3159
    %v3186 = vpack.c.b16 %v3160, %v3160
    %v3187 = vpack.c.b16 %v3161, %v3161
    %v3188 = vpack.c.b16 %v3162, %v3162
    %v3189 = vpack.c.b16 %v3163, %v3163
    %v3190 = vpack.c.b16 %v3164, %v3164
    %v3191 = vpack.c.b16 %v3165, %v3165
    %v3192 = vpack.c.b16 %v3166, %v3166
    %v3193 = vpack.c.b16 %v3167, %v3167
    %v3194 = vpack.c.b16 %v3168, %v3168
    %v3195 = vpack.c.b16 %v3169, %v3169
    %v3196 = vpack.c.b16 %v3170, %v3170
    %v3197 = vpack.c.b16 %v3171, %v3171
    %v3198 = vpack.c.b16 %v3172, %v3172
    %v3199 = vpack.c.b16 %v3173, %v3173
    %vm3200 = vcmask 1042432
    %vm3201 = vcmask 1046532
    %vm3202 = vmor %vm3200, %vm3201
    %v3203 = vrot.slane %v3174, 5
    %v3204 = vrot.slane %v3203, 4
    %v3205 = vrot.slane %v3175, 5
    %v3206 = vsel %vm3202, %v3204, %v3205
    %v3207 = vrot.slane %v3205, 4
    %v3208 = vrot.slane %v3176, 5
    %v3209 = vsel %vm3202, %v3207, %v3208
    %v3210 = vrot.slane %v3208, 4
    %v3211 = vrot.slane %v3177, 5
    %v3212 = vsel %vm3202, %v3210, %v3211
    %v3213 = vrot.slane %v3211, 4
    %v3214 = vrot.slane %v3178, 5
    %v3215 = vsel %vm3202, %v3213, %v3214
    %v3216 = vrot.slane %v3214, 4
    %v3217 = vrot.slane %v3179, 5
    %v3218 = vsel %vm3202, %v3216, %v3217
    %v3219 = vrot.slane %v3217, 4
    %v3220 = vrot.slane %v3180, 5
    %v3221 = vsel %vm3202, %v3219, %v3220
    %v3222 = vrot.slane %v3220, 4
    %v3223 = vrot.slane %v3181, 5
    %v3224 = vsel %vm3202, %v3222, %v3223
    %v3225 = vrot.slane %v3223, 4
    %v3226 = vrot.slane %v3182, 5
    %v3227 = vsel %vm3202, %v3225, %v3226
    %v3228 = vrot.slane %v3226, 4
    %v3229 = vrot.slane %v3183, 5
    %v3230 = vsel %vm3202, %v3228, %v3229
    %v3231 = vrot.slane %v3229, 4
    %v3232 = vrot.slane %v3184, 5
    %v3233 = vsel %vm3202, %v3231, %v3232
    %v3234 = vrot.slane %v3232, 4
    %v3235 = vrot.slane %v3185, 5
    %v3236 = vsel %vm3202, %v3234, %v3235
    %v3237 = vrot.slane %v3235, 4
    %v3238 = vrot.slane %v3186, 5
    %v3239 = vsel %vm3202, %v3237, %v3238
    %v3240 = vrot.slane %v3238, 4
    %v3241 = vrot.slane %v3187, 5
    %v3242 = vsel %vm3202, %v3240, %v3241
    %v3243 = vrot.slane %v3241, 4
    %v3244 = vrot.slane %v3188, 5
    %v3245 = vsel %vm3202, %v3243, %v3244
    %v3246 = vrot.slane %v3244, 4
    %v3247 = vrot.slane %v3189, 5
    %v3248 = vsel %vm3202, %v3246, %v3247
    %v3249 = vrot.slane %v3247, 4
    %v3250 = vrot.slane %v3190, 5
    %v3251 = vsel %vm3202, %v3249, %v3250
    %v3252 = vrot.slane %v3250, 4
    %v3253 = vrot.slane %v3191, 5
    %v3254 = vsel %vm3202, %v3252, %v3253
    %v3255 = vrot.slane %v3253, 4
    %v3256 = vrot.slane %v3192, 5
    %v3257 = vsel %vm3202, %v3255, %v3256
    %v3258 = vrot.slane %v3256, 4
    %v3259 = vrot.slane %v3193, 5
    %v3260 = vsel %vm3202, %v3258, %v3259
    %v3261 = vrot.slane %v3259, 4
    %v3262 = vrot.slane %v3194, 5
    %v3263 = vsel %vm3202, %v3261, %v3262
    %v3264 = vrot.slane %v3262, 4
    %v3265 = vrot.slane %v3195, 5
    %v3266 = vsel %vm3202, %v3264, %v3265
    %v3267 = vrot.slane %v3265, 4
    %v3268 = vrot.slane %v3196, 5
    %v3269 = vsel %vm3202, %v3267, %v3268
    %v3270 = vrot.slane %v3268, 4
    %v3271 = vrot.slane %v3197, 5
    %v3272 = vsel %vm3202, %v3270, %v3271
    %v3273 = vrot.slane %v3271, 4
    %v3274 = vrot.slane %v3198, 5
    %v3275 = vsel %vm3202, %v3273, %v3274
    %v3276 = vrot.slane %v3274, 4
    %v3277 = vrot.slane %v3199, 5
    %v3278 = vsel %vm3202, %v3276, %v3277
    %3304 = vst [vmem:[#allocation4 + $0x8] sm:$0xf] %v3206
    %3305 = vst [vmem:[#allocation4 + $0x2c] sm:$0xf] %v3209
    %3306 = vst [vmem:[#allocation4 + $0x50] sm:$0xf] %v3212
    %3307 = vst [vmem:[#allocation4 + $0x74] sm:$0xf] %v3215
    %3308 = vst [vmem:[#allocation4 + $0x98] sm:$0xf] %v3218
    %3309 = vst [vmem:[#allocation4 + $0xbc] sm:$0xf] %v3221
    %3310 = vst [vmem:[#allocation4 + $0xe0] sm:$0xf] %v3224
    %3311 = vst [vmem:[#allocation4 + $0x104] sm:$0xf] %v3227
    %3312 = vst [vmem:[#allocation4 + $0x128] sm:$0xf] %v3230
    %3313 = vst [vmem:[#allocation4 + $0x14c] sm:$0xf] %v3233
    %3314 = vst [vmem:[#allocation4 + $0x170] sm:$0xf] %v3236
    %3315 = vst [vmem:[#allocation4 + $0x194] sm:$0xf] %v3239
    %3316 = vst [vmem:[#allocation4 + $0x1b8] sm:$0xf] %v3242
    %3317 = vst [vmem:[#allocation4 + $0x1dc] sm:$0xf] %v3245
    %3318 = vst [vmem:[#allocation4 + $0x200] sm:$0xf] %v3248
    %3319 = vst [vmem:[#allocation4 + $0x224] sm:$0xf] %v3251
    %3320 = vst [vmem:[#allocation4 + $0x248] sm:$0xf] %v3254
    %3321 = vst [vmem:[#allocation4 + $0x26c] sm:$0xf] %v3257
    %3322 = vst [vmem:[#allocation4 + $0x290] sm:$0xf] %v3260
    %3323 = vst [vmem:[#allocation4 + $0x2b4] sm:$0xf] %v3263
    %3324 = vst [vmem:[#allocation4 + $0x2d8] sm:$0xf] %v3266
    %3325 = vst [vmem:[#allocation4 + $0x2fc] sm:$0xf] %v3269
    %3326 = vst [vmem:[#allocation4 + $0x320] sm:$0xf] %v3272
    %3327 = vst [vmem:[#allocation4 + $0x344] sm:$0xf] %v3275
    %3328 = vst [vmem:[#allocation4 + $0x368] sm:$0xf] %v3278
    %v3329 = vld [vmem:[#allocation3] sm:$0xe0]
    %v3330 = vld [vmem:[#allocation3 + $0x8] sm:$0xff]
    %v3331 = vld [vmem:[#allocation3 + $0x10] sm:$0xff]
    %v3332 = vld [vmem:[#allocation3 + $0x18] sm:$0xff]
    %v3333 = vld [vmem:[#allocation3 + $0x20] sm:$0xff]
    %v3334 = vld [vmem:[#allocation3 + $0x28] sm:$0xff]
    %v3335 = vld [vmem:[#allocation3 + $0x30] sm:$0xff]
    %v3336 = vld [vmem:[#allocation3 + $0x38] sm:$0xff]
    %v3337 = vld [vmem:[#allocation3 + $0x40] sm:$0xff]
    %v3338 = vld [vmem:[#allocation3 + $0x48] sm:$0xff]
    %v3339 = vld [vmem:[#allocation3 + $0x50] sm:$0xff]
    %v3340 = vld [vmem:[#allocation3 + $0x58] sm:$0xff]
    %v3341 = vld [vmem:[#allocation3 + $0x60] sm:$0xff]
    %v3342 = vld [vmem:[#allocation3 + $0x68] sm:$0x1]
    %v3357 = vunpack.c.h.b16 %v3329
    %v3358 = vunpack.c.l.b16 %v3330
    %v3359 = vunpack.c.h.b16 %v3330
    %v3360 = vunpack.c.l.b16 %v3331
    %v3361 = vunpack.c.h.b16 %v3331
    %v3362 = vunpack.c.l.b16 %v3332
    %v3363 = vunpack.c.h.b16 %v3332
    %v3364 = vunpack.c.l.b16 %v3333
    %v3365 = vunpack.c.h.b16 %v3333
    %v3366 = vunpack.c.l.b16 %v3334
    %v3367 = vunpack.c.h.b16 %v3334
    %v3368 = vunpack.c.l.b16 %v3335
    %v3369 = vunpack.c.h.b16 %v3335
    %v3370 = vunpack.c.l.b16 %v3336
    %v3371 = vunpack.c.h.b16 %v3336
    %v3372 = vunpack.c.l.b16 %v3337
    %v3373 = vunpack.c.h.b16 %v3337
    %v3374 = vunpack.c.l.b16 %v3338
    %v3375 = vunpack.c.h.b16 %v3338
    %v3376 = vunpack.c.l.b16 %v3339
    %v3377 = vunpack.c.h.b16 %v3339
    %v3378 = vunpack.c.l.b16 %v3340
    %v3379 = vunpack.c.h.b16 %v3340
    %v3380 = vunpack.c.l.b16 %v3341
    %v3381 = vunpack.c.h.b16 %v3341
    %v3382 = vunpack.c.l.b16 %v3342
    %v3383 = vpack.c.b16 %v3357, %v3357
    %v3384 = vpack.c.b16 %v3358, %v3358
    %v3385 = vpack.c.b16 %v3359, %v3359
    %v3386 = vpack.c.b16 %v3360, %v3360
    %v3387 = vpack.c.b16 %v3361, %v3361
    %v3388 = vpack.c.b16 %v3362, %v3362
    %v3389 = vpack.c.b16 %v3363, %v3363
    %v3390 = vpack.c.b16 %v3364, %v3364
    %v3391 = vpack.c.b16 %v3365, %v3365
    %v3392 = vpack.c.b16 %v3366, %v3366
    %v3393 = vpack.c.b16 %v3367, %v3367
    %v3394 = vpack.c.b16 %v3368, %v3368
    %v3395 = vpack.c.b16 %v3369, %v3369
    %v3396 = vpack.c.b16 %v3370, %v3370
    %v3397 = vpack.c.b16 %v3371, %v3371
    %v3398 = vpack.c.b16 %v3372, %v3372
    %v3399 = vpack.c.b16 %v3373, %v3373
    %v3400 = vpack.c.b16 %v3374, %v3374
    %v3401 = vpack.c.b16 %v3375, %v3375
    %v3402 = vpack.c.b16 %v3376, %v3376
    %v3403 = vpack.c.b16 %v3377, %v3377
    %v3404 = vpack.c.b16 %v3378, %v3378
    %v3405 = vpack.c.b16 %v3379, %v3379
    %v3406 = vpack.c.b16 %v3380, %v3380
    %v3407 = vpack.c.b16 %v3381, %v3381
    %v3408 = vpack.c.b16 %v3382, %v3382
    %v3409 = vrot.slane %v3383, 5
    %v3410 = vrot.slane %v3409, 4
    %v3411 = vrot.slane %v3384, 5
    %v3412 = vsel %vm3202, %v3410, %v3411
    %v3413 = vrot.slane %v3411, 4
    %v3414 = vrot.slane %v3385, 5
    %v3415 = vsel %vm3202, %v3413, %v3414
    %v3416 = vrot.slane %v3414, 4
    %v3417 = vrot.slane %v3386, 5
    %v3418 = vsel %vm3202, %v3416, %v3417
    %v3419 = vrot.slane %v3417, 4
    %v3420 = vrot.slane %v3387, 5
    %v3421 = vsel %vm3202, %v3419, %v3420
    %v3422 = vrot.slane %v3420, 4
    %v3423 = vrot.slane %v3388, 5
    %v3424 = vsel %vm3202, %v3422, %v3423
    %v3425 = vrot.slane %v3423, 4
    %v3426 = vrot.slane %v3389, 5
    %v3427 = vsel %vm3202, %v3425, %v3426
    %v3428 = vrot.slane %v3426, 4
    %v3429 = vrot.slane %v3390, 5
    %v3430 = vsel %vm3202, %v3428, %v3429
    %v3431 = vrot.slane %v3429, 4
    %v3432 = vrot.slane %v3391, 5
    %v3433 = vsel %vm3202, %v3431, %v3432
    %v3434 = vrot.slane %v3432, 4
    %v3435 = vrot.slane %v3392, 5
    %v3436 = vsel %vm3202, %v3434, %v3435
    %v3437 = vrot.slane %v3435, 4
    %v3438 = vrot.slane %v3393, 5
    %v3439 = vsel %vm3202, %v3437, %v3438
    %v3440 = vrot.slane %v3438, 4
    %v3441 = vrot.slane %v3394, 5
    %v3442 = vsel %vm3202, %v3440, %v3441
    %v3443 = vrot.slane %v3441, 4
    %v3444 = vrot.slane %v3395, 5
    %v3445 = vsel %vm3202, %v3443, %v3444
    %v3446 = vrot.slane %v3444, 4
    %v3447 = vrot.slane %v3396, 5
    %v3448 = vsel %vm3202, %v3446, %v3447
    %v3449 = vrot.slane %v3447, 4
    %v3450 = vrot.slane %v3397, 5
    %v3451 = vsel %vm3202, %v3449, %v3450
    %v3452 = vrot.slane %v3450, 4
    %v3453 = vrot.slane %v3398, 5
    %v3454 = vsel %vm3202, %v3452, %v3453
    %v3455 = vrot.slane %v3453, 4
    %v3456 = vrot.slane %v3399, 5
    %v3457 = vsel %vm3202, %v3455, %v3456
    %v3458 = vrot.slane %v3456, 4
    %v3459 = vrot.slane %v3400, 5
    %v3460 = vsel %vm3202, %v3458, %v3459
    %v3461 = vrot.slane %v3459, 4
    %v3462 = vrot.slane %v3401, 5
    %v3463 = vsel %vm3202, %v3461, %v3462
    %v3464 = vrot.slane %v3462, 4
    %v3465 = vrot.slane %v3402, 5
    %v3466 = vsel %vm3202, %v3464, %v3465
    %v3467 = vrot.slane %v3465, 4
    %v3468 = vrot.slane %v3403, 5
    %v3469 = vsel %vm3202, %v3467, %v3468
    %v3470 = vrot.slane %v3468, 4
    %v3471 = vrot.slane %v3404, 5
    %v3472 = vsel %vm3202, %v3470, %v3471
    %v3473 = vrot.slane %v3471, 4
    %v3474 = vrot.slane %v3405, 5
    %v3475 = vsel %vm3202, %v3473, %v3474
    %v3476 = vrot.slane %v3474, 4
    %v3477 = vrot.slane %v3406, 5
    %v3478 = vsel %vm3202, %v3476, %v3477
    %v3479 = vrot.slane %v3477, 4
    %v3480 = vrot.slane %v3407, 5
    %v3481 = vsel %vm3202, %v3479, %v3480
    %v3482 = vrot.slane %v3480, 4
    %v3483 = vrot.slane %v3408, 5
    %v3484 = vsel %vm3202, %v3482, %v3483
    %3510 = vst [vmem:[#allocation4 + $0xc] sm:$0xf] %v3412
    %3511 = vst [vmem:[#allocation4 + $0x30] sm:$0xf] %v3415
    %3512 = vst [vmem:[#allocation4 + $0x54] sm:$0xf] %v3418
    %3513 = vst [vmem:[#allocation4 + $0x78] sm:$0xf] %v3421
    %3514 = vst [vmem:[#allocation4 + $0x9c] sm:$0xf] %v3424
    %3515 = vst [vmem:[#allocation4 + $0xc0] sm:$0xf] %v3427
    %3516 = vst [vmem:[#allocation4 + $0xe4] sm:$0xf] %v3430
    %3517 = vst [vmem:[#allocation4 + $0x108] sm:$0xf] %v3433
    %3518 = vst [vmem:[#allocation4 + $0x12c] sm:$0xf] %v3436
    %3519 = vst [vmem:[#allocation4 + $0x150] sm:$0xf] %v3439
    %3520 = vst [vmem:[#allocation4 + $0x174] sm:$0xf] %v3442
    %3521 = vst [vmem:[#allocation4 + $0x198] sm:$0xf] %v3445
    %3522 = vst [vmem:[#allocation4 + $0x1bc] sm:$0xf] %v3448
    %3523 = vst [vmem:[#allocation4 + $0x1e0] sm:$0xf] %v3451
    %3524 = vst [vmem:[#allocation4 + $0x204] sm:$0xf] %v3454
    %3525 = vst [vmem:[#allocation4 + $0x228] sm:$0xf] %v3457
    %3526 = vst [vmem:[#allocation4 + $0x24c] sm:$0xf] %v3460
    %3527 = vst [vmem:[#allocation4 + $0x270] sm:$0xf] %v3463
    %3528 = vst [vmem:[#allocation4 + $0x294] sm:$0xf] %v3466
    %3529 = vst [vmem:[#allocation4 + $0x2b8] sm:$0xf] %v3469
    %3530 = vst [vmem:[#allocation4 + $0x2dc] sm:$0xf] %v3472
    %3531 = vst [vmem:[#allocation4 + $0x300] sm:$0xf] %v3475
    %3532 = vst [vmem:[#allocation4 + $0x324] sm:$0xf] %v3478
    %3533 = vst [vmem:[#allocation4 + $0x348] sm:$0xf] %v3481
    %3534 = vst [vmem:[#allocation4 + $0x36c] sm:$0xf] %v3484
    %v3535 = vld [vmem:[#allocation3] sm:$0xe0]
    %v3536 = vld [vmem:[#allocation3 + $0x8] sm:$0xff]
    %v3537 = vld [vmem:[#allocation3 + $0x10] sm:$0xff]
    %v3538 = vld [vmem:[#allocation3 + $0x18] sm:$0xff]
    %v3539 = vld [vmem:[#allocation3 + $0x20] sm:$0xff]
    %v3540 = vld [vmem:[#allocation3 + $0x28] sm:$0xff]
    %v3541 = vld [vmem:[#allocation3 + $0x30] sm:$0xff]
    %v3542 = vld [vmem:[#allocation3 + $0x38] sm:$0xff]
    %v3543 = vld [vmem:[#allocation3 + $0x40] sm:$0xff]
    %v3544 = vld [vmem:[#allocation3 + $0x48] sm:$0xff]
    %v3545 = vld [vmem:[#allocation3 + $0x50] sm:$0xff]
    %v3546 = vld [vmem:[#allocation3 + $0x58] sm:$0xff]
    %v3547 = vld [vmem:[#allocation3 + $0x60] sm:$0xff]
    %v3548 = vld [vmem:[#allocation3 + $0x68] sm:$0x3]
    %v3563 = vunpack.c.h.b16 %v3535
    %v3564 = vunpack.c.l.b16 %v3536
    %v3565 = vunpack.c.h.b16 %v3536
    %v3566 = vunpack.c.l.b16 %v3537
    %v3567 = vunpack.c.h.b16 %v3537
    %v3568 = vunpack.c.l.b16 %v3538
    %v3569 = vunpack.c.h.b16 %v3538
    %v3570 = vunpack.c.l.b16 %v3539
    %v3571 = vunpack.c.h.b16 %v3539
    %v3572 = vunpack.c.l.b16 %v3540
    %v3573 = vunpack.c.h.b16 %v3540
    %v3574 = vunpack.c.l.b16 %v3541
    %v3575 = vunpack.c.h.b16 %v3541
    %v3576 = vunpack.c.l.b16 %v3542
    %v3577 = vunpack.c.h.b16 %v3542
    %v3578 = vunpack.c.l.b16 %v3543
    %v3579 = vunpack.c.h.b16 %v3543
    %v3580 = vunpack.c.l.b16 %v3544
    %v3581 = vunpack.c.h.b16 %v3544
    %v3582 = vunpack.c.l.b16 %v3545
    %v3583 = vunpack.c.h.b16 %v3545
    %v3584 = vunpack.c.l.b16 %v3546
    %v3585 = vunpack.c.h.b16 %v3546
    %v3586 = vunpack.c.l.b16 %v3547
    %v3587 = vunpack.c.h.b16 %v3547
    %v3588 = vunpack.c.l.b16 %v3548
    %v3589 = vpack.c.b16 %v3563, %v3563
    %v3590 = vpack.c.b16 %v3564, %v3564
    %v3591 = vpack.c.b16 %v3565, %v3565
    %v3592 = vpack.c.b16 %v3566, %v3566
    %v3593 = vpack.c.b16 %v3567, %v3567
    %v3594 = vpack.c.b16 %v3568, %v3568
    %v3595 = vpack.c.b16 %v3569, %v3569
    %v3596 = vpack.c.b16 %v3570, %v3570
    %v3597 = vpack.c.b16 %v3571, %v3571
    %v3598 = vpack.c.b16 %v3572, %v3572
    %v3599 = vpack.c.b16 %v3573, %v3573
    %v3600 = vpack.c.b16 %v3574, %v3574
    %v3601 = vpack.c.b16 %v3575, %v3575
    %v3602 = vpack.c.b16 %v3576, %v3576
    %v3603 = vpack.c.b16 %v3577, %v3577
    %v3604 = vpack.c.b16 %v3578, %v3578
    %v3605 = vpack.c.b16 %v3579, %v3579
    %v3606 = vpack.c.b16 %v3580, %v3580
    %v3607 = vpack.c.b16 %v3581, %v3581
    %v3608 = vpack.c.b16 %v3582, %v3582
    %v3609 = vpack.c.b16 %v3583, %v3583
    %v3610 = vpack.c.b16 %v3584, %v3584
    %v3611 = vpack.c.b16 %v3585, %v3585
    %v3612 = vpack.c.b16 %v3586, %v3586
    %v3613 = vpack.c.b16 %v3587, %v3587
    %v3614 = vpack.c.b16 %v3588, %v3588
    %vm3615 = vsmask.f32 2304
    %vm3616 = vsmask.f32 6416
    %vm3617 = vmor %vm3615, %vm3616
    %v3619 = vshrl.u32 %v3589, 16
    %v3621 = vrot.slane %v3619, 5
    %v3622 = vshll.u32 %v3589, 16
    %v3624 = vrot.slane %v3622, 6
    %v3625 = vor.u32 %v3621, %v3624
    %v3626 = vrot.slane %v3625, 4
    %v3628 = vshrl.u32 %v3590, 16
    %v3630 = vrot.slane %v3628, 5
    %v3631 = vshll.u32 %v3590, 16
    %v3633 = vrot.slane %v3631, 6
    %v3634 = vor.u32 %v3630, %v3633
    %v3635 = vsel %vm3617, %v3626, %v3634
    %v3636 = vrot.slane %v3634, 4
    %v3638 = vshrl.u32 %v3591, 16
    %v3640 = vrot.slane %v3638, 5
    %v3641 = vshll.u32 %v3591, 16
    %v3643 = vrot.slane %v3641, 6
    %v3644 = vor.u32 %v3640, %v3643
    %v3645 = vsel %vm3617, %v3636, %v3644
    %v3646 = vrot.slane %v3644, 4
    %v3648 = vshrl.u32 %v3592, 16
    %v3650 = vrot.slane %v3648, 5
    %v3651 = vshll.u32 %v3592, 16
    %v3653 = vrot.slane %v3651, 6
    %v3654 = vor.u32 %v3650, %v3653
    %v3655 = vsel %vm3617, %v3646, %v3654
    %v3656 = vrot.slane %v3654, 4
    %v3658 = vshrl.u32 %v3593, 16
    %v3660 = vrot.slane %v3658, 5
    %v3661 = vshll.u32 %v3593, 16
    %v3663 = vrot.slane %v3661, 6
    %v3664 = vor.u32 %v3660, %v3663
    %v3665 = vsel %vm3617, %v3656, %v3664
    %v3666 = vrot.slane %v3664, 4
    %v3668 = vshrl.u32 %v3594, 16
    %v3670 = vrot.slane %v3668, 5
    %v3671 = vshll.u32 %v3594, 16
    %v3673 = vrot.slane %v3671, 6
    %v3674 = vor.u32 %v3670, %v3673
    %v3675 = vsel %vm3617, %v3666, %v3674
    %v3676 = vrot.slane %v3674, 4
    %v3678 = vshrl.u32 %v3595, 16
    %v3680 = vrot.slane %v3678, 5
    %v3681 = vshll.u32 %v3595, 16
    %v3683 = vrot.slane %v3681, 6
    %v3684 = vor.u32 %v3680, %v3683
    %v3685 = vsel %vm3617, %v3676, %v3684
    %v3686 = vrot.slane %v3684, 4
    %v3688 = vshrl.u32 %v3596, 16
    %v3690 = vrot.slane %v3688, 5
    %v3691 = vshll.u32 %v3596, 16
    %v3693 = vrot.slane %v3691, 6
    %v3694 = vor.u32 %v3690, %v3693
    %v3695 = vsel %vm3617, %v3686, %v3694
    %v3696 = vrot.slane %v3694, 4
    %v3698 = vshrl.u32 %v3597, 16
    %v3700 = vrot.slane %v3698, 5
    %v3701 = vshll.u32 %v3597, 16
    %v3703 = vrot.slane %v3701, 6
    %v3704 = vor.u32 %v3700, %v3703
    %v3705 = vsel %vm3617, %v3696, %v3704
    %v3706 = vrot.slane %v3704, 4
    %v3708 = vshrl.u32 %v3598, 16
    %v3710 = vrot.slane %v3708, 5
    %v3711 = vshll.u32 %v3598, 16
    %v3713 = vrot.slane %v3711, 6
    %v3714 = vor.u32 %v3710, %v3713
    %v3715 = vsel %vm3617, %v3706, %v3714
    %v3716 = vrot.slane %v3714, 4
    %v3718 = vshrl.u32 %v3599, 16
    %v3720 = vrot.slane %v3718, 5
    %v3721 = vshll.u32 %v3599, 16
    %v3723 = vrot.slane %v3721, 6
    %v3724 = vor.u32 %v3720, %v3723
    %v3725 = vsel %vm3617, %v3716, %v3724
    %v3726 = vrot.slane %v3724, 4
    %v3728 = vshrl.u32 %v3600, 16
    %v3730 = vrot.slane %v3728, 5
    %v3731 = vshll.u32 %v3600, 16
    %v3733 = vrot.slane %v3731, 6
    %v3734 = vor.u32 %v3730, %v3733
    %v3735 = vsel %vm3617, %v3726, %v3734
    %v3736 = vrot.slane %v3734, 4
    %v3738 = vshrl.u32 %v3601, 16
    %v3740 = vrot.slane %v3738, 5
    %v3741 = vshll.u32 %v3601, 16
    %v3743 = vrot.slane %v3741, 6
    %v3744 = vor.u32 %v3740, %v3743
    %v3745 = vsel %vm3617, %v3736, %v3744
    %v3746 = vrot.slane %v3744, 4
    %v3748 = vshrl.u32 %v3602, 16
    %v3750 = vrot.slane %v3748, 5
    %v3751 = vshll.u32 %v3602, 16
    %v3753 = vrot.slane %v3751, 6
    %v3754 = vor.u32 %v3750, %v3753
    %v3755 = vsel %vm3617, %v3746, %v3754
    %v3756 = vrot.slane %v3754, 4
    %v3758 = vshrl.u32 %v3603, 16
    %v3760 = vrot.slane %v3758, 5
    %v3761 = vshll.u32 %v3603, 16
    %v3763 = vrot.slane %v3761, 6
    %v3764 = vor.u32 %v3760, %v3763
    %v3765 = vsel %vm3617, %v3756, %v3764
    %v3766 = vrot.slane %v3764, 4
    %v3768 = vshrl.u32 %v3604, 16
    %v3770 = vrot.slane %v3768, 5
    %v3771 = vshll.u32 %v3604, 16
    %v3773 = vrot.slane %v3771, 6
    %v3774 = vor.u32 %v3770, %v3773
    %v3775 = vsel %vm3617, %v3766, %v3774
    %v3776 = vrot.slane %v3774, 4
    %v3778 = vshrl.u32 %v3605, 16
    %v3780 = vrot.slane %v3778, 5
    %v3781 = vshll.u32 %v3605, 16
    %v3783 = vrot.slane %v3781, 6
    %v3784 = vor.u32 %v3780, %v3783
    %v3785 = vsel %vm3617, %v3776, %v3784
    %v3786 = vrot.slane %v3784, 4
    %v3788 = vshrl.u32 %v3606, 16
    %v3790 = vrot.slane %v3788, 5
    %v3791 = vshll.u32 %v3606, 16
    %v3793 = vrot.slane %v3791, 6
    %v3794 = vor.u32 %v3790, %v3793
    %v3795 = vsel %vm3617, %v3786, %v3794
    %v3796 = vrot.slane %v3794, 4
    %v3798 = vshrl.u32 %v3607, 16
    %v3800 = vrot.slane %v3798, 5
    %v3801 = vshll.u32 %v3607, 16
    %v3803 = vrot.slane %v3801, 6
    %v3804 = vor.u32 %v3800, %v3803
    %v3805 = vsel %vm3617, %v3796, %v3804
    %v3806 = vrot.slane %v3804, 4
    %v3808 = vshrl.u32 %v3608, 16
    %v3810 = vrot.slane %v3808, 5
    %v3811 = vshll.u32 %v3608, 16
    %v3813 = vrot.slane %v3811, 6
    %v3814 = vor.u32 %v3810, %v3813
    %v3815 = vsel %vm3617, %v3806, %v3814
    %v3816 = vrot.slane %v3814, 4
    %v3818 = vshrl.u32 %v3609, 16
    %v3820 = vrot.slane %v3818, 5
    %v3821 = vshll.u32 %v3609, 16
    %v3823 = vrot.slane %v3821, 6
    %v3824 = vor.u32 %v3820, %v3823
    %v3825 = vsel %vm3617, %v3816, %v3824
    %v3826 = vrot.slane %v3824, 4
    %v3828 = vshrl.u32 %v3610, 16
    %v3830 = vrot.slane %v3828, 5
    %v3831 = vshll.u32 %v3610, 16
    %v3833 = vrot.slane %v3831, 6
    %v3834 = vor.u32 %v3830, %v3833
    %v3835 = vsel %vm3617, %v3826, %v3834
    %v3836 = vrot.slane %v3834, 4
    %v3838 = vshrl.u32 %v3611, 16
    %v3840 = vrot.slane %v3838, 5
    %v3841 = vshll.u32 %v3611, 16
    %v3843 = vrot.slane %v3841, 6
    %v3844 = vor.u32 %v3840, %v3843
    %v3845 = vsel %vm3617, %v3836, %v3844
    %v3846 = vrot.slane %v3844, 4
    %v3848 = vshrl.u32 %v3612, 16
    %v3850 = vrot.slane %v3848, 5
    %v3851 = vshll.u32 %v3612, 16
    %v3853 = vrot.slane %v3851, 6
    %v3854 = vor.u32 %v3850, %v3853
    %v3855 = vsel %vm3617, %v3846, %v3854
    %v3856 = vrot.slane %v3854, 4
    %v3858 = vshrl.u32 %v3613, 16
    %v3860 = vrot.slane %v3858, 5
    %v3861 = vshll.u32 %v3613, 16
    %v3863 = vrot.slane %v3861, 6
    %v3864 = vor.u32 %v3860, %v3863
    %v3865 = vsel %vm3617, %v3856, %v3864
    %v3866 = vrot.slane %v3864, 4
    %v3868 = vshrl.u32 %v3614, 16
    %v3870 = vrot.slane %v3868, 5
    %v3871 = vshll.u32 %v3614, 16
    %v3873 = vrot.slane %v3871, 6
    %v3874 = vor.u32 %v3870, %v3873
    %v3875 = vsel %vm3617, %v3866, %v3874
    %3901 = vst [vmem:[#allocation4 + $0x10] sm:$0xf] %v3635
    %3902 = vst [vmem:[#allocation4 + $0x34] sm:$0xf] %v3645
    %3903 = vst [vmem:[#allocation4 + $0x58] sm:$0xf] %v3655
    %3904 = vst [vmem:[#allocation4 + $0x7c] sm:$0xf] %v3665
    %3905 = vst [vmem:[#allocation4 + $0xa0] sm:$0xf] %v3675
    %3906 = vst [vmem:[#allocation4 + $0xc4] sm:$0xf] %v3685
    %3907 = vst [vmem:[#allocation4 + $0xe8] sm:$0xf] %v3695
    %3908 = vst [vmem:[#allocation4 + $0x10c] sm:$0xf] %v3705
    %3909 = vst [vmem:[#allocation4 + $0x130] sm:$0xf] %v3715
    %3910 = vst [vmem:[#allocation4 + $0x154] sm:$0xf] %v3725
    %3911 = vst [vmem:[#allocation4 + $0x178] sm:$0xf] %v3735
    %3912 = vst [vmem:[#allocation4 + $0x19c] sm:$0xf] %v3745
    %3913 = vst [vmem:[#allocation4 + $0x1c0] sm:$0xf] %v3755
    %3914 = vst [vmem:[#allocation4 + $0x1e4] sm:$0xf] %v3765
    %3915 = vst [vmem:[#allocation4 + $0x208] sm:$0xf] %v3775
    %3916 = vst [vmem:[#allocation4 + $0x22c] sm:$0xf] %v3785
    %3917 = vst [vmem:[#allocation4 + $0x250] sm:$0xf] %v3795
    %3918 = vst [vmem:[#allocation4 + $0x274] sm:$0xf] %v3805
    %3919 = vst [vmem:[#allocation4 + $0x298] sm:$0xf] %v3815
    %3920 = vst [vmem:[#allocation4 + $0x2bc] sm:$0xf] %v3825
    %3921 = vst [vmem:[#allocation4 + $0x2e0] sm:$0xf] %v3835
    %3922 = vst [vmem:[#allocation4 + $0x304] sm:$0xf] %v3845
    %3923 = vst [vmem:[#allocation4 + $0x328] sm:$0xf] %v3855
    %3924 = vst [vmem:[#allocation4 + $0x34c] sm:$0xf] %v3865
    %3925 = vst [vmem:[#allocation4 + $0x370] sm:$0xf] %v3875
    %v3926 = vld [vmem:[#allocation3] sm:$0xc0]
    %v3927 = vld [vmem:[#allocation3 + $0x8] sm:$0xff]
    %v3928 = vld [vmem:[#allocation3 + $0x10] sm:$0xff]
    %v3929 = vld [vmem:[#allocation3 + $0x18] sm:$0xff]
    %v3930 = vld [vmem:[#allocation3 + $0x20] sm:$0xff]
    %v3931 = vld [vmem:[#allocation3 + $0x28] sm:$0xff]
    %v3932 = vld [vmem:[#allocation3 + $0x30] sm:$0xff]
    %v3933 = vld [vmem:[#allocation3 + $0x38] sm:$0xff]
    %v3934 = vld [vmem:[#allocation3 + $0x40] sm:$0xff]
    %v3935 = vld [vmem:[#allocation3 + $0x48] sm:$0xff]
    %v3936 = vld [vmem:[#allocation3 + $0x50] sm:$0xff]
    %v3937 = vld [vmem:[#allocation3 + $0x58] sm:$0xff]
    %v3938 = vld [vmem:[#allocation3 + $0x60] sm:$0xff]
    %v3939 = vld [vmem:[#allocation3 + $0x68] sm:$0x3]
    %v3954 = vunpack.c.h.b16 %v3926
    %v3955 = vunpack.c.l.b16 %v3927
    %v3956 = vunpack.c.h.b16 %v3927
    %v3957 = vunpack.c.l.b16 %v3928
    %v3958 = vunpack.c.h.b16 %v3928
    %v3959 = vunpack.c.l.b16 %v3929
    %v3960 = vunpack.c.h.b16 %v3929
    %v3961 = vunpack.c.l.b16 %v3930
    %v3962 = vunpack.c.h.b16 %v3930
    %v3963 = vunpack.c.l.b16 %v3931
    %v3964 = vunpack.c.h.b16 %v3931
    %v3965 = vunpack.c.l.b16 %v3932
    %v3966 = vunpack.c.h.b16 %v3932
    %v3967 = vunpack.c.l.b16 %v3933
    %v3968 = vunpack.c.h.b16 %v3933
    %v3969 = vunpack.c.l.b16 %v3934
    %v3970 = vunpack.c.h.b16 %v3934
    %v3971 = vunpack.c.l.b16 %v3935
    %v3972 = vunpack.c.h.b16 %v3935
    %v3973 = vunpack.c.l.b16 %v3936
    %v3974 = vunpack.c.h.b16 %v3936
    %v3975 = vunpack.c.l.b16 %v3937
    %v3976 = vunpack.c.h.b16 %v3937
    %v3977 = vunpack.c.l.b16 %v3938
    %v3978 = vunpack.c.h.b16 %v3938
    %v3979 = vunpack.c.l.b16 %v3939
    %v3980 = vpack.c.b16 %v3954, %v3954
    %v3981 = vpack.c.b16 %v3955, %v3955
    %v3982 = vpack.c.b16 %v3956, %v3956
    %v3983 = vpack.c.b16 %v3957, %v3957
    %v3984 = vpack.c.b16 %v3958, %v3958
    %v3985 = vpack.c.b16 %v3959, %v3959
    %v3986 = vpack.c.b16 %v3960, %v3960
    %v3987 = vpack.c.b16 %v3961, %v3961
    %v3988 = vpack.c.b16 %v3962, %v3962
    %v3989 = vpack.c.b16 %v3963, %v3963
    %v3990 = vpack.c.b16 %v3964, %v3964
    %v3991 = vpack.c.b16 %v3965, %v3965
    %v3992 = vpack.c.b16 %v3966, %v3966
    %v3993 = vpack.c.b16 %v3967, %v3967
    %v3994 = vpack.c.b16 %v3968, %v3968
    %v3995 = vpack.c.b16 %v3969, %v3969
    %v3996 = vpack.c.b16 %v3970, %v3970
    %v3997 = vpack.c.b16 %v3971, %v3971
    %v3998 = vpack.c.b16 %v3972, %v3972
    %v3999 = vpack.c.b16 %v3973, %v3973
    %v4000 = vpack.c.b16 %v3974, %v3974
    %v4001 = vpack.c.b16 %v3975, %v3975
    %v4002 = vpack.c.b16 %v3976, %v3976
    %v4003 = vpack.c.b16 %v3977, %v3977
    %v4004 = vpack.c.b16 %v3978, %v3978
    %v4005 = vpack.c.b16 %v3979, %v3979
    %vm4006 = vcmask 1041408
    %vm4007 = vcmask 1045508
    %vm4008 = vmor %vm4006, %vm4007
    %v4009 = vrot.slane %v3980, 6
    %v4010 = vrot.slane %v4009, 4
    %v4011 = vrot.slane %v3981, 6
    %v4012 = vsel %vm4008, %v4010, %v4011
    %v4013 = vrot.slane %v4011, 4
    %v4014 = vrot.slane %v3982, 6
    %v4015 = vsel %vm4008, %v4013, %v4014
    %v4016 = vrot.slane %v4014, 4
    %v4017 = vrot.slane %v3983, 6
    %v4018 = vsel %vm4008, %v4016, %v4017
    %v4019 = vrot.slane %v4017, 4
    %v4020 = vrot.slane %v3984, 6
    %v4021 = vsel %vm4008, %v4019, %v4020
    %v4022 = vrot.slane %v4020, 4
    %v4023 = vrot.slane %v3985, 6
    %v4024 = vsel %vm4008, %v4022, %v4023
    %v4025 = vrot.slane %v4023, 4
    %v4026 = vrot.slane %v3986, 6
    %v4027 = vsel %vm4008, %v4025, %v4026
    %v4028 = vrot.slane %v4026, 4
    %v4029 = vrot.slane %v3987, 6
    %v4030 = vsel %vm4008, %v4028, %v4029
    %v4031 = vrot.slane %v4029, 4
    %v4032 = vrot.slane %v3988, 6
    %v4033 = vsel %vm4008, %v4031, %v4032
    %v4034 = vrot.slane %v4032, 4
    %v4035 = vrot.slane %v3989, 6
    %v4036 = vsel %vm4008, %v4034, %v4035
    %v4037 = vrot.slane %v4035, 4
    %v4038 = vrot.slane %v3990, 6
    %v4039 = vsel %vm4008, %v4037, %v4038
    %v4040 = vrot.slane %v4038, 4
    %v4041 = vrot.slane %v3991, 6
    %v4042 = vsel %vm4008, %v4040, %v4041
    %v4043 = vrot.slane %v4041, 4
    %v4044 = vrot.slane %v3992, 6
    %v4045 = vsel %vm4008, %v4043, %v4044
    %v4046 = vrot.slane %v4044, 4
    %v4047 = vrot.slane %v3993, 6
    %v4048 = vsel %vm4008, %v4046, %v4047
    %v4049 = vrot.slane %v4047, 4
    %v4050 = vrot.slane %v3994, 6
    %v4051 = vsel %vm4008, %v4049, %v4050
    %v4052 = vrot.slane %v4050, 4
    %v4053 = vrot.slane %v3995, 6
    %v4054 = vsel %vm4008, %v4052, %v4053
    %v4055 = vrot.slane %v4053, 4
    %v4056 = vrot.slane %v3996, 6
    %v4057 = vsel %vm4008, %v4055, %v4056
    %v4058 = vrot.slane %v4056, 4
    %v4059 = vrot.slane %v3997, 6
    %v4060 = vsel %vm4008, %v4058, %v4059
    %v4061 = vrot.slane %v4059, 4
    %v4062 = vrot.slane %v3998, 6
    %v4063 = vsel %vm4008, %v4061, %v4062
    %v4064 = vrot.slane %v4062, 4
    %v4065 = vrot.slane %v3999, 6
    %v4066 = vsel %vm4008, %v4064, %v4065
    %v4067 = vrot.slane %v4065, 4
    %v4068 = vrot.slane %v4000, 6
    %v4069 = vsel %vm4008, %v4067, %v4068
    %v4070 = vrot.slane %v4068, 4
    %v4071 = vrot.slane %v4001, 6
    %v4072 = vsel %vm4008, %v4070, %v4071
    %v4073 = vrot.slane %v4071, 4
    %v4074 = vrot.slane %v4002, 6
    %v4075 = vsel %vm4008, %v4073, %v4074
    %v4076 = vrot.slane %v4074, 4
    %v4077 = vrot.slane %v4003, 6
    %v4078 = vsel %vm4008, %v4076, %v4077
    %v4079 = vrot.slane %v4077, 4
    %v4080 = vrot.slane %v4004, 6
    %v4081 = vsel %vm4008, %v4079, %v4080
    %v4082 = vrot.slane %v4080, 4
    %v4083 = vrot.slane %v4005, 6
    %v4084 = vsel %vm4008, %v4082, %v4083
    %4110 = vst [vmem:[#allocation4 + $0x14] sm:$0xf] %v4012
    %4111 = vst [vmem:[#allocation4 + $0x38] sm:$0xf] %v4015
    %4112 = vst [vmem:[#allocation4 + $0x5c] sm:$0xf] %v4018
    %4113 = vst [vmem:[#allocation4 + $0x80] sm:$0xf] %v4021
    %4114 = vst [vmem:[#allocation4 + $0xa4] sm:$0xf] %v4024
    %4115 = vst [vmem:[#allocation4 + $0xc8] sm:$0xf] %v4027
    %4116 = vst [vmem:[#allocation4 + $0xec] sm:$0xf] %v4030
    %4117 = vst [vmem:[#allocation4 + $0x110] sm:$0xf] %v4033
    %4118 = vst [vmem:[#allocation4 + $0x134] sm:$0xf] %v4036
    %4119 = vst [vmem:[#allocation4 + $0x158] sm:$0xf] %v4039
    %4120 = vst [vmem:[#allocation4 + $0x17c] sm:$0xf] %v4042
    %4121 = vst [vmem:[#allocation4 + $0x1a0] sm:$0xf] %v4045
    %4122 = vst [vmem:[#allocation4 + $0x1c4] sm:$0xf] %v4048
    %4123 = vst [vmem:[#allocation4 + $0x1e8] sm:$0xf] %v4051
    %4124 = vst [vmem:[#allocation4 + $0x20c] sm:$0xf] %v4054
    %4125 = vst [vmem:[#allocation4 + $0x230] sm:$0xf] %v4057
    %4126 = vst [vmem:[#allocation4 + $0x254] sm:$0xf] %v4060
    %4127 = vst [vmem:[#allocation4 + $0x278] sm:$0xf] %v4063
    %4128 = vst [vmem:[#allocation4 + $0x29c] sm:$0xf] %v4066
    %4129 = vst [vmem:[#allocation4 + $0x2c0] sm:$0xf] %v4069
    %4130 = vst [vmem:[#allocation4 + $0x2e4] sm:$0xf] %v4072
    %4131 = vst [vmem:[#allocation4 + $0x308] sm:$0xf] %v4075
    %4132 = vst [vmem:[#allocation4 + $0x32c] sm:$0xf] %v4078
    %4133 = vst [vmem:[#allocation4 + $0x350] sm:$0xf] %v4081
    %4134 = vst [vmem:[#allocation4 + $0x374] sm:$0xf] %v4084
    %v4135 = vld [vmem:[#allocation3 + $0x8] sm:$0xfc]
    %v4136 = vld [vmem:[#allocation3 + $0x10] sm:$0xff]
    %v4137 = vld [vmem:[#allocation3 + $0x18] sm:$0xff]
    %v4138 = vld [vmem:[#allocation3 + $0x20] sm:$0xff]
    %v4139 = vld [vmem:[#allocation3 + $0x28] sm:$0xff]
    %v4140 = vld [vmem:[#allocation3 + $0x30] sm:$0xff]
    %v4141 = vld [vmem:[#allocation3 + $0x38] sm:$0xff]
    %v4142 = vld [vmem:[#allocation3 + $0x40] sm:$0xff]
    %v4143 = vld [vmem:[#allocation3 + $0x48] sm:$0xff]
    %v4144 = vld [vmem:[#allocation3 + $0x50] sm:$0xff]
    %v4145 = vld [vmem:[#allocation3 + $0x58] sm:$0xff]
    %v4146 = vld [vmem:[#allocation3 + $0x60] sm:$0xff]
    %v4147 = vld [vmem:[#allocation3 + $0x68] sm:$0x3f]
    %v4161 = vunpack.c.l.b16 %v4135
    %v4162 = vunpack.c.h.b16 %v4135
    %v4163 = vunpack.c.l.b16 %v4136
    %v4164 = vunpack.c.h.b16 %v4136
    %v4165 = vunpack.c.l.b16 %v4137
    %v4166 = vunpack.c.h.b16 %v4137
    %v4167 = vunpack.c.l.b16 %v4138
    %v4168 = vunpack.c.h.b16 %v4138
    %v4169 = vunpack.c.l.b16 %v4139
    %v4170 = vunpack.c.h.b16 %v4139
    %v4171 = vunpack.c.l.b16 %v4140
    %v4172 = vunpack.c.h.b16 %v4140
    %v4173 = vunpack.c.l.b16 %v4141
    %v4174 = vunpack.c.h.b16 %v4141
    %v4175 = vunpack.c.l.b16 %v4142
    %v4176 = vunpack.c.h.b16 %v4142
    %v4177 = vunpack.c.l.b16 %v4143
    %v4178 = vunpack.c.h.b16 %v4143
    %v4179 = vunpack.c.l.b16 %v4144
    %v4180 = vunpack.c.h.b16 %v4144
    %v4181 = vunpack.c.l.b16 %v4145
    %v4182 = vunpack.c.h.b16 %v4145
    %v4183 = vunpack.c.l.b16 %v4146
    %v4184 = vunpack.c.h.b16 %v4146
    %v4185 = vunpack.c.l.b16 %v4147
    %v4186 = vunpack.c.h.b16 %v4147
    %v4187 = vpack.c.b16 %v4161, %v4161
    %v4188 = vpack.c.b16 %v4162, %v4162
    %v4189 = vpack.c.b16 %v4163, %v4163
    %v4190 = vpack.c.b16 %v4164, %v4164
    %v4191 = vpack.c.b16 %v4165, %v4165
    %v4192 = vpack.c.b16 %v4166, %v4166
    %v4193 = vpack.c.b16 %v4167, %v4167
    %v4194 = vpack.c.b16 %v4168, %v4168
    %v4195 = vpack.c.b16 %v4169, %v4169
    %v4196 = vpack.c.b16 %v4170, %v4170
    %v4197 = vpack.c.b16 %v4171, %v4171
    %v4198 = vpack.c.b16 %v4172, %v4172
    %v4199 = vpack.c.b16 %v4173, %v4173
    %v4200 = vpack.c.b16 %v4174, %v4174
    %v4201 = vpack.c.b16 %v4175, %v4175
    %v4202 = vpack.c.b16 %v4176, %v4176
    %v4203 = vpack.c.b16 %v4177, %v4177
    %v4204 = vpack.c.b16 %v4178, %v4178
    %v4205 = vpack.c.b16 %v4179, %v4179
    %v4206 = vpack.c.b16 %v4180, %v4180
    %v4207 = vpack.c.b16 %v4181, %v4181
    %v4208 = vpack.c.b16 %v4182, %v4182
    %v4209 = vpack.c.b16 %v4183, %v4183
    %v4210 = vpack.c.b16 %v4184, %v4184
    %v4211 = vpack.c.b16 %v4185, %v4185
    %v4212 = vpack.c.b16 %v4186, %v4186
    %v4213 = vrot.slane %v4187, 6
    %v4214 = vrot.slane %v4213, 4
    %v4215 = vrot.slane %v4188, 6
    %v4216 = vsel %vm4008, %v4214, %v4215
    %v4217 = vrot.slane %v4215, 4
    %v4218 = vrot.slane %v4189, 6
    %v4219 = vsel %vm4008, %v4217, %v4218
    %v4220 = vrot.slane %v4218, 4
    %v4221 = vrot.slane %v4190, 6
    %v4222 = vsel %vm4008, %v4220, %v4221
    %v4223 = vrot.slane %v4221, 4
    %v4224 = vrot.slane %v4191, 6
    %v4225 = vsel %vm4008, %v4223, %v4224
    %v4226 = vrot.slane %v4224, 4
    %v4227 = vrot.slane %v4192, 6
    %v4228 = vsel %vm4008, %v4226, %v4227
    %v4229 = vrot.slane %v4227, 4
    %v4230 = vrot.slane %v4193, 6
    %v4231 = vsel %vm4008, %v4229, %v4230
    %v4232 = vrot.slane %v4230, 4
    %v4233 = vrot.slane %v4194, 6
    %v4234 = vsel %vm4008, %v4232, %v4233
    %v4235 = vrot.slane %v4233, 4
    %v4236 = vrot.slane %v4195, 6
    %v4237 = vsel %vm4008, %v4235, %v4236
    %v4238 = vrot.slane %v4236, 4
    %v4239 = vrot.slane %v4196, 6
    %v4240 = vsel %vm4008, %v4238, %v4239
    %v4241 = vrot.slane %v4239, 4
    %v4242 = vrot.slane %v4197, 6
    %v4243 = vsel %vm4008, %v4241, %v4242
    %v4244 = vrot.slane %v4242, 4
    %v4245 = vrot.slane %v4198, 6
    %v4246 = vsel %vm4008, %v4244, %v4245
    %v4247 = vrot.slane %v4245, 4
    %v4248 = vrot.slane %v4199, 6
    %v4249 = vsel %vm4008, %v4247, %v4248
    %v4250 = vrot.slane %v4248, 4
    %v4251 = vrot.slane %v4200, 6
    %v4252 = vsel %vm4008, %v4250, %v4251
    %v4253 = vrot.slane %v4251, 4
    %v4254 = vrot.slane %v4201, 6
    %v4255 = vsel %vm4008, %v4253, %v4254
    %v4256 = vrot.slane %v4254, 4
    %v4257 = vrot.slane %v4202, 6
    %v4258 = vsel %vm4008, %v4256, %v4257
    %v4259 = vrot.slane %v4257, 4
    %v4260 = vrot.slane %v4203, 6
    %v4261 = vsel %vm4008, %v4259, %v4260
    %v4262 = vrot.slane %v4260, 4
    %v4263 = vrot.slane %v4204, 6
    %v4264 = vsel %vm4008, %v4262, %v4263
    %v4265 = vrot.slane %v4263, 4
    %v4266 = vrot.slane %v4205, 6
    %v4267 = vsel %vm4008, %v4265, %v4266
    %v4268 = vrot.slane %v4266, 4
    %v4269 = vrot.slane %v4206, 6
    %v4270 = vsel %vm4008, %v4268, %v4269
    %v4271 = vrot.slane %v4269, 4
    %v4272 = vrot.slane %v4207, 6
    %v4273 = vsel %vm4008, %v4271, %v4272
    %v4274 = vrot.slane %v4272, 4
    %v4275 = vrot.slane %v4208, 6
    %v4276 = vsel %vm4008, %v4274, %v4275
    %v4277 = vrot.slane %v4275, 4
    %v4278 = vrot.slane %v4209, 6
    %v4279 = vsel %vm4008, %v4277, %v4278
    %v4280 = vrot.slane %v4278, 4
    %v4281 = vrot.slane %v4210, 6
    %v4282 = vsel %vm4008, %v4280, %v4281
    %v4283 = vrot.slane %v4281, 4
    %v4284 = vrot.slane %v4211, 6
    %v4285 = vsel %vm4008, %v4283, %v4284
    %v4286 = vrot.slane %v4284, 4
    %v4287 = vrot.slane %v4212, 6
    %v4288 = vsel %vm4008, %v4286, %v4287
    %4314 = vst [vmem:[#allocation4 + $0x18] sm:$0xf] %v4216
    %4315 = vst [vmem:[#allocation4 + $0x3c] sm:$0xf] %v4219
    %4316 = vst [vmem:[#allocation4 + $0x60] sm:$0xf] %v4222
    %4317 = vst [vmem:[#allocation4 + $0x84] sm:$0xf] %v4225
    %4318 = vst [vmem:[#allocation4 + $0xa8] sm:$0xf] %v4228
    %4319 = vst [vmem:[#allocation4 + $0xcc] sm:$0xf] %v4231
    %4320 = vst [vmem:[#allocation4 + $0xf0] sm:$0xf] %v4234
    %4321 = vst [vmem:[#allocation4 + $0x114] sm:$0xf] %v4237
    %4322 = vst [vmem:[#allocation4 + $0x138] sm:$0xf] %v4240
    %4323 = vst [vmem:[#allocation4 + $0x15c] sm:$0xf] %v4243
    %4324 = vst [vmem:[#allocation4 + $0x180] sm:$0xf] %v4246
    %4325 = vst [vmem:[#allocation4 + $0x1a4] sm:$0xf] %v4249
    %4326 = vst [vmem:[#allocation4 + $0x1c8] sm:$0xf] %v4252
    %4327 = vst [vmem:[#allocation4 + $0x1ec] sm:$0xf] %v4255
    %4328 = vst [vmem:[#allocation4 + $0x210] sm:$0xf] %v4258
    %4329 = vst [vmem:[#allocation4 + $0x234] sm:$0xf] %v4261
    %4330 = vst [vmem:[#allocation4 + $0x258] sm:$0xf] %v4264
    %4331 = vst [vmem:[#allocation4 + $0x27c] sm:$0xf] %v4267
    %4332 = vst [vmem:[#allocation4 + $0x2a0] sm:$0xf] %v4270
    %4333 = vst [vmem:[#allocation4 + $0x2c4] sm:$0xf] %v4273
    %4334 = vst [vmem:[#allocation4 + $0x2e8] sm:$0xf] %v4276
    %4335 = vst [vmem:[#allocation4 + $0x30c] sm:$0xf] %v4279
    %4336 = vst [vmem:[#allocation4 + $0x330] sm:$0xf] %v4282
    %4337 = vst [vmem:[#allocation4 + $0x354] sm:$0xf] %v4285
    %4338 = vst [vmem:[#allocation4 + $0x378] sm:$0xf] %v4288
    %v4339 = vld [vmem:[#allocation3 + $0x8] sm:$0xfc]
    %v4340 = vld [vmem:[#allocation3 + $0x10] sm:$0xff]
    %v4341 = vld [vmem:[#allocation3 + $0x18] sm:$0xff]
    %v4342 = vld [vmem:[#allocation3 + $0x20] sm:$0xff]
    %v4343 = vld [vmem:[#allocation3 + $0x28] sm:$0xff]
    %v4344 = vld [vmem:[#allocation3 + $0x30] sm:$0xff]
    %v4345 = vld [vmem:[#allocation3 + $0x38] sm:$0xff]
    %v4346 = vld [vmem:[#allocation3 + $0x40] sm:$0xff]
    %v4347 = vld [vmem:[#allocation3 + $0x48] sm:$0xff]
    %v4348 = vld [vmem:[#allocation3 + $0x50] sm:$0xff]
    %v4349 = vld [vmem:[#allocation3 + $0x58] sm:$0xff]
    %v4350 = vld [vmem:[#allocation3 + $0x60] sm:$0xff]
    %v4351 = vld [vmem:[#allocation3 + $0x68] sm:$0x7f]
    %v4365 = vunpack.c.l.b16 %v4339
    %v4366 = vunpack.c.h.b16 %v4339
    %v4367 = vunpack.c.l.b16 %v4340
    %v4368 = vunpack.c.h.b16 %v4340
    %v4369 = vunpack.c.l.b16 %v4341
    %v4370 = vunpack.c.h.b16 %v4341
    %v4371 = vunpack.c.l.b16 %v4342
    %v4372 = vunpack.c.h.b16 %v4342
    %v4373 = vunpack.c.l.b16 %v4343
    %v4374 = vunpack.c.h.b16 %v4343
    %v4375 = vunpack.c.l.b16 %v4344
    %v4376 = vunpack.c.h.b16 %v4344
    %v4377 = vunpack.c.l.b16 %v4345
    %v4378 = vunpack.c.h.b16 %v4345
    %v4379 = vunpack.c.l.b16 %v4346
    %v4380 = vunpack.c.h.b16 %v4346
    %v4381 = vunpack.c.l.b16 %v4347
    %v4382 = vunpack.c.h.b16 %v4347
    %v4383 = vunpack.c.l.b16 %v4348
    %v4384 = vunpack.c.h.b16 %v4348
    %v4385 = vunpack.c.l.b16 %v4349
    %v4386 = vunpack.c.h.b16 %v4349
    %v4387 = vunpack.c.l.b16 %v4350
    %v4388 = vunpack.c.h.b16 %v4350
    %v4389 = vunpack.c.l.b16 %v4351
    %v4390 = vunpack.c.h.b16 %v4351
    %v4391 = vpack.c.b16 %v4365, %v4365
    %v4392 = vpack.c.b16 %v4366, %v4366
    %v4393 = vpack.c.b16 %v4367, %v4367
    %v4394 = vpack.c.b16 %v4368, %v4368
    %v4395 = vpack.c.b16 %v4369, %v4369
    %v4396 = vpack.c.b16 %v4370, %v4370
    %v4397 = vpack.c.b16 %v4371, %v4371
    %v4398 = vpack.c.b16 %v4372, %v4372
    %v4399 = vpack.c.b16 %v4373, %v4373
    %v4400 = vpack.c.b16 %v4374, %v4374
    %v4401 = vpack.c.b16 %v4375, %v4375
    %v4402 = vpack.c.b16 %v4376, %v4376
    %v4403 = vpack.c.b16 %v4377, %v4377
    %v4404 = vpack.c.b16 %v4378, %v4378
    %v4405 = vpack.c.b16 %v4379, %v4379
    %v4406 = vpack.c.b16 %v4380, %v4380
    %v4407 = vpack.c.b16 %v4381, %v4381
    %v4408 = vpack.c.b16 %v4382, %v4382
    %v4409 = vpack.c.b16 %v4383, %v4383
    %v4410 = vpack.c.b16 %v4384, %v4384
    %v4411 = vpack.c.b16 %v4385, %v4385
    %v4412 = vpack.c.b16 %v4386, %v4386
    %v4413 = vpack.c.b16 %v4387, %v4387
    %v4414 = vpack.c.b16 %v4388, %v4388
    %v4415 = vpack.c.b16 %v4389, %v4389
    %v4416 = vpack.c.b16 %v4390, %v4390
    %vm4417 = vsmask.f32 1280
    %vm4418 = vsmask.f32 5392
    %vm4419 = vmor %vm4417, %vm4418
    %v4421 = vshrl.u32 %v4391, 16
    %v4423 = vrot.slane %v4421, 6
    %v4424 = vshll.u32 %v4391, 16
    %v4426 = vrot.slane %v4424, 7
    %v4427 = vor.u32 %v4423, %v4426
    %v4428 = vrot.slane %v4427, 4
    %v4430 = vshrl.u32 %v4392, 16
    %v4432 = vrot.slane %v4430, 6
    %v4433 = vshll.u32 %v4392, 16
    %v4435 = vrot.slane %v4433, 7
    %v4436 = vor.u32 %v4432, %v4435
    %v4437 = vsel %vm4419, %v4428, %v4436
    %v4438 = vrot.slane %v4436, 4
    %v4440 = vshrl.u32 %v4393, 16
    %v4442 = vrot.slane %v4440, 6
    %v4443 = vshll.u32 %v4393, 16
    %v4445 = vrot.slane %v4443, 7
    %v4446 = vor.u32 %v4442, %v4445
    %v4447 = vsel %vm4419, %v4438, %v4446
    %v4448 = vrot.slane %v4446, 4
    %v4450 = vshrl.u32 %v4394, 16
    %v4452 = vrot.slane %v4450, 6
    %v4453 = vshll.u32 %v4394, 16
    %v4455 = vrot.slane %v4453, 7
    %v4456 = vor.u32 %v4452, %v4455
    %v4457 = vsel %vm4419, %v4448, %v4456
    %v4458 = vrot.slane %v4456, 4
    %v4460 = vshrl.u32 %v4395, 16
    %v4462 = vrot.slane %v4460, 6
    %v4463 = vshll.u32 %v4395, 16
    %v4465 = vrot.slane %v4463, 7
    %v4466 = vor.u32 %v4462, %v4465
    %v4467 = vsel %vm4419, %v4458, %v4466
    %v4468 = vrot.slane %v4466, 4
    %v4470 = vshrl.u32 %v4396, 16
    %v4472 = vrot.slane %v4470, 6
    %v4473 = vshll.u32 %v4396, 16
    %v4475 = vrot.slane %v4473, 7
    %v4476 = vor.u32 %v4472, %v4475
    %v4477 = vsel %vm4419, %v4468, %v4476
    %v4478 = vrot.slane %v4476, 4
    %v4480 = vshrl.u32 %v4397, 16
    %v4482 = vrot.slane %v4480, 6
    %v4483 = vshll.u32 %v4397, 16
    %v4485 = vrot.slane %v4483, 7
    %v4486 = vor.u32 %v4482, %v4485
    %v4487 = vsel %vm4419, %v4478, %v4486
    %v4488 = vrot.slane %v4486, 4
    %v4490 = vshrl.u32 %v4398, 16
    %v4492 = vrot.slane %v4490, 6
    %v4493 = vshll.u32 %v4398, 16
    %v4495 = vrot.slane %v4493, 7
    %v4496 = vor.u32 %v4492, %v4495
    %v4497 = vsel %vm4419, %v4488, %v4496
    %v4498 = vrot.slane %v4496, 4
    %v4500 = vshrl.u32 %v4399, 16
    %v4502 = vrot.slane %v4500, 6
    %v4503 = vshll.u32 %v4399, 16
    %v4505 = vrot.slane %v4503, 7
    %v4506 = vor.u32 %v4502, %v4505
    %v4507 = vsel %vm4419, %v4498, %v4506
    %v4508 = vrot.slane %v4506, 4
    %v4510 = vshrl.u32 %v4400, 16
    %v4512 = vrot.slane %v4510, 6
    %v4513 = vshll.u32 %v4400, 16
    %v4515 = vrot.slane %v4513, 7
    %v4516 = vor.u32 %v4512, %v4515
    %v4517 = vsel %vm4419, %v4508, %v4516
    %v4518 = vrot.slane %v4516, 4
    %v4520 = vshrl.u32 %v4401, 16
    %v4522 = vrot.slane %v4520, 6
    %v4523 = vshll.u32 %v4401, 16
    %v4525 = vrot.slane %v4523, 7
    %v4526 = vor.u32 %v4522, %v4525
    %v4527 = vsel %vm4419, %v4518, %v4526
    %v4528 = vrot.slane %v4526, 4
    %v4530 = vshrl.u32 %v4402, 16
    %v4532 = vrot.slane %v4530, 6
    %v4533 = vshll.u32 %v4402, 16
    %v4535 = vrot.slane %v4533, 7
    %v4536 = vor.u32 %v4532, %v4535
    %v4537 = vsel %vm4419, %v4528, %v4536
    %v4538 = vrot.slane %v4536, 4
    %v4540 = vshrl.u32 %v4403, 16
    %v4542 = vrot.slane %v4540, 6
    %v4543 = vshll.u32 %v4403, 16
    %v4545 = vrot.slane %v4543, 7
    %v4546 = vor.u32 %v4542, %v4545
    %v4547 = vsel %vm4419, %v4538, %v4546
    %v4548 = vrot.slane %v4546, 4
    %v4550 = vshrl.u32 %v4404, 16
    %v4552 = vrot.slane %v4550, 6
    %v4553 = vshll.u32 %v4404, 16
    %v4555 = vrot.slane %v4553, 7
    %v4556 = vor.u32 %v4552, %v4555
    %v4557 = vsel %vm4419, %v4548, %v4556
    %v4558 = vrot.slane %v4556, 4
    %v4560 = vshrl.u32 %v4405, 16
    %v4562 = vrot.slane %v4560, 6
    %v4563 = vshll.u32 %v4405, 16
    %v4565 = vrot.slane %v4563, 7
    %v4566 = vor.u32 %v4562, %v4565
    %v4567 = vsel %vm4419, %v4558, %v4566
    %v4568 = vrot.slane %v4566, 4
    %v4570 = vshrl.u32 %v4406, 16
    %v4572 = vrot.slane %v4570, 6
    %v4573 = vshll.u32 %v4406, 16
    %v4575 = vrot.slane %v4573, 7
    %v4576 = vor.u32 %v4572, %v4575
    %v4577 = vsel %vm4419, %v4568, %v4576
    %v4578 = vrot.slane %v4576, 4
    %v4580 = vshrl.u32 %v4407, 16
    %v4582 = vrot.slane %v4580, 6
    %v4583 = vshll.u32 %v4407, 16
    %v4585 = vrot.slane %v4583, 7
    %v4586 = vor.u32 %v4582, %v4585
    %v4587 = vsel %vm4419, %v4578, %v4586
    %v4588 = vrot.slane %v4586, 4
    %v4590 = vshrl.u32 %v4408, 16
    %v4592 = vrot.slane %v4590, 6
    %v4593 = vshll.u32 %v4408, 16
    %v4595 = vrot.slane %v4593, 7
    %v4596 = vor.u32 %v4592, %v4595
    %v4597 = vsel %vm4419, %v4588, %v4596
    %v4598 = vrot.slane %v4596, 4
    %v4600 = vshrl.u32 %v4409, 16
    %v4602 = vrot.slane %v4600, 6
    %v4603 = vshll.u32 %v4409, 16
    %v4605 = vrot.slane %v4603, 7
    %v4606 = vor.u32 %v4602, %v4605
    %v4607 = vsel %vm4419, %v4598, %v4606
    %v4608 = vrot.slane %v4606, 4
    %v4610 = vshrl.u32 %v4410, 16
    %v4612 = vrot.slane %v4610, 6
    %v4613 = vshll.u32 %v4410, 16
    %v4615 = vrot.slane %v4613, 7
    %v4616 = vor.u32 %v4612, %v4615
    %v4617 = vsel %vm4419, %v4608, %v4616
    %v4618 = vrot.slane %v4616, 4
    %v4620 = vshrl.u32 %v4411, 16
    %v4622 = vrot.slane %v4620, 6
    %v4623 = vshll.u32 %v4411, 16
    %v4625 = vrot.slane %v4623, 7
    %v4626 = vor.u32 %v4622, %v4625
    %v4627 = vsel %vm4419, %v4618, %v4626
    %v4628 = vrot.slane %v4626, 4
    %v4630 = vshrl.u32 %v4412, 16
    %v4632 = vrot.slane %v4630, 6
    %v4633 = vshll.u32 %v4412, 16
    %v4635 = vrot.slane %v4633, 7
    %v4636 = vor.u32 %v4632, %v4635
    %v4637 = vsel %vm4419, %v4628, %v4636
    %v4638 = vrot.slane %v4636, 4
    %v4640 = vshrl.u32 %v4413, 16
    %v4642 = vrot.slane %v4640, 6
    %v4643 = vshll.u32 %v4413, 16
    %v4645 = vrot.slane %v4643, 7
    %v4646 = vor.u32 %v4642, %v4645
    %v4647 = vsel %vm4419, %v4638, %v4646
    %v4648 = vrot.slane %v4646, 4
    %v4650 = vshrl.u32 %v4414, 16
    %v4652 = vrot.slane %v4650, 6
    %v4653 = vshll.u32 %v4414, 16
    %v4655 = vrot.slane %v4653, 7
    %v4656 = vor.u32 %v4652, %v4655
    %v4657 = vsel %vm4419, %v4648, %v4656
    %v4658 = vrot.slane %v4656, 4
    %v4660 = vshrl.u32 %v4415, 16
    %v4662 = vrot.slane %v4660, 6
    %v4663 = vshll.u32 %v4415, 16
    %v4665 = vrot.slane %v4663, 7
    %v4666 = vor.u32 %v4662, %v4665
    %v4667 = vsel %vm4419, %v4658, %v4666
    %v4668 = vrot.slane %v4666, 4
    %v4670 = vshrl.u32 %v4416, 16
    %v4672 = vrot.slane %v4670, 6
    %v4673 = vshll.u32 %v4416, 16
    %v4675 = vrot.slane %v4673, 7
    %v4676 = vor.u32 %v4672, %v4675
    %v4677 = vsel %vm4419, %v4668, %v4676
    %4703 = vst [vmem:[#allocation4 + $0x1c] sm:$0xf] %v4437
    %4704 = vst [vmem:[#allocation4 + $0x40] sm:$0xf] %v4447
    %4705 = vst [vmem:[#allocation4 + $0x64] sm:$0xf] %v4457
    %4706 = vst [vmem:[#allocation4 + $0x88] sm:$0xf] %v4467
    %4707 = vst [vmem:[#allocation4 + $0xac] sm:$0xf] %v4477
    %4708 = vst [vmem:[#allocation4 + $0xd0] sm:$0xf] %v4487
    %4709 = vst [vmem:[#allocation4 + $0xf4] sm:$0xf] %v4497
    %4710 = vst [vmem:[#allocation4 + $0x118] sm:$0xf] %v4507
    %4711 = vst [vmem:[#allocation4 + $0x13c] sm:$0xf] %v4517
    %4712 = vst [vmem:[#allocation4 + $0x160] sm:$0xf] %v4527
    %4713 = vst [vmem:[#allocation4 + $0x184] sm:$0xf] %v4537
    %4714 = vst [vmem:[#allocation4 + $0x1a8] sm:$0xf] %v4547
    %4715 = vst [vmem:[#allocation4 + $0x1cc] sm:$0xf] %v4557
    %4716 = vst [vmem:[#allocation4 + $0x1f0] sm:$0xf] %v4567
    %4717 = vst [vmem:[#allocation4 + $0x214] sm:$0xf] %v4577
    %4718 = vst [vmem:[#allocation4 + $0x238] sm:$0xf] %v4587
    %4719 = vst [vmem:[#allocation4 + $0x25c] sm:$0xf] %v4597
    %4720 = vst [vmem:[#allocation4 + $0x280] sm:$0xf] %v4607
    %4721 = vst [vmem:[#allocation4 + $0x2a4] sm:$0xf] %v4617
    %4722 = vst [vmem:[#allocation4 + $0x2c8] sm:$0xf] %v4627
    %4723 = vst [vmem:[#allocation4 + $0x2ec] sm:$0xf] %v4637
    %4724 = vst [vmem:[#allocation4 + $0x310] sm:$0xf] %v4647
    %4725 = vst [vmem:[#allocation4 + $0x334] sm:$0xf] %v4657
    %4726 = vst [vmem:[#allocation4 + $0x358] sm:$0xf] %v4667
    %4727 = vst [vmem:[#allocation4 + $0x37c] sm:$0xf] %v4677
    %v4728 = vld [vmem:[#allocation3 + $0x8] sm:$0xf8]
    %v4729 = vld [vmem:[#allocation3 + $0x10] sm:$0xff]
    %v4730 = vld [vmem:[#allocation3 + $0x18] sm:$0xff]
    %v4731 = vld [vmem:[#allocation3 + $0x20] sm:$0xff]
    %v4732 = vld [vmem:[#allocation3 + $0x28] sm:$0xff]
    %v4733 = vld [vmem:[#allocation3 + $0x30] sm:$0xff]
    %v4734 = vld [vmem:[#allocation3 + $0x38] sm:$0xff]
    %v4735 = vld [vmem:[#allocation3 + $0x40] sm:$0xff]
    %v4736 = vld [vmem:[#allocation3 + $0x48] sm:$0xff]
    %v4737 = vld [vmem:[#allocation3 + $0x50] sm:$0xff]
    %v4738 = vld [vmem:[#allocation3 + $0x58] sm:$0xff]
    %v4739 = vld [vmem:[#allocation3 + $0x60] sm:$0xff]
    %v4740 = vld [vmem:[#allocation3 + $0x68] sm:$0x7f]
    %v4754 = vunpack.c.l.b16 %v4728
    %v4755 = vunpack.c.h.b16 %v4728
    %v4756 = vunpack.c.l.b16 %v4729
    %v4757 = vunpack.c.h.b16 %v4729
    %v4758 = vunpack.c.l.b16 %v4730
    %v4759 = vunpack.c.h.b16 %v4730
    %v4760 = vunpack.c.l.b16 %v4731
    %v4761 = vunpack.c.h.b16 %v4731
    %v4762 = vunpack.c.l.b16 %v4732
    %v4763 = vunpack.c.h.b16 %v4732
    %v4764 = vunpack.c.l.b16 %v4733
    %v4765 = vunpack.c.h.b16 %v4733
    %v4766 = vunpack.c.l.b16 %v4734
    %v4767 = vunpack.c.h.b16 %v4734
    %v4768 = vunpack.c.l.b16 %v4735
    %v4769 = vunpack.c.h.b16 %v4735
    %v4770 = vunpack.c.l.b16 %v4736
    %v4771 = vunpack.c.h.b16 %v4736
    %v4772 = vunpack.c.l.b16 %v4737
    %v4773 = vunpack.c.h.b16 %v4737
    %v4774 = vunpack.c.l.b16 %v4738
    %v4775 = vunpack.c.h.b16 %v4738
    %v4776 = vunpack.c.l.b16 %v4739
    %v4777 = vunpack.c.h.b16 %v4739
    %v4778 = vunpack.c.l.b16 %v4740
    %v4779 = vunpack.c.h.b16 %v4740
    %v4780 = vpack.c.b16 %v4754, %v4754
    %v4781 = vpack.c.b16 %v4755, %v4755
    %v4782 = vpack.c.b16 %v4756, %v4756
    %v4783 = vpack.c.b16 %v4757, %v4757
    %v4784 = vpack.c.b16 %v4758, %v4758
    %v4785 = vpack.c.b16 %v4759, %v4759
    %v4786 = vpack.c.b16 %v4760, %v4760
    %v4787 = vpack.c.b16 %v4761, %v4761
    %v4788 = vpack.c.b16 %v4762, %v4762
    %v4789 = vpack.c.b16 %v4763, %v4763
    %v4790 = vpack.c.b16 %v4764, %v4764
    %v4791 = vpack.c.b16 %v4765, %v4765
    %v4792 = vpack.c.b16 %v4766, %v4766
    %v4793 = vpack.c.b16 %v4767, %v4767
    %v4794 = vpack.c.b16 %v4768, %v4768
    %v4795 = vpack.c.b16 %v4769, %v4769
    %v4796 = vpack.c.b16 %v4770, %v4770
    %v4797 = vpack.c.b16 %v4771, %v4771
    %v4798 = vpack.c.b16 %v4772, %v4772
    %v4799 = vpack.c.b16 %v4773, %v4773
    %v4800 = vpack.c.b16 %v4774, %v4774
    %v4801 = vpack.c.b16 %v4775, %v4775
    %v4802 = vpack.c.b16 %v4776, %v4776
    %v4803 = vpack.c.b16 %v4777, %v4777
    %v4804 = vpack.c.b16 %v4778, %v4778
    %v4805 = vpack.c.b16 %v4779, %v4779
    %vm4806 = vcmask 1040384
    %vm4807 = vcmask 1044484
    %vm4808 = vmor %vm4806, %vm4807
    %v4809 = vrot.slane %v4780, 7
    %v4810 = vrot.slane %v4809, 4
    %v4811 = vrot.slane %v4781, 7
    %v4812 = vsel %vm4808, %v4810, %v4811
    %v4813 = vrot.slane %v4811, 4
    %v4814 = vrot.slane %v4782, 7
    %v4815 = vsel %vm4808, %v4813, %v4814
    %v4816 = vrot.slane %v4814, 4
    %v4817 = vrot.slane %v4783, 7
    %v4818 = vsel %vm4808, %v4816, %v4817
    %v4819 = vrot.slane %v4817, 4
    %v4820 = vrot.slane %v4784, 7
    %v4821 = vsel %vm4808, %v4819, %v4820
    %v4822 = vrot.slane %v4820, 4
    %v4823 = vrot.slane %v4785, 7
    %v4824 = vsel %vm4808, %v4822, %v4823
    %v4825 = vrot.slane %v4823, 4
    %v4826 = vrot.slane %v4786, 7
    %v4827 = vsel %vm4808, %v4825, %v4826
    %v4828 = vrot.slane %v4826, 4
    %v4829 = vrot.slane %v4787, 7
    %v4830 = vsel %vm4808, %v4828, %v4829
    %v4831 = vrot.slane %v4829, 4
    %v4832 = vrot.slane %v4788, 7
    %v4833 = vsel %vm4808, %v4831, %v4832
    %v4834 = vrot.slane %v4832, 4
    %v4835 = vrot.slane %v4789, 7
    %v4836 = vsel %vm4808, %v4834, %v4835
    %v4837 = vrot.slane %v4835, 4
    %v4838 = vrot.slane %v4790, 7
    %v4839 = vsel %vm4808, %v4837, %v4838
    %v4840 = vrot.slane %v4838, 4
    %v4841 = vrot.slane %v4791, 7
    %v4842 = vsel %vm4808, %v4840, %v4841
    %v4843 = vrot.slane %v4841, 4
    %v4844 = vrot.slane %v4792, 7
    %v4845 = vsel %vm4808, %v4843, %v4844
    %v4846 = vrot.slane %v4844, 4
    %v4847 = vrot.slane %v4793, 7
    %v4848 = vsel %vm4808, %v4846, %v4847
    %v4849 = vrot.slane %v4847, 4
    %v4850 = vrot.slane %v4794, 7
    %v4851 = vsel %vm4808, %v4849, %v4850
    %v4852 = vrot.slane %v4850, 4
    %v4853 = vrot.slane %v4795, 7
    %v4854 = vsel %vm4808, %v4852, %v4853
    %v4855 = vrot.slane %v4853, 4
    %v4856 = vrot.slane %v4796, 7
    %v4857 = vsel %vm4808, %v4855, %v4856
    %v4858 = vrot.slane %v4856, 4
    %v4859 = vrot.slane %v4797, 7
    %v4860 = vsel %vm4808, %v4858, %v4859
    %v4861 = vrot.slane %v4859, 4
    %v4862 = vrot.slane %v4798, 7
    %v4863 = vsel %vm4808, %v4861, %v4862
    %v4864 = vrot.slane %v4862, 4
    %v4865 = vrot.slane %v4799, 7
    %v4866 = vsel %vm4808, %v4864, %v4865
    %v4867 = vrot.slane %v4865, 4
    %v4868 = vrot.slane %v4800, 7
    %v4869 = vsel %vm4808, %v4867, %v4868
    %v4870 = vrot.slane %v4868, 4
    %v4871 = vrot.slane %v4801, 7
    %v4872 = vsel %vm4808, %v4870, %v4871
    %v4873 = vrot.slane %v4871, 4
    %v4874 = vrot.slane %v4802, 7
    %v4875 = vsel %vm4808, %v4873, %v4874
    %v4876 = vrot.slane %v4874, 4
    %v4877 = vrot.slane %v4803, 7
    %v4878 = vsel %vm4808, %v4876, %v4877
    %v4879 = vrot.slane %v4877, 4
    %v4880 = vrot.slane %v4804, 7
    %v4881 = vsel %vm4808, %v4879, %v4880
    %v4882 = vrot.slane %v4880, 4
    %v4883 = vrot.slane %v4805, 7
    %v4884 = vsel %vm4808, %v4882, %v4883
    %4910 = vst [vmem:[#allocation4 + $0x20] sm:$0xf] %v4812
    %4911 = vst [vmem:[#allocation4 + $0x44] sm:$0xf] %v4815
    %4912 = vst [vmem:[#allocation4 + $0x68] sm:$0xf] %v4818
    %4913 = vst [vmem:[#allocation4 + $0x8c] sm:$0xf] %v4821
    %4914 = vst [vmem:[#allocation4 + $0xb0] sm:$0xf] %v4824
    %4915 = vst [vmem:[#allocation4 + $0xd4] sm:$0xf] %v4827
    %4916 = vst [vmem:[#allocation4 + $0xf8] sm:$0xf] %v4830
    %4917 = vst [vmem:[#allocation4 + $0x11c] sm:$0xf] %v4833
    %4918 = vst [vmem:[#allocation4 + $0x140] sm:$0xf] %v4836
    %4919 = vst [vmem:[#allocation4 + $0x164] sm:$0xf] %v4839
    %4920 = vst [vmem:[#allocation4 + $0x188] sm:$0xf] %v4842
    %4921 = vst [vmem:[#allocation4 + $0x1ac] sm:$0xf] %v4845
    %4922 = vst [vmem:[#allocation4 + $0x1d0] sm:$0xf] %v4848
    %4923 = vst [vmem:[#allocation4 + $0x1f4] sm:$0xf] %v4851
    %4924 = vst [vmem:[#allocation4 + $0x218] sm:$0xf] %v4854
    %4925 = vst [vmem:[#allocation4 + $0x23c] sm:$0xf] %v4857
    %4926 = vst [vmem:[#allocation4 + $0x260] sm:$0xf] %v4860
    %4927 = vst [vmem:[#allocation4 + $0x284] sm:$0xf] %v4863
    %4928 = vst [vmem:[#allocation4 + $0x2a8] sm:$0xf] %v4866
    %4929 = vst [vmem:[#allocation4 + $0x2cc] sm:$0xf] %v4869
    %4930 = vst [vmem:[#allocation4 + $0x2f0] sm:$0xf] %v4872
    %4931 = vst [vmem:[#allocation4 + $0x314] sm:$0xf] %v4875
    %4932 = vst [vmem:[#allocation4 + $0x338] sm:$0xf] %v4878
    %4933 = vst [vmem:[#allocation4 + $0x35c] sm:$0xf] %v4881
    %4934 = vst [vmem:[#allocation4 + $0x380] sm:$0xf] %v4884
  $region97: #{residual_block_forward.8} parent=0 // pred_fallthru
    _
  %v4935 = vld [vmem:[#allocation4] sm:$0xff]
  %v4936 = vld [vmem:[#allocation4 + $0x8] sm:$0xff]
  %v4937 = vld [vmem:[#allocation4 + $0x10] sm:$0xff]
  %v4938 = vld [vmem:[#allocation4 + $0x18] sm:$0xff]
  %v4939 = vld [vmem:[#allocation4 + $0x20] sm:$0xf]
  %v4940 = vld [vmem:[#allocation4 + $0x24] sm:$0xff]
  %v4941 = vld [vmem:[#allocation4 + $0x2c] sm:$0xff]
  %v4942 = vld [vmem:[#allocation4 + $0x34] sm:$0xff]
  %v4943 = vld [vmem:[#allocation4 + $0x3c] sm:$0xff]
  %v4944 = vld [vmem:[#allocation4 + $0x44] sm:$0xf]
  %v4945 = vld [vmem:[#allocation4 + $0x48] sm:$0xff]
  %v4946 = vld [vmem:[#allocation4 + $0x50] sm:$0xff]
  %v4947 = vld [vmem:[#allocation4 + $0x58] sm:$0xff]
  %v4948 = vld [vmem:[#allocation4 + $0x60] sm:$0xff]
  %v4949 = vld [vmem:[#allocation4 + $0x68] sm:$0xf]
  %v4950 = vld [vmem:[#allocation4 + $0x6c] sm:$0xff]
  %v4951 = vld [vmem:[#allocation4 + $0x74] sm:$0xff]
  %v4952 = vld [vmem:[#allocation4 + $0x7c] sm:$0xff]
  %v4953 = vld [vmem:[#allocation4 + $0x84] sm:$0xff]
  %v4954 = vld [vmem:[#allocation4 + $0x8c] sm:$0xf]
  %v4955 = vld [vmem:[#allocation4 + $0x90] sm:$0xff]
  %v4956 = vld [vmem:[#allocation4 + $0x98] sm:$0xff]
  %v4957 = vld [vmem:[#allocation4 + $0xa0] sm:$0xff]
  %v4958 = vld [vmem:[#allocation4 + $0xa8] sm:$0xff]
  %v4959 = vld [vmem:[#allocation4 + $0xb0] sm:$0xf]
  %v4960 = vld [vmem:[#allocation4 + $0xb4] sm:$0xff]
  %v4961 = vld [vmem:[#allocation4 + $0xbc] sm:$0xff]
  %v4962 = vld [vmem:[#allocation4 + $0xc4] sm:$0xff]
  %v4963 = vld [vmem:[#allocation4 + $0xcc] sm:$0xff]
  %v4964 = vld [vmem:[#allocation4 + $0xd4] sm:$0xf]
  %v4965 = vld [vmem:[#allocation4 + $0xd8] sm:$0xff]
  %v4966 = vld [vmem:[#allocation4 + $0xe0] sm:$0xff]
  %v4967 = vld [vmem:[#allocation4 + $0xe8] sm:$0xff]
  %v4968 = vld [vmem:[#allocation4 + $0xf0] sm:$0xff]
  %v4969 = vld [vmem:[#allocation4 + $0xf8] sm:$0xf]
  %v4970 = vld [vmem:[#allocation4 + $0xfc] sm:$0xff]
  %v4971 = vld [vmem:[#allocation4 + $0x104] sm:$0xff]
  %v4972 = vld [vmem:[#allocation4 + $0x10c] sm:$0xff]
  %v4973 = vld [vmem:[#allocation4 + $0x114] sm:$0xff]
  %v4974 = vld [vmem:[#allocation4 + $0x11c] sm:$0xf]
  %v4975 = vld [vmem:[#allocation4 + $0x120] sm:$0xff]
  %v4976 = vld [vmem:[#allocation4 + $0x128] sm:$0xff]
  %v4977 = vld [vmem:[#allocation4 + $0x130] sm:$0xff]
  %v4978 = vld [vmem:[#allocation4 + $0x138] sm:$0xff]
  %v4979 = vld [vmem:[#allocation4 + $0x140] sm:$0xf]
  %v4980 = vld [vmem:[#allocation4 + $0x144] sm:$0xff]
  %v4981 = vld [vmem:[#allocation4 + $0x14c] sm:$0xff]
  %v4982 = vld [vmem:[#allocation4 + $0x154] sm:$0xff]
  %v4983 = vld [vmem:[#allocation4 + $0x15c] sm:$0xff]
  %v4984 = vld [vmem:[#allocation4 + $0x164] sm:$0xf]
  %v4985 = vld [vmem:[#allocation4 + $0x168] sm:$0xff]
  %v4986 = vld [vmem:[#allocation4 + $0x170] sm:$0xff]
  %v4987 = vld [vmem:[#allocation4 + $0x178] sm:$0xff]
  %v4988 = vld [vmem:[#allocation4 + $0x180] sm:$0xff]
  %v4989 = vld [vmem:[#allocation4 + $0x188] sm:$0xf]
  %v4990 = vld [vmem:[#allocation4 + $0x18c] sm:$0xff]
  %v4991 = vld [vmem:[#allocation4 + $0x194] sm:$0xff]
  %v4992 = vld [vmem:[#allocation4 + $0x19c] sm:$0xff]
  %v4993 = vld [vmem:[#allocation4 + $0x1a4] sm:$0xff]
  %v4994 = vld [vmem:[#allocation4 + $0x1ac] sm:$0xf]
  %v4995 = vld [vmem:[#allocation4 + $0x1b0] sm:$0xff]
  %v4996 = vld [vmem:[#allocation4 + $0x1b8] sm:$0xff]
  %v4997 = vld [vmem:[#allocation4 + $0x1c0] sm:$0xff]
  %v4998 = vld [vmem:[#allocation4 + $0x1c8] sm:$0xff]
  %v4999 = vld [vmem:[#allocation4 + $0x1d0] sm:$0xf]
  %v5000 = vld [vmem:[#allocation4 + $0x1d4] sm:$0xff]
  %v5001 = vld [vmem:[#allocation4 + $0x1dc] sm:$0xff]
  %v5002 = vld [vmem:[#allocation4 + $0x1e4] sm:$0xff]
  %v5003 = vld [vmem:[#allocation4 + $0x1ec] sm:$0xff]
  %v5004 = vld [vmem:[#allocation4 + $0x1f4] sm:$0xf]
  %v5005 = vld [vmem:[#allocation4 + $0x1f8] sm:$0xff]
  %v5006 = vld [vmem:[#allocation4 + $0x200] sm:$0xff]
  %v5007 = vld [vmem:[#allocation4 + $0x208] sm:$0xff]
  %v5008 = vld [vmem:[#allocation4 + $0x210] sm:$0xff]
  %v5009 = vld [vmem:[#allocation4 + $0x218] sm:$0xf]
  %v5010 = vld [vmem:[#allocation4 + $0x21c] sm:$0xff]
  %v5011 = vld [vmem:[#allocation4 + $0x224] sm:$0xff]
  %v5012 = vld [vmem:[#allocation4 + $0x22c] sm:$0xff]
  %v5013 = vld [vmem:[#allocation4 + $0x234] sm:$0xff]
  %v5014 = vld [vmem:[#allocation4 + $0x23c] sm:$0xf]
  %v5015 = vld [vmem:[#allocation4 + $0x240] sm:$0xff]
  %v5016 = vld [vmem:[#allocation4 + $0x248] sm:$0xff]
  %v5017 = vld [vmem:[#allocation4 + $0x250] sm:$0xff]
  %v5018 = vld [vmem:[#allocation4 + $0x258] sm:$0xff]
  %v5019 = vld [vmem:[#allocation4 + $0x260] sm:$0xf]
  %v5020 = vld [vmem:[#allocation4 + $0x264] sm:$0xff]
  %v5021 = vld [vmem:[#allocation4 + $0x26c] sm:$0xff]
  %v5022 = vld [vmem:[#allocation4 + $0x274] sm:$0xff]
  %v5023 = vld [vmem:[#allocation4 + $0x27c] sm:$0xff]
  %v5024 = vld [vmem:[#allocation4 + $0x284] sm:$0xf]
  %v5025 = vld [vmem:[#allocation4 + $0x288] sm:$0xff]
  %v5026 = vld [vmem:[#allocation4 + $0x290] sm:$0xff]
  %v5027 = vld [vmem:[#allocation4 + $0x298] sm:$0xff]
  %v5028 = vld [vmem:[#allocation4 + $0x2a0] sm:$0xff]
  %v5029 = vld [vmem:[#allocation4 + $0x2a8] sm:$0xf]
  %v5030 = vld [vmem:[#allocation4 + $0x2ac] sm:$0xff]
  %v5031 = vld [vmem:[#allocation4 + $0x2b4] sm:$0xff]
  %v5032 = vld [vmem:[#allocation4 + $0x2bc] sm:$0xff]
  %v5033 = vld [vmem:[#allocation4 + $0x2c4] sm:$0xff]
  %v5034 = vld [vmem:[#allocation4 + $0x2cc] sm:$0xf]
  %v5035 = vld [vmem:[#allocation4 + $0x2d0] sm:$0xff]
  %v5036 = vld [vmem:[#allocation4 + $0x2d8] sm:$0xff]
  %v5037 = vld [vmem:[#allocation4 + $0x2e0] sm:$0xff]
  %v5038 = vld [vmem:[#allocation4 + $0x2e8] sm:$0xff]
  %v5039 = vld [vmem:[#allocation4 + $0x2f0] sm:$0xf]
  %v5040 = vld [vmem:[#allocation4 + $0x2f4] sm:$0xff]
  %v5041 = vld [vmem:[#allocation4 + $0x2fc] sm:$0xff]
  %v5042 = vld [vmem:[#allocation4 + $0x304] sm:$0xff]
  %v5043 = vld [vmem:[#allocation4 + $0x30c] sm:$0xff]
  %v5044 = vld [vmem:[#allocation4 + $0x314] sm:$0xf]
  %v5045 = vld [vmem:[#allocation4 + $0x318] sm:$0xff]
  %v5046 = vld [vmem:[#allocation4 + $0x320] sm:$0xff]
  %v5047 = vld [vmem:[#allocation4 + $0x328] sm:$0xff]
  %v5048 = vld [vmem:[#allocation4 + $0x330] sm:$0xff]
  %v5049 = vld [vmem:[#allocation4 + $0x338] sm:$0xf]
  %v5050 = vld [vmem:[#allocation4 + $0x33c] sm:$0xff]
  %v5051 = vld [vmem:[#allocation4 + $0x344] sm:$0xff]
  %v5052 = vld [vmem:[#allocation4 + $0x34c] sm:$0xff]
  %v5053 = vld [vmem:[#allocation4 + $0x354] sm:$0xff]
  %v5054 = vld [vmem:[#allocation4 + $0x35c] sm:$0xf]
  %v5055 = vld [vmem:[#allocation4 + $0x360] sm:$0xff]
  %v5056 = vld [vmem:[#allocation4 + $0x368] sm:$0xff]
  %v5057 = vld [vmem:[#allocation4 + $0x370] sm:$0xff]
  %v5058 = vld [vmem:[#allocation4 + $0x378] sm:$0xff]
  %v5059 = vld [vmem:[#allocation4 + $0x380] sm:$0xf]
  %v5060 = vld [vmem:[%s1] sm:$0xf]
  %v5061 = vld [vmem:[%s1 + $0x4] sm:$0xf]
  %v5062 = vld [vmem:[%s1 + $0x8] sm:$0xf]
  %v5063 = vld [vmem:[%s1 + $0xc] sm:$0xf]
  %v5064 = vld [vmem:[%s1 + $0x10] sm:$0xf]
  %v5065 = vld [vmem:[%s1 + $0x14] sm:$0xf]
  %v5066 = vld [vmem:[%s1 + $0x18] sm:$0xf]
  %v5067 = vld [vmem:[%s1 + $0x1c] sm:$0xf]
  %v5068 = vld [vmem:[%s1 + $0x20] sm:$0xf]
  %v5069 = vld [vmem:[%s1 + $0x24] sm:$0xf]
  %v5070 = vld [vmem:[%s1 + $0x28] sm:$0xf]
  %v5071 = vld [vmem:[%s1 + $0x2c] sm:$0xf]
  %v5072 = vld [vmem:[%s1 + $0x30] sm:$0xf]
  %v5073 = vld [vmem:[%s1 + $0x34] sm:$0xf]
  %v5074 = vld [vmem:[%s1 + $0x38] sm:$0xf]
  %v5075 = vld [vmem:[%s1 + $0x3c] sm:$0xf]
  %v5076 = vld [vmem:[%s1 + $0x40] sm:$0xf]
  %v5077 = vld [vmem:[%s1 + $0x44] sm:$0xf]
  %v5078 = vld [vmem:[%s1 + $0x48] sm:$0xf]
  %v5079 = vld [vmem:[%s1 + $0x4c] sm:$0xf]
  %v5080 = vld [vmem:[%s1 + $0x50] sm:$0xf]
  %v5081 = vld [vmem:[%s1 + $0x54] sm:$0xf]
  %v5082 = vld [vmem:[%s1 + $0x58] sm:$0xf]
  %v5083 = vld [vmem:[%s1 + $0x5c] sm:$0xf]
  %v5084 = vld [vmem:[%s1 + $0x60] sm:$0xf]
  %v5085 = vld [vmem:[%s1 + $0x64] sm:$0xf]
  %v5086 = vld [vmem:[%s1 + $0x68] sm:$0xf]
  %v5087 = vld [vmem:[%s1 + $0x6c] sm:$0xf]
  %v5088 = vld [vmem:[%s1 + $0x70] sm:$0xf]
  %v5089 = vld [vmem:[%s1 + $0x74] sm:$0xf]
  %v5090 = vld [vmem:[%s1 + $0x78] sm:$0xf]
  %v5091 = vld [vmem:[%s1 + $0x7c] sm:$0xf]
  %v5092 = vld [vmem:[%s1 + $0x80] sm:$0xf]
  %v5093 = vld [vmem:[%s1 + $0x84] sm:$0xf]
  %v5094 = vld [vmem:[%s1 + $0x88] sm:$0xf]
  %v5095 = vld [vmem:[%s1 + $0x8c] sm:$0xf]
  %v5096 = vld [vmem:[%s1 + $0x90] sm:$0xf]
  %v5097 = vld [vmem:[%s1 + $0x94] sm:$0xf]
  %v5098 = vld [vmem:[%s1 + $0x98] sm:$0xf]
  %v5099 = vld [vmem:[%s1 + $0x9c] sm:$0xf]
  %v5100 = vld [vmem:[%s1 + $0xa0] sm:$0xf]
  %v5101 = vld [vmem:[%s1 + $0xa4] sm:$0xf]
  %v5102 = vld [vmem:[%s1 + $0xa8] sm:$0xf]
  %v5103 = vld [vmem:[%s1 + $0xac] sm:$0xf]
  %v5104 = vld [vmem:[%s1 + $0xb0] sm:$0xf]
  %v5105 = vld [vmem:[%s1 + $0xb4] sm:$0xf]
  %v5106 = vld [vmem:[%s1 + $0xb8] sm:$0xf]
  %v5107 = vld [vmem:[%s1 + $0xbc] sm:$0xf]
  %v5108 = vld [vmem:[%s1 + $0xc0] sm:$0xf]
  %v5109 = vld [vmem:[%s1 + $0xc4] sm:$0xf]
  %v5110 = vld [vmem:[%s1 + $0xc8] sm:$0xf]
  %v5111 = vld [vmem:[%s1 + $0xcc] sm:$0xf]
  %v5112 = vld [vmem:[%s1 + $0xd0] sm:$0xf]
  %v5113 = vld [vmem:[%s1 + $0xd4] sm:$0xf]
  %v5114 = vld [vmem:[%s1 + $0xd8] sm:$0xf]
  %v5115 = vld [vmem:[%s1 + $0xdc] sm:$0xf]
  %v5116 = vld [vmem:[%s1 + $0xe0] sm:$0xf]
  %v5117 = vld [vmem:[%s1 + $0xe4] sm:$0xf]
  %v5118 = vld [vmem:[%s1 + $0xe8] sm:$0xf]
  %v5119 = vld [vmem:[%s1 + $0xec] sm:$0xf]
  %v5120 = vld [vmem:[%s1 + $0xf0] sm:$0xf]
  %v5121 = vld [vmem:[%s1 + $0xf4] sm:$0xf]
  %v5122 = vld [vmem:[%s1 + $0xf8] sm:$0xf]
  %v5123 = vld [vmem:[%s1 + $0xfc] sm:$0xf]
  %v5124 = vld [vmem:[%s1 + $0x100] sm:$0xf]
  %v5125 = vld [vmem:[%s1 + $0x104] sm:$0xf]
  %v5126 = vld [vmem:[%s1 + $0x108] sm:$0xf]
  %v5127 = vld [vmem:[%s1 + $0x10c] sm:$0xf]
  %v5128 = vld [vmem:[%s1 + $0x110] sm:$0xf]
  %v5129 = vld [vmem:[%s1 + $0x114] sm:$0xf]
  %v5130 = vld [vmem:[%s1 + $0x118] sm:$0xf]
  %v5131 = vld [vmem:[%s1 + $0x11c] sm:$0xf]
  %v5132 = vld [vmem:[%s1 + $0x120] sm:$0xf]
  %v5133 = vld [vmem:[%s1 + $0x124] sm:$0xf]
  %v5134 = vld [vmem:[%s1 + $0x128] sm:$0xf]
  %v5135 = vld [vmem:[%s1 + $0x12c] sm:$0xf]
  %v5136 = vld [vmem:[%s1 + $0x130] sm:$0xf]
  %v5137 = vld [vmem:[%s1 + $0x134] sm:$0xf]
  %v5138 = vld [vmem:[%s1 + $0x138] sm:$0xf]
  %v5139 = vld [vmem:[%s1 + $0x13c] sm:$0xf]
  %v5140 = vld [vmem:[%s1 + $0x140] sm:$0xf]
  %v5141 = vld [vmem:[%s1 + $0x144] sm:$0xf]
  %v5142 = vld [vmem:[%s1 + $0x148] sm:$0xf]
  %v5143 = vld [vmem:[%s1 + $0x14c] sm:$0xf]
  %v5144 = vld [vmem:[%s1 + $0x150] sm:$0xf]
  %v5145 = vld [vmem:[%s1 + $0x154] sm:$0xf]
  %v5146 = vld [vmem:[%s1 + $0x158] sm:$0xf]
  %v5147 = vld [vmem:[%s1 + $0x15c] sm:$0xf]
  %v5148 = vld [vmem:[%s1 + $0x160] sm:$0xf]
  %v5149 = vld [vmem:[%s1 + $0x164] sm:$0xf]
  %v5150 = vld [vmem:[%s1 + $0x168] sm:$0xf]
  %v5151 = vld [vmem:[%s1 + $0x16c] sm:$0xf]
  %v5152 = vld [vmem:[%s1 + $0x170] sm:$0xf]
  %v5153 = vld [vmem:[%s1 + $0x174] sm:$0xf]
  %v5154 = vld [vmem:[%s1 + $0x178] sm:$0xf]
  %v5155 = vld [vmem:[%s1 + $0x17c] sm:$0xf]
  %v5156 = vld [vmem:[%s1 + $0x180] sm:$0xf]
  %v5157 = vld [vmem:[%s1 + $0x184] sm:$0xf]
  %v5158 = vld [vmem:[%s1 + $0x188] sm:$0xf]
  %v5159 = vld [vmem:[%s1 + $0x18c] sm:$0xf]
  %v5160 = vld [vmem:[%s1 + $0x190] sm:$0xf]
  %v5161 = vld [vmem:[%s1 + $0x194] sm:$0xf]
  %v5162 = vld [vmem:[%s1 + $0x198] sm:$0xf]
  %v5163 = vld [vmem:[%s1 + $0x19c] sm:$0xf]
  %v5164 = vld [vmem:[%s1 + $0x1a0] sm:$0xf]
  %v5165 = vld [vmem:[%s1 + $0x1a4] sm:$0xf]
  %v5166 = vld [vmem:[%s1 + $0x1a8] sm:$0xf]
  %v5167 = vld [vmem:[%s1 + $0x1ac] sm:$0xf]
  %v5168 = vld [vmem:[%s1 + $0x1b0] sm:$0xf]
  %v5169 = vld [vmem:[%s1 + $0x1b4] sm:$0xf]
  %v5170 = vld [vmem:[%s1 + $0x1b8] sm:$0xf]
  %v5171 = vld [vmem:[%s1 + $0x1bc] sm:$0xf]
  %v5172 = vld [vmem:[%s1 + $0x1c0] sm:$0xf]
  %v5173 = vld [vmem:[%s1 + $0x1c4] sm:$0xf]
  %v5174 = vld [vmem:[%s1 + $0x1c8] sm:$0xf]
  %v5175 = vld [vmem:[%s1 + $0x1cc] sm:$0xf]
  %v5176 = vld [vmem:[%s1 + $0x1d0] sm:$0xf]
  %v5177 = vld [vmem:[%s1 + $0x1d4] sm:$0xf]
  %v5178 = vld [vmem:[%s1 + $0x1d8] sm:$0xf]
  %v5179 = vld [vmem:[%s1 + $0x1dc] sm:$0xf]
  %v5180 = vld [vmem:[%s1 + $0x1e0] sm:$0xf]
  %v5181 = vld [vmem:[%s1 + $0x1e4] sm:$0xf]
  %v5182 = vld [vmem:[%s1 + $0x1e8] sm:$0xf]
  %v5183 = vld [vmem:[%s1 + $0x1ec] sm:$0xf]
  %v5184 = vld [vmem:[%s1 + $0x1f0] sm:$0xf]
  %v5185 = vld [vmem:[%s1 + $0x1f4] sm:$0xf]
  %v5186 = vld [vmem:[%s1 + $0x1f8] sm:$0xf]
  %v5187 = vld [vmem:[%s1 + $0x1fc] sm:$0xf]
  %v5188 = vld [vmem:[%s1 + $0x200] sm:$0xf]
  %v5189 = vld [vmem:[%s1 + $0x204] sm:$0xf]
  %v5190 = vld [vmem:[%s1 + $0x208] sm:$0xf]
  %v5191 = vld [vmem:[%s1 + $0x20c] sm:$0xf]
  %v5192 = vld [vmem:[%s1 + $0x210] sm:$0xf]
  %v5193 = vld [vmem:[%s1 + $0x214] sm:$0xf]
  %v5194 = vld [vmem:[%s1 + $0x218] sm:$0xf]
  %v5195 = vld [vmem:[%s1 + $0x21c] sm:$0xf]
  %v5196 = vld [vmem:[%s1 + $0x220] sm:$0xf]
  %v5197 = vld [vmem:[%s1 + $0x224] sm:$0xf]
  %v5198 = vld [vmem:[%s1 + $0x228] sm:$0xf]
  %v5199 = vld [vmem:[%s1 + $0x22c] sm:$0xf]
  %v5200 = vld [vmem:[%s1 + $0x230] sm:$0xf]
  %v5201 = vld [vmem:[%s1 + $0x234] sm:$0xf]
  %v5202 = vld [vmem:[%s1 + $0x238] sm:$0xf]
  %v5203 = vld [vmem:[%s1 + $0x23c] sm:$0xf]
  %v5204 = vld [vmem:[%s3] sm:$0xf]
  %v5205 = vld [vmem:[%s3 + $0x4] sm:$0xf]
  %v5206 = vld [vmem:[%s3 + $0x8] sm:$0xf]
  %v5207 = vld [vmem:[%s3 + $0xc] sm:$0xf]
  %v5208 = vld [vmem:[%s3 + $0x10] sm:$0xf]
  %v5209 = vld [vmem:[%s3 + $0x14] sm:$0xf]
  %v5210 = vld [vmem:[%s3 + $0x18] sm:$0xf]
  %v5211 = vld [vmem:[%s3 + $0x1c] sm:$0xf]
  %v5212 = vld [vmem:[%s3 + $0x20] sm:$0xf]
  %v5213 = vld [vmem:[%s3 + $0x24] sm:$0xf]
  %v5214 = vld [vmem:[%s3 + $0x28] sm:$0xf]
  %v5215 = vld [vmem:[%s3 + $0x2c] sm:$0xf]
  %v5216 = vld [vmem:[%s3 + $0x30] sm:$0xf]
  %v5217 = vld [vmem:[%s3 + $0x34] sm:$0xf]
  %v5218 = vld [vmem:[%s3 + $0x38] sm:$0xf]
  %v5219 = vld [vmem:[%s3 + $0x3c] sm:$0xf]
  %v5220 = vld [vmem:[%s3 + $0x40] sm:$0xf]
  %v5221 = vld [vmem:[%s3 + $0x44] sm:$0xf]
  %v5222 = vld [vmem:[%s3 + $0x48] sm:$0xf]
  %v5223 = vld [vmem:[%s3 + $0x4c] sm:$0xf]
  %v5224 = vld [vmem:[%s3 + $0x50] sm:$0xf]
  %v5225 = vld [vmem:[%s3 + $0x54] sm:$0xf]
  %v5226 = vld [vmem:[%s3 + $0x58] sm:$0xf]
  %v5227 = vld [vmem:[%s3 + $0x5c] sm:$0xf]
  %v5228 = vld [vmem:[%s3 + $0x60] sm:$0xf]
  %v5229 = vunpack.c.l.bf16 %v5204
  %v5230 = vunpack.c.l.bf16 %v5205
  %v5231 = vunpack.c.l.bf16 %v5206
  %v5232 = vunpack.c.l.bf16 %v5207
  %v5233 = vunpack.c.l.bf16 %v5208
  %v5234 = vunpack.c.l.bf16 %v5209
  %v5235 = vunpack.c.l.bf16 %v5210
  %v5236 = vunpack.c.l.bf16 %v5211
  %v5237 = vunpack.c.l.bf16 %v5212
  %v5238 = vunpack.c.l.bf16 %v5213
  %v5239 = vunpack.c.l.bf16 %v5214
  %v5240 = vunpack.c.l.bf16 %v5215
  %v5241 = vunpack.c.l.bf16 %v5216
  %v5242 = vunpack.c.l.bf16 %v5217
  %v5243 = vunpack.c.l.bf16 %v5218
  %v5244 = vunpack.c.l.bf16 %v5219
  %v5245 = vunpack.c.l.bf16 %v5220
  %v5246 = vunpack.c.l.bf16 %v5221
  %v5247 = vunpack.c.l.bf16 %v5222
  %v5248 = vunpack.c.l.bf16 %v5223
  %v5249 = vunpack.c.l.bf16 %v5224
  %v5250 = vunpack.c.l.bf16 %v5225
  %v5251 = vunpack.c.l.bf16 %v5226
  %v5252 = vunpack.c.l.bf16 %v5227
  %v5253 = vunpack.c.l.bf16 %v5228
  %v5379 = vunpack.c.l.b16 %v4935
  %v5380 = vunpack.c.h.b16 %v4935
  %v5381 = vunpack.c.l.b16 %v4936
  %v5382 = vunpack.c.h.b16 %v4936
  %v5383 = vunpack.c.l.b16 %v4937
  %v5384 = vunpack.c.h.b16 %v4937
  %v5385 = vunpack.c.l.b16 %v4938
  %v5386 = vunpack.c.h.b16 %v4938
  %v5387 = vunpack.c.l.b16 %v4939
  %v5388 = vunpack.c.l.b16 %v4940
  %v5389 = vunpack.c.h.b16 %v4940
  %v5390 = vunpack.c.l.b16 %v4941
  %v5391 = vunpack.c.h.b16 %v4941
  %v5392 = vunpack.c.l.b16 %v4942
  %v5393 = vunpack.c.h.b16 %v4942
  %v5394 = vunpack.c.l.b16 %v4943
  %v5395 = vunpack.c.h.b16 %v4943
  %v5396 = vunpack.c.l.b16 %v4944
  %v5397 = vunpack.c.l.b16 %v4945
  %v5398 = vunpack.c.h.b16 %v4945
  %v5399 = vunpack.c.l.b16 %v4946
  %v5400 = vunpack.c.h.b16 %v4946
  %v5401 = vunpack.c.l.b16 %v4947
  %v5402 = vunpack.c.h.b16 %v4947
  %v5403 = vunpack.c.l.b16 %v4948
  %v5404 = vunpack.c.h.b16 %v4948
  %v5405 = vunpack.c.l.b16 %v4949
  %v5406 = vunpack.c.l.b16 %v4950
  %v5407 = vunpack.c.h.b16 %v4950
  %v5408 = vunpack.c.l.b16 %v4951
  %v5409 = vunpack.c.h.b16 %v4951
  %v5410 = vunpack.c.l.b16 %v4952
  %v5411 = vunpack.c.h.b16 %v4952
  %v5412 = vunpack.c.l.b16 %v4953
  %v5413 = vunpack.c.h.b16 %v4953
  %v5414 = vunpack.c.l.b16 %v4954
  %v5415 = vunpack.c.l.b16 %v4955
  %v5416 = vunpack.c.h.b16 %v4955
  %v5417 = vunpack.c.l.b16 %v4956
  %v5418 = vunpack.c.h.b16 %v4956
  %v5419 = vunpack.c.l.b16 %v4957
  %v5420 = vunpack.c.h.b16 %v4957
  %v5421 = vunpack.c.l.b16 %v4958
  %v5422 = vunpack.c.h.b16 %v4958
  %v5423 = vunpack.c.l.b16 %v4959
  %v5424 = vunpack.c.l.b16 %v4960
  %v5425 = vunpack.c.h.b16 %v4960
  %v5426 = vunpack.c.l.b16 %v4961
  %v5427 = vunpack.c.h.b16 %v4961
  %v5428 = vunpack.c.l.b16 %v4962
  %v5429 = vunpack.c.h.b16 %v4962
  %v5430 = vunpack.c.l.b16 %v4963
  %v5431 = vunpack.c.h.b16 %v4963
  %v5432 = vunpack.c.l.b16 %v4964
  %v5433 = vunpack.c.l.b16 %v4965
  %v5434 = vunpack.c.h.b16 %v4965
  %v5435 = vunpack.c.l.b16 %v4966
  %v5436 = vunpack.c.h.b16 %v4966
  %v5437 = vunpack.c.l.b16 %v4967
  %v5438 = vunpack.c.h.b16 %v4967
  %v5439 = vunpack.c.l.b16 %v4968
  %v5440 = vunpack.c.h.b16 %v4968
  %v5441 = vunpack.c.l.b16 %v4969
  %v5442 = vunpack.c.l.b16 %v4970
  %v5443 = vunpack.c.h.b16 %v4970
  %v5444 = vunpack.c.l.b16 %v4971
  %v5445 = vunpack.c.h.b16 %v4971
  %v5446 = vunpack.c.l.b16 %v4972
  %v5447 = vunpack.c.h.b16 %v4972
  %v5448 = vunpack.c.l.b16 %v4973
  %v5449 = vunpack.c.h.b16 %v4973
  %v5450 = vunpack.c.l.b16 %v4974
  %v5451 = vunpack.c.l.b16 %v4975
  %v5452 = vunpack.c.h.b16 %v4975
  %v5453 = vunpack.c.l.b16 %v4976
  %v5454 = vunpack.c.h.b16 %v4976
  %v5455 = vunpack.c.l.b16 %v4977
  %v5456 = vunpack.c.h.b16 %v4977
  %v5457 = vunpack.c.l.b16 %v4978
  %v5458 = vunpack.c.h.b16 %v4978
  %v5459 = vunpack.c.l.b16 %v4979
  %v5460 = vunpack.c.l.b16 %v4980
  %v5461 = vunpack.c.h.b16 %v4980
  %v5462 = vunpack.c.l.b16 %v4981
  %v5463 = vunpack.c.h.b16 %v4981
  %v5464 = vunpack.c.l.b16 %v4982
  %v5465 = vunpack.c.h.b16 %v4982
  %v5466 = vunpack.c.l.b16 %v4983
  %v5467 = vunpack.c.h.b16 %v4983
  %v5468 = vunpack.c.l.b16 %v4984
  %v5469 = vunpack.c.l.b16 %v4985
  %v5470 = vunpack.c.h.b16 %v4985
  %v5471 = vunpack.c.l.b16 %v4986
  %v5472 = vunpack.c.h.b16 %v4986
  %v5473 = vunpack.c.l.b16 %v4987
  %v5474 = vunpack.c.h.b16 %v4987
  %v5475 = vunpack.c.l.b16 %v4988
  %v5476 = vunpack.c.h.b16 %v4988
  %v5477 = vunpack.c.l.b16 %v4989
  %v5478 = vunpack.c.l.b16 %v4990
  %v5479 = vunpack.c.h.b16 %v4990
  %v5480 = vunpack.c.l.b16 %v4991
  %v5481 = vunpack.c.h.b16 %v4991
  %v5482 = vunpack.c.l.b16 %v4992
  %v5483 = vunpack.c.h.b16 %v4992
  %v5484 = vunpack.c.l.b16 %v4993
  %v5485 = vunpack.c.h.b16 %v4993
  %v5486 = vunpack.c.l.b16 %v4994
  %v5487 = vunpack.c.l.b16 %v4995
  %v5488 = vunpack.c.h.b16 %v4995
  %v5489 = vunpack.c.l.b16 %v4996
  %v5490 = vunpack.c.h.b16 %v4996
  %v5491 = vunpack.c.l.b16 %v4997
  %v5492 = vunpack.c.h.b16 %v4997
  %v5493 = vunpack.c.l.b16 %v4998
  %v5494 = vunpack.c.h.b16 %v4998
  %v5495 = vunpack.c.l.b16 %v4999
  %v5496 = vunpack.c.l.b16 %v5000
  %v5497 = vunpack.c.h.b16 %v5000
  %v5498 = vunpack.c.l.b16 %v5001
  %v5499 = vunpack.c.h.b16 %v5001
  %v5500 = vunpack.c.l.b16 %v5002
  %v5501 = vunpack.c.h.b16 %v5002
  %v5502 = vunpack.c.l.b16 %v5003
  %v5503 = vunpack.c.h.b16 %v5003
  %v5504 = vunpack.c.l.b16 %v5004
  %v5505 = vunpack.c.l.b16 %v5005
  %v5506 = vunpack.c.h.b16 %v5005
  %v5507 = vunpack.c.l.b16 %v5006
  %v5508 = vunpack.c.h.b16 %v5006
  %v5509 = vunpack.c.l.b16 %v5007
  %v5510 = vunpack.c.h.b16 %v5007
  %v5511 = vunpack.c.l.b16 %v5008
  %v5512 = vunpack.c.h.b16 %v5008
  %v5513 = vunpack.c.l.b16 %v5009
  %v5514 = vunpack.c.l.b16 %v5010
  %v5515 = vunpack.c.h.b16 %v5010
  %v5516 = vunpack.c.l.b16 %v5011
  %v5517 = vunpack.c.h.b16 %v5011
  %v5518 = vunpack.c.l.b16 %v5012
  %v5519 = vunpack.c.h.b16 %v5012
  %v5520 = vunpack.c.l.b16 %v5013
  %v5521 = vunpack.c.h.b16 %v5013
  %v5522 = vunpack.c.l.b16 %v5014
  %v5523 = vunpack.c.l.b16 %v5015
  %v5524 = vunpack.c.h.b16 %v5015
  %v5525 = vunpack.c.l.b16 %v5016
  %v5526 = vunpack.c.h.b16 %v5016
  %v5527 = vunpack.c.l.b16 %v5017
  %v5528 = vunpack.c.h.b16 %v5017
  %v5529 = vunpack.c.l.b16 %v5018
  %v5530 = vunpack.c.h.b16 %v5018
  %v5531 = vunpack.c.l.b16 %v5019
  %v5532 = vunpack.c.l.b16 %v5020
  %v5533 = vunpack.c.h.b16 %v5020
  %v5534 = vunpack.c.l.b16 %v5021
  %v5535 = vunpack.c.h.b16 %v5021
  %v5536 = vunpack.c.l.b16 %v5022
  %v5537 = vunpack.c.h.b16 %v5022
  %v5538 = vunpack.c.l.b16 %v5023
  %v5539 = vunpack.c.h.b16 %v5023
  %v5540 = vunpack.c.l.b16 %v5024
  %v5541 = vunpack.c.l.b16 %v5025
  %v5542 = vunpack.c.h.b16 %v5025
  %v5543 = vunpack.c.l.b16 %v5026
  %v5544 = vunpack.c.h.b16 %v5026
  %v5545 = vunpack.c.l.b16 %v5027
  %v5546 = vunpack.c.h.b16 %v5027
  %v5547 = vunpack.c.l.b16 %v5028
  %v5548 = vunpack.c.h.b16 %v5028
  %v5549 = vunpack.c.l.b16 %v5029
  %v5550 = vunpack.c.l.b16 %v5030
  %v5551 = vunpack.c.h.b16 %v5030
  %v5552 = vunpack.c.l.b16 %v5031
  %v5553 = vunpack.c.h.b16 %v5031
  %v5554 = vunpack.c.l.b16 %v5032
  %v5555 = vunpack.c.h.b16 %v5032
  %v5556 = vunpack.c.l.b16 %v5033
  %v5557 = vunpack.c.h.b16 %v5033
  %v5558 = vunpack.c.l.b16 %v5034
  %v5559 = vunpack.c.l.b16 %v5035
  %v5560 = vunpack.c.h.b16 %v5035
  %v5561 = vunpack.c.l.b16 %v5036
  %v5562 = vunpack.c.h.b16 %v5036
  %v5563 = vunpack.c.l.b16 %v5037
  %v5564 = vunpack.c.h.b16 %v5037
  %v5565 = vunpack.c.l.b16 %v5038
  %v5566 = vunpack.c.h.b16 %v5038
  %v5567 = vunpack.c.l.b16 %v5039
  %v5568 = vunpack.c.l.b16 %v5040
  %v5569 = vunpack.c.h.b16 %v5040
  %v5570 = vunpack.c.l.b16 %v5041
  %v5571 = vunpack.c.h.b16 %v5041
  %v5572 = vunpack.c.l.b16 %v5042
  %v5573 = vunpack.c.h.b16 %v5042
  %v5574 = vunpack.c.l.b16 %v5043
  %v5575 = vunpack.c.h.b16 %v5043
  %v5576 = vunpack.c.l.b16 %v5044
  %v5577 = vunpack.c.l.b16 %v5045
  %v5578 = vunpack.c.h.b16 %v5045
  %v5579 = vunpack.c.l.b16 %v5046
  %v5580 = vunpack.c.h.b16 %v5046
  %v5581 = vunpack.c.l.b16 %v5047
  %v5582 = vunpack.c.h.b16 %v5047
  %v5583 = vunpack.c.l.b16 %v5048
  %v5584 = vunpack.c.h.b16 %v5048
  %v5585 = vunpack.c.l.b16 %v5049
  %v5586 = vunpack.c.l.b16 %v5050
  %v5587 = vunpack.c.h.b16 %v5050
  %v5588 = vunpack.c.l.b16 %v5051
  %v5589 = vunpack.c.h.b16 %v5051
  %v5590 = vunpack.c.l.b16 %v5052
  %v5591 = vunpack.c.h.b16 %v5052
  %v5592 = vunpack.c.l.b16 %v5053
  %v5593 = vunpack.c.h.b16 %v5053
  %v5594 = vunpack.c.l.b16 %v5054
  %v5595 = vunpack.c.l.b16 %v5055
  %v5596 = vunpack.c.h.b16 %v5055
  %v5597 = vunpack.c.l.b16 %v5056
  %v5598 = vunpack.c.h.b16 %v5056
  %v5599 = vunpack.c.l.b16 %v5057
  %v5600 = vunpack.c.h.b16 %v5057
  %v5601 = vunpack.c.l.b16 %v5058
  %v5602 = vunpack.c.h.b16 %v5058
  %v5603 = vunpack.c.l.b16 %v5059
  %v5604 = vpack.c.b16 %v5388, %v5379
  %v5605 = vpack.c.b16 %v5389, %v5380
  %v5606 = vpack.c.b16 %v5390, %v5381
  %v5607 = vpack.c.b16 %v5391, %v5382
  %v5608 = vpack.c.b16 %v5392, %v5383
  %v5609 = vpack.c.b16 %v5393, %v5384
  %v5610 = vpack.c.b16 %v5394, %v5385
  %v5611 = vpack.c.b16 %v5395, %v5386
  %v5612 = vpack.c.b16 %v5396, %v5387
  %v5613 = vpack.c.b16 %v5406, %v5397
  %v5614 = vpack.c.b16 %v5407, %v5398
  %v5615 = vpack.c.b16 %v5408, %v5399
  %v5616 = vpack.c.b16 %v5409, %v5400
  %v5617 = vpack.c.b16 %v5410, %v5401
  %v5618 = vpack.c.b16 %v5411, %v5402
  %v5619 = vpack.c.b16 %v5412, %v5403
  %v5620 = vpack.c.b16 %v5413, %v5404
  %v5621 = vpack.c.b16 %v5414, %v5405
  %v5622 = vpack.c.b16 %v5424, %v5415
  %v5623 = vpack.c.b16 %v5425, %v5416
  %v5624 = vpack.c.b16 %v5426, %v5417
  %v5625 = vpack.c.b16 %v5427, %v5418
  %v5626 = vpack.c.b16 %v5428, %v5419
  %v5627 = vpack.c.b16 %v5429, %v5420
  %v5628 = vpack.c.b16 %v5430, %v5421
  %v5629 = vpack.c.b16 %v5431, %v5422
  %v5630 = vpack.c.b16 %v5432, %v5423
  %v5631 = vpack.c.b16 %v5442, %v5433
  %v5632 = vpack.c.b16 %v5443, %v5434
  %v5633 = vpack.c.b16 %v5444, %v5435
  %v5634 = vpack.c.b16 %v5445, %v5436
  %v5635 = vpack.c.b16 %v5446, %v5437
  %v5636 = vpack.c.b16 %v5447, %v5438
  %v5637 = vpack.c.b16 %v5448, %v5439
  %v5638 = vpack.c.b16 %v5449, %v5440
  %v5639 = vpack.c.b16 %v5450, %v5441
  %v5640 = vpack.c.b16 %v5460, %v5451
  %v5641 = vpack.c.b16 %v5461, %v5452
  %v5642 = vpack.c.b16 %v5462, %v5453
  %v5643 = vpack.c.b16 %v5463, %v5454
  %v5644 = vpack.c.b16 %v5464, %v5455
  %v5645 = vpack.c.b16 %v5465, %v5456
  %v5646 = vpack.c.b16 %v5466, %v5457
  %v5647 = vpack.c.b16 %v5467, %v5458
  %v5648 = vpack.c.b16 %v5468, %v5459
  %v5649 = vpack.c.b16 %v5478, %v5469
  %v5650 = vpack.c.b16 %v5479, %v5470
  %v5651 = vpack.c.b16 %v5480, %v5471
  %v5652 = vpack.c.b16 %v5481, %v5472
  %v5653 = vpack.c.b16 %v5482, %v5473
  %v5654 = vpack.c.b16 %v5483, %v5474
  %v5655 = vpack.c.b16 %v5484, %v5475
  %v5656 = vpack.c.b16 %v5485, %v5476
  %v5657 = vpack.c.b16 %v5486, %v5477
  %v5658 = vpack.c.b16 %v5496, %v5487
  %v5659 = vpack.c.b16 %v5497, %v5488
  %v5660 = vpack.c.b16 %v5498, %v5489
  %v5661 = vpack.c.b16 %v5499, %v5490
  %v5662 = vpack.c.b16 %v5500, %v5491
  %v5663 = vpack.c.b16 %v5501, %v5492
  %v5664 = vpack.c.b16 %v5502, %v5493
  %v5665 = vpack.c.b16 %v5503, %v5494
  %v5666 = vpack.c.b16 %v5504, %v5495
  %v5667 = vpack.c.b16 %v5514, %v5505
  %v5668 = vpack.c.b16 %v5515, %v5506
  %v5669 = vpack.c.b16 %v5516, %v5507
  %v5670 = vpack.c.b16 %v5517, %v5508
  %v5671 = vpack.c.b16 %v5518, %v5509
  %v5672 = vpack.c.b16 %v5519, %v5510
  %v5673 = vpack.c.b16 %v5520, %v5511
  %v5674 = vpack.c.b16 %v5521, %v5512
  %v5675 = vpack.c.b16 %v5522, %v5513
  %v5676 = vpack.c.b16 %v5532, %v5523
  %v5677 = vpack.c.b16 %v5533, %v5524
  %v5678 = vpack.c.b16 %v5534, %v5525
  %v5679 = vpack.c.b16 %v5535, %v5526
  %v5680 = vpack.c.b16 %v5536, %v5527
  %v5681 = vpack.c.b16 %v5537, %v5528
  %v5682 = vpack.c.b16 %v5538, %v5529
  %v5683 = vpack.c.b16 %v5539, %v5530
  %v5684 = vpack.c.b16 %v5540, %v5531
  %v5685 = vpack.c.b16 %v5550, %v5541
  %v5686 = vpack.c.b16 %v5551, %v5542
  %v5687 = vpack.c.b16 %v5552, %v5543
  %v5688 = vpack.c.b16 %v5553, %v5544
  %v5689 = vpack.c.b16 %v5554, %v5545
  %v5690 = vpack.c.b16 %v5555, %v5546
  %v5691 = vpack.c.b16 %v5556, %v5547
  %v5692 = vpack.c.b16 %v5557, %v5548
  %v5693 = vpack.c.b16 %v5558, %v5549
  %v5694 = vpack.c.b16 %v5568, %v5559
  %v5695 = vpack.c.b16 %v5569, %v5560
  %v5696 = vpack.c.b16 %v5570, %v5561
  %v5697 = vpack.c.b16 %v5571, %v5562
  %v5698 = vpack.c.b16 %v5572, %v5563
  %v5699 = vpack.c.b16 %v5573, %v5564
  %v5700 = vpack.c.b16 %v5574, %v5565
  %v5701 = vpack.c.b16 %v5575, %v5566
  %v5702 = vpack.c.b16 %v5576, %v5567
  %v5703 = vpack.c.b16 %v5586, %v5577
  %v5704 = vpack.c.b16 %v5587, %v5578
  %v5705 = vpack.c.b16 %v5588, %v5579
  %v5706 = vpack.c.b16 %v5589, %v5580
  %v5707 = vpack.c.b16 %v5590, %v5581
  %v5708 = vpack.c.b16 %v5591, %v5582
  %v5709 = vpack.c.b16 %v5592, %v5583
  %v5710 = vpack.c.b16 %v5593, %v5584
  %v5711 = vpack.c.b16 %v5594, %v5585
  %v5712 = vpack.c.b16 %v5595, %v5595
  %v5713 = vpack.c.b16 %v5596, %v5596
  %v5714 = vpack.c.b16 %v5597, %v5597
  %v5715 = vpack.c.b16 %v5598, %v5598
  %v5716 = vpack.c.b16 %v5599, %v5599
  %v5717 = vpack.c.b16 %v5600, %v5600
  %v5718 = vpack.c.b16 %v5601, %v5601
  %v5719 = vpack.c.b16 %v5602, %v5602
  %v5720 = vpack.c.b16 %v5603, %v5603
  %v5982 = vunpack.c.l.b16 %v5060
  %v5983 = vunpack.c.l.b16 %v5061
  %v5984 = vunpack.c.l.b16 %v5062
  %v5985 = vunpack.c.l.b16 %v5063
  %v5986 = vunpack.c.l.b16 %v5064
  %v5987 = vunpack.c.l.b16 %v5065
  %v5988 = vunpack.c.l.b16 %v5066
  %v5989 = vunpack.c.l.b16 %v5067
  %v5990 = vunpack.c.l.b16 %v5068
  %v5991 = vunpack.c.l.b16 %v5069
  %v5992 = vunpack.c.l.b16 %v5070
  %v5993 = vunpack.c.l.b16 %v5071
  %v5994 = vunpack.c.l.b16 %v5072
  %v5995 = vunpack.c.l.b16 %v5073
  %v5996 = vunpack.c.l.b16 %v5074
  %v5997 = vunpack.c.l.b16 %v5075
  %v5998 = vunpack.c.l.b16 %v5076
  %v5999 = vunpack.c.l.b16 %v5077
  %v6000 = vunpack.c.l.b16 %v5078
  %v6001 = vunpack.c.l.b16 %v5079
  %v6002 = vunpack.c.l.b16 %v5080
  %v6003 = vunpack.c.l.b16 %v5081
  %v6004 = vunpack.c.l.b16 %v5082
  %v6005 = vunpack.c.l.b16 %v5083
  %v6006 = vunpack.c.l.b16 %v5084
  %v6007 = vunpack.c.l.b16 %v5085
  %v6008 = vunpack.c.l.b16 %v5086
  %v6009 = vunpack.c.l.b16 %v5087
  %v6010 = vunpack.c.l.b16 %v5088
  %v6011 = vunpack.c.l.b16 %v5089
  %v6012 = vunpack.c.l.b16 %v5090
  %v6013 = vunpack.c.l.b16 %v5091
  %v6014 = vunpack.c.l.b16 %v5092
  %v6015 = vunpack.c.l.b16 %v5093
  %v6016 = vunpack.c.l.b16 %v5094
  %v6017 = vunpack.c.l.b16 %v5095
  %v6018 = vunpack.c.l.b16 %v5096
  %v6019 = vunpack.c.l.b16 %v5097
  %v6020 = vunpack.c.l.b16 %v5098
  %v6021 = vunpack.c.l.b16 %v5099
  %v6022 = vunpack.c.l.b16 %v5100
  %v6023 = vunpack.c.l.b16 %v5101
  %v6024 = vunpack.c.l.b16 %v5102
  %v6025 = vunpack.c.l.b16 %v5103
  %v6026 = vunpack.c.l.b16 %v5104
  %v6027 = vunpack.c.l.b16 %v5105
  %v6028 = vunpack.c.l.b16 %v5106
  %v6029 = vunpack.c.l.b16 %v5107
  %v6030 = vunpack.c.l.b16 %v5108
  %v6031 = vunpack.c.l.b16 %v5109
  %v6032 = vunpack.c.l.b16 %v5110
  %v6033 = vunpack.c.l.b16 %v5111
  %v6034 = vunpack.c.l.b16 %v5112
  %v6035 = vunpack.c.l.b16 %v5113
  %v6036 = vunpack.c.l.b16 %v5114
  %v6037 = vunpack.c.l.b16 %v5115
  %v6038 = vunpack.c.l.b16 %v5116
  %v6039 = vunpack.c.l.b16 %v5117
  %v6040 = vunpack.c.l.b16 %v5118
  %v6041 = vunpack.c.l.b16 %v5119
  %v6042 = vunpack.c.l.b16 %v5120
  %v6043 = vunpack.c.l.b16 %v5121
  %v6044 = vunpack.c.l.b16 %v5122
  %v6045 = vunpack.c.l.b16 %v5123
  %v6046 = vunpack.c.l.b16 %v5124
  %v6047 = vunpack.c.l.b16 %v5125
  %v6048 = vunpack.c.l.b16 %v5126
  %v6049 = vunpack.c.l.b16 %v5127
  %v6050 = vunpack.c.l.b16 %v5128
  %v6051 = vunpack.c.l.b16 %v5129
  %v6052 = vunpack.c.l.b16 %v5130
  %v6053 = vunpack.c.l.b16 %v5131
  %v6054 = vunpack.c.l.b16 %v5132
  %v6055 = vunpack.c.l.b16 %v5133
  %v6056 = vunpack.c.l.b16 %v5134
  %v6057 = vunpack.c.l.b16 %v5135
  %v6058 = vunpack.c.l.b16 %v5136
  %v6059 = vunpack.c.l.b16 %v5137
  %v6060 = vunpack.c.l.b16 %v5138
  %v6061 = vunpack.c.l.b16 %v5139
  %v6062 = vunpack.c.l.b16 %v5140
  %v6063 = vunpack.c.l.b16 %v5141
  %v6064 = vunpack.c.l.b16 %v5142
  %v6065 = vunpack.c.l.b16 %v5143
  %v6066 = vunpack.c.l.b16 %v5144
  %v6067 = vunpack.c.l.b16 %v5145
  %v6068 = vunpack.c.l.b16 %v5146
  %v6069 = vunpack.c.l.b16 %v5147
  %v6070 = vunpack.c.l.b16 %v5148
  %v6071 = vunpack.c.l.b16 %v5149
  %v6072 = vunpack.c.l.b16 %v5150
  %v6073 = vunpack.c.l.b16 %v5151
  %v6074 = vunpack.c.l.b16 %v5152
  %v6075 = vunpack.c.l.b16 %v5153
  %v6076 = vunpack.c.l.b16 %v5154
  %v6077 = vunpack.c.l.b16 %v5155
  %v6078 = vunpack.c.l.b16 %v5156
  %v6079 = vunpack.c.l.b16 %v5157
  %v6080 = vunpack.c.l.b16 %v5158
  %v6081 = vunpack.c.l.b16 %v5159
  %v6082 = vunpack.c.l.b16 %v5160
  %v6083 = vunpack.c.l.b16 %v5161
  %v6084 = vunpack.c.l.b16 %v5162
  %v6085 = vunpack.c.l.b16 %v5163
  %v6086 = vunpack.c.l.b16 %v5164
  %v6087 = vunpack.c.l.b16 %v5165
  %v6088 = vunpack.c.l.b16 %v5166
  %v6089 = vunpack.c.l.b16 %v5167
  %v6090 = vunpack.c.l.b16 %v5168
  %v6091 = vunpack.c.l.b16 %v5169
  %v6092 = vunpack.c.l.b16 %v5170
  %v6093 = vunpack.c.l.b16 %v5171
  %v6094 = vunpack.c.l.b16 %v5172
  %v6095 = vunpack.c.l.b16 %v5173
  %v6096 = vunpack.c.l.b16 %v5174
  %v6097 = vunpack.c.l.b16 %v5175
  %v6098 = vunpack.c.l.b16 %v5176
  %v6099 = vunpack.c.l.b16 %v5177
  %v6100 = vunpack.c.l.b16 %v5178
  %v6101 = vunpack.c.l.b16 %v5179
  %v6102 = vunpack.c.l.b16 %v5180
  %v6103 = vunpack.c.l.b16 %v5181
  %v6104 = vunpack.c.l.b16 %v5182
  %v6105 = vunpack.c.l.b16 %v5183
  %v6106 = vunpack.c.l.b16 %v5184
  %v6107 = vunpack.c.l.b16 %v5185
  %v6108 = vunpack.c.l.b16 %v5186
  %v6109 = vunpack.c.l.b16 %v5187
  %v6110 = vunpack.c.l.b16 %v5188
  %v6111 = vunpack.c.l.b16 %v5189
  %v6112 = vunpack.c.l.b16 %v5190
  %v6113 = vunpack.c.l.b16 %v5191
  %v6114 = vunpack.c.l.b16 %v5192
  %v6115 = vunpack.c.l.b16 %v5193
  %v6116 = vunpack.c.l.b16 %v5194
  %v6117 = vunpack.c.l.b16 %v5195
  %v6118 = vunpack.c.l.b16 %v5196
  %v6119 = vunpack.c.l.b16 %v5197
  %v6120 = vunpack.c.l.b16 %v5198
  %v6121 = vunpack.c.l.b16 %v5199
  %v6122 = vunpack.c.l.b16 %v5200
  %v6123 = vunpack.c.l.b16 %v5201
  %v6124 = vunpack.c.l.b16 %v5202
  %v6125 = vunpack.c.l.b16 %v5203
  %v6126 = vpack.c.b16 %v5983, %v5982
  %v6127 = vpack.c.b16 %v5985, %v5984
  %v6128 = vpack.c.b16 %v5987, %v5986
  %v6129 = vpack.c.b16 %v5989, %v5988
  %v6130 = vpack.c.b16 %v5991, %v5990
  %v6131 = vpack.c.b16 %v5993, %v5992
  %v6132 = vpack.c.b16 %v5995, %v5994
  %v6133 = vpack.c.b16 %v5997, %v5996
  %v6134 = vpack.c.b16 %v5999, %v5998
  %v6135 = vpack.c.b16 %v6001, %v6000
  %v6136 = vpack.c.b16 %v6003, %v6002
  %v6137 = vpack.c.b16 %v6005, %v6004
  %v6138 = vpack.c.b16 %v6007, %v6006
  %v6139 = vpack.c.b16 %v6009, %v6008
  %v6140 = vpack.c.b16 %v6011, %v6010
  %v6141 = vpack.c.b16 %v6013, %v6012
  %v6142 = vpack.c.b16 %v6015, %v6014
  %v6143 = vpack.c.b16 %v6017, %v6016
  %v6144 = vpack.c.b16 %v6019, %v6018
  %v6145 = vpack.c.b16 %v6021, %v6020
  %v6146 = vpack.c.b16 %v6023, %v6022
  %v6147 = vpack.c.b16 %v6025, %v6024
  %v6148 = vpack.c.b16 %v6027, %v6026
  %v6149 = vpack.c.b16 %v6029, %v6028
  %v6150 = vpack.c.b16 %v6031, %v6030
  %v6151 = vpack.c.b16 %v6033, %v6032
  %v6152 = vpack.c.b16 %v6035, %v6034
  %v6153 = vpack.c.b16 %v6037, %v6036
  %v6154 = vpack.c.b16 %v6039, %v6038
  %v6155 = vpack.c.b16 %v6041, %v6040
  %v6156 = vpack.c.b16 %v6043, %v6042
  %v6157 = vpack.c.b16 %v6045, %v6044
  %v6158 = vpack.c.b16 %v6047, %v6046
  %v6159 = vpack.c.b16 %v6049, %v6048
  %v6160 = vpack.c.b16 %v6051, %v6050
  %v6161 = vpack.c.b16 %v6053, %v6052
  %v6162 = vpack.c.b16 %v6055, %v6054
  %v6163 = vpack.c.b16 %v6057, %v6056
  %v6164 = vpack.c.b16 %v6059, %v6058
  %v6165 = vpack.c.b16 %v6061, %v6060
  %v6166 = vpack.c.b16 %v6063, %v6062
  %v6167 = vpack.c.b16 %v6065, %v6064
  %v6168 = vpack.c.b16 %v6067, %v6066
  %v6169 = vpack.c.b16 %v6069, %v6068
  %v6170 = vpack.c.b16 %v6071, %v6070
  %v6171 = vpack.c.b16 %v6073, %v6072
  %v6172 = vpack.c.b16 %v6075, %v6074
  %v6173 = vpack.c.b16 %v6077, %v6076
  %v6174 = vpack.c.b16 %v6079, %v6078
  %v6175 = vpack.c.b16 %v6081, %v6080
  %v6176 = vpack.c.b16 %v6083, %v6082
  %v6177 = vpack.c.b16 %v6085, %v6084
  %v6178 = vpack.c.b16 %v6087, %v6086
  %v6179 = vpack.c.b16 %v6089, %v6088
  %v6180 = vpack.c.b16 %v6091, %v6090
  %v6181 = vpack.c.b16 %v6093, %v6092
  %v6182 = vpack.c.b16 %v6095, %v6094
  %v6183 = vpack.c.b16 %v6097, %v6096
  %v6184 = vpack.c.b16 %v6099, %v6098
  %v6185 = vpack.c.b16 %v6101, %v6100
  %v6186 = vpack.c.b16 %v6103, %v6102
  %v6187 = vpack.c.b16 %v6105, %v6104
  %v6188 = vpack.c.b16 %v6107, %v6106
  %v6189 = vpack.c.b16 %v6109, %v6108
  %v6190 = vpack.c.b16 %v6111, %v6110
  %v6191 = vpack.c.b16 %v6113, %v6112
  %v6192 = vpack.c.b16 %v6115, %v6114
  %v6193 = vpack.c.b16 %v6117, %v6116
  %v6194 = vpack.c.b16 %v6119, %v6118
  %v6195 = vpack.c.b16 %v6121, %v6120
  %v6196 = vpack.c.b16 %v6123, %v6122
  %v6197 = vpack.c.b16 %v6125, %v6124
  %6270 = vmatprep.subr.bf16.mxu0 0
  %6271 = vmatpush1.bf16.msra.mxu0 %v6126
  %6272 = vmatprep.subr.bf16.mxu0 0
  %6273 = vmatpush1.bf16.msra.mxu0 %v6127
  %6274 = vmatprep.subr.bf16.mxu0 0
  %6275 = vmatpush1.bf16.msra.mxu0 %v6128
  %6276 = vmatprep.subr.bf16.mxu0 0
  %6277 = vmatpush1.bf16.msra.mxu0 %v6129
  %6278 = vmatprep.subr.bf16.mxu0 0
  %6279 = vmatpush1.bf16.msra.mxu0 %v6130
  %6280 = vmatprep.subr.bf16.mxu0 0
  %6281 = vmatpush1.bf16.msra.mxu0 %v6131
  %6282 = vmatprep.subr.bf16.mxu0 0
  %6283 = vmatpush1.bf16.msra.mxu0 %v6132
  %6284 = vmatprep.subr.bf16.mxu0 0
  %6285 = vmatpush1.bf16.msra.mxu0 %v6133
  %6286 = vmatprep.subr.bf16.mxu0 0
  %6287 = vmatpush1.bf16.msra.mxu0 %v6134
  %6288 = vmatprep.subr.bf16.mxu0 0
  %6289 = vmatpush1.bf16.msra.mxu0 %v6135
  %6290 = vmatprep.subr.bf16.mxu0 0
  %6291 = vmatpush1.bf16.msra.mxu0 %v6136
  %6292 = vmatprep.subr.bf16.mxu0 0
  %6293 = vmatpush1.bf16.msra.mxu0 %v6137
  %6294 = vmatprep.subr.bf16.mxu0 0
  %6295 = vmatpush1.bf16.msra.mxu0 %v6138
  %6296 = vmatprep.subr.bf16.mxu0 0
  %6297 = vmatpush1.bf16.msra.mxu0 %v6139
  %6298 = vmatprep.subr.bf16.mxu0 0
  %6299 = vmatpush1.bf16.msra.mxu0 %v6140
  %6300 = vmatprep.subr.bf16.mxu0 0
  %6301 = vmatpush1.bf16.msra.mxu0 %v6141
  %6302 = vmatprep.mubr.bf16.mxu0 %v5605
  %6303 = vmatmul.mubr.bf16.gmra.mrb[0].mxu0 %v5604
  %v6304 = vpop.f32.mrb[0].mxu0
  %v6305 = vadd.f32 %v5229, %v6304
  %v6306 = vpop.f32.mrb[0].mxu0
  %v6307 = vpop.f32.mrb[0].mxu0
  %v6308 = vadd.f32 %v5230, %v6307
  %v6309 = vpop.f32.mrb[0].mxu0
  %6310 = vmatprep.mubr.bf16.mxu0 %v5614
  %6311 = vmatmul.mubr.bf16.gmra.mrb[0].mxu0 %v5613
  %v6312 = vpop.f32.mrb[0].mxu0
  %v6313 = vadd.f32 %v5231, %v6312
  %v6314 = vpop.f32.mrb[0].mxu0
  %v6315 = vpop.f32.mrb[0].mxu0
  %v6316 = vadd.f32 %v5232, %v6315
  %v6317 = vpop.f32.mrb[0].mxu0
  %6318 = vmatprep.mubr.bf16.mxu0 %v5623
  %6319 = vmatmul.mubr.bf16.gmra.mrb[0].mxu0 %v5622
  %v6320 = vpop.f32.mrb[0].mxu0
  %v6321 = vadd.f32 %v5233, %v6320
  %v6322 = vpop.f32.mrb[0].mxu0
  %v6323 = vpop.f32.mrb[0].mxu0
  %v6324 = vadd.f32 %v5234, %v6323
  %v6325 = vpop.f32.mrb[0].mxu0
  %6326 = vmatprep.mubr.bf16.mxu0 %v5632
  %6327 = vmatmul.mubr.bf16.gmra.mrb[0].mxu0 %v5631
  %v6328 = vpop.f32.mrb[0].mxu0
  %v6329 = vadd.f32 %v5235, %v6328
  %v6330 = vpop.f32.mrb[0].mxu0
  %v6331 = vpop.f32.mrb[0].mxu0
  %v6332 = vadd.f32 %v5236, %v6331
  %v6333 = vpop.f32.mrb[0].mxu0
  %6334 = vmatprep.mubr.bf16.mxu0 %v5641
  %6335 = vmatmul.mubr.bf16.gmra.mrb[0].mxu0 %v5640
  %v6336 = vpop.f32.mrb[0].mxu0
  %v6337 = vadd.f32 %v5237, %v6336
  %v6338 = vpop.f32.mrb[0].mxu0
  %v6339 = vpop.f32.mrb[0].mxu0
  %v6340 = vadd.f32 %v5238, %v6339
  %v6341 = vpop.f32.mrb[0].mxu0
  %6342 = vmatprep.mubr.bf16.mxu0 %v5650
  %6343 = vmatmul.mubr.bf16.gmra.mrb[0].mxu0 %v5649
  %v6344 = vpop.f32.mrb[0].mxu0
  %v6345 = vadd.f32 %v5239, %v6344
  %v6346 = vpop.f32.mrb[0].mxu0
  %v6347 = vpop.f32.mrb[0].mxu0
  %v6348 = vadd.f32 %v5240, %v6347
  %v6349 = vpop.f32.mrb[0].mxu0
  %6350 = vmatprep.mubr.bf16.mxu0 %v5659
  %6351 = vmatmul.mubr.bf16.gmra.mrb[0].mxu0 %v5658
  %v6352 = vpop.f32.mrb[0].mxu0
  %v6353 = vadd.f32 %v5241, %v6352
  %v6354 = vpop.f32.mrb[0].mxu0
  %v6355 = vpop.f32.mrb[0].mxu0
  %v6356 = vadd.f32 %v5242, %v6355
  %v6357 = vpop.f32.mrb[0].mxu0
  %6358 = vmatprep.mubr.bf16.mxu0 %v5668
  %6359 = vmatmul.mubr.bf16.gmra.mrb[0].mxu0 %v5667
  %v6360 = vpop.f32.mrb[0].mxu0
  %v6361 = vadd.f32 %v5243, %v6360
  %v6362 = vpop.f32.mrb[0].mxu0
  %v6363 = vpop.f32.mrb[0].mxu0
  %v6364 = vadd.f32 %v5244, %v6363
  %v6365 = vpop.f32.mrb[0].mxu0
  %6366 = vmatprep.mubr.bf16.mxu0 %v5677
  %6367 = vmatmul.mubr.bf16.gmra.mrb[0].mxu0 %v5676
  %v6368 = vpop.f32.mrb[0].mxu0
  %v6369 = vadd.f32 %v5245, %v6368
  %v6370 = vpop.f32.mrb[0].mxu0
  %v6371 = vpop.f32.mrb[0].mxu0
  %v6372 = vadd.f32 %v5246, %v6371
  %v6373 = vpop.f32.mrb[0].mxu0
  %6374 = vmatprep.mubr.bf16.mxu0 %v5686
  %6375 = vmatmul.mubr.bf16.gmra.mrb[0].mxu0 %v5685
  %v6376 = vpop.f32.mrb[0].mxu0
  %v6377 = vadd.f32 %v5247, %v6376
  %v6378 = vpop.f32.mrb[0].mxu0
  %v6379 = vpop.f32.mrb[0].mxu0
  %v6380 = vadd.f32 %v5248, %v6379
  %v6381 = vpop.f32.mrb[0].mxu0
  %6382 = vmatprep.mubr.bf16.mxu0 %v5695
  %6383 = vmatmul.mubr.bf16.gmra.mrb[0].mxu0 %v5694
  %v6384 = vpop.f32.mrb[0].mxu0
  %v6385 = vadd.f32 %v5249, %v6384
  %v6386 = vpop.f32.mrb[0].mxu0
  %v6387 = vpop.f32.mrb[0].mxu0
  %v6388 = vadd.f32 %v5250, %v6387
  %v6389 = vpop.f32.mrb[0].mxu0
  %6390 = vmatprep.mubr.bf16.mxu0 %v5704
  %6391 = vmatmul.mubr.bf16.gmra.mrb[0].mxu0 %v5703
  %v6392 = vpop.f32.mrb[0].mxu0
  %v6393 = vadd.f32 %v5251, %v6392
  %v6394 = vpop.f32.mrb[0].mxu0
  %v6395 = vpop.f32.mrb[0].mxu0
  %v6396 = vadd.f32 %v5252, %v6395
  %v6397 = vpop.f32.mrb[0].mxu0
  %6398 = vmatprep.mubr.bf16.mxu0 %v5713
  %6399 = vmatmul.mubr.bf16.gmra.mrb[0].mxu0 %v5712
  %v6400 = vpop.f32.mrb[0].mxu0
  %v6401 = vadd.f32 %v5253, %v6400
  %v6402 = vpop.f32.mrb[0].mxu0
  %v6403 = vpop.f32.mrb[0].mxu0
  %v6404 = vpop.f32.mrb[0].mxu0
  %6405 = vdwg.mxu0
  %6406 = vmatprep.subr.bf16.mxu0 0
  %6407 = vmatpush1.bf16.msra.mxu0 %v6142
  %6408 = vmatprep.subr.bf16.mxu0 0
  %6409 = vmatpush1.bf16.msra.mxu0 %v6143
  %6410 = vmatprep.subr.bf16.mxu0 0
  %6411 = vmatpush1.bf16.msra.mxu0 %v6144
  %6412 = vmatprep.subr.bf16.mxu0 0
  %6413 = vmatpush1.bf16.msra.mxu0 %v6145
  %6414 = vmatprep.subr.bf16.mxu0 0
  %6415 = vmatpush1.bf16.msra.mxu0 %v6146
  %6416 = vmatprep.subr.bf16.mxu0 0
  %6417 = vmatpush1.bf16.msra.mxu0 %v6147
  %6418 = vmatprep.subr.bf16.mxu0 0
  %6419 = vmatpush1.bf16.msra.mxu0 %v6148
  %6420 = vmatprep.subr.bf16.mxu0 0
  %6421 = vmatpush1.bf16.msra.mxu0 %v6149
  %6422 = vmatprep.subr.bf16.mxu0 0
  %6423 = vmatpush1.bf16.msra.mxu0 %v6150
  %6424 = vmatprep.subr.bf16.mxu0 0
  %6425 = vmatpush1.bf16.msra.mxu0 %v6151
  %6426 = vmatprep.subr.bf16.mxu0 0
  %6427 = vmatpush1.bf16.msra.mxu0 %v6152
  %6428 = vmatprep.subr.bf16.mxu0 0
  %6429 = vmatpush1.bf16.msra.mxu0 %v6153
  %6430 = vmatprep.subr.bf16.mxu0 0
  %6431 = vmatpush1.bf16.msra.mxu0 %v6154
  %6432 = vmatprep.subr.bf16.mxu0 0
  %6433 = vmatpush1.bf16.msra.mxu0 %v6155
  %6434 = vmatprep.subr.bf16.mxu0 0
  %6435 = vmatpush1.bf16.msra.mxu0 %v6156
  %6436 = vmatprep.subr.bf16.mxu0 0
  %6437 = vmatpush1.bf16.msra.mxu0 %v6157
  %6438 = vmatprep.mubr.bf16.mxu0 %v5607
  %6439 = vmatmul.mubr.bf16.gmra.mrb[0].mxu0 %v5606
  %v6440 = vpop.f32.mrb[0].mxu0
  %v6441 = vadd.f32 %v6305, %v6440
  %v6442 = vpop.f32.mrb[0].mxu0
  %v6443 = vpop.f32.mrb[0].mxu0
  %v6444 = vadd.f32 %v6308, %v6443
  %v6445 = vpop.f32.mrb[0].mxu0
  %6446 = vmatprep.mubr.bf16.mxu0 %v5616
  %6447 = vmatmul.mubr.bf16.gmra.mrb[0].mxu0 %v5615
  %v6448 = vpop.f32.mrb[0].mxu0
  %v6449 = vadd.f32 %v6313, %v6448
  %v6450 = vpop.f32.mrb[0].mxu0
  %v6451 = vpop.f32.mrb[0].mxu0
  %v6452 = vadd.f32 %v6316, %v6451
  %v6453 = vpop.f32.mrb[0].mxu0
  %6454 = vmatprep.mubr.bf16.mxu0 %v5625
  %6455 = vmatmul.mubr.bf16.gmra.mrb[0].mxu0 %v5624
  %v6456 = vpop.f32.mrb[0].mxu0
  %v6457 = vadd.f32 %v6321, %v6456
  %v6458 = vpop.f32.mrb[0].mxu0
  %v6459 = vpop.f32.mrb[0].mxu0
  %v6460 = vadd.f32 %v6324, %v6459
  %v6461 = vpop.f32.mrb[0].mxu0
  %6462 = vmatprep.mubr.bf16.mxu0 %v5634
  %6463 = vmatmul.mubr.bf16.gmra.mrb[0].mxu0 %v5633
  %v6464 = vpop.f32.mrb[0].mxu0
  %v6465 = vadd.f32 %v6329, %v6464
  %v6466 = vpop.f32.mrb[0].mxu0
  %v6467 = vpop.f32.mrb[0].mxu0
  %v6468 = vadd.f32 %v6332, %v6467
  %v6469 = vpop.f32.mrb[0].mxu0
  %6470 = vmatprep.mubr.bf16.mxu0 %v5643
  %6471 = vmatmul.mubr.bf16.gmra.mrb[0].mxu0 %v5642
  %v6472 = vpop.f32.mrb[0].mxu0
  %v6473 = vadd.f32 %v6337, %v6472
  %v6474 = vpop.f32.mrb[0].mxu0
  %v6475 = vpop.f32.mrb[0].mxu0
  %v6476 = vadd.f32 %v6340, %v6475
  %v6477 = vpop.f32.mrb[0].mxu0
  %6478 = vmatprep.mubr.bf16.mxu0 %v5652
  %6479 = vmatmul.mubr.bf16.gmra.mrb[0].mxu0 %v5651
  %v6480 = vpop.f32.mrb[0].mxu0
  %v6481 = vadd.f32 %v6345, %v6480
  %v6482 = vpop.f32.mrb[0].mxu0
  %v6483 = vpop.f32.mrb[0].mxu0
  %v6484 = vadd.f32 %v6348, %v6483
  %v6485 = vpop.f32.mrb[0].mxu0
  %6486 = vmatprep.mubr.bf16.mxu0 %v5661
  %6487 = vmatmul.mubr.bf16.gmra.mrb[0].mxu0 %v5660
  %v6488 = vpop.f32.mrb[0].mxu0
  %v6489 = vadd.f32 %v6353, %v6488
  %v6490 = vpop.f32.mrb[0].mxu0
  %v6491 = vpop.f32.mrb[0].mxu0
  %v6492 = vadd.f32 %v6356, %v6491
  %v6493 = vpop.f32.mrb[0].mxu0
  %6494 = vmatprep.mubr.bf16.mxu0 %v5670
  %6495 = vmatmul.mubr.bf16.gmra.mrb[0].mxu0 %v5669
  %v6496 = vpop.f32.mrb[0].mxu0
  %v6497 = vadd.f32 %v6361, %v6496
  %v6498 = vpop.f32.mrb[0].mxu0
  %v6499 = vpop.f32.mrb[0].mxu0
  %v6500 = vadd.f32 %v6364, %v6499
  %v6501 = vpop.f32.mrb[0].mxu0
  %6502 = vmatprep.mubr.bf16.mxu0 %v5679
  %6503 = vmatmul.mubr.bf16.gmra.mrb[0].mxu0 %v5678
  %v6504 = vpop.f32.mrb[0].mxu0
  %v6505 = vadd.f32 %v6369, %v6504
  %v6506 = vpop.f32.mrb[0].mxu0
  %v6507 = vpop.f32.mrb[0].mxu0
  %v6508 = vadd.f32 %v6372, %v6507
  %v6509 = vpop.f32.mrb[0].mxu0
  %6510 = vmatprep.mubr.bf16.mxu0 %v5688
  %6511 = vmatmul.mubr.bf16.gmra.mrb[0].mxu0 %v5687
  %v6512 = vpop.f32.mrb[0].mxu0
  %v6513 = vadd.f32 %v6377, %v6512
  %v6514 = vpop.f32.mrb[0].mxu0
  %v6515 = vpop.f32.mrb[0].mxu0
  %v6516 = vadd.f32 %v6380, %v6515
  %v6517 = vpop.f32.mrb[0].mxu0
  %6518 = vmatprep.mubr.bf16.mxu0 %v5697
  %6519 = vmatmul.mubr.bf16.gmra.mrb[0].mxu0 %v5696
  %v6520 = vpop.f32.mrb[0].mxu0
  %v6521 = vadd.f32 %v6385, %v6520
  %v6522 = vpop.f32.mrb[0].mxu0
  %v6523 = vpop.f32.mrb[0].mxu0
  %v6524 = vadd.f32 %v6388, %v6523
  %v6525 = vpop.f32.mrb[0].mxu0
  %6526 = vmatprep.mubr.bf16.mxu0 %v5706
  %6527 = vmatmul.mubr.bf16.gmra.mrb[0].mxu0 %v5705
  %v6528 = vpop.f32.mrb[0].mxu0
  %v6529 = vadd.f32 %v6393, %v6528
  %v6530 = vpop.f32.mrb[0].mxu0
  %v6531 = vpop.f32.mrb[0].mxu0
  %v6532 = vadd.f32 %v6396, %v6531
  %v6533 = vpop.f32.mrb[0].mxu0
  %6534 = vmatprep.mubr.bf16.mxu0 %v5715
  %6535 = vmatmul.mubr.bf16.gmra.mrb[0].mxu0 %v5714
  %v6536 = vpop.f32.mrb[0].mxu0
  %v6537 = vadd.f32 %v6401, %v6536
  %v6538 = vpop.f32.mrb[0].mxu0
  %v6539 = vpop.f32.mrb[0].mxu0
  %v6540 = vpop.f32.mrb[0].mxu0
  %6541 = vdwg.mxu0
  %6542 = vmatprep.subr.bf16.mxu0 0
  %6543 = vmatpush1.bf16.msra.mxu0 %v6158
  %6544 = vmatprep.subr.bf16.mxu0 0
  %6545 = vmatpush1.bf16.msra.mxu0 %v6159
  %6546 = vmatprep.subr.bf16.mxu0 0
  %6547 = vmatpush1.bf16.msra.mxu0 %v6160
  %6548 = vmatprep.subr.bf16.mxu0 0
  %6549 = vmatpush1.bf16.msra.mxu0 %v6161
  %6550 = vmatprep.subr.bf16.mxu0 0
  %6551 = vmatpush1.bf16.msra.mxu0 %v6162
  %6552 = vmatprep.subr.bf16.mxu0 0
  %6553 = vmatpush1.bf16.msra.mxu0 %v6163
  %6554 = vmatprep.subr.bf16.mxu0 0
  %6555 = vmatpush1.bf16.msra.mxu0 %v6164
  %6556 = vmatprep.subr.bf16.mxu0 0
  %6557 = vmatpush1.bf16.msra.mxu0 %v6165
  %6558 = vmatprep.subr.bf16.mxu0 0
  %6559 = vmatpush1.bf16.msra.mxu0 %v6166
  %6560 = vmatprep.subr.bf16.mxu0 0
  %6561 = vmatpush1.bf16.msra.mxu0 %v6167
  %6562 = vmatprep.subr.bf16.mxu0 0
  %6563 = vmatpush1.bf16.msra.mxu0 %v6168
  %6564 = vmatprep.subr.bf16.mxu0 0
  %6565 = vmatpush1.bf16.msra.mxu0 %v6169
  %6566 = vmatprep.subr.bf16.mxu0 0
  %6567 = vmatpush1.bf16.msra.mxu0 %v6170
  %6568 = vmatprep.subr.bf16.mxu0 0
  %6569 = vmatpush1.bf16.msra.mxu0 %v6171
  %6570 = vmatprep.subr.bf16.mxu0 0
  %6571 = vmatpush1.bf16.msra.mxu0 %v6172
  %6572 = vmatprep.subr.bf16.mxu0 0
  %6573 = vmatpush1.bf16.msra.mxu0 %v6173
  %6574 = vmatprep.mubr.bf16.mxu0 %v5609
  %6575 = vmatmul.mubr.bf16.gmra.mrb[0].mxu0 %v5608
  %v6576 = vpop.f32.mrb[0].mxu0
  %v6577 = vadd.f32 %v6441, %v6576
  %v6578 = vpop.f32.mrb[0].mxu0
  %v6579 = vpop.f32.mrb[0].mxu0
  %v6580 = vadd.f32 %v6444, %v6579
  %v6581 = vpop.f32.mrb[0].mxu0
  %6582 = vmatprep.mubr.bf16.mxu0 %v5618
  %6583 = vmatmul.mubr.bf16.gmra.mrb[0].mxu0 %v5617
  %v6584 = vpop.f32.mrb[0].mxu0
  %v6585 = vadd.f32 %v6449, %v6584
  %v6586 = vpop.f32.mrb[0].mxu0
  %v6587 = vpop.f32.mrb[0].mxu0
  %v6588 = vadd.f32 %v6452, %v6587
  %v6589 = vpop.f32.mrb[0].mxu0
  %6590 = vmatprep.mubr.bf16.mxu0 %v5627
  %6591 = vmatmul.mubr.bf16.gmra.mrb[0].mxu0 %v5626
  %v6592 = vpop.f32.mrb[0].mxu0
  %v6593 = vadd.f32 %v6457, %v6592
  %v6594 = vpop.f32.mrb[0].mxu0
  %v6595 = vpop.f32.mrb[0].mxu0
  %v6596 = vadd.f32 %v6460, %v6595
  %v6597 = vpop.f32.mrb[0].mxu0
  %6598 = vmatprep.mubr.bf16.mxu0 %v5636
  %6599 = vmatmul.mubr.bf16.gmra.mrb[0].mxu0 %v5635
  %v6600 = vpop.f32.mrb[0].mxu0
  %v6601 = vadd.f32 %v6465, %v6600
  %v6602 = vpop.f32.mrb[0].mxu0
  %v6603 = vpop.f32.mrb[0].mxu0
  %v6604 = vadd.f32 %v6468, %v6603
  %v6605 = vpop.f32.mrb[0].mxu0
  %6606 = vmatprep.mubr.bf16.mxu0 %v5645
  %6607 = vmatmul.mubr.bf16.gmra.mrb[0].mxu0 %v5644
  %v6608 = vpop.f32.mrb[0].mxu0
  %v6609 = vadd.f32 %v6473, %v6608
  %v6610 = vpop.f32.mrb[0].mxu0
  %v6611 = vpop.f32.mrb[0].mxu0
  %v6612 = vadd.f32 %v6476, %v6611
  %v6613 = vpop.f32.mrb[0].mxu0
  %6614 = vmatprep.mubr.bf16.mxu0 %v5654
  %6615 = vmatmul.mubr.bf16.gmra.mrb[0].mxu0 %v5653
  %v6616 = vpop.f32.mrb[0].mxu0
  %v6617 = vadd.f32 %v6481, %v6616
  %v6618 = vpop.f32.mrb[0].mxu0
  %v6619 = vpop.f32.mrb[0].mxu0
  %v6620 = vadd.f32 %v6484, %v6619
  %v6621 = vpop.f32.mrb[0].mxu0
  %6622 = vmatprep.mubr.bf16.mxu0 %v5663
  %6623 = vmatmul.mubr.bf16.gmra.mrb[0].mxu0 %v5662
  %v6624 = vpop.f32.mrb[0].mxu0
  %v6625 = vadd.f32 %v6489, %v6624
  %v6626 = vpop.f32.mrb[0].mxu0
  %v6627 = vpop.f32.mrb[0].mxu0
  %v6628 = vadd.f32 %v6492, %v6627
  %v6629 = vpop.f32.mrb[0].mxu0
  %6630 = vmatprep.mubr.bf16.mxu0 %v5672
  %6631 = vmatmul.mubr.bf16.gmra.mrb[0].mxu0 %v5671
  %v6632 = vpop.f32.mrb[0].mxu0
  %v6633 = vadd.f32 %v6497, %v6632
  %v6634 = vpop.f32.mrb[0].mxu0
  %v6635 = vpop.f32.mrb[0].mxu0
  %v6636 = vadd.f32 %v6500, %v6635
  %v6637 = vpop.f32.mrb[0].mxu0
  %6638 = vmatprep.mubr.bf16.mxu0 %v5681
  %6639 = vmatmul.mubr.bf16.gmra.mrb[0].mxu0 %v5680
  %v6640 = vpop.f32.mrb[0].mxu0
  %v6641 = vadd.f32 %v6505, %v6640
  %v6642 = vpop.f32.mrb[0].mxu0
  %v6643 = vpop.f32.mrb[0].mxu0
  %v6644 = vadd.f32 %v6508, %v6643
  %v6645 = vpop.f32.mrb[0].mxu0
  %6646 = vmatprep.mubr.bf16.mxu0 %v5690
  %6647 = vmatmul.mubr.bf16.gmra.mrb[0].mxu0 %v5689
  %v6648 = vpop.f32.mrb[0].mxu0
  %v6649 = vadd.f32 %v6513, %v6648
  %v6650 = vpop.f32.mrb[0].mxu0
  %v6651 = vpop.f32.mrb[0].mxu0
  %v6652 = vadd.f32 %v6516, %v6651
  %v6653 = vpop.f32.mrb[0].mxu0
  %6654 = vmatprep.mubr.bf16.mxu0 %v5699
  %6655 = vmatmul.mubr.bf16.gmra.mrb[0].mxu0 %v5698
  %v6656 = vpop.f32.mrb[0].mxu0
  %v6657 = vadd.f32 %v6521, %v6656
  %v6658 = vpop.f32.mrb[0].mxu0
  %v6659 = vpop.f32.mrb[0].mxu0
  %v6660 = vadd.f32 %v6524, %v6659
  %v6661 = vpop.f32.mrb[0].mxu0
  %6662 = vmatprep.mubr.bf16.mxu0 %v5708
  %6663 = vmatmul.mubr.bf16.gmra.mrb[0].mxu0 %v5707
  %v6664 = vpop.f32.mrb[0].mxu0
  %v6665 = vadd.f32 %v6529, %v6664
  %v6666 = vpop.f32.mrb[0].mxu0
  %v6667 = vpop.f32.mrb[0].mxu0
  %v6668 = vadd.f32 %v6532, %v6667
  %v6669 = vpop.f32.mrb[0].mxu0
  %6670 = vmatprep.mubr.bf16.mxu0 %v5717
  %6671 = vmatmul.mubr.bf16.gmra.mrb[0].mxu0 %v5716
  %v6672 = vpop.f32.mrb[0].mxu0
  %v6673 = vadd.f32 %v6537, %v6672
  %v6674 = vpop.f32.mrb[0].mxu0
  %v6675 = vpop.f32.mrb[0].mxu0
  %v6676 = vpop.f32.mrb[0].mxu0
  %6677 = vdwg.mxu0
  %6678 = vmatprep.subr.bf16.mxu0 0
  %6679 = vmatpush1.bf16.msra.mxu0 %v6174
  %6680 = vmatprep.subr.bf16.mxu0 0
  %6681 = vmatpush1.bf16.msra.mxu0 %v6175
  %6682 = vmatprep.subr.bf16.mxu0 0
  %6683 = vmatpush1.bf16.msra.mxu0 %v6176
  %6684 = vmatprep.subr.bf16.mxu0 0
  %6685 = vmatpush1.bf16.msra.mxu0 %v6177
  %6686 = vmatprep.subr.bf16.mxu0 0
  %6687 = vmatpush1.bf16.msra.mxu0 %v6178
  %6688 = vmatprep.subr.bf16.mxu0 0
  %6689 = vmatpush1.bf16.msra.mxu0 %v6179
  %6690 = vmatprep.subr.bf16.mxu0 0
  %6691 = vmatpush1.bf16.msra.mxu0 %v6180
  %6692 = vmatprep.subr.bf16.mxu0 0
  %6693 = vmatpush1.bf16.msra.mxu0 %v6181
  %6694 = vmatprep.subr.bf16.mxu0 0
  %6695 = vmatpush1.bf16.msra.mxu0 %v6182
  %6696 = vmatprep.subr.bf16.mxu0 0
  %6697 = vmatpush1.bf16.msra.mxu0 %v6183
  %6698 = vmatprep.subr.bf16.mxu0 0
  %6699 = vmatpush1.bf16.msra.mxu0 %v6184
  %6700 = vmatprep.subr.bf16.mxu0 0
  %6701 = vmatpush1.bf16.msra.mxu0 %v6185
  %6702 = vmatprep.subr.bf16.mxu0 0
  %6703 = vmatpush1.bf16.msra.mxu0 %v6186
  %6704 = vmatprep.subr.bf16.mxu0 0
  %6705 = vmatpush1.bf16.msra.mxu0 %v6187
  %6706 = vmatprep.subr.bf16.mxu0 0
  %6707 = vmatpush1.bf16.msra.mxu0 %v6188
  %6708 = vmatprep.subr.bf16.mxu0 0
  %6709 = vmatpush1.bf16.msra.mxu0 %v6189
  %6710 = vmatprep.mubr.bf16.mxu0 %v5611
  %6711 = vmatmul.mubr.bf16.gmra.mrb[0].mxu0 %v5610
  %v6712 = vpop.f32.mrb[0].mxu0
  %v6713 = vadd.f32 %v6577, %v6712
  %v6714 = vpop.f32.mrb[0].mxu0
  %v6715 = vpop.f32.mrb[0].mxu0
  %v6716 = vadd.f32 %v6580, %v6715
  %v6717 = vpop.f32.mrb[0].mxu0
  %6718 = vmatprep.mubr.bf16.mxu0 %v5620
  %6719 = vmatmul.mubr.bf16.gmra.mrb[0].mxu0 %v5619
  %v6720 = vpop.f32.mrb[0].mxu0
  %v6721 = vadd.f32 %v6585, %v6720
  %v6722 = vpop.f32.mrb[0].mxu0
  %v6723 = vpop.f32.mrb[0].mxu0
  %v6724 = vadd.f32 %v6588, %v6723
  %v6725 = vpop.f32.mrb[0].mxu0
  %6726 = vmatprep.mubr.bf16.mxu0 %v5629
  %6727 = vmatmul.mubr.bf16.gmra.mrb[0].mxu0 %v5628
  %v6728 = vpop.f32.mrb[0].mxu0
  %v6729 = vadd.f32 %v6593, %v6728
  %v6730 = vpop.f32.mrb[0].mxu0
  %v6731 = vpop.f32.mrb[0].mxu0
  %v6732 = vadd.f32 %v6596, %v6731
  %v6733 = vpop.f32.mrb[0].mxu0
  %6734 = vmatprep.mubr.bf16.mxu0 %v5638
  %6735 = vmatmul.mubr.bf16.gmra.mrb[0].mxu0 %v5637
  %v6736 = vpop.f32.mrb[0].mxu0
  %v6737 = vadd.f32 %v6601, %v6736
  %v6738 = vpop.f32.mrb[0].mxu0
  %v6739 = vpop.f32.mrb[0].mxu0
  %v6740 = vadd.f32 %v6604, %v6739
  %v6741 = vpop.f32.mrb[0].mxu0
  %6742 = vmatprep.mubr.bf16.mxu0 %v5647
  %6743 = vmatmul.mubr.bf16.gmra.mrb[0].mxu0 %v5646
  %v6744 = vpop.f32.mrb[0].mxu0
  %v6745 = vadd.f32 %v6609, %v6744
  %v6746 = vpop.f32.mrb[0].mxu0
  %v6747 = vpop.f32.mrb[0].mxu0
  %v6748 = vadd.f32 %v6612, %v6747
  %v6749 = vpop.f32.mrb[0].mxu0
  %6750 = vmatprep.mubr.bf16.mxu0 %v5656
  %6751 = vmatmul.mubr.bf16.gmra.mrb[0].mxu0 %v5655
  %v6752 = vpop.f32.mrb[0].mxu0
  %v6753 = vadd.f32 %v6617, %v6752
  %v6754 = vpop.f32.mrb[0].mxu0
  %v6755 = vpop.f32.mrb[0].mxu0
  %v6756 = vadd.f32 %v6620, %v6755
  %v6757 = vpop.f32.mrb[0].mxu0
  %6758 = vmatprep.mubr.bf16.mxu0 %v5665
  %6759 = vmatmul.mubr.bf16.gmra.mrb[0].mxu0 %v5664
  %v6760 = vpop.f32.mrb[0].mxu0
  %v6761 = vadd.f32 %v6625, %v6760
  %v6762 = vpop.f32.mrb[0].mxu0
  %v6763 = vpop.f32.mrb[0].mxu0
  %v6764 = vadd.f32 %v6628, %v6763
  %v6765 = vpop.f32.mrb[0].mxu0
  %6766 = vmatprep.mubr.bf16.mxu0 %v5674
  %6767 = vmatmul.mubr.bf16.gmra.mrb[0].mxu0 %v5673
  %v6768 = vpop.f32.mrb[0].mxu0
  %v6769 = vadd.f32 %v6633, %v6768
  %v6770 = vpop.f32.mrb[0].mxu0
  %v6771 = vpop.f32.mrb[0].mxu0
  %v6772 = vadd.f32 %v6636, %v6771
  %v6773 = vpop.f32.mrb[0].mxu0
  %6774 = vmatprep.mubr.bf16.mxu0 %v5683
  %6775 = vmatmul.mubr.bf16.gmra.mrb[0].mxu0 %v5682
  %v6776 = vpop.f32.mrb[0].mxu0
  %v6777 = vadd.f32 %v6641, %v6776
  %v6778 = vpop.f32.mrb[0].mxu0
  %v6779 = vpop.f32.mrb[0].mxu0
  %v6780 = vadd.f32 %v6644, %v6779
  %v6781 = vpop.f32.mrb[0].mxu0
  %6782 = vmatprep.mubr.bf16.mxu0 %v5692
  %6783 = vmatmul.mubr.bf16.gmra.mrb[0].mxu0 %v5691
  %v6784 = vpop.f32.mrb[0].mxu0
  %v6785 = vadd.f32 %v6649, %v6784
  %v6786 = vpop.f32.mrb[0].mxu0
  %v6787 = vpop.f32.mrb[0].mxu0
  %v6788 = vadd.f32 %v6652, %v6787
  %v6789 = vpop.f32.mrb[0].mxu0
  %6790 = vmatprep.mubr.bf16.mxu0 %v5701
  %6791 = vmatmul.mubr.bf16.gmra.mrb[0].mxu0 %v5700
  %v6792 = vpop.f32.mrb[0].mxu0
  %v6793 = vadd.f32 %v6657, %v6792
  %v6794 = vpop.f32.mrb[0].mxu0
  %v6795 = vpop.f32.mrb[0].mxu0
  %v6796 = vadd.f32 %v6660, %v6795
  %v6797 = vpop.f32.mrb[0].mxu0
  %6798 = vmatprep.mubr.bf16.mxu0 %v5710
  %6799 = vmatmul.mubr.bf16.gmra.mrb[0].mxu0 %v5709
  %v6800 = vpop.f32.mrb[0].mxu0
  %v6801 = vadd.f32 %v6665, %v6800
  %v6802 = vpop.f32.mrb[0].mxu0
  %v6803 = vpop.f32.mrb[0].mxu0
  %v6804 = vadd.f32 %v6668, %v6803
  %v6805 = vpop.f32.mrb[0].mxu0
  %6806 = vmatprep.mubr.bf16.mxu0 %v5719
  %6807 = vmatmul.mubr.bf16.gmra.mrb[0].mxu0 %v5718
  %v6808 = vpop.f32.mrb[0].mxu0
  %v6809 = vadd.f32 %v6673, %v6808
  %v6810 = vpop.f32.mrb[0].mxu0
  %v6811 = vpop.f32.mrb[0].mxu0
  %v6812 = vpop.f32.mrb[0].mxu0
  %6813 = vdwg.mxu0
  %6814 = vmatprep.subr.bf16.mxu0 0
  %6815 = vmatpush1.bf16.msra.mxu0 %v6190
  %6816 = vmatprep.subr.bf16.mxu0 0
  %6817 = vmatpush1.bf16.msra.mxu0 %v6191
  %6818 = vmatprep.subr.bf16.mxu0 0
  %6819 = vmatpush1.bf16.msra.mxu0 %v6192
  %6820 = vmatprep.subr.bf16.mxu0 0
  %6821 = vmatpush1.bf16.msra.mxu0 %v6193
  %6822 = vmatprep.subr.bf16.mxu0 0
  %6823 = vmatpush1.bf16.msra.mxu0 %v6194
  %6824 = vmatprep.subr.bf16.mxu0 0
  %6825 = vmatpush1.bf16.msra.mxu0 %v6195
  %6826 = vmatprep.subr.bf16.mxu0 0
  %6827 = vmatpush1.bf16.msra.mxu0 %v6196
  %6828 = vmatprep.subr.bf16.mxu0 0
  %6829 = vmatpush1.bf16.msra.mxu0 %v6197
  %6830 = vmatprep.subr.bf16.mxu0 0
  %6831 = vmatpush1.bf16.msra.mxu0 0
  %6832 = vmatprep.subr.bf16.mxu0 0
  %6833 = vmatpush1.bf16.msra.mxu0 0
  %6834 = vmatprep.subr.bf16.mxu0 0
  %6835 = vmatpush1.bf16.msra.mxu0 0
  %6836 = vmatprep.subr.bf16.mxu0 0
  %6837 = vmatpush1.bf16.msra.mxu0 0
  %6838 = vmatprep.subr.bf16.mxu0 0
  %6839 = vmatpush1.bf16.msra.mxu0 0
  %6840 = vmatprep.subr.bf16.mxu0 0
  %6841 = vmatpush1.bf16.msra.mxu0 0
  %6842 = vmatprep.subr.bf16.mxu0 0
  %6843 = vmatpush1.bf16.msra.mxu0 0
  %6844 = vmatprep.subr.bf16.mxu0 0
  %6845 = vmatpush1.bf16.msra.mxu0 0
  %6846 = vmatprep.mubr.bf16.mxu0 0
  %6847 = vmatmul.mubr.bf16.gmra.mrb[0].mxu0 %v5612
  %v6848 = vpop.f32.mrb[0].mxu0
  %v6849 = vadd.f32 %v6713, %v6848
  %v6850 = vpop.f32.mrb[0].mxu0
  %v6851 = vpop.f32.mrb[0].mxu0
  %v6852 = vadd.f32 %v6716, %v6851
  %v6853 = vpop.f32.mrb[0].mxu0
  %6854 = vmatprep.mubr.bf16.mxu0 0
  %6855 = vmatmul.mubr.bf16.gmra.mrb[0].mxu0 %v5621
  %v6856 = vpop.f32.mrb[0].mxu0
  %v6857 = vadd.f32 %v6721, %v6856
  %v6858 = vpop.f32.mrb[0].mxu0
  %v6859 = vpop.f32.mrb[0].mxu0
  %v6860 = vadd.f32 %v6724, %v6859
  %v6861 = vpop.f32.mrb[0].mxu0
  %6862 = vmatprep.mubr.bf16.mxu0 0
  %6863 = vmatmul.mubr.bf16.gmra.mrb[0].mxu0 %v5630
  %v6864 = vpop.f32.mrb[0].mxu0
  %v6865 = vadd.f32 %v6729, %v6864
  %v6866 = vpop.f32.mrb[0].mxu0
  %v6867 = vpop.f32.mrb[0].mxu0
  %v6868 = vadd.f32 %v6732, %v6867
  %v6869 = vpop.f32.mrb[0].mxu0
  %6870 = vmatprep.mubr.bf16.mxu0 0
  %6871 = vmatmul.mubr.bf16.gmra.mrb[0].mxu0 %v5639
  %v6872 = vpop.f32.mrb[0].mxu0
  %v6873 = vadd.f32 %v6737, %v6872
  %v6874 = vpop.f32.mrb[0].mxu0
  %v6875 = vpop.f32.mrb[0].mxu0
  %v6876 = vadd.f32 %v6740, %v6875
  %v6877 = vpop.f32.mrb[0].mxu0
  %6878 = vmatprep.mubr.bf16.mxu0 0
  %6879 = vmatmul.mubr.bf16.gmra.mrb[0].mxu0 %v5648
  %v6880 = vpop.f32.mrb[0].mxu0
  %v6881 = vadd.f32 %v6745, %v6880
  %v6882 = vpop.f32.mrb[0].mxu0
  %v6883 = vpop.f32.mrb[0].mxu0
  %v6884 = vadd.f32 %v6748, %v6883
  %v6885 = vpop.f32.mrb[0].mxu0
  %6886 = vmatprep.mubr.bf16.mxu0 0
  %6887 = vmatmul.mubr.bf16.gmra.mrb[0].mxu0 %v5657
  %v6888 = vpop.f32.mrb[0].mxu0
  %v6889 = vadd.f32 %v6753, %v6888
  %v6890 = vpop.f32.mrb[0].mxu0
  %v6891 = vpop.f32.mrb[0].mxu0
  %v6892 = vadd.f32 %v6756, %v6891
  %v6893 = vpop.f32.mrb[0].mxu0
  %6894 = vmatprep.mubr.bf16.mxu0 0
  %6895 = vmatmul.mubr.bf16.gmra.mrb[0].mxu0 %v5666
  %v6896 = vpop.f32.mrb[0].mxu0
  %v6897 = vadd.f32 %v6761, %v6896
  %v6898 = vpop.f32.mrb[0].mxu0
  %v6899 = vpop.f32.mrb[0].mxu0
  %v6900 = vadd.f32 %v6764, %v6899
  %v6901 = vpop.f32.mrb[0].mxu0
  %6902 = vmatprep.mubr.bf16.mxu0 0
  %6903 = vmatmul.mubr.bf16.gmra.mrb[0].mxu0 %v5675
  %v6904 = vpop.f32.mrb[0].mxu0
  %v6905 = vadd.f32 %v6769, %v6904
  %v6906 = vpop.f32.mrb[0].mxu0
  %v6907 = vpop.f32.mrb[0].mxu0
  %v6908 = vadd.f32 %v6772, %v6907
  %v6909 = vpop.f32.mrb[0].mxu0
  %6910 = vmatprep.mubr.bf16.mxu0 0
  %6911 = vmatmul.mubr.bf16.gmra.mrb[0].mxu0 %v5684
  %v6912 = vpop.f32.mrb[0].mxu0
  %v6913 = vadd.f32 %v6777, %v6912
  %v6914 = vpop.f32.mrb[0].mxu0
  %v6915 = vpop.f32.mrb[0].mxu0
  %v6916 = vadd.f32 %v6780, %v6915
  %v6917 = vpop.f32.mrb[0].mxu0
  %6918 = vmatprep.mubr.bf16.mxu0 0
  %6919 = vmatmul.mubr.bf16.gmra.mrb[0].mxu0 %v5693
  %v6920 = vpop.f32.mrb[0].mxu0
  %v6921 = vadd.f32 %v6785, %v6920
  %v6922 = vpop.f32.mrb[0].mxu0
  %v6923 = vpop.f32.mrb[0].mxu0
  %v6924 = vadd.f32 %v6788, %v6923
  %v6925 = vpop.f32.mrb[0].mxu0
  %6926 = vmatprep.mubr.bf16.mxu0 0
  %6927 = vmatmul.mubr.bf16.gmra.mrb[0].mxu0 %v5702
  %v6928 = vpop.f32.mrb[0].mxu0
  %v6929 = vadd.f32 %v6793, %v6928
  %v6930 = vpop.f32.mrb[0].mxu0
  %v6931 = vpop.f32.mrb[0].mxu0
  %v6932 = vadd.f32 %v6796, %v6931
  %v6933 = vpop.f32.mrb[0].mxu0
  %6934 = vmatprep.mubr.bf16.mxu0 0
  %6935 = vmatmul.mubr.bf16.gmra.mrb[0].mxu0 %v5711
  %v6936 = vpop.f32.mrb[0].mxu0
  %v6937 = vadd.f32 %v6801, %v6936
  %v6938 = vpop.f32.mrb[0].mxu0
  %v6939 = vpop.f32.mrb[0].mxu0
  %v6940 = vadd.f32 %v6804, %v6939
  %v6941 = vpop.f32.mrb[0].mxu0
  %6942 = vmatprep.mubr.bf16.mxu0 0
  %6943 = vmatmul.mubr.bf16.gmra.mrb[0].mxu0 %v5720
  %v6944 = vpop.f32.mrb[0].mxu0
  %v6945 = vadd.f32 %v6809, %v6944
  %v6946 = vpop.f32.mrb[0].mxu0
  %v6947 = vpop.f32.mrb[0].mxu0
  %v6948 = vpop.f32.mrb[0].mxu0
  %6949 = vdwg.mxu0
  %v6950 = vld [vmem:[%s2] sm:$0xff]
  %v6951 = vld [vmem:[%s2 + $0x8] sm:$0xff]
  %v6952 = vld [vmem:[%s2 + $0x10] sm:$0xff]
  %v6953 = vld [vmem:[%s2 + $0x18] sm:$0xff]
  %v6954 = vld [vmem:[%s2 + $0x20] sm:$0xff]
  %v6955 = vld [vmem:[%s2 + $0x28] sm:$0xff]
  %v6956 = vld [vmem:[%s2 + $0x30] sm:$0xff]
  %v6957 = vld [vmem:[%s2 + $0x38] sm:$0xff]
  %v6958 = vld [vmem:[%s2 + $0x40] sm:$0xff]
  %v6959 = vld [vmem:[%s2 + $0x48] sm:$0xff]
  %v6960 = vld [vmem:[%s2 + $0x50] sm:$0xff]
  %v6961 = vld [vmem:[%s2 + $0x58] sm:$0xff]
  %v6962 = vld [vmem:[%s2 + $0x60] sm:$0xff]
  %v6963 = vld [vmem:[%s2 + $0x68] sm:$0xff]
  %v6964 = vld [vmem:[%s2 + $0x70] sm:$0xff]
  %v6965 = vld [vmem:[%s2 + $0x78] sm:$0xff]
  %v6966 = vld [vmem:[%s2 + $0x80] sm:$0xff]
  %v6967 = vld [vmem:[%s2 + $0x88] sm:$0xff]
  %v6968 = vld [vmem:[%s2 + $0x90] sm:$0xff]
  %v6969 = vld [vmem:[%s2 + $0x98] sm:$0xff]
  %v6970 = vld [vmem:[%s2 + $0xa0] sm:$0xff]
  %v6971 = vld [vmem:[%s2 + $0xa8] sm:$0xff]
  %v6972 = vld [vmem:[%s2 + $0xb0] sm:$0xff]
  %v6973 = vld [vmem:[%s2 + $0xb8] sm:$0xff]
  %v6974 = vld [vmem:[%s2 + $0xc0] sm:$0xff]
  %6976 = vset.pattern.permute.xlu0 0
  %6977 = vperm.xlu0 %6976, %v6950
  %v6978 = vpop.permute.xlu0 %6977
  %6981 = vset.pattern.permute.xlu0 0
  %6982 = vperm.xlu0 %6981, %v6951
  %v6983 = vpop.permute.xlu0 %6982
  %6986 = vset.pattern.permute.xlu0 0
  %6987 = vperm.xlu0 %6986, %v6952
  %v6988 = vpop.permute.xlu0 %6987
  %6991 = vset.pattern.permute.xlu0 0
  %6992 = vperm.xlu0 %6991, %v6953
  %v6993 = vpop.permute.xlu0 %6992
  %6996 = vset.pattern.permute.xlu0 0
  %6997 = vperm.xlu0 %6996, %v6954
  %v6998 = vpop.permute.xlu0 %6997
  %7001 = vset.pattern.permute.xlu0 0
  %7002 = vperm.xlu0 %7001, %v6955
  %v7003 = vpop.permute.xlu0 %7002
  %7006 = vset.pattern.permute.xlu0 0
  %7007 = vperm.xlu0 %7006, %v6956
  %v7008 = vpop.permute.xlu0 %7007
  %7011 = vset.pattern.permute.xlu0 0
  %7012 = vperm.xlu0 %7011, %v6957
  %v7013 = vpop.permute.xlu0 %7012
  %7016 = vset.pattern.permute.xlu0 0
  %7017 = vperm.xlu0 %7016, %v6958
  %v7018 = vpop.permute.xlu0 %7017
  %7021 = vset.pattern.permute.xlu0 0
  %7022 = vperm.xlu0 %7021, %v6959
  %v7023 = vpop.permute.xlu0 %7022
  %7026 = vset.pattern.permute.xlu0 0
  %7027 = vperm.xlu0 %7026, %v6960
  %v7028 = vpop.permute.xlu0 %7027
  %7031 = vset.pattern.permute.xlu0 0
  %7032 = vperm.xlu0 %7031, %v6961
  %v7033 = vpop.permute.xlu0 %7032
  %7036 = vset.pattern.permute.xlu0 0
  %7037 = vperm.xlu0 %7036, %v6962
  %v7038 = vpop.permute.xlu0 %7037
  %7041 = vset.pattern.permute.xlu0 0
  %7042 = vperm.xlu0 %7041, %v6963
  %v7043 = vpop.permute.xlu0 %7042
  %7046 = vset.pattern.permute.xlu0 0
  %7047 = vperm.xlu0 %7046, %v6964
  %v7048 = vpop.permute.xlu0 %7047
  %7051 = vset.pattern.permute.xlu0 0
  %7052 = vperm.xlu0 %7051, %v6965
  %v7053 = vpop.permute.xlu0 %7052
  %7056 = vset.pattern.permute.xlu0 0
  %7057 = vperm.xlu0 %7056, %v6966
  %v7058 = vpop.permute.xlu0 %7057
  %7061 = vset.pattern.permute.xlu0 0
  %7062 = vperm.xlu0 %7061, %v6967
  %v7063 = vpop.permute.xlu0 %7062
  %7066 = vset.pattern.permute.xlu0 0
  %7067 = vperm.xlu0 %7066, %v6968
  %v7068 = vpop.permute.xlu0 %7067
  %7071 = vset.pattern.permute.xlu0 0
  %7072 = vperm.xlu0 %7071, %v6969
  %v7073 = vpop.permute.xlu0 %7072
  %7076 = vset.pattern.permute.xlu0 0
  %7077 = vperm.xlu0 %7076, %v6970
  %v7078 = vpop.permute.xlu0 %7077
  %7081 = vset.pattern.permute.xlu0 0
  %7082 = vperm.xlu0 %7081, %v6971
  %v7083 = vpop.permute.xlu0 %7082
  %7086 = vset.pattern.permute.xlu0 0
  %7087 = vperm.xlu0 %7086, %v6972
  %v7088 = vpop.permute.xlu0 %7087
  %7091 = vset.pattern.permute.xlu0 0
  %7092 = vperm.xlu0 %7091, %v6973
  %v7093 = vpop.permute.xlu0 %7092
  %7096 = vset.pattern.permute.xlu0 0
  %7097 = vperm.xlu0 %7096, %v6974
  %v7098 = vpop.permute.xlu0 %7097
  %v7100 = vmul.f32 %v6849, %v6978
  %v7101 = vmul.f32 %v6852, %v6983
  %v7102 = vmul.f32 %v6857, %v6988
  %v7103 = vmul.f32 %v6860, %v6993
  %v7104 = vmul.f32 %v6865, %v6998
  %v7105 = vmul.f32 %v6868, %v7003
  %v7106 = vmul.f32 %v6873, %v7008
  %v7107 = vmul.f32 %v6876, %v7013
  %v7108 = vmul.f32 %v6881, %v7018
  %v7109 = vmul.f32 %v6884, %v7023
  %v7110 = vmul.f32 %v6889, %v7028
  %v7111 = vmul.f32 %v6892, %v7033
  %v7112 = vmul.f32 %v6897, %v7038
  %v7113 = vmul.f32 %v6900, %v7043
  %v7114 = vmul.f32 %v6905, %v7048
  %v7115 = vmul.f32 %v6908, %v7053
  %v7116 = vmul.f32 %v6913, %v7058
  %v7117 = vmul.f32 %v6916, %v7063
  %v7118 = vmul.f32 %v6921, %v7068
  %v7119 = vmul.f32 %v6924, %v7073
  %v7120 = vmul.f32 %v6929, %v7078
  %v7121 = vmul.f32 %v6932, %v7083
  %v7122 = vmul.f32 %v6937, %v7088
  %v7123 = vmul.f32 %v6940, %v7093
  %v7124 = vmul.f32 %v6945, %v7098
  %v7125 = vadd.f32 %v7100, %v7101
  %v7126 = vadd.f32 %v7125, %v7102
  %v7127 = vadd.f32 %v7126, %v7103
  %v7128 = vadd.f32 %v7127, %v7104
  %v7129 = vadd.f32 %v7128, %v7105
  %v7130 = vadd.f32 %v7129, %v7106
  %v7131 = vadd.f32 %v7130, %v7107
  %v7132 = vadd.f32 %v7131, %v7108
  %v7133 = vadd.f32 %v7132, %v7109
  %v7134 = vadd.f32 %v7133, %v7110
  %v7135 = vadd.f32 %v7134, %v7111
  %v7136 = vadd.f32 %v7135, %v7112
  %v7137 = vadd.f32 %v7136, %v7113
  %v7138 = vadd.f32 %v7137, %v7114
  %v7139 = vadd.f32 %v7138, %v7115
  %v7140 = vadd.f32 %v7139, %v7116
  %v7141 = vadd.f32 %v7140, %v7117
  %v7142 = vadd.f32 %v7141, %v7118
  %v7143 = vadd.f32 %v7142, %v7119
  %v7144 = vadd.f32 %v7143, %v7120
  %v7145 = vadd.f32 %v7144, %v7121
  %v7146 = vadd.f32 %v7145, %v7122
  %v7147 = vadd.f32 %v7146, %v7123
  %v7148 = vadd.f32 %v7147, %v7124
  %v7149 = vrot.slane %v7148, 4
  %v7150 = vadd.f32 %v7148, %v7149
  %v7151 = vrot.slane %v7150, 2
  %v7152 = vadd.f32 %v7150, %v7151
  %v7153 = vrot.slane %v7152, 1
  %v7154 = vadd.f32 %v7152, %v7153
  %v7155 = vmul.f32 %v7100, %v7100
  %v7156 = vmul.f32 %v7101, %v7101
  %v7157 = vmul.f32 %v7102, %v7102
  %v7158 = vmul.f32 %v7103, %v7103
  %v7159 = vmul.f32 %v7104, %v7104
  %v7160 = vmul.f32 %v7105, %v7105
  %v7161 = vmul.f32 %v7106, %v7106
  %v7162 = vmul.f32 %v7107, %v7107
  %v7163 = vmul.f32 %v7108, %v7108
  %v7164 = vmul.f32 %v7109, %v7109
  %v7165 = vmul.f32 %v7110, %v7110
  %v7166 = vmul.f32 %v7111, %v7111
  %v7167 = vmul.f32 %v7112, %v7112
  %v7168 = vmul.f32 %v7113, %v7113
  %v7169 = vmul.f32 %v7114, %v7114
  %v7170 = vmul.f32 %v7115, %v7115
  %v7171 = vmul.f32 %v7116, %v7116
  %v7172 = vmul.f32 %v7117, %v7117
  %v7173 = vmul.f32 %v7118, %v7118
  %v7174 = vmul.f32 %v7119, %v7119
  %v7175 = vmul.f32 %v7120, %v7120
  %v7176 = vmul.f32 %v7121, %v7121
  %v7177 = vmul.f32 %v7122, %v7122
  %v7178 = vmul.f32 %v7123, %v7123
  %v7179 = vmul.f32 %v7124, %v7124
  %v7180 = vadd.f32 %v7155, %v7156
  %v7181 = vadd.f32 %v7180, %v7157
  %v7182 = vadd.f32 %v7181, %v7158
  %v7183 = vadd.f32 %v7182, %v7159
  %v7184 = vadd.f32 %v7183, %v7160
  %v7185 = vadd.f32 %v7184, %v7161
  %v7186 = vadd.f32 %v7185, %v7162
  %v7187 = vadd.f32 %v7186, %v7163
  %v7188 = vadd.f32 %v7187, %v7164
  %v7189 = vadd.f32 %v7188, %v7165
  %v7190 = vadd.f32 %v7189, %v7166
  %v7191 = vadd.f32 %v7190, %v7167
  %v7192 = vadd.f32 %v7191, %v7168
  %v7193 = vadd.f32 %v7192, %v7169
  %v7194 = vadd.f32 %v7193, %v7170
  %v7195 = vadd.f32 %v7194, %v7171
  %v7196 = vadd.f32 %v7195, %v7172
  %v7197 = vadd.f32 %v7196, %v7173
  %v7198 = vadd.f32 %v7197, %v7174
  %v7199 = vadd.f32 %v7198, %v7175
  %v7200 = vadd.f32 %v7199, %v7176
  %v7201 = vadd.f32 %v7200, %v7177
  %v7202 = vadd.f32 %v7201, %v7178
  %v7203 = vadd.f32 %v7202, %v7179
  %v7204 = vrot.slane %v7203, 4
  %v7205 = vadd.f32 %v7203, %v7204
  %v7206 = vrot.slane %v7205, 2
  %v7207 = vadd.f32 %v7205, %v7206
  %v7208 = vrot.slane %v7207, 1
  %v7209 = vadd.f32 %v7207, %v7208
  %vm7210 = vcmask 1040384
  %v7211 = vsel %vm7210, %v7154, %v7209
  %7212 = vst [vmem:[%s5] sm:$0x3] %v7211
  %v7213 = vpack.c.bf16 %v6852, %v6849
  %v7214 = vpack.c.bf16 %v6860, %v6857
  %v7215 = vpack.c.bf16 %v6868, %v6865
  %v7216 = vpack.c.bf16 %v6876, %v6873
  %v7217 = vpack.c.bf16 %v6884, %v6881
  %v7218 = vpack.c.bf16 %v6892, %v6889
  %v7219 = vpack.c.bf16 %v6900, %v6897
  %v7220 = vpack.c.bf16 %v6908, %v6905
  %v7221 = vpack.c.bf16 %v6916, %v6913
  %v7222 = vpack.c.bf16 %v6924, %v6921
  %v7223 = vpack.c.bf16 %v6932, %v6929
  %v7224 = vpack.c.bf16 %v6940, %v6937
  %v7225 = vpack.c.bf16 %v6945, %v6945
  %v7239 = vunpack.c.l.b16 %v7213
  %v7240 = vunpack.c.h.b16 %v7213
  %v7241 = vunpack.c.l.b16 %v7214
  %v7242 = vunpack.c.h.b16 %v7214
  %v7243 = vunpack.c.l.b16 %v7215
  %v7244 = vunpack.c.h.b16 %v7215
  %v7245 = vunpack.c.l.b16 %v7216
  %v7246 = vunpack.c.h.b16 %v7216
  %v7247 = vunpack.c.l.b16 %v7217
  %v7248 = vunpack.c.h.b16 %v7217
  %v7249 = vunpack.c.l.b16 %v7218
  %v7250 = vunpack.c.h.b16 %v7218
  %v7251 = vunpack.c.l.b16 %v7219
  %v7252 = vunpack.c.h.b16 %v7219
  %v7253 = vunpack.c.l.b16 %v7220
  %v7254 = vunpack.c.h.b16 %v7220
  %v7255 = vunpack.c.l.b16 %v7221
  %v7256 = vunpack.c.h.b16 %v7221
  %v7257 = vunpack.c.l.b16 %v7222
  %v7258 = vunpack.c.h.b16 %v7222
  %v7259 = vunpack.c.l.b16 %v7223
  %v7260 = vunpack.c.h.b16 %v7223
  %v7261 = vunpack.c.l.b16 %v7224
  %v7262 = vunpack.c.h.b16 %v7224
  %v7263 = vunpack.c.l.b16 %v7225
  %v7264 = vpack.c.b16 %v7239, %v7239
  %v7265 = vpack.c.b16 %v7240, %v7240
  %v7266 = vpack.c.b16 %v7241, %v7241
  %v7267 = vpack.c.b16 %v7242, %v7242
  %v7268 = vpack.c.b16 %v7243, %v7243
  %v7269 = vpack.c.b16 %v7244, %v7244
  %v7270 = vpack.c.b16 %v7245, %v7245
  %v7271 = vpack.c.b16 %v7246, %v7246
  %v7272 = vpack.c.b16 %v7247, %v7247
  %v7273 = vpack.c.b16 %v7248, %v7248
  %v7274 = vpack.c.b16 %v7249, %v7249
  %v7275 = vpack.c.b16 %v7250, %v7250
  %v7276 = vpack.c.b16 %v7251, %v7251
  %v7277 = vpack.c.b16 %v7252, %v7252
  %v7278 = vpack.c.b16 %v7253, %v7253
  %v7279 = vpack.c.b16 %v7254, %v7254
  %v7280 = vpack.c.b16 %v7255, %v7255
  %v7281 = vpack.c.b16 %v7256, %v7256
  %v7282 = vpack.c.b16 %v7257, %v7257
  %v7283 = vpack.c.b16 %v7258, %v7258
  %v7284 = vpack.c.b16 %v7259, %v7259
  %v7285 = vpack.c.b16 %v7260, %v7260
  %v7286 = vpack.c.b16 %v7261, %v7261
  %v7287 = vpack.c.b16 %v7262, %v7262
  %v7288 = vpack.c.b16 %v7263, %v7263
  %7314 = vst [vmem:[%s4] sm:$0xf] %v7264
  %7315 = vst [vmem:[%s4 + $0x4] sm:$0xf] %v7265
  %7316 = vst [vmem:[%s4 + $0x8] sm:$0xf] %v7266
  %7317 = vst [vmem:[%s4 + $0xc] sm:$0xf] %v7267
  %7318 = vst [vmem:[%s4 + $0x10] sm:$0xf] %v7268
  %7319 = vst [vmem:[%s4 + $0x14] sm:$0xf] %v7269
  %7320 = vst [vmem:[%s4 + $0x18] sm:$0xf] %v7270
  %7321 = vst [vmem:[%s4 + $0x1c] sm:$0xf] %v7271
  %7322 = vst [vmem:[%s4 + $0x20] sm:$0xf] %v7272
  %7323 = vst [vmem:[%s4 + $0x24] sm:$0xf] %v7273
  %7324 = vst [vmem:[%s4 + $0x28] sm:$0xf] %v7274
  %7325 = vst [vmem:[%s4 + $0x2c] sm:$0xf] %v7275
  %7326 = vst [vmem:[%s4 + $0x30] sm:$0xf] %v7276
  %7327 = vst [vmem:[%s4 + $0x34] sm:$0xf] %v7277
  %7328 = vst [vmem:[%s4 + $0x38] sm:$0xf] %v7278
  %7329 = vst [vmem:[%s4 + $0x3c] sm:$0xf] %v7279
  %7330 = vst [vmem:[%s4 + $0x40] sm:$0xf] %v7280
  %7331 = vst [vmem:[%s4 + $0x44] sm:$0xf] %v7281
  %7332 = vst [vmem:[%s4 + $0x48] sm:$0xf] %v7282
  %7333 = vst [vmem:[%s4 + $0x4c] sm:$0xf] %v7283
  %7334 = vst [vmem:[%s4 + $0x50] sm:$0xf] %v7284
  %7335 = vst [vmem:[%s4 + $0x54] sm:$0xf] %v7285
  %7336 = vst [vmem:[%s4 + $0x58] sm:$0xf] %v7286
  %7337 = vst [vmem:[%s4 + $0x5c] sm:$0xf] %v7287
  %7338 = vst [vmem:[%s4 + $0x60] sm:$0xf] %v7288
  // Predicated region
  $region136: #{residual_block_forward.8} parent=0 // pred_check
    _
  $region137: #{residual_block_forward.8} parent=0 // pred_check_branch
    %7340 = sbr.rel (0) target = $region139
  $region138: #{residual_block_forward.8} parent=0 // pred_region
    _
  $region139: #{residual_block_forward.8} parent=0 // pred_fallthru
    _
  // Predicated region
  $region140: #{residual_block_forward.8} parent=0 // pred_check
    _
  $region141: #{residual_block_forward.8} parent=0 // pred_check_branch
    %7342 = sbr.rel (0) target = $region143
  $region142: #{residual_block_forward.8} parent=0 // pred_region
    _
  $region143: #{residual_block_forward.8} parent=0 // pred_fallthru
    _
  // Predicated region
  $region144: #{residual_block_forward.8} parent=0 // pred_check
    _
  $region145: #{residual_block_forward.8} parent=0 // pred_check_branch
    %7344 = sbr.rel (0) target = $region147
  $region146: #{residual_block_forward.8} parent=0 // pred_region
    _
  $region147: #{residual_block_forward.8} parent=0 // pred_fallthru
    _
  // Predicated region
  $region148: #{residual_block_forward.8} parent=0 // pred_check
    _
  $region149: #{residual_block_forward.8} parent=0 // pred_check_branch
    %7346 = sbr.rel (0) target = $region151
  $region150: #{residual_block_forward.8} parent=0 // pred_region
    _
  $region151: #{residual_block_forward.8} parent=0 // pred_fallthru
    _
  %7347 = vsyncmov [#allocation5]
  %s7348 = vpop.sfrf %7347
  %p7349 = scmp.eq.s32.totalorder %s7348, 0
  %p7350 = pneg %p7349
  %7352 = shalt.err (%p7350)
  %s7353 = scalar_lea.sflag [#allocation5], 1
  %7354 = vsyncmov %s7353
  %s7355 = vpop.sfrf %7354
  %p7356 = scmp.eq.s32.totalorder %s7355, 0
  %p7357 = pneg %p7356
  %7359 = shalt.err (%p7357)

</llo_original>
